<compile_context>
chip_gen: v5e
topology: v5e:2x2
jax: 0.10.0
libtpu: 0.0.40
codegen_flags: <defaults>
</compile_context>

<pallas_src>
import functools

import jax
import jax.numpy as jnp
import numpy as np
from jax import lax
from jax.experimental import pallas as pl
from jax.experimental.pallas import tpu as pltpu

EPS = 1e-5  # PyTorch BatchNorm2d default eps


# ---------------------------------------------------------------------------
# Pass 1: 3x3 conv (register-resident sub-tiles) + per-image channel stats.
# ---------------------------------------------------------------------------
def _conv_stats_kernel(x_ref, w_ref, y_ref, stats_ref, sum_sc, sq_sc,
                       *, sub_rows, sub_cols, ksize):
    # x_ref    : (1, Cin, H+2, W+2)  whole padded image (bf16 or f32)
    # w_ref    : (KH*KW*Cin, Cout)   f32 weights in SMEM (scalar reads)
    # y_ref    : (1, Cout, TH, W)    conv output row tile (bf16 or f32)
    # stats_ref: (1, Cout, 2)        per-image [sum, sumsq] f32, written at last r
    # sum_sc/sq_sc: (Cout, W)        f32 accumulators, persist across row tiles
    _, Cin, _, _ = x_ref.shape
    _, Cout, TH, W = y_ref.shape
    KH, KW = ksize
    n_taps = KH * KW * Cin

    r = pl.program_id(1)

    @pl.when(r == 0)
    def _init():
        sum_sc[...] = jnp.zeros_like(sum_sc)
        sq_sc[...] = jnp.zeros_like(sq_sc)

    row_base = r * TH  # top output row of this tile (== its top padded halo row)

    @pl.loop(0, TH // sub_rows)
    def _row_block(s):
        row0 = row_base + s * sub_rows
        for c in range(W // sub_cols):
            col0 = c * sub_cols
            # 27 taps restricted to this (sub_rows, sub_cols) sub-tile; each is
            # ~1 vreg, so taps + one accumulator stay register-resident.
            taps = []
            for dkh in range(KH):
                for dkw in range(KW):
                    for ci in range(Cin):
                        taps.append(
                            x_ref[0, ci, pl.ds(row0 + dkh, sub_rows),
                                  col0 + dkw:col0 + dkw + sub_cols
                                  ].astype(jnp.float32))
            # Tap order k = (kh*KW + kw)*Cin + ci matches w_hwio.reshape(27, Cout).
            for co in range(Cout):
                acc = taps[0] * w_ref[0, co]
                for k in range(1, n_taps):
                    acc = acc + taps[k] * w_ref[k, co]
                y_ref[0, co, pl.ds(s * sub_rows, sub_rows),
                      col0:col0 + sub_cols] = acc.astype(y_ref.dtype)
                # Stats from the f32 in-register acc (XLU reduce + VPU add);
                # accumulated directly into the scratch rows (no concat).
                sum_sc[co:co + 1, col0:col0 + sub_cols] += jnp.sum(
                    acc, axis=0, keepdims=True)
                sq_sc[co:co + 1, col0:col0 + sub_cols] += jnp.sum(
                    acc * acc, axis=0, keepdims=True)

    @pl.when(r == pl.num_programs(1) - 1)
    def _finalize():
        stats_ref[0, :, 0:1] = jnp.sum(sum_sc[...], axis=1, keepdims=True)
        stats_ref[0, :, 1:2] = jnp.sum(sq_sc[...], axis=1, keepdims=True)


# ---------------------------------------------------------------------------
# Pass 2: folded BatchNorm affine + ReLU (layout-agnostic, per-channel FMA+max).
# ---------------------------------------------------------------------------
def _bn_relu_kernel(y_ref, scale_ref, shift_ref, o_ref):
    # y_ref/o_ref: (1, Cout, rows, cols); scale/shift: (Cout,) SMEM scalars.
    Cout = y_ref.shape[1]
    for co in range(Cout):
        yv = y_ref[0, co].astype(jnp.float32)
        o_ref[0, co] = jnp.maximum(
            yv * scale_ref[co] + shift_ref[co], 0.0).astype(o_ref.dtype)


# ---------------------------------------------------------------------------
# Generation-aware sizing helpers.
# ---------------------------------------------------------------------------
def _vmem_limit_bytes():
    try:
        cap = int(pltpu.get_tpu_info().vmem_capacity_bytes)
    except Exception:
        cap = 64 * 1024 * 1024  # conservative (v7x-sized) fallback
    # ~48 MiB on 64 MiB-VMEM parts, capped at 96 MiB on 128 MiB parts.
    return min((cap * 3) // 4, 96 * 1024 * 1024)


def _pick_row_tile(H, W, Cin, Cout, in_bytes, y_bytes, budget):
    """Largest row tile (divisor of H, multiple of 16 or == H) fitting budget."""
    def step_bytes(th):
        x_blk = Cin * (H + 2) * max(W + 2, 128) * in_bytes   # whole padded image
        y_blk = Cout * th * max(W, 128) * y_bytes
        scratch = 2 * Cout * max(W, 128) * 4
        return 2 * (x_blk + y_blk) + scratch                 # double-buffered
    cands = [H] + [t for t in (256, 128, 64, 32, 16) if t < H and H % t == 0]
    for th in cands:
        if step_bytes(th) <= budget:
            return th
    return cands[-1]


def _pick_flat_tile(rows, bytes_per_row, budget):
    """Pass-2 flat-row tile: whole image unless it blows the VMEM budget."""
    t = rows
    while t % 16 == 0 and t * bytes_per_row > budget:
        t //= 2
    return t


# ---------------------------------------------------------------------------
# Forward wrapper.
# ---------------------------------------------------------------------------
def base_layer_forward(x_nchw, w_hwio, bias, gamma, beta,
                       conv_input_dtype=jnp.bfloat16, y_dtype=None,
                       out_dtype=jnp.float32):
    """Forward of BaseLayer with cfg['bn'] == True.  Input/output are NCHW."""
    # Conv bias is mathematically cancelled by train-mode BN mean subtraction,
    # so it is accepted for API parity but never touched by the kernels.
    del bias
    N, Cin, H, W = x_nchw.shape
    KH, KW, _, Cout = w_hwio.shape
    assert (KH, KW) == (3, 3)
    assert H % 8 == 0, "row sub-tiling assumes H % 8 == 0"
    if y_dtype is None:
        y_dtype = conv_input_dtype   # bf16 intermediate when inputs are bf16
    Hp, Wp = H + 2, W + 2

    vmem_limit = _vmem_limit_bytes()
    budget = vmem_limit // 2                       # headroom for the pipeline
    in_bytes = jnp.dtype(conv_input_dtype).itemsize
    y_bytes = jnp.dtype(y_dtype).itemsize
    out_bytes = jnp.dtype(out_dtype).itemsize

    TH = _pick_row_tile(H, W, Cin, Cout, in_bytes, y_bytes, budget)
    R = H // TH
    SUB_ROWS = 8
    SUB_COLS = W if W <= 128 else (128 if W % 128 == 0 else W)
    # TODO(synk): ragged W > 128 (not a multiple of 128) falls back to full-width
    # sub-tiles and may spill; add column-halo sub-tiling if such shapes matter.

    # Single padded input (no KH-stacked copy); pad is on 3 channels only.
    xp = jnp.pad(x_nchw, ((0, 0), (0, 0), (1, 1), (1, 1))).astype(conv_input_dtype)
    wmat = w_hwio.reshape(KH * KW * Cin, Cout).astype(jnp.float32)

    conv_kernel = functools.partial(
        _conv_stats_kernel, sub_rows=SUB_ROWS, sub_cols=SUB_COLS, ksize=(KH, KW))

    # ---- pass 1: conv + per-image per-channel sum / sumsq ----
    y, stats = pl.pallas_call(
        conv_kernel,
        grid=(N, R),
        in_specs=(
            pl.BlockSpec((1, Cin, Hp, Wp), lambda n, r: (n, 0, 0, 0)),
            pl.BlockSpec((KH * KW * Cin, Cout), lambda n, r: (0, 0),
                         memory_space=pltpu.MemorySpace.SMEM),
        ),
        out_specs=(
            pl.BlockSpec((1, Cout, TH, W), lambda n, r: (n, 0, r, 0)),
            pl.BlockSpec((1, Cout, 2), lambda n, r: (n, 0, 0)),
        ),
        out_shape=(
            jax.ShapeDtypeStruct((N, Cout, H, W), y_dtype),
            jax.ShapeDtypeStruct((N, Cout, 2), jnp.float32),
        ),
        scratch_shapes=[pltpu.VMEM((Cout, W), jnp.float32),
                        pltpu.VMEM((Cout, W), jnp.float32)],
        compiler_params=pltpu.CompilerParams(
            dimension_semantics=("parallel", "arbitrary"),
            vmem_limit_bytes=vmem_limit),
    )(xp, wmat)

    # ---- tiny combine (16 channels) + fold BN into scale/shift (plain JAX) ----
    count = float(N * H * W)
    ch_sum = jnp.sum(stats[:, :, 0], axis=0)
    ch_sq = jnp.sum(stats[:, :, 1], axis=0)
    mean = ch_sum / count
    var = jnp.maximum(ch_sq / count - mean * mean, 0.0)  # biased (train-mode)
    # TODO(synk): E[x^2]-mean^2 can cancel for very large counts / strongly
    # non-zero-mean activations; switch to mean-shifted partials if needed.
    scale = gamma.astype(jnp.float32) * lax.rsqrt(var + EPS)
    shift = beta.astype(jnp.float32) - mean * scale

    # ---- pass 2: y * scale + shift, ReLU (lane-dense flat view when possible) --
    use_flat = (H * W) % 128 == 0
    if use_flat:
        rows2 = (H * W) // 128
        bytes_per_row = 2 * Cout * 128 * (y_bytes + out_bytes)  # dbl-buffered y+o
        T2 = _pick_flat_tile(rows2, bytes_per_row, budget)
        R2 = rows2 // T2
        y2 = y.reshape(N, Cout, rows2, 128)        # free (row-major) reshape
        blk2 = (1, Cout, T2, 128)
        out_shape2 = jax.ShapeDtypeStruct((N, Cout, rows2, 128), out_dtype)
    else:
        T2, R2 = TH, R
        y2 = y
        blk2 = (1, Cout, TH, W)
        out_shape2 = jax.ShapeDtypeStruct((N, Cout, H, W), out_dtype)

    alias = ({0: 0} if jnp.dtype(y_dtype) == jnp.dtype(out_dtype) else {})
    out = pl.pallas_call(
        _bn_relu_kernel,
        grid=(N, R2),
        in_specs=(
            pl.BlockSpec(blk2, lambda n, r: (n, 0, r, 0)),
            pl.BlockSpec((Cout,), lambda n, r: (0,),
                         memory_space=pltpu.MemorySpace.SMEM),
            pl.BlockSpec((Cout,), lambda n, r: (0,),
                         memory_space=pltpu.MemorySpace.SMEM),
        ),
        out_specs=pl.BlockSpec(blk2, lambda n, r: (n, 0, r, 0)),
        out_shape=out_shape2,
        input_output_aliases=alias,
        compiler_params=pltpu.CompilerParams(
            dimension_semantics=("parallel", "parallel"),
            vmem_limit_bytes=vmem_limit),
    )(y2, scale, shift)

    if use_flat:
        out = out.reshape(N, Cout, H, W)
    return out  # NCHW


# ---------------------------------------------------------------------------
# Pure-JAX reference matching PyTorch BaseLayer.forward (train-mode BN).
# ---------------------------------------------------------------------------
def reference_forward(x_nchw, w_hwio, bias, gamma, beta):
    x = jnp.transpose(x_nchw, (0, 2, 3, 1))
    y = lax.conv_general_dilated(
        x, w_hwio, window_strides=(1, 1), padding=((1, 1), (1, 1)),
        dimension_numbers=('NHWC', 'HWIO', 'NHWC'))
    y = y + bias[None, None, None, :]
    mean = jnp.mean(y, axis=(0, 1, 2), keepdims=True)
    var = jnp.mean(jnp.square(y - mean), axis=(0, 1, 2), keepdims=True)
    y = (y - mean) * lax.rsqrt(var + EPS)
    y = y * gamma[None, None, None, :] + beta[None, None, None, :]
    y = jnp.maximum(y, 0.0)
    return jnp.transpose(y, (0, 3, 1, 2))


if __name__ == "__main__":
    key = jax.random.PRNGKey(0)
    kx, kw, kb, kg, kbt = jax.random.split(key, 5)

    # Small shapes consistent with the module (Cin must be 3, Cout is 16).
    N, Cin, H, W = 2, 3, 32, 32
    Cout, KH, KW = 16, 3, 3

    x = jax.random.normal(kx, (N, Cin, H, W), dtype=jnp.float32)

    # Conv2d(3, 16, 3, stride=1, padding=1) parameters (deterministic init).
    w_hwio = jax.random.normal(kw, (KH, KW, Cin, Cout), dtype=jnp.float32) * 0.1
    bias = jax.random.normal(kb, (Cout,), dtype=jnp.float32) * 0.1

    # BatchNorm2d(16) affine params (non-trivial for a stronger check).
    gamma = 1.0 + 0.1 * jax.random.normal(kg, (Cout,), dtype=jnp.float32)
    beta = 0.1 * jax.random.normal(kbt, (Cout,), dtype=jnp.float32)

    ref = reference_forward(x, w_hwio, bias, gamma, beta)

    # f32 path: conv inputs, intermediate y and output all f32.
    out_f32 = jax.block_until_ready(
        base_layer_forward(x, w_hwio, bias, gamma, beta,
                           conv_input_dtype=jnp.float32))
    assert out_f32.shape == (N, Cout, H, W), out_f32.shape
    np.testing.assert_allclose(np.asarray(out_f32), np.asarray(ref),
                               rtol=2e-3, atol=2e-3)

    # bf16 path (default): bf16 conv-input stream + bf16 y intermediate;
    # accumulation and BN math stay f32.
    out_bf16 = jax.block_until_ready(
        base_layer_forward(x, w_hwio, bias, gamma, beta,
                           conv_input_dtype=jnp.bfloat16))
    np.testing.assert_allclose(np.asarray(out_bf16), np.asarray(ref),
                               rtol=3e-2, atol=3e-2)

    print("KERNEL_OK")
</pallas_src>

<mosaic_0001>
module attributes {stable_mosaic.version = 11 : i64} {
  func.func @_conv_stats_kernel(%arg0: i32, %arg1: i32, %arg2: memref<1x3x34x34xf32, #tpu.memory_space<vmem>>, %arg3: memref<27x16xf32, #tpu.memory_space<smem>>, %arg4: memref<1x16x32x32xf32, #tpu.memory_space<vmem>>, %arg5: memref<1x16x2xf32, #tpu.memory_space<vmem>>, %arg6: memref<16x32xf32, #tpu.memory_space<vmem>>, %arg7: memref<16x32xf32, #tpu.memory_space<vmem>>) attributes {dimension_semantics = [#tpu.dimension_semantics<parallel>, #tpu.dimension_semantics<arbitrary>], iteration_bounds = array<i64: 2, 1>, scalar_prefetch = 0 : i64, scratch_operands = 2 : i64, tpu.core_type = #tpu.core_type<tc>, window_params = [{transform_indices = @transform_0, window_bounds = array<i64: 1, 3, 34, 34>}, {transform_indices = @transform_1, window_bounds = array<i64: 27, 16>}, {transform_indices = @transform_2, window_bounds = array<i64: 1, 16, 32, 32>}, {transform_indices = @transform_3, window_bounds = array<i64: 1, 16, 2>}]} {
    %c0_i32 = arith.constant 0 : i32
    %0 = arith.cmpi eq, %arg1, %c0_i32 : i32
    %1 = arith.extui %0 : i1 to i32
    %c0_i32_0 = arith.constant 0 : i32
    %2 = arith.cmpi ne, %1, %c0_i32_0 : i32
    scf.if %2 {
      %cst = arith.constant 0.000000e+00 : f32
      %8 = vector.broadcast %cst : f32 to vector<16x32xf32>
      %c0 = arith.constant 0 : index
      %c0_5 = arith.constant 0 : index
      %9 = vector.load %arg6[%c0, %c0_5] : memref<16x32xf32, #tpu.memory_space<vmem>>, vector<16x32xf32>
      tpu.vector_store %arg6[%c0, %c0_5], %8 {strides = array<i32>} : memref<16x32xf32, #tpu.memory_space<vmem>>, vector<16x32xf32>,
      %cst_6 = arith.constant 0.000000e+00 : f32
      %10 = vector.broadcast %cst_6 : f32 to vector<16x32xf32>
      %c0_7 = arith.constant 0 : index
      %c0_8 = arith.constant 0 : index
      %11 = vector.load %arg7[%c0_7, %c0_8] : memref<16x32xf32, #tpu.memory_space<vmem>>, vector<16x32xf32>
      tpu.vector_store %arg7[%c0_7, %c0_8], %10 {strides = array<i32>} : memref<16x32xf32, #tpu.memory_space<vmem>>, vector<16x32xf32>,
    } else {
    }
    %c32_i32 = arith.constant 32 : i32
    %3 = arith.muli %arg1, %c32_i32 : i32
    %c0_i32_1 = arith.constant 0 : i32
    %c4_i32 = arith.constant 4 : i32
    %4 = arith.addi %c0_i32_1, %c4_i32 : i32
    %c1_i32 = arith.constant 1 : i32
    scf.for %arg8 = %c0_i32_1 to %4 step %c1_i32  : i32 {
      %c1_i32_5 = arith.constant 1 : i32
      %8 = arith.muli %arg8, %c1_i32_5 : i32
      %c0_i32_6 = arith.constant 0 : i32
      %9 = arith.addi %c0_i32_6, %8 : i32
      %c8_i32 = arith.constant 8 : i32
      %10 = arith.muli %9, %c8_i32 : i32
      %11 = arith.addi %3, %10 : i32
      %c0_i32_7 = arith.constant 0 : i32
      %12 = arith.addi %11, %c0_i32_7 : i32
      %c0 = arith.constant 0 : index
      %c0_8 = arith.constant 0 : index
      %13 = arith.index_cast %12 : i32 to index
      %c0_9 = arith.constant 0 : index
      %14 = vector.load %arg2[%c0, %c0_8, %13, %c0_9] : memref<1x3x34x34xf32, #tpu.memory_space<vmem>>, vector<1x1x8x32xf32>
      %15 = vector.shape_cast %14 : vector<1x1x8x32xf32> to vector<8x32xf32>
      %c0_i32_10 = arith.constant 0 : i32
      %16 = arith.addi %11, %c0_i32_10 : i32
      %c0_11 = arith.constant 0 : index
      %c1 = arith.constant 1 : index
      %17 = arith.index_cast %16 : i32 to index
      %c0_12 = arith.constant 0 : index
      %18 = vector.load %arg2[%c0_11, %c1, %17, %c0_12] : memref<1x3x34x34xf32, #tpu.memory_space<vmem>>, vector<1x1x8x32xf32>
      %19 = vector.shape_cast %18 : vector<1x1x8x32xf32> to vector<8x32xf32>
      %c0_i32_13 = arith.constant 0 : i32
      %20 = arith.addi %11, %c0_i32_13 : i32
      %c0_14 = arith.constant 0 : index
      %c2 = arith.constant 2 : index
      %21 = arith.index_cast %20 : i32 to index
      %c0_15 = arith.constant 0 : index
      %22 = vector.load %arg2[%c0_14, %c2, %21, %c0_15] : memref<1x3x34x34xf32, #tpu.memory_space<vmem>>, vector<1x1x8x32xf32>
      %23 = vector.shape_cast %22 : vector<1x1x8x32xf32> to vector<8x32xf32>
      %c0_i32_16 = arith.constant 0 : i32
      %24 = arith.addi %11, %c0_i32_16 : i32
      %c0_17 = arith.constant 0 : index
      %c0_18 = arith.constant 0 : index
      %25 = arith.index_cast %24 : i32 to index
      %c1_19 = arith.constant 1 : index
      %26 = vector.load %arg2[%c0_17, %c0_18, %25, %c1_19] : memref<1x3x34x34xf32, #tpu.memory_space<vmem>>, vector<1x1x8x32xf32>
      %27 = vector.shape_cast %26 : vector<1x1x8x32xf32> to vector<8x32xf32>
      %c0_i32_20 = arith.constant 0 : i32
      %28 = arith.addi %11, %c0_i32_20 : i32
      %c0_21 = arith.constant 0 : index
      %c1_22 = arith.constant 1 : index
      %29 = arith.index_cast %28 : i32 to index
      %c1_23 = arith.constant 1 : index
      %30 = vector.load %arg2[%c0_21, %c1_22, %29, %c1_23] : memref<1x3x34x34xf32, #tpu.memory_space<vmem>>, vector<1x1x8x32xf32>
      %31 = vector.shape_cast %30 : vector<1x1x8x32xf32> to vector<8x32xf32>
      %c0_i32_24 = arith.constant 0 : i32
      %32 = arith.addi %11, %c0_i32_24 : i32
      %c0_25 = arith.constant 0 : index
      %c2_26 = arith.constant 2 : index
      %33 = arith.index_cast %32 : i32 to index
      %c1_27 = arith.constant 1 : index
      %34 = vector.load %arg2[%c0_25, %c2_26, %33, %c1_27] : memref<1x3x34x34xf32, #tpu.memory_space<vmem>>, vector<1x1x8x32xf32>
      %35 = vector.shape_cast %34 : vector<1x1x8x32xf32> to vector<8x32xf32>
      %c0_i32_28 = arith.constant 0 : i32
      %36 = arith.addi %11, %c0_i32_28 : i32
      %c0_29 = arith.constant 0 : index
      %c0_30 = arith.constant 0 : index
      %37 = arith.index_cast %36 : i32 to index
      %c2_31 = arith.constant 2 : index
      %38 = vector.load %arg2[%c0_29, %c0_30, %37, %c2_31] : memref<1x3x34x34xf32, #tpu.memory_space<vmem>>, vector<1x1x8x32xf32>
      %39 = vector.shape_cast %38 : vector<1x1x8x32xf32> to vector<8x32xf32>
      %c0_i32_32 = arith.constant 0 : i32
      %40 = arith.addi %11, %c0_i32_32 : i32
      %c0_33 = arith.constant 0 : index
      %c1_34 = arith.constant 1 : index
      %41 = arith.index_cast %40 : i32 to index
      %c2_35 = arith.constant 2 : index
      %42 = vector.load %arg2[%c0_33, %c1_34, %41, %c2_35] : memref<1x3x34x34xf32, #tpu.memory_space<vmem>>, vector<1x1x8x32xf32>
      %43 = vector.shape_cast %42 : vector<1x1x8x32xf32> to vector<8x32xf32>
      %c0_i32_36 = arith.constant 0 : i32
      %44 = arith.addi %11, %c0_i32_36 : i32
      %c0_37 = arith.constant 0 : index
      %c2_38 = arith.constant 2 : index
      %45 = arith.index_cast %44 : i32 to index
      %c2_39 = arith.constant 2 : index
      %46 = vector.load %arg2[%c0_37, %c2_38, %45, %c2_39] : memref<1x3x34x34xf32, #tpu.memory_space<vmem>>, vector<1x1x8x32xf32>
      %47 = vector.shape_cast %46 : vector<1x1x8x32xf32> to vector<8x32xf32>
      %c1_i32_40 = arith.constant 1 : i32
      %48 = arith.addi %11, %c1_i32_40 : i32
      %c0_41 = arith.constant 0 : index
      %c0_42 = arith.constant 0 : index
      %49 = arith.index_cast %48 : i32 to index
      %c0_43 = arith.constant 0 : index
      %50 = vector.load %arg2[%c0_41, %c0_42, %49, %c0_43] : memref<1x3x34x34xf32, #tpu.memory_space<vmem>>, vector<1x1x8x32xf32>
      %51 = vector.shape_cast %50 : vector<1x1x8x32xf32> to vector<8x32xf32>
      %c1_i32_44 = arith.constant 1 : i32
      %52 = arith.addi %11, %c1_i32_44 : i32
      %c0_45 = arith.constant 0 : index
      %c1_46 = arith.constant 1 : index
      %53 = arith.index_cast %52 : i32 to index
      %c0_47 = arith.constant 0 : index
      %54 = vector.load %arg2[%c0_45, %c1_46, %53, %c0_47] : memref<1x3x34x34xf32, #tpu.memory_space<vmem>>, vector<1x1x8x32xf32>
      %55 = vector.shape_cast %54 : vector<1x1x8x32xf32> to vector<8x32xf32>
      %c1_i32_48 = arith.constant 1 : i32
      %56 = arith.addi %11, %c1_i32_48 : i32
      %c0_49 = arith.constant 0 : index
      %c2_50 = arith.constant 2 : index
      %57 = arith.index_cast %56 : i32 to index
      %c0_51 = arith.constant 0 : index
      %58 = vector.load %arg2[%c0_49, %c2_50, %57, %c0_51] : memref<1x3x34x34xf32, #tpu.memory_space<vmem>>, vector<1x1x8x32xf32>
      %59 = vector.shape_cast %58 : vector<1x1x8x32xf32> to vector<8x32xf32>
      %c1_i32_52 = arith.constant 1 : i32
      %60 = arith.addi %11, %c1_i32_52 : i32
      %c0_53 = arith.constant 0 : index
      %c0_54 = arith.constant 0 : index
      %61 = arith.index_cast %60 : i32 to index
      %c1_55 = arith.constant 1 : index
      %62 = vector.load %arg2[%c0_53, %c0_54, %61, %c1_55] : memref<1x3x34x34xf32, #tpu.memory_space<vmem>>, vector<1x1x8x32xf32>
      %63 = vector.shape_cast %62 : vector<1x1x8x32xf32> to vector<8x32xf32>
      %c1_i32_56 = arith.constant 1 : i32
      %64 = arith.addi %11, %c1_i32_56 : i32
      %c0_57 = arith.constant 0 : index
      %c1_58 = arith.constant 1 : index
      %65 = arith.index_cast %64 : i32 to index
      %c1_59 = arith.constant 1 : index
      %66 = vector.load %arg2[%c0_57, %c1_58, %65, %c1_59] : memref<1x3x34x34xf32, #tpu.memory_space<vmem>>, vector<1x1x8x32xf32>
      %67 = vector.shape_cast %66 : vector<1x1x8x32xf32> to vector<8x32xf32>
      %c1_i32_60 = arith.constant 1 : i32
      %68 = arith.addi %11, %c1_i32_60 : i32
      %c0_61 = arith.constant 0 : index
      %c2_62 = arith.constant 2 : index
      %69 = arith.index_cast %68 : i32 to index
      %c1_63 = arith.constant 1 : index
      %70 = vector.load %arg2[%c0_61, %c2_62, %69, %c1_63] : memref<1x3x34x34xf32, #tpu.memory_space<vmem>>, vector<1x1x8x32xf32>
      %71 = vector.shape_cast %70 : vector<1x1x8x32xf32> to vector<8x32xf32>
      %c1_i32_64 = arith.constant 1 : i32
      %72 = arith.addi %11, %c1_i32_64 : i32
      %c0_65 = arith.constant 0 : index
      %c0_66 = arith.constant 0 : index
      %73 = arith.index_cast %72 : i32 to index
      %c2_67 = arith.constant 2 : index
      %74 = vector.load %arg2[%c0_65, %c0_66, %73, %c2_67] : memref<1x3x34x34xf32, #tpu.memory_space<vmem>>, vector<1x1x8x32xf32>
      %75 = vector.shape_cast %74 : vector<1x1x8x32xf32> to vector<8x32xf32>
      %c1_i32_68 = arith.constant 1 : i32
      %76 = arith.addi %11, %c1_i32_68 : i32
      %c0_69 = arith.constant 0 : index
      %c1_70 = arith.constant 1 : index
      %77 = arith.index_cast %76 : i32 to index
      %c2_71 = arith.constant 2 : index
      %78 = vector.load %arg2[%c0_69, %c1_70, %77, %c2_71] : memref<1x3x34x34xf32, #tpu.memory_space<vmem>>, vector<1x1x8x32xf32>
      %79 = vector.shape_cast %78 : vector<1x1x8x32xf32> to vector<8x32xf32>
      %c1_i32_72 = arith.constant 1 : i32
      %80 = arith.addi %11, %c1_i32_72 : i32
      %c0_73 = arith.constant 0 : index
      %c2_74 = arith.constant 2 : index
      %81 = arith.index_cast %80 : i32 to index
      %c2_75 = arith.constant 2 : index
      %82 = vector.load %arg2[%c0_73, %c2_74, %81, %c2_75] : memref<1x3x34x34xf32, #tpu.memory_space<vmem>>, vector<1x1x8x32xf32>
      %83 = vector.shape_cast %82 : vector<1x1x8x32xf32> to vector<8x32xf32>
      %c2_i32 = arith.constant 2 : i32
      %84 = arith.addi %11, %c2_i32 : i32
      %c0_76 = arith.constant 0 : index
      %c0_77 = arith.constant 0 : index
      %85 = arith.index_cast %84 : i32 to index
      %c0_78 = arith.constant 0 : index
      %86 = vector.load %arg2[%c0_76, %c0_77, %85, %c0_78] : memref<1x3x34x34xf32, #tpu.memory_space<vmem>>, vector<1x1x8x32xf32>
      %87 = vector.shape_cast %86 : vector<1x1x8x32xf32> to vector<8x32xf32>
      %c2_i32_79 = arith.constant 2 : i32
      %88 = arith.addi %11, %c2_i32_79 : i32
      %c0_80 = arith.constant 0 : index
      %c1_81 = arith.constant 1 : index
      %89 = arith.index_cast %88 : i32 to index
      %c0_82 = arith.constant 0 : index
      %90 = vector.load %arg2[%c0_80, %c1_81, %89, %c0_82] : memref<1x3x34x34xf32, #tpu.memory_space<vmem>>, vector<1x1x8x32xf32>
      %91 = vector.shape_cast %90 : vector<1x1x8x32xf32> to vector<8x32xf32>
      %c2_i32_83 = arith.constant 2 : i32
      %92 = arith.addi %11, %c2_i32_83 : i32
      %c0_84 = arith.constant 0 : index
      %c2_85 = arith.constant 2 : index
      %93 = arith.index_cast %92 : i32 to index
      %c0_86 = arith.constant 0 : index
      %94 = vector.load %arg2[%c0_84, %c2_85, %93, %c0_86] : memref<1x3x34x34xf32, #tpu.memory_space<vmem>>, vector<1x1x8x32xf32>
      %95 = vector.shape_cast %94 : vector<1x1x8x32xf32> to vector<8x32xf32>
      %c2_i32_87 = arith.constant 2 : i32
      %96 = arith.addi %11, %c2_i32_87 : i32
      %c0_88 = arith.constant 0 : index
      %c0_89 = arith.constant 0 : index
      %97 = arith.index_cast %96 : i32 to index
      %c1_90 = arith.constant 1 : index
      %98 = vector.load %arg2[%c0_88, %c0_89, %97, %c1_90] : memref<1x3x34x34xf32, #tpu.memory_space<vmem>>, vector<1x1x8x32xf32>
      %99 = vector.shape_cast %98 : vector<1x1x8x32xf32> to vector<8x32xf32>
      %c2_i32_91 = arith.constant 2 : i32
      %100 = arith.addi %11, %c2_i32_91 : i32
      %c0_92 = arith.constant 0 : index
      %c1_93 = arith.constant 1 : index
      %101 = arith.index_cast %100 : i32 to index
      %c1_94 = arith.constant 1 : index
      %102 = vector.load %arg2[%c0_92, %c1_93, %101, %c1_94] : memref<1x3x34x34xf32, #tpu.memory_space<vmem>>, vector<1x1x8x32xf32>
      %103 = vector.shape_cast %102 : vector<1x1x8x32xf32> to vector<8x32xf32>
      %c2_i32_95 = arith.constant 2 : i32
      %104 = arith.addi %11, %c2_i32_95 : i32
      %c0_96 = arith.constant 0 : index
      %c2_97 = arith.constant 2 : index
      %105 = arith.index_cast %104 : i32 to index
      %c1_98 = arith.constant 1 : index
      %106 = vector.load %arg2[%c0_96, %c2_97, %105, %c1_98] : memref<1x3x34x34xf32, #tpu.memory_space<vmem>>, vector<1x1x8x32xf32>
      %107 = vector.shape_cast %106 : vector<1x1x8x32xf32> to vector<8x32xf32>
      %c2_i32_99 = arith.constant 2 : i32
      %108 = arith.addi %11, %c2_i32_99 : i32
      %c0_100 = arith.constant 0 : index
      %c0_101 = arith.constant 0 : index
      %109 = arith.index_cast %108 : i32 to index
      %c2_102 = arith.constant 2 : index
      %110 = vector.load %arg2[%c0_100, %c0_101, %109, %c2_102] : memref<1x3x34x34xf32, #tpu.memory_space<vmem>>, vector<1x1x8x32xf32>
      %111 = vector.shape_cast %110 : vector<1x1x8x32xf32> to vector<8x32xf32>
      %c2_i32_103 = arith.constant 2 : i32
      %112 = arith.addi %11, %c2_i32_103 : i32
      %c0_104 = arith.constant 0 : index
      %c1_105 = arith.constant 1 : index
      %113 = arith.index_cast %112 : i32 to index
      %c2_106 = arith.constant 2 : index
      %114 = vector.load %arg2[%c0_104, %c1_105, %113, %c2_106] : memref<1x3x34x34xf32, #tpu.memory_space<vmem>>, vector<1x1x8x32xf32>
      %115 = vector.shape_cast %114 : vector<1x1x8x32xf32> to vector<8x32xf32>
      %c2_i32_107 = arith.constant 2 : i32
      %116 = arith.addi %11, %c2_i32_107 : i32
      %c0_108 = arith.constant 0 : index
      %c2_109 = arith.constant 2 : index
      %117 = arith.index_cast %116 : i32 to index
      %c2_110 = arith.constant 2 : index
      %118 = vector.load %arg2[%c0_108, %c2_109, %117, %c2_110] : memref<1x3x34x34xf32, #tpu.memory_space<vmem>>, vector<1x1x8x32xf32>
      %119 = vector.shape_cast %118 : vector<1x1x8x32xf32> to vector<8x32xf32>
      %c0_111 = arith.constant 0 : index
      %c0_112 = arith.constant 0 : index
      %120 = memref.load %arg3[%c0_111, %c0_112] : memref<27x16xf32, #tpu.memory_space<smem>>
      %121 = vector.broadcast %120 : f32 to vector<8x32xf32>
      %122 = arith.mulf %15, %121 : vector<8x32xf32>
      %c1_113 = arith.constant 1 : index
      %c0_114 = arith.constant 0 : index
      %123 = memref.load %arg3[%c1_113, %c0_114] : memref<27x16xf32, #tpu.memory_space<smem>>
      %124 = vector.broadcast %123 : f32 to vector<8x32xf32>
      %125 = arith.mulf %19, %124 : vector<8x32xf32>
      %126 = arith.addf %122, %125 : vector<8x32xf32>
      %c2_115 = arith.constant 2 : index
      %c0_116 = arith.constant 0 : index
      %127 = memref.load %arg3[%c2_115, %c0_116] : memref<27x16xf32, #tpu.memory_space<smem>>
      %128 = vector.broadcast %127 : f32 to vector<8x32xf32>
      %129 = arith.mulf %23, %128 : vector<8x32xf32>
      %130 = arith.addf %126, %129 : vector<8x32xf32>
      %c3 = arith.constant 3 : index
      %c0_117 = arith.constant 0 : index
      %131 = memref.load %arg3[%c3, %c0_117] : memref<27x16xf32, #tpu.memory_space<smem>>
      %132 = vector.broadcast %131 : f32 to vector<8x32xf32>
      %133 = arith.mulf %27, %132 : vector<8x32xf32>
      %134 = arith.addf %130, %133 : vector<8x32xf32>
      %c4 = arith.constant 4 : index
      %c0_118 = arith.constant 0 : index
      %135 = memref.load %arg3[%c4, %c0_118] : memref<27x16xf32, #tpu.memory_space<smem>>
      %136 = vector.broadcast %135 : f32 to vector<8x32xf32>
      %137 = arith.mulf %31, %136 : vector<8x32xf32>
      %138 = arith.addf %134, %137 : vector<8x32xf32>
      %c5 = arith.constant 5 : index
      %c0_119 = arith.constant 0 : index
      %139 = memref.load %arg3[%c5, %c0_119] : memref<27x16xf32, #tpu.memory_space<smem>>
      %140 = vector.broadcast %139 : f32 to vector<8x32xf32>
      %141 = arith.mulf %35, %140 : vector<8x32xf32>
      %142 = arith.addf %138, %141 : vector<8x32xf32>
      %c6 = arith.constant 6 : index
      %c0_120 = arith.constant 0 : index
      %143 = memref.load %arg3[%c6, %c0_120] : memref<27x16xf32, #tpu.memory_space<smem>>
      %144 = vector.broadcast %143 : f32 to vector<8x32xf32>
      %145 = arith.mulf %39, %144 : vector<8x32xf32>
      %146 = arith.addf %142, %145 : vector<8x32xf32>
      %c7 = arith.constant 7 : index
      %c0_121 = arith.constant 0 : index
      %147 = memref.load %arg3[%c7, %c0_121] : memref<27x16xf32, #tpu.memory_space<smem>>
      %148 = vector.broadcast %147 : f32 to vector<8x32xf32>
      %149 = arith.mulf %43, %148 : vector<8x32xf32>
      %150 = arith.addf %146, %149 : vector<8x32xf32>
      %c8 = arith.constant 8 : index
      %c0_122 = arith.constant 0 : index
      %151 = memref.load %arg3[%c8, %c0_122] : memref<27x16xf32, #tpu.memory_space<smem>>
      %152 = vector.broadcast %151 : f32 to vector<8x32xf32>
      %153 = arith.mulf %47, %152 : vector<8x32xf32>
      %154 = arith.addf %150, %153 : vector<8x32xf32>
      %c9 = arith.constant 9 : index
      %c0_123 = arith.constant 0 : index
      %155 = memref.load %arg3[%c9, %c0_123] : memref<27x16xf32, #tpu.memory_space<smem>>
      %156 = vector.broadcast %155 : f32 to vector<8x32xf32>
      %157 = arith.mulf %51, %156 : vector<8x32xf32>
      %158 = arith.addf %154, %157 : vector<8x32xf32>
      %c10 = arith.constant 10 : index
      %c0_124 = arith.constant 0 : index
      %159 = memref.load %arg3[%c10, %c0_124] : memref<27x16xf32, #tpu.memory_space<smem>>
      %160 = vector.broadcast %159 : f32 to vector<8x32xf32>
      %161 = arith.mulf %55, %160 : vector<8x32xf32>
      %162 = arith.addf %158, %161 : vector<8x32xf32>
      %c11 = arith.constant 11 : index
      %c0_125 = arith.constant 0 : index
      %163 = memref.load %arg3[%c11, %c0_125] : memref<27x16xf32, #tpu.memory_space<smem>>
      %164 = vector.broadcast %163 : f32 to vector<8x32xf32>
      %165 = arith.mulf %59, %164 : vector<8x32xf32>
      %166 = arith.addf %162, %165 : vector<8x32xf32>
      %c12 = arith.constant 12 : index
      %c0_126 = arith.constant 0 : index
      %167 = memref.load %arg3[%c12, %c0_126] : memref<27x16xf32, #tpu.memory_space<smem>>
      %168 = vector.broadcast %167 : f32 to vector<8x32xf32>
      %169 = arith.mulf %63, %168 : vector<8x32xf32>
      %170 = arith.addf %166, %169 : vector<8x32xf32>
      %c13 = arith.constant 13 : index
      %c0_127 = arith.constant 0 : index
      %171 = memref.load %arg3[%c13, %c0_127] : memref<27x16xf32, #tpu.memory_space<smem>>
      %172 = vector.broadcast %171 : f32 to vector<8x32xf32>
      %173 = arith.mulf %67, %172 : vector<8x32xf32>
      %174 = arith.addf %170, %173 : vector<8x32xf32>
      %c14 = arith.constant 14 : index
      %c0_128 = arith.constant 0 : index
      %175 = memref.load %arg3[%c14, %c0_128] : memref<27x16xf32, #tpu.memory_space<smem>>
      %176 = vector.broadcast %175 : f32 to vector<8x32xf32>
      %177 = arith.mulf %71, %176 : vector<8x32xf32>
      %178 = arith.addf %174, %177 : vector<8x32xf32>
      %c15 = arith.constant 15 : index
      %c0_129 = arith.constant 0 : index
      %179 = memref.load %arg3[%c15, %c0_129] : memref<27x16xf32, #tpu.memory_space<smem>>
      %180 = vector.broadcast %179 : f32 to vector<8x32xf32>
      %181 = arith.mulf %75, %180 : vector<8x32xf32>
      %182 = arith.addf %178, %181 : vector<8x32xf32>
      %c16 = arith.constant 16 : index
      %c0_130 = arith.constant 0 : index
      %183 = memref.load %arg3[%c16, %c0_130] : memref<27x16xf32, #tpu.memory_space<smem>>
      %184 = vector.broadcast %183 : f32 to vector<8x32xf32>
      %185 = arith.mulf %79, %184 : vector<8x32xf32>
      %186 = arith.addf %182, %185 : vector<8x32xf32>
      %c17 = arith.constant 17 : index
      %c0_131 = arith.constant 0 : index
      %187 = memref.load %arg3[%c17, %c0_131] : memref<27x16xf32, #tpu.memory_space<smem>>
      %188 = vector.broadcast %187 : f32 to vector<8x32xf32>
      %189 = arith.mulf %83, %188 : vector<8x32xf32>
      %190 = arith.addf %186, %189 : vector<8x32xf32>
      %c18 = arith.constant 18 : index
      %c0_132 = arith.constant 0 : index
      %191 = memref.load %arg3[%c18, %c0_132] : memref<27x16xf32, #tpu.memory_space<smem>>
      %192 = vector.broadcast %191 : f32 to vector<8x32xf32>
      %193 = arith.mulf %87, %192 : vector<8x32xf32>
      %194 = arith.addf %190, %193 : vector<8x32xf32>
      %c19 = arith.constant 19 : index
      %c0_133 = arith.constant 0 : index
      %195 = memref.load %arg3[%c19, %c0_133] : memref<27x16xf32, #tpu.memory_space<smem>>
      %196 = vector.broadcast %195 : f32 to vector<8x32xf32>
      %197 = arith.mulf %91, %196 : vector<8x32xf32>
      %198 = arith.addf %194, %197 : vector<8x32xf32>
      %c20 = arith.constant 20 : index
      %c0_134 = arith.constant 0 : index
      %199 = memref.load %arg3[%c20, %c0_134] : memref<27x16xf32, #tpu.memory_space<smem>>
      %200 = vector.broadcast %199 : f32 to vector<8x32xf32>
      %201 = arith.mulf %95, %200 : vector<8x32xf32>
      %202 = arith.addf %198, %201 : vector<8x32xf32>
      %c21 = arith.constant 21 : index
      %c0_135 = arith.constant 0 : index
      %203 = memref.load %arg3[%c21, %c0_135] : memref<27x16xf32, #tpu.memory_space<smem>>
      %204 = vector.broadcast %203 : f32 to vector<8x32xf32>
      %205 = arith.mulf %99, %204 : vector<8x32xf32>
      %206 = arith.addf %202, %205 : vector<8x32xf32>
      %c22 = arith.constant 22 : index
      %c0_136 = arith.constant 0 : index
      %207 = memref.load %arg3[%c22, %c0_136] : memref<27x16xf32, #tpu.memory_space<smem>>
      %208 = vector.broadcast %207 : f32 to vector<8x32xf32>
      %209 = arith.mulf %103, %208 : vector<8x32xf32>
      %210 = arith.addf %206, %209 : vector<8x32xf32>
      %c23 = arith.constant 23 : index
      %c0_137 = arith.constant 0 : index
      %211 = memref.load %arg3[%c23, %c0_137] : memref<27x16xf32, #tpu.memory_space<smem>>
      %212 = vector.broadcast %211 : f32 to vector<8x32xf32>
      %213 = arith.mulf %107, %212 : vector<8x32xf32>
      %214 = arith.addf %210, %213 : vector<8x32xf32>
      %c24 = arith.constant 24 : index
      %c0_138 = arith.constant 0 : index
      %215 = memref.load %arg3[%c24, %c0_138] : memref<27x16xf32, #tpu.memory_space<smem>>
      %216 = vector.broadcast %215 : f32 to vector<8x32xf32>
      %217 = arith.mulf %111, %216 : vector<8x32xf32>
      %218 = arith.addf %214, %217 : vector<8x32xf32>
      %c25 = arith.constant 25 : index
      %c0_139 = arith.constant 0 : index
      %219 = memref.load %arg3[%c25, %c0_139] : memref<27x16xf32, #tpu.memory_space<smem>>
      %220 = vector.broadcast %219 : f32 to vector<8x32xf32>
      %221 = arith.mulf %115, %220 : vector<8x32xf32>
      %222 = arith.addf %218, %221 : vector<8x32xf32>
      %c26 = arith.constant 26 : index
      %c0_140 = arith.constant 0 : index
      %223 = memref.load %arg3[%c26, %c0_140] : memref<27x16xf32, #tpu.memory_space<smem>>
      %224 = vector.broadcast %223 : f32 to vector<8x32xf32>
      %225 = arith.mulf %119, %224 : vector<8x32xf32>
      %226 = arith.addf %222, %225 : vector<8x32xf32>
      %c8_i32_141 = arith.constant 8 : i32
      %227 = arith.muli %9, %c8_i32_141 : i32
      %c0_142 = arith.constant 0 : index
      %c0_143 = arith.constant 0 : index
      %228 = arith.index_cast %227 : i32 to index
      %c0_144 = arith.constant 0 : index
      %229 = vector.load %arg4[%c0_142, %c0_143, %228, %c0_144] : memref<1x16x32x32xf32, #tpu.memory_space<vmem>>, vector<1x1x8x32xf32>
      %230 = vector.shape_cast %229 : vector<1x1x8x32xf32> to vector<8x32xf32>
      %231 = vector.shape_cast %226 : vector<8x32xf32> to vector<1x1x8x32xf32>
      tpu.vector_store %arg4[%c0_142, %c0_143, %228, %c0_144], %231 {strides = array<i32>} : memref<1x16x32x32xf32, #tpu.memory_space<vmem>>, vector<1x1x8x32xf32>,
      %c0_145 = arith.constant 0 : index
      %c0_146 = arith.constant 0 : index
      %232 = vector.load %arg6[%c0_145, %c0_146] : memref<16x32xf32, #tpu.memory_space<vmem>>, vector<1x32xf32>
      %cst = arith.constant dense<0.000000e+00> : vector<32xf32>
      %233 = vector.multi_reduction <add>, %226, %cst [0] : vector<8x32xf32> to vector<32xf32>
      %234 = vector.shape_cast %233 : vector<32xf32> to vector<1x32xf32>
      %235 = arith.addf %232, %234 : vector<1x32xf32>
      %c0_147 = arith.constant 0 : index
      %c0_148 = arith.constant 0 : index
      %236 = vector.load %arg6[%c0_147, %c0_148] : memref<16x32xf32, #tpu.memory_space<vmem>>, vector<1x32xf32>
      tpu.vector_store %arg6[%c0_147, %c0_148], %235 {strides = array<i32>} : memref<16x32xf32, #tpu.memory_space<vmem>>, vector<1x32xf32>,
      %c0_149 = arith.constant 0 : index
      %c0_150 = arith.constant 0 : index
      %237 = vector.load %arg7[%c0_149, %c0_150] : memref<16x32xf32, #tpu.memory_space<vmem>>, vector<1x32xf32>
      %238 = arith.mulf %226, %226 : vector<8x32xf32>
      %cst_151 = arith.constant dense<0.000000e+00> : vector<32xf32>
      %239 = vector.multi_reduction <add>, %238, %cst_151 [0] : vector<8x32xf32> to vector<32xf32>
      %240 = vector.shape_cast %239 : vector<32xf32> to vector<1x32xf32>
      %241 = arith.addf %237, %240 : vector<1x32xf32>
      %c0_152 = arith.constant 0 : index
      %c0_153 = arith.constant 0 : index
      %242 = vector.load %arg7[%c0_152, %c0_153] : memref<16x32xf32, #tpu.memory_space<vmem>>, vector<1x32xf32>
      tpu.vector_store %arg7[%c0_152, %c0_153], %241 {strides = array<i32>} : memref<16x32xf32, #tpu.memory_space<vmem>>, vector<1x32xf32>,
      %c0_154 = arith.constant 0 : index
      %c1_155 = arith.constant 1 : index
      %243 = memref.load %arg3[%c0_154, %c1_155] : memref<27x16xf32, #tpu.memory_space<smem>>
      %244 = vector.broadcast %243 : f32 to vector<8x32xf32>
      %245 = arith.mulf %15, %244 : vector<8x32xf32>
      %c1_156 = arith.constant 1 : index
      %c1_157 = arith.constant 1 : index
      %246 = memref.load %arg3[%c1_156, %c1_157] : memref<27x16xf32, #tpu.memory_space<smem>>
      %247 = vector.broadcast %246 : f32 to vector<8x32xf32>
      %248 = arith.mulf %19, %247 : vector<8x32xf32>
      %249 = arith.addf %245, %248 : vector<8x32xf32>
      %c2_158 = arith.constant 2 : index
      %c1_159 = arith.constant 1 : index
      %250 = memref.load %arg3[%c2_158, %c1_159] : memref<27x16xf32, #tpu.memory_space<smem>>
      %251 = vector.broadcast %250 : f32 to vector<8x32xf32>
      %252 = arith.mulf %23, %251 : vector<8x32xf32>
      %253 = arith.addf %249, %252 : vector<8x32xf32>
      %c3_160 = arith.constant 3 : index
      %c1_161 = arith.constant 1 : index
      %254 = memref.load %arg3[%c3_160, %c1_161] : memref<27x16xf32, #tpu.memory_space<smem>>
      %255 = vector.broadcast %254 : f32 to vector<8x32xf32>
      %256 = arith.mulf %27, %255 : vector<8x32xf32>
      %257 = arith.addf %253, %256 : vector<8x32xf32>
      %c4_162 = arith.constant 4 : index
      %c1_163 = arith.constant 1 : index
      %258 = memref.load %arg3[%c4_162, %c1_163] : memref<27x16xf32, #tpu.memory_space<smem>>
      %259 = vector.broadcast %258 : f32 to vector<8x32xf32>
      %260 = arith.mulf %31, %259 : vector<8x32xf32>
      %261 = arith.addf %257, %260 : vector<8x32xf32>
      %c5_164 = arith.constant 5 : index
      %c1_165 = arith.constant 1 : index
      %262 = memref.load %arg3[%c5_164, %c1_165] : memref<27x16xf32, #tpu.memory_space<smem>>
      %263 = vector.broadcast %262 : f32 to vector<8x32xf32>
      %264 = arith.mulf %35, %263 : vector<8x32xf32>
      %265 = arith.addf %261, %264 : vector<8x32xf32>
      %c6_166 = arith.constant 6 : index
      %c1_167 = arith.constant 1 : index
      %266 = memref.load %arg3[%c6_166, %c1_167] : memref<27x16xf32, #tpu.memory_space<smem>>
      %267 = vector.broadcast %266 : f32 to vector<8x32xf32>
      %268 = arith.mulf %39, %267 : vector<8x32xf32>
      %269 = arith.addf %265, %268 : vector<8x32xf32>
      %c7_168 = arith.constant 7 : index
      %c1_169 = arith.constant 1 : index
      %270 = memref.load %arg3[%c7_168, %c1_169] : memref<27x16xf32, #tpu.memory_space<smem>>
      %271 = vector.broadcast %270 : f32 to vector<8x32xf32>
      %272 = arith.mulf %43, %271 : vector<8x32xf32>
      %273 = arith.addf %269, %272 : vector<8x32xf32>
      %c8_170 = arith.constant 8 : index
      %c1_171 = arith.constant 1 : index
      %274 = memref.load %arg3[%c8_170, %c1_171] : memref<27x16xf32, #tpu.memory_space<smem>>
      %275 = vector.broadcast %274 : f32 to vector<8x32xf32>
      %276 = arith.mulf %47, %275 : vector<8x32xf32>
      %277 = arith.addf %273, %276 : vector<8x32xf32>
      %c9_172 = arith.constant 9 : index
      %c1_173 = arith.constant 1 : index
      %278 = memref.load %arg3[%c9_172, %c1_173] : memref<27x16xf32, #tpu.memory_space<smem>>
      %279 = vector.broadcast %278 : f32 to vector<8x32xf32>
      %280 = arith.mulf %51, %279 : vector<8x32xf32>
      %281 = arith.addf %277, %280 : vector<8x32xf32>
      %c10_174 = arith.constant 10 : index
      %c1_175 = arith.constant 1 : index
      %282 = memref.load %arg3[%c10_174, %c1_175] : memref<27x16xf32, #tpu.memory_space<smem>>
      %283 = vector.broadcast %282 : f32 to vector<8x32xf32>
      %284 = arith.mulf %55, %283 : vector<8x32xf32>
      %285 = arith.addf %281, %284 : vector<8x32xf32>
      %c11_176 = arith.constant 11 : index
      %c1_177 = arith.constant 1 : index
      %286 = memref.load %arg3[%c11_176, %c1_177] : memref<27x16xf32, #tpu.memory_space<smem>>
      %287 = vector.broadcast %286 : f32 to vector<8x32xf32>
      %288 = arith.mulf %59, %287 : vector<8x32xf32>
      %289 = arith.addf %285, %288 : vector<8x32xf32>
      %c12_178 = arith.constant 12 : index
      %c1_179 = arith.constant 1 : index
      %290 = memref.load %arg3[%c12_178, %c1_179] : memref<27x16xf32, #tpu.memory_space<smem>>
      %291 = vector.broadcast %290 : f32 to vector<8x32xf32>
      %292 = arith.mulf %63, %291 : vector<8x32xf32>
      %293 = arith.addf %289, %292 : vector<8x32xf32>
      %c13_180 = arith.constant 13 : index
      %c1_181 = arith.constant 1 : index
      %294 = memref.load %arg3[%c13_180, %c1_181] : memref<27x16xf32, #tpu.memory_space<smem>>
      %295 = vector.broadcast %294 : f32 to vector<8x32xf32>
      %296 = arith.mulf %67, %295 : vector<8x32xf32>
      %297 = arith.addf %293, %296 : vector<8x32xf32>
      %c14_182 = arith.constant 14 : index
      %c1_183 = arith.constant 1 : index
      %298 = memref.load %arg3[%c14_182, %c1_183] : memref<27x16xf32, #tpu.memory_space<smem>>
      %299 = vector.broadcast %298 : f32 to vector<8x32xf32>
      %300 = arith.mulf %71, %299 : vector<8x32xf32>
      %301 = arith.addf %297, %300 : vector<8x32xf32>
      %c15_184 = arith.constant 15 : index
      %c1_185 = arith.constant 1 : index
      %302 = memref.load %arg3[%c15_184, %c1_185] : memref<27x16xf32, #tpu.memory_space<smem>>
      %303 = vector.broadcast %302 : f32 to vector<8x32xf32>
      %304 = arith.mulf %75, %303 : vector<8x32xf32>
      %305 = arith.addf %301, %304 : vector<8x32xf32>
      %c16_186 = arith.constant 16 : index
      %c1_187 = arith.constant 1 : index
      %306 = memref.load %arg3[%c16_186, %c1_187] : memref<27x16xf32, #tpu.memory_space<smem>>
      %307 = vector.broadcast %306 : f32 to vector<8x32xf32>
      %308 = arith.mulf %79, %307 : vector<8x32xf32>
      %309 = arith.addf %305, %308 : vector<8x32xf32>
      %c17_188 = arith.constant 17 : index
      %c1_189 = arith.constant 1 : index
      %310 = memref.load %arg3[%c17_188, %c1_189] : memref<27x16xf32, #tpu.memory_space<smem>>
      %311 = vector.broadcast %310 : f32 to vector<8x32xf32>
      %312 = arith.mulf %83, %311 : vector<8x32xf32>
      %313 = arith.addf %309, %312 : vector<8x32xf32>
      %c18_190 = arith.constant 18 : index
      %c1_191 = arith.constant 1 : index
      %314 = memref.load %arg3[%c18_190, %c1_191] : memref<27x16xf32, #tpu.memory_space<smem>>
      %315 = vector.broadcast %314 : f32 to vector<8x32xf32>
      %316 = arith.mulf %87, %315 : vector<8x32xf32>
      %317 = arith.addf %313, %316 : vector<8x32xf32>
      %c19_192 = arith.constant 19 : index
      %c1_193 = arith.constant 1 : index
      %318 = memref.load %arg3[%c19_192, %c1_193] : memref<27x16xf32, #tpu.memory_space<smem>>
      %319 = vector.broadcast %318 : f32 to vector<8x32xf32>
      %320 = arith.mulf %91, %319 : vector<8x32xf32>
      %321 = arith.addf %317, %320 : vector<8x32xf32>
      %c20_194 = arith.constant 20 : index
      %c1_195 = arith.constant 1 : index
      %322 = memref.load %arg3[%c20_194, %c1_195] : memref<27x16xf32, #tpu.memory_space<smem>>
      %323 = vector.broadcast %322 : f32 to vector<8x32xf32>
      %324 = arith.mulf %95, %323 : vector<8x32xf32>
      %325 = arith.addf %321, %324 : vector<8x32xf32>
      %c21_196 = arith.constant 21 : index
      %c1_197 = arith.constant 1 : index
      %326 = memref.load %arg3[%c21_196, %c1_197] : memref<27x16xf32, #tpu.memory_space<smem>>
      %327 = vector.broadcast %326 : f32 to vector<8x32xf32>
      %328 = arith.mulf %99, %327 : vector<8x32xf32>
      %329 = arith.addf %325, %328 : vector<8x32xf32>
      %c22_198 = arith.constant 22 : index
      %c1_199 = arith.constant 1 : index
      %330 = memref.load %arg3[%c22_198, %c1_199] : memref<27x16xf32, #tpu.memory_space<smem>>
      %331 = vector.broadcast %330 : f32 to vector<8x32xf32>
      %332 = arith.mulf %103, %331 : vector<8x32xf32>
      %333 = arith.addf %329, %332 : vector<8x32xf32>
      %c23_200 = arith.constant 23 : index
      %c1_201 = arith.constant 1 : index
      %334 = memref.load %arg3[%c23_200, %c1_201] : memref<27x16xf32, #tpu.memory_space<smem>>
      %335 = vector.broadcast %334 : f32 to vector<8x32xf32>
      %336 = arith.mulf %107, %335 : vector<8x32xf32>
      %337 = arith.addf %333, %336 : vector<8x32xf32>
      %c24_202 = arith.constant 24 : index
      %c1_203 = arith.constant 1 : index
      %338 = memref.load %arg3[%c24_202, %c1_203] : memref<27x16xf32, #tpu.memory_space<smem>>
      %339 = vector.broadcast %338 : f32 to vector<8x32xf32>
      %340 = arith.mulf %111, %339 : vector<8x32xf32>
      %341 = arith.addf %337, %340 : vector<8x32xf32>
      %c25_204 = arith.constant 25 : index
      %c1_205 = arith.constant 1 : index
      %342 = memref.load %arg3[%c25_204, %c1_205] : memref<27x16xf32, #tpu.memory_space<smem>>
      %343 = vector.broadcast %342 : f32 to vector<8x32xf32>
      %344 = arith.mulf %115, %343 : vector<8x32xf32>
      %345 = arith.addf %341, %344 : vector<8x32xf32>
      %c26_206 = arith.constant 26 : index
      %c1_207 = arith.constant 1 : index
      %346 = memref.load %arg3[%c26_206, %c1_207] : memref<27x16xf32, #tpu.memory_space<smem>>
      %347 = vector.broadcast %346 : f32 to vector<8x32xf32>
      %348 = arith.mulf %119, %347 : vector<8x32xf32>
      %349 = arith.addf %345, %348 : vector<8x32xf32>
      %c8_i32_208 = arith.constant 8 : i32
      %350 = arith.muli %9, %c8_i32_208 : i32
      %c0_209 = arith.constant 0 : index
      %c1_210 = arith.constant 1 : index
      %351 = arith.index_cast %350 : i32 to index
      %c0_211 = arith.constant 0 : index
      %352 = vector.load %arg4[%c0_209, %c1_210, %351, %c0_211] : memref<1x16x32x32xf32, #tpu.memory_space<vmem>>, vector<1x1x8x32xf32>
      %353 = vector.shape_cast %352 : vector<1x1x8x32xf32> to vector<8x32xf32>
      %354 = vector.shape_cast %349 : vector<8x32xf32> to vector<1x1x8x32xf32>
      tpu.vector_store %arg4[%c0_209, %c1_210, %351, %c0_211], %354 {strides = array<i32>} : memref<1x16x32x32xf32, #tpu.memory_space<vmem>>, vector<1x1x8x32xf32>,
      %c1_212 = arith.constant 1 : index
      %c0_213 = arith.constant 0 : index
      %355 = vector.load %arg6[%c1_212, %c0_213] : memref<16x32xf32, #tpu.memory_space<vmem>>, vector<1x32xf32>
      %cst_214 = arith.constant dense<0.000000e+00> : vector<32xf32>
      %356 = vector.multi_reduction <add>, %349, %cst_214 [0] : vector<8x32xf32> to vector<32xf32>
      %357 = vector.shape_cast %356 : vector<32xf32> to vector<1x32xf32>
      %358 = arith.addf %355, %357 : vector<1x32xf32>
      %c1_215 = arith.constant 1 : index
      %c0_216 = arith.constant 0 : index
      %359 = vector.load %arg6[%c1_215, %c0_216] : memref<16x32xf32, #tpu.memory_space<vmem>>, vector<1x32xf32>
      tpu.vector_store %arg6[%c1_215, %c0_216], %358 {strides = array<i32>} : memref<16x32xf32, #tpu.memory_space<vmem>>, vector<1x32xf32>,
      %c1_217 = arith.constant 1 : index
      %c0_218 = arith.constant 0 : index
      %360 = vector.load %arg7[%c1_217, %c0_218] : memref<16x32xf32, #tpu.memory_space<vmem>>, vector<1x32xf32>
      %361 = arith.mulf %349, %349 : vector<8x32xf32>
      %cst_219 = arith.constant dense<0.000000e+00> : vector<32xf32>
      %362 = vector.multi_reduction <add>, %361, %cst_219 [0] : vector<8x32xf32> to vector<32xf32>
      %363 = vector.shape_cast %362 : vector<32xf32> to vector<1x32xf32>
      %364 = arith.addf %360, %363 : vector<1x32xf32>
      %c1_220 = arith.constant 1 : index
      %c0_221 = arith.constant 0 : index
      %365 = vector.load %arg7[%c1_220, %c0_221] : memref<16x32xf32, #tpu.memory_space<vmem>>, vector<1x32xf32>
      tpu.vector_store %arg7[%c1_220, %c0_221], %364 {strides = array<i32>} : memref<16x32xf32, #tpu.memory_space<vmem>>, vector<1x32xf32>,
      %c0_222 = arith.constant 0 : index
      %c2_223 = arith.constant 2 : index
      %366 = memref.load %arg3[%c0_222, %c2_223] : memref<27x16xf32, #tpu.memory_space<smem>>
      %367 = vector.broadcast %366 : f32 to vector<8x32xf32>
      %368 = arith.mulf %15, %367 : vector<8x32xf32>
      %c1_224 = arith.constant 1 : index
      %c2_225 = arith.constant 2 : index
      %369 = memref.load %arg3[%c1_224, %c2_225] : memref<27x16xf32, #tpu.memory_space<smem>>
      %370 = vector.broadcast %369 : f32 to vector<8x32xf32>
      %371 = arith.mulf %19, %370 : vector<8x32xf32>
      %372 = arith.addf %368, %371 : vector<8x32xf32>
      %c2_226 = arith.constant 2 : index
      %c2_227 = arith.constant 2 : index
      %373 = memref.load %arg3[%c2_226, %c2_227] : memref<27x16xf32, #tpu.memory_space<smem>>
      %374 = vector.broadcast %373 : f32 to vector<8x32xf32>
      %375 = arith.mulf %23, %374 : vector<8x32xf32>
      %376 = arith.addf %372, %375 : vector<8x32xf32>
      %c3_228 = arith.constant 3 : index
      %c2_229 = arith.constant 2 : index
      %377 = memref.load %arg3[%c3_228, %c2_229] : memref<27x16xf32, #tpu.memory_space<smem>>
      %378 = vector.broadcast %377 : f32 to vector<8x32xf32>
      %379 = arith.mulf %27, %378 : vector<8x32xf32>
      %380 = arith.addf %376, %379 : vector<8x32xf32>
      %c4_230 = arith.constant 4 : index
      %c2_231 = arith.constant 2 : index
      %381 = memref.load %arg3[%c4_230, %c2_231] : memref<27x16xf32, #tpu.memory_space<smem>>
      %382 = vector.broadcast %381 : f32 to vector<8x32xf32>
      %383 = arith.mulf %31, %382 : vector<8x32xf32>
      %384 = arith.addf %380, %383 : vector<8x32xf32>
      %c5_232 = arith.constant 5 : index
      %c2_233 = arith.constant 2 : index
      %385 = memref.load %arg3[%c5_232, %c2_233] : memref<27x16xf32, #tpu.memory_space<smem>>
      %386 = vector.broadcast %385 : f32 to vector<8x32xf32>
      %387 = arith.mulf %35, %386 : vector<8x32xf32>
      %388 = arith.addf %384, %387 : vector<8x32xf32>
      %c6_234 = arith.constant 6 : index
      %c2_235 = arith.constant 2 : index
      %389 = memref.load %arg3[%c6_234, %c2_235] : memref<27x16xf32, #tpu.memory_space<smem>>
      %390 = vector.broadcast %389 : f32 to vector<8x32xf32>
      %391 = arith.mulf %39, %390 : vector<8x32xf32>
      %392 = arith.addf %388, %391 : vector<8x32xf32>
      %c7_236 = arith.constant 7 : index
      %c2_237 = arith.constant 2 : index
      %393 = memref.load %arg3[%c7_236, %c2_237] : memref<27x16xf32, #tpu.memory_space<smem>>
      %394 = vector.broadcast %393 : f32 to vector<8x32xf32>
      %395 = arith.mulf %43, %394 : vector<8x32xf32>
      %396 = arith.addf %392, %395 : vector<8x32xf32>
      %c8_238 = arith.constant 8 : index
      %c2_239 = arith.constant 2 : index
      %397 = memref.load %arg3[%c8_238, %c2_239] : memref<27x16xf32, #tpu.memory_space<smem>>
      %398 = vector.broadcast %397 : f32 to vector<8x32xf32>
      %399 = arith.mulf %47, %398 : vector<8x32xf32>
      %400 = arith.addf %396, %399 : vector<8x32xf32>
      %c9_240 = arith.constant 9 : index
      %c2_241 = arith.constant 2 : index
      %401 = memref.load %arg3[%c9_240, %c2_241] : memref<27x16xf32, #tpu.memory_space<smem>>
      %402 = vector.broadcast %401 : f32 to vector<8x32xf32>
      %403 = arith.mulf %51, %402 : vector<8x32xf32>
      %404 = arith.addf %400, %403 : vector<8x32xf32>
      %c10_242 = arith.constant 10 : index
      %c2_243 = arith.constant 2 : index
      %405 = memref.load %arg3[%c10_242, %c2_243] : memref<27x16xf32, #tpu.memory_space<smem>>
      %406 = vector.broadcast %405 : f32 to vector<8x32xf32>
      %407 = arith.mulf %55, %406 : vector<8x32xf32>
      %408 = arith.addf %404, %407 : vector<8x32xf32>
      %c11_244 = arith.constant 11 : index
      %c2_245 = arith.constant 2 : index
      %409 = memref.load %arg3[%c11_244, %c2_245] : memref<27x16xf32, #tpu.memory_space<smem>>
      %410 = vector.broadcast %409 : f32 to vector<8x32xf32>
      %411 = arith.mulf %59, %410 : vector<8x32xf32>
      %412 = arith.addf %408, %411 : vector<8x32xf32>
      %c12_246 = arith.constant 12 : index
      %c2_247 = arith.constant 2 : index
      %413 = memref.load %arg3[%c12_246, %c2_247] : memref<27x16xf32, #tpu.memory_space<smem>>
      %414 = vector.broadcast %413 : f32 to vector<8x32xf32>
      %415 = arith.mulf %63, %414 : vector<8x32xf32>
      %416 = arith.addf %412, %415 : vector<8x32xf32>
      %c13_248 = arith.constant 13 : index
      %c2_249 = arith.constant 2 : index
      %417 = memref.load %arg3[%c13_248, %c2_249] : memref<27x16xf32, #tpu.memory_space<smem>>
      %418 = vector.broadcast %417 : f32 to vector<8x32xf32>
      %419 = arith.mulf %67, %418 : vector<8x32xf32>
      %420 = arith.addf %416, %419 : vector<8x32xf32>
      %c14_250 = arith.constant 14 : index
      %c2_251 = arith.constant 2 : index
      %421 = memref.load %arg3[%c14_250, %c2_251] : memref<27x16xf32, #tpu.memory_space<smem>>
      %422 = vector.broadcast %421 : f32 to vector<8x32xf32>
      %423 = arith.mulf %71, %422 : vector<8x32xf32>
      %424 = arith.addf %420, %423 : vector<8x32xf32>
      %c15_252 = arith.constant 15 : index
      %c2_253 = arith.constant 2 : index
      %425 = memref.load %arg3[%c15_252, %c2_253] : memref<27x16xf32, #tpu.memory_space<smem>>
      %426 = vector.broadcast %425 : f32 to vector<8x32xf32>
      %427 = arith.mulf %75, %426 : vector<8x32xf32>
      %428 = arith.addf %424, %427 : vector<8x32xf32>
      %c16_254 = arith.constant 16 : index
      %c2_255 = arith.constant 2 : index
      %429 = memref.load %arg3[%c16_254, %c2_255] : memref<27x16xf32, #tpu.memory_space<smem>>
      %430 = vector.broadcast %429 : f32 to vector<8x32xf32>
      %431 = arith.mulf %79, %430 : vector<8x32xf32>
      %432 = arith.addf %428, %431 : vector<8x32xf32>
      %c17_256 = arith.constant 17 : index
      %c2_257 = arith.constant 2 : index
      %433 = memref.load %arg3[%c17_256, %c2_257] : memref<27x16xf32, #tpu.memory_space<smem>>
      %434 = vector.broadcast %433 : f32 to vector<8x32xf32>
      %435 = arith.mulf %83, %434 : vector<8x32xf32>
      %436 = arith.addf %432, %435 : vector<8x32xf32>
      %c18_258 = arith.constant 18 : index
      %c2_259 = arith.constant 2 : index
      %437 = memref.load %arg3[%c18_258, %c2_259] : memref<27x16xf32, #tpu.memory_space<smem>>
      %438 = vector.broadcast %437 : f32 to vector<8x32xf32>
      %439 = arith.mulf %87, %438 : vector<8x32xf32>
      %440 = arith.addf %436, %439 : vector<8x32xf32>
      %c19_260 = arith.constant 19 : index
      %c2_261 = arith.constant 2 : index
      %441 = memref.load %arg3[%c19_260, %c2_261] : memref<27x16xf32, #tpu.memory_space<smem>>
      %442 = vector.broadcast %441 : f32 to vector<8x32xf32>
      %443 = arith.mulf %91, %442 : vector<8x32xf32>
      %444 = arith.addf %440, %443 : vector<8x32xf32>
      %c20_262 = arith.constant 20 : index
      %c2_263 = arith.constant 2 : index
      %445 = memref.load %arg3[%c20_262, %c2_263] : memref<27x16xf32, #tpu.memory_space<smem>>
      %446 = vector.broadcast %445 : f32 to vector<8x32xf32>
      %447 = arith.mulf %95, %446 : vector<8x32xf32>
      %448 = arith.addf %444, %447 : vector<8x32xf32>
      %c21_264 = arith.constant 21 : index
      %c2_265 = arith.constant 2 : index
      %449 = memref.load %arg3[%c21_264, %c2_265] : memref<27x16xf32, #tpu.memory_space<smem>>
      %450 = vector.broadcast %449 : f32 to vector<8x32xf32>
      %451 = arith.mulf %99, %450 : vector<8x32xf32>
      %452 = arith.addf %448, %451 : vector<8x32xf32>
      %c22_266 = arith.constant 22 : index
      %c2_267 = arith.constant 2 : index
      %453 = memref.load %arg3[%c22_266, %c2_267] : memref<27x16xf32, #tpu.memory_space<smem>>
      %454 = vector.broadcast %453 : f32 to vector<8x32xf32>
      %455 = arith.mulf %103, %454 : vector<8x32xf32>
      %456 = arith.addf %452, %455 : vector<8x32xf32>
      %c23_268 = arith.constant 23 : index
      %c2_269 = arith.constant 2 : index
      %457 = memref.load %arg3[%c23_268, %c2_269] : memref<27x16xf32, #tpu.memory_space<smem>>
      %458 = vector.broadcast %457 : f32 to vector<8x32xf32>
      %459 = arith.mulf %107, %458 : vector<8x32xf32>
      %460 = arith.addf %456, %459 : vector<8x32xf32>
      %c24_270 = arith.constant 24 : index
      %c2_271 = arith.constant 2 : index
      %461 = memref.load %arg3[%c24_270, %c2_271] : memref<27x16xf32, #tpu.memory_space<smem>>
      %462 = vector.broadcast %461 : f32 to vector<8x32xf32>
      %463 = arith.mulf %111, %462 : vector<8x32xf32>
      %464 = arith.addf %460, %463 : vector<8x32xf32>
      %c25_272 = arith.constant 25 : index
      %c2_273 = arith.constant 2 : index
      %465 = memref.load %arg3[%c25_272, %c2_273] : memref<27x16xf32, #tpu.memory_space<smem>>
      %466 = vector.broadcast %465 : f32 to vector<8x32xf32>
      %467 = arith.mulf %115, %466 : vector<8x32xf32>
      %468 = arith.addf %464, %467 : vector<8x32xf32>
      %c26_274 = arith.constant 26 : index
      %c2_275 = arith.constant 2 : index
      %469 = memref.load %arg3[%c26_274, %c2_275] : memref<27x16xf32, #tpu.memory_space<smem>>
      %470 = vector.broadcast %469 : f32 to vector<8x32xf32>
      %471 = arith.mulf %119, %470 : vector<8x32xf32>
      %472 = arith.addf %468, %471 : vector<8x32xf32>
      %c8_i32_276 = arith.constant 8 : i32
      %473 = arith.muli %9, %c8_i32_276 : i32
      %c0_277 = arith.constant 0 : index
      %c2_278 = arith.constant 2 : index
      %474 = arith.index_cast %473 : i32 to index
      %c0_279 = arith.constant 0 : index
      %475 = vector.load %arg4[%c0_277, %c2_278, %474, %c0_279] : memref<1x16x32x32xf32, #tpu.memory_space<vmem>>, vector<1x1x8x32xf32>
      %476 = vector.shape_cast %475 : vector<1x1x8x32xf32> to vector<8x32xf32>
      %477 = vector.shape_cast %472 : vector<8x32xf32> to vector<1x1x8x32xf32>
      tpu.vector_store %arg4[%c0_277, %c2_278, %474, %c0_279], %477 {strides = array<i32>} : memref<1x16x32x32xf32, #tpu.memory_space<vmem>>, vector<1x1x8x32xf32>,
      %c2_280 = arith.constant 2 : index
      %c0_281 = arith.constant 0 : index
      %478 = vector.load %arg6[%c2_280, %c0_281] : memref<16x32xf32, #tpu.memory_space<vmem>>, vector<1x32xf32>
      %cst_282 = arith.constant dense<0.000000e+00> : vector<32xf32>
      %479 = vector.multi_reduction <add>, %472, %cst_282 [0] : vector<8x32xf32> to vector<32xf32>
      %480 = vector.shape_cast %479 : vector<32xf32> to vector<1x32xf32>
      %481 = arith.addf %478, %480 : vector<1x32xf32>
      %c2_283 = arith.constant 2 : index
      %c0_284 = arith.constant 0 : index
      %482 = vector.load %arg6[%c2_283, %c0_284] : memref<16x32xf32, #tpu.memory_space<vmem>>, vector<1x32xf32>
      tpu.vector_store %arg6[%c2_283, %c0_284], %481 {strides = array<i32>} : memref<16x32xf32, #tpu.memory_space<vmem>>, vector<1x32xf32>,
      %c2_285 = arith.constant 2 : index
      %c0_286 = arith.constant 0 : index
      %483 = vector.load %arg7[%c2_285, %c0_286] : memref<16x32xf32, #tpu.memory_space<vmem>>, vector<1x32xf32>
      %484 = arith.mulf %472, %472 : vector<8x32xf32>
      %cst_287 = arith.constant dense<0.000000e+00> : vector<32xf32>
      %485 = vector.multi_reduction <add>, %484, %cst_287 [0] : vector<8x32xf32> to vector<32xf32>
      %486 = vector.shape_cast %485 : vector<32xf32> to vector<1x32xf32>
      %487 = arith.addf %483, %486 : vector<1x32xf32>
      %c2_288 = arith.constant 2 : index
      %c0_289 = arith.constant 0 : index
      %488 = vector.load %arg7[%c2_288, %c0_289] : memref<16x32xf32, #tpu.memory_space<vmem>>, vector<1x32xf32>
      tpu.vector_store %arg7[%c2_288, %c0_289], %487 {strides = array<i32>} : memref<16x32xf32, #tpu.memory_space<vmem>>, vector<1x32xf32>,
      %c0_290 = arith.constant 0 : index
      %c3_291 = arith.constant 3 : index
      %489 = memref.load %arg3[%c0_290, %c3_291] : memref<27x16xf32, #tpu.memory_space<smem>>
      %490 = vector.broadcast %489 : f32 to vector<8x32xf32>
      %491 = arith.mulf %15, %490 : vector<8x32xf32>
      %c1_292 = arith.constant 1 : index
      %c3_293 = arith.constant 3 : index
      %492 = memref.load %arg3[%c1_292, %c3_293] : memref<27x16xf32, #tpu.memory_space<smem>>
      %493 = vector.broadcast %492 : f32 to vector<8x32xf32>
      %494 = arith.mulf %19, %493 : vector<8x32xf32>
      %495 = arith.addf %491, %494 : vector<8x32xf32>
      %c2_294 = arith.constant 2 : index
      %c3_295 = arith.constant 3 : index
      %496 = memref.load %arg3[%c2_294, %c3_295] : memref<27x16xf32, #tpu.memory_space<smem>>
      %497 = vector.broadcast %496 : f32 to vector<8x32xf32>
      %498 = arith.mulf %23, %497 : vector<8x32xf32>
      %499 = arith.addf %495, %498 : vector<8x32xf32>
      %c3_296 = arith.constant 3 : index
      %c3_297 = arith.constant 3 : index
      %500 = memref.load %arg3[%c3_296, %c3_297] : memref<27x16xf32, #tpu.memory_space<smem>>
      %501 = vector.broadcast %500 : f32 to vector<8x32xf32>
      %502 = arith.mulf %27, %501 : vector<8x32xf32>
      %503 = arith.addf %499, %502 : vector<8x32xf32>
      %c4_298 = arith.constant 4 : index
      %c3_299 = arith.constant 3 : index
      %504 = memref.load %arg3[%c4_298, %c3_299] : memref<27x16xf32, #tpu.memory_space<smem>>
      %505 = vector.broadcast %504 : f32 to vector<8x32xf32>
      %506 = arith.mulf %31, %505 : vector<8x32xf32>
      %507 = arith.addf %503, %506 : vector<8x32xf32>
      %c5_300 = arith.constant 5 : index
      %c3_301 = arith.constant 3 : index
      %508 = memref.load %arg3[%c5_300, %c3_301] : memref<27x16xf32, #tpu.memory_space<smem>>
      %509 = vector.broadcast %508 : f32 to vector<8x32xf32>
      %510 = arith.mulf %35, %509 : vector<8x32xf32>
      %511 = arith.addf %507, %510 : vector<8x32xf32>
      %c6_302 = arith.constant 6 : index
      %c3_303 = arith.constant 3 : index
      %512 = memref.load %arg3[%c6_302, %c3_303] : memref<27x16xf32, #tpu.memory_space<smem>>
      %513 = vector.broadcast %512 : f32 to vector<8x32xf32>
      %514 = arith.mulf %39, %513 : vector<8x32xf32>
      %515 = arith.addf %511, %514 : vector<8x32xf32>
      %c7_304 = arith.constant 7 : index
      %c3_305 = arith.constant 3 : index
      %516 = memref.load %arg3[%c7_304, %c3_305] : memref<27x16xf32, #tpu.memory_space<smem>>
      %517 = vector.broadcast %516 : f32 to vector<8x32xf32>
      %518 = arith.mulf %43, %517 : vector<8x32xf32>
      %519 = arith.addf %515, %518 : vector<8x32xf32>
      %c8_306 = arith.constant 8 : index
      %c3_307 = arith.constant 3 : index
      %520 = memref.load %arg3[%c8_306, %c3_307] : memref<27x16xf32, #tpu.memory_space<smem>>
      %521 = vector.broadcast %520 : f32 to vector<8x32xf32>
      %522 = arith.mulf %47, %521 : vector<8x32xf32>
      %523 = arith.addf %519, %522 : vector<8x32xf32>
      %c9_308 = arith.constant 9 : index
      %c3_309 = arith.constant 3 : index
      %524 = memref.load %arg3[%c9_308, %c3_309] : memref<27x16xf32, #tpu.memory_space<smem>>
      %525 = vector.broadcast %524 : f32 to vector<8x32xf32>
      %526 = arith.mulf %51, %525 : vector<8x32xf32>
      %527 = arith.addf %523, %526 : vector<8x32xf32>
      %c10_310 = arith.constant 10 : index
      %c3_311 = arith.constant 3 : index
      %528 = memref.load %arg3[%c10_310, %c3_311] : memref<27x16xf32, #tpu.memory_space<smem>>
      %529 = vector.broadcast %528 : f32 to vector<8x32xf32>
      %530 = arith.mulf %55, %529 : vector<8x32xf32>
      %531 = arith.addf %527, %530 : vector<8x32xf32>
      %c11_312 = arith.constant 11 : index
      %c3_313 = arith.constant 3 : index
      %532 = memref.load %arg3[%c11_312, %c3_313] : memref<27x16xf32, #tpu.memory_space<smem>>
      %533 = vector.broadcast %532 : f32 to vector<8x32xf32>
      %534 = arith.mulf %59, %533 : vector<8x32xf32>
      %535 = arith.addf %531, %534 : vector<8x32xf32>
      %c12_314 = arith.constant 12 : index
      %c3_315 = arith.constant 3 : index
      %536 = memref.load %arg3[%c12_314, %c3_315] : memref<27x16xf32, #tpu.memory_space<smem>>
      %537 = vector.broadcast %536 : f32 to vector<8x32xf32>
      %538 = arith.mulf %63, %537 : vector<8x32xf32>
      %539 = arith.addf %535, %538 : vector<8x32xf32>
      %c13_316 = arith.constant 13 : index
      %c3_317 = arith.constant 3 : index
      %540 = memref.load %arg3[%c13_316, %c3_317] : memref<27x16xf32, #tpu.memory_space<smem>>
      %541 = vector.broadcast %540 : f32 to vector<8x32xf32>
      %542 = arith.mulf %67, %541 : vector<8x32xf32>
      %543 = arith.addf %539, %542 : vector<8x32xf32>
      %c14_318 = arith.constant 14 : index
      %c3_319 = arith.constant 3 : index
      %544 = memref.load %arg3[%c14_318, %c3_319] : memref<27x16xf32, #tpu.memory_space<smem>>
      %545 = vector.broadcast %544 : f32 to vector<8x32xf32>
      %546 = arith.mulf %71, %545 : vector<8x32xf32>
      %547 = arith.addf %543, %546 : vector<8x32xf32>
      %c15_320 = arith.constant 15 : index
      %c3_321 = arith.constant 3 : index
      %548 = memref.load %arg3[%c15_320, %c3_321] : memref<27x16xf32, #tpu.memory_space<smem>>
      %549 = vector.broadcast %548 : f32 to vector<8x32xf32>
      %550 = arith.mulf %75, %549 : vector<8x32xf32>
      %551 = arith.addf %547, %550 : vector<8x32xf32>
      %c16_322 = arith.constant 16 : index
      %c3_323 = arith.constant 3 : index
      %552 = memref.load %arg3[%c16_322, %c3_323] : memref<27x16xf32, #tpu.memory_space<smem>>
      %553 = vector.broadcast %552 : f32 to vector<8x32xf32>
      %554 = arith.mulf %79, %553 : vector<8x32xf32>
      %555 = arith.addf %551, %554 : vector<8x32xf32>
      %c17_324 = arith.constant 17 : index
      %c3_325 = arith.constant 3 : index
      %556 = memref.load %arg3[%c17_324, %c3_325] : memref<27x16xf32, #tpu.memory_space<smem>>
      %557 = vector.broadcast %556 : f32 to vector<8x32xf32>
      %558 = arith.mulf %83, %557 : vector<8x32xf32>
      %559 = arith.addf %555, %558 : vector<8x32xf32>
      %c18_326 = arith.constant 18 : index
      %c3_327 = arith.constant 3 : index
      %560 = memref.load %arg3[%c18_326, %c3_327] : memref<27x16xf32, #tpu.memory_space<smem>>
      %561 = vector.broadcast %560 : f32 to vector<8x32xf32>
      %562 = arith.mulf %87, %561 : vector<8x32xf32>
      %563 = arith.addf %559, %562 : vector<8x32xf32>
      %c19_328 = arith.constant 19 : index
      %c3_329 = arith.constant 3 : index
      %564 = memref.load %arg3[%c19_328, %c3_329] : memref<27x16xf32, #tpu.memory_space<smem>>
      %565 = vector.broadcast %564 : f32 to vector<8x32xf32>
      %566 = arith.mulf %91, %565 : vector<8x32xf32>
      %567 = arith.addf %563, %566 : vector<8x32xf32>
      %c20_330 = arith.constant 20 : index
      %c3_331 = arith.constant 3 : index
      %568 = memref.load %arg3[%c20_330, %c3_331] : memref<27x16xf32, #tpu.memory_space<smem>>
      %569 = vector.broadcast %568 : f32 to vector<8x32xf32>
      %570 = arith.mulf %95, %569 : vector<8x32xf32>
      %571 = arith.addf %567, %570 : vector<8x32xf32>
      %c21_332 = arith.constant 21 : index
      %c3_333 = arith.constant 3 : index
      %572 = memref.load %arg3[%c21_332, %c3_333] : memref<27x16xf32, #tpu.memory_space<smem>>
      %573 = vector.broadcast %572 : f32 to vector<8x32xf32>
      %574 = arith.mulf %99, %573 : vector<8x32xf32>
      %575 = arith.addf %571, %574 : vector<8x32xf32>
      %c22_334 = arith.constant 22 : index
      %c3_335 = arith.constant 3 : index
      %576 = memref.load %arg3[%c22_334, %c3_335] : memref<27x16xf32, #tpu.memory_space<smem>>
      %577 = vector.broadcast %576 : f32 to vector<8x32xf32>
      %578 = arith.mulf %103, %577 : vector<8x32xf32>
      %579 = arith.addf %575, %578 : vector<8x32xf32>
      %c23_336 = arith.constant 23 : index
      %c3_337 = arith.constant 3 : index
      %580 = memref.load %arg3[%c23_336, %c3_337] : memref<27x16xf32, #tpu.memory_space<smem>>
      %581 = vector.broadcast %580 : f32 to vector<8x32xf32>
      %582 = arith.mulf %107, %581 : vector<8x32xf32>
      %583 = arith.addf %579, %582 : vector<8x32xf32>
      %c24_338 = arith.constant 24 : index
      %c3_339 = arith.constant 3 : index
      %584 = memref.load %arg3[%c24_338, %c3_339] : memref<27x16xf32, #tpu.memory_space<smem>>
      %585 = vector.broadcast %584 : f32 to vector<8x32xf32>
      %586 = arith.mulf %111, %585 : vector<8x32xf32>
      %587 = arith.addf %583, %586 : vector<8x32xf32>
      %c25_340 = arith.constant 25 : index
      %c3_341 = arith.constant 3 : index
      %588 = memref.load %arg3[%c25_340, %c3_341] : memref<27x16xf32, #tpu.memory_space<smem>>
      %589 = vector.broadcast %588 : f32 to vector<8x32xf32>
      %590 = arith.mulf %115, %589 : vector<8x32xf32>
      %591 = arith.addf %587, %590 : vector<8x32xf32>
      %c26_342 = arith.constant 26 : index
      %c3_343 = arith.constant 3 : index
      %592 = memref.load %arg3[%c26_342, %c3_343] : memref<27x16xf32, #tpu.memory_space<smem>>
      %593 = vector.broadcast %592 : f32 to vector<8x32xf32>
      %594 = arith.mulf %119, %593 : vector<8x32xf32>
      %595 = arith.addf %591, %594 : vector<8x32xf32>
      %c8_i32_344 = arith.constant 8 : i32
      %596 = arith.muli %9, %c8_i32_344 : i32
      %c0_345 = arith.constant 0 : index
      %c3_346 = arith.constant 3 : index
      %597 = arith.index_cast %596 : i32 to index
      %c0_347 = arith.constant 0 : index
      %598 = vector.load %arg4[%c0_345, %c3_346, %597, %c0_347] : memref<1x16x32x32xf32, #tpu.memory_space<vmem>>, vector<1x1x8x32xf32>
      %599 = vector.shape_cast %598 : vector<1x1x8x32xf32> to vector<8x32xf32>
      %600 = vector.shape_cast %595 : vector<8x32xf32> to vector<1x1x8x32xf32>
      tpu.vector_store %arg4[%c0_345, %c3_346, %597, %c0_347], %600 {strides = array<i32>} : memref<1x16x32x32xf32, #tpu.memory_space<vmem>>, vector<1x1x8x32xf32>,
      %c3_348 = arith.constant 3 : index
      %c0_349 = arith.constant 0 : index
      %601 = vector.load %arg6[%c3_348, %c0_349] : memref<16x32xf32, #tpu.memory_space<vmem>>, vector<1x32xf32>
      %cst_350 = arith.constant dense<0.000000e+00> : vector<32xf32>
      %602 = vector.multi_reduction <add>, %595, %cst_350 [0] : vector<8x32xf32> to vector<32xf32>
      %603 = vector.shape_cast %602 : vector<32xf32> to vector<1x32xf32>
      %604 = arith.addf %601, %603 : vector<1x32xf32>
      %c3_351 = arith.constant 3 : index
      %c0_352 = arith.constant 0 : index
      %605 = vector.load %arg6[%c3_351, %c0_352] : memref<16x32xf32, #tpu.memory_space<vmem>>, vector<1x32xf32>
      tpu.vector_store %arg6[%c3_351, %c0_352], %604 {strides = array<i32>} : memref<16x32xf32, #tpu.memory_space<vmem>>, vector<1x32xf32>,
      %c3_353 = arith.constant 3 : index
      %c0_354 = arith.constant 0 : index
      %606 = vector.load %arg7[%c3_353, %c0_354] : memref<16x32xf32, #tpu.memory_space<vmem>>, vector<1x32xf32>
      %607 = arith.mulf %595, %595 : vector<8x32xf32>
      %cst_355 = arith.constant dense<0.000000e+00> : vector<32xf32>
      %608 = vector.multi_reduction <add>, %607, %cst_355 [0] : vector<8x32xf32> to vector<32xf32>
      %609 = vector.shape_cast %608 : vector<32xf32> to vector<1x32xf32>
      %610 = arith.addf %606, %609 : vector<1x32xf32>
      %c3_356 = arith.constant 3 : index
      %c0_357 = arith.constant 0 : index
      %611 = vector.load %arg7[%c3_356, %c0_357] : memref<16x32xf32, #tpu.memory_space<vmem>>, vector<1x32xf32>
      tpu.vector_store %arg7[%c3_356, %c0_357], %610 {strides = array<i32>} : memref<16x32xf32, #tpu.memory_space<vmem>>, vector<1x32xf32>,
      %c0_358 = arith.constant 0 : index
      %c4_359 = arith.constant 4 : index
      %612 = memref.load %arg3[%c0_358, %c4_359] : memref<27x16xf32, #tpu.memory_space<smem>>
      %613 = vector.broadcast %612 : f32 to vector<8x32xf32>
      %614 = arith.mulf %15, %613 : vector<8x32xf32>
      %c1_360 = arith.constant 1 : index
      %c4_361 = arith.constant 4 : index
      %615 = memref.load %arg3[%c1_360, %c4_361] : memref<27x16xf32, #tpu.memory_space<smem>>
      %616 = vector.broadcast %615 : f32 to vector<8x32xf32>
      %617 = arith.mulf %19, %616 : vector<8x32xf32>
      %618 = arith.addf %614, %617 : vector<8x32xf32>
      %c2_362 = arith.constant 2 : index
      %c4_363 = arith.constant 4 : index
      %619 = memref.load %arg3[%c2_362, %c4_363] : memref<27x16xf32, #tpu.memory_space<smem>>
      %620 = vector.broadcast %619 : f32 to vector<8x32xf32>
      %621 = arith.mulf %23, %620 : vector<8x32xf32>
      %622 = arith.addf %618, %621 : vector<8x32xf32>
      %c3_364 = arith.constant 3 : index
      %c4_365 = arith.constant 4 : index
      %623 = memref.load %arg3[%c3_364, %c4_365] : memref<27x16xf32, #tpu.memory_space<smem>>
      %624 = vector.broadcast %623 : f32 to vector<8x32xf32>
      %625 = arith.mulf %27, %624 : vector<8x32xf32>
      %626 = arith.addf %622, %625 : vector<8x32xf32>
      %c4_366 = arith.constant 4 : index
      %c4_367 = arith.constant 4 : index
      %627 = memref.load %arg3[%c4_366, %c4_367] : memref<27x16xf32, #tpu.memory_space<smem>>
      %628 = vector.broadcast %627 : f32 to vector<8x32xf32>
      %629 = arith.mulf %31, %628 : vector<8x32xf32>
      %630 = arith.addf %626, %629 : vector<8x32xf32>
      %c5_368 = arith.constant 5 : index
      %c4_369 = arith.constant 4 : index
      %631 = memref.load %arg3[%c5_368, %c4_369] : memref<27x16xf32, #tpu.memory_space<smem>>
      %632 = vector.broadcast %631 : f32 to vector<8x32xf32>
      %633 = arith.mulf %35, %632 : vector<8x32xf32>
      %634 = arith.addf %630, %633 : vector<8x32xf32>
      %c6_370 = arith.constant 6 : index
      %c4_371 = arith.constant 4 : index
      %635 = memref.load %arg3[%c6_370, %c4_371] : memref<27x16xf32, #tpu.memory_space<smem>>
      %636 = vector.broadcast %635 : f32 to vector<8x32xf32>
      %637 = arith.mulf %39, %636 : vector<8x32xf32>
      %638 = arith.addf %634, %637 : vector<8x32xf32>
      %c7_372 = arith.constant 7 : index
      %c4_373 = arith.constant 4 : index
      %639 = memref.load %arg3[%c7_372, %c4_373] : memref<27x16xf32, #tpu.memory_space<smem>>
      %640 = vector.broadcast %639 : f32 to vector<8x32xf32>
      %641 = arith.mulf %43, %640 : vector<8x32xf32>
      %642 = arith.addf %638, %641 : vector<8x32xf32>
      %c8_374 = arith.constant 8 : index
      %c4_375 = arith.constant 4 : index
      %643 = memref.load %arg3[%c8_374, %c4_375] : memref<27x16xf32, #tpu.memory_space<smem>>
      %644 = vector.broadcast %643 : f32 to vector<8x32xf32>
      %645 = arith.mulf %47, %644 : vector<8x32xf32>
      %646 = arith.addf %642, %645 : vector<8x32xf32>
      %c9_376 = arith.constant 9 : index
      %c4_377 = arith.constant 4 : index
      %647 = memref.load %arg3[%c9_376, %c4_377] : memref<27x16xf32, #tpu.memory_space<smem>>
      %648 = vector.broadcast %647 : f32 to vector<8x32xf32>
      %649 = arith.mulf %51, %648 : vector<8x32xf32>
      %650 = arith.addf %646, %649 : vector<8x32xf32>
      %c10_378 = arith.constant 10 : index
      %c4_379 = arith.constant 4 : index
      %651 = memref.load %arg3[%c10_378, %c4_379] : memref<27x16xf32, #tpu.memory_space<smem>>
      %652 = vector.broadcast %651 : f32 to vector<8x32xf32>
      %653 = arith.mulf %55, %652 : vector<8x32xf32>
      %654 = arith.addf %650, %653 : vector<8x32xf32>
      %c11_380 = arith.constant 11 : index
      %c4_381 = arith.constant 4 : index
      %655 = memref.load %arg3[%c11_380, %c4_381] : memref<27x16xf32, #tpu.memory_space<smem>>
      %656 = vector.broadcast %655 : f32 to vector<8x32xf32>
      %657 = arith.mulf %59, %656 : vector<8x32xf32>
      %658 = arith.addf %654, %657 : vector<8x32xf32>
      %c12_382 = arith.constant 12 : index
      %c4_383 = arith.constant 4 : index
      %659 = memref.load %arg3[%c12_382, %c4_383] : memref<27x16xf32, #tpu.memory_space<smem>>
      %660 = vector.broadcast %659 : f32 to vector<8x32xf32>
      %661 = arith.mulf %63, %660 : vector<8x32xf32>
      %662 = arith.addf %658, %661 : vector<8x32xf32>
      %c13_384 = arith.constant 13 : index
      %c4_385 = arith.constant 4 : index
      %663 = memref.load %arg3[%c13_384, %c4_385] : memref<27x16xf32, #tpu.memory_space<smem>>
      %664 = vector.broadcast %663 : f32 to vector<8x32xf32>
      %665 = arith.mulf %67, %664 : vector<8x32xf32>
      %666 = arith.addf %662, %665 : vector<8x32xf32>
      %c14_386 = arith.constant 14 : index
      %c4_387 = arith.constant 4 : index
      %667 = memref.load %arg3[%c14_386, %c4_387] : memref<27x16xf32, #tpu.memory_space<smem>>
      %668 = vector.broadcast %667 : f32 to vector<8x32xf32>
      %669 = arith.mulf %71, %668 : vector<8x32xf32>
      %670 = arith.addf %666, %669 : vector<8x32xf32>
      %c15_388 = arith.constant 15 : index
      %c4_389 = arith.constant 4 : index
      %671 = memref.load %arg3[%c15_388, %c4_389] : memref<27x16xf32, #tpu.memory_space<smem>>
      %672 = vector.broadcast %671 : f32 to vector<8x32xf32>
      %673 = arith.mulf %75, %672 : vector<8x32xf32>
      %674 = arith.addf %670, %673 : vector<8x32xf32>
      %c16_390 = arith.constant 16 : index
      %c4_391 = arith.constant 4 : index
      %675 = memref.load %arg3[%c16_390, %c4_391] : memref<27x16xf32, #tpu.memory_space<smem>>
      %676 = vector.broadcast %675 : f32 to vector<8x32xf32>
      %677 = arith.mulf %79, %676 : vector<8x32xf32>
      %678 = arith.addf %674, %677 : vector<8x32xf32>
      %c17_392 = arith.constant 17 : index
      %c4_393 = arith.constant 4 : index
      %679 = memref.load %arg3[%c17_392, %c4_393] : memref<27x16xf32, #tpu.memory_space<smem>>
      %680 = vector.broadcast %679 : f32 to vector<8x32xf32>
      %681 = arith.mulf %83, %680 : vector<8x32xf32>
      %682 = arith.addf %678, %681 : vector<8x32xf32>
      %c18_394 = arith.constant 18 : index
      %c4_395 = arith.constant 4 : index
      %683 = memref.load %arg3[%c18_394, %c4_395] : memref<27x16xf32, #tpu.memory_space<smem>>
      %684 = vector.broadcast %683 : f32 to vector<8x32xf32>
      %685 = arith.mulf %87, %684 : vector<8x32xf32>
      %686 = arith.addf %682, %685 : vector<8x32xf32>
      %c19_396 = arith.constant 19 : index
      %c4_397 = arith.constant 4 : index
      %687 = memref.load %arg3[%c19_396, %c4_397] : memref<27x16xf32, #tpu.memory_space<smem>>
      %688 = vector.broadcast %687 : f32 to vector<8x32xf32>
      %689 = arith.mulf %91, %688 : vector<8x32xf32>
      %690 = arith.addf %686, %689 : vector<8x32xf32>
      %c20_398 = arith.constant 20 : index
      %c4_399 = arith.constant 4 : index
      %691 = memref.load %arg3[%c20_398, %c4_399] : memref<27x16xf32, #tpu.memory_space<smem>>
      %692 = vector.broadcast %691 : f32 to vector<8x32xf32>
      %693 = arith.mulf %95, %692 : vector<8x32xf32>
      %694 = arith.addf %690, %693 : vector<8x32xf32>
      %c21_400 = arith.constant 21 : index
      %c4_401 = arith.constant 4 : index
      %695 = memref.load %arg3[%c21_400, %c4_401] : memref<27x16xf32, #tpu.memory_space<smem>>
      %696 = vector.broadcast %695 : f32 to vector<8x32xf32>
      %697 = arith.mulf %99, %696 : vector<8x32xf32>
      %698 = arith.addf %694, %697 : vector<8x32xf32>
      %c22_402 = arith.constant 22 : index
      %c4_403 = arith.constant 4 : index
      %699 = memref.load %arg3[%c22_402, %c4_403] : memref<27x16xf32, #tpu.memory_space<smem>>
      %700 = vector.broadcast %699 : f32 to vector<8x32xf32>
      %701 = arith.mulf %103, %700 : vector<8x32xf32>
      %702 = arith.addf %698, %701 : vector<8x32xf32>
      %c23_404 = arith.constant 23 : index
      %c4_405 = arith.constant 4 : index
      %703 = memref.load %arg3[%c23_404, %c4_405] : memref<27x16xf32, #tpu.memory_space<smem>>
      %704 = vector.broadcast %703 : f32 to vector<8x32xf32>
      %705 = arith.mulf %107, %704 : vector<8x32xf32>
      %706 = arith.addf %702, %705 : vector<8x32xf32>
      %c24_406 = arith.constant 24 : index
      %c4_407 = arith.constant 4 : index
      %707 = memref.load %arg3[%c24_406, %c4_407] : memref<27x16xf32, #tpu.memory_space<smem>>
      %708 = vector.broadcast %707 : f32 to vector<8x32xf32>
      %709 = arith.mulf %111, %708 : vector<8x32xf32>
      %710 = arith.addf %706, %709 : vector<8x32xf32>
      %c25_408 = arith.constant 25 : index
      %c4_409 = arith.constant 4 : index
      %711 = memref.load %arg3[%c25_408, %c4_409] : memref<27x16xf32, #tpu.memory_space<smem>>
      %712 = vector.broadcast %711 : f32 to vector<8x32xf32>
      %713 = arith.mulf %115, %712 : vector<8x32xf32>
      %714 = arith.addf %710, %713 : vector<8x32xf32>
      %c26_410 = arith.constant 26 : index
      %c4_411 = arith.constant 4 : index
      %715 = memref.load %arg3[%c26_410, %c4_411] : memref<27x16xf32, #tpu.memory_space<smem>>
      %716 = vector.broadcast %715 : f32 to vector<8x32xf32>
      %717 = arith.mulf %119, %716 : vector<8x32xf32>
      %718 = arith.addf %714, %717 : vector<8x32xf32>
      %c8_i32_412 = arith.constant 8 : i32
      %719 = arith.muli %9, %c8_i32_412 : i32
      %c0_413 = arith.constant 0 : index
      %c4_414 = arith.constant 4 : index
      %720 = arith.index_cast %719 : i32 to index
      %c0_415 = arith.constant 0 : index
      %721 = vector.load %arg4[%c0_413, %c4_414, %720, %c0_415] : memref<1x16x32x32xf32, #tpu.memory_space<vmem>>, vector<1x1x8x32xf32>
      %722 = vector.shape_cast %721 : vector<1x1x8x32xf32> to vector<8x32xf32>
      %723 = vector.shape_cast %718 : vector<8x32xf32> to vector<1x1x8x32xf32>
      tpu.vector_store %arg4[%c0_413, %c4_414, %720, %c0_415], %723 {strides = array<i32>} : memref<1x16x32x32xf32, #tpu.memory_space<vmem>>, vector<1x1x8x32xf32>,
      %c4_416 = arith.constant 4 : index
      %c0_417 = arith.constant 0 : index
      %724 = vector.load %arg6[%c4_416, %c0_417] : memref<16x32xf32, #tpu.memory_space<vmem>>, vector<1x32xf32>
      %cst_418 = arith.constant dense<0.000000e+00> : vector<32xf32>
      %725 = vector.multi_reduction <add>, %718, %cst_418 [0] : vector<8x32xf32> to vector<32xf32>
      %726 = vector.shape_cast %725 : vector<32xf32> to vector<1x32xf32>
      %727 = arith.addf %724, %726 : vector<1x32xf32>
      %c4_419 = arith.constant 4 : index
      %c0_420 = arith.constant 0 : index
      %728 = vector.load %arg6[%c4_419, %c0_420] : memref<16x32xf32, #tpu.memory_space<vmem>>, vector<1x32xf32>
      tpu.vector_store %arg6[%c4_419, %c0_420], %727 {strides = array<i32>} : memref<16x32xf32, #tpu.memory_space<vmem>>, vector<1x32xf32>,
      %c4_421 = arith.constant 4 : index
      %c0_422 = arith.constant 0 : index
      %729 = vector.load %arg7[%c4_421, %c0_422] : memref<16x32xf32, #tpu.memory_space<vmem>>, vector<1x32xf32>
      %730 = arith.mulf %718, %718 : vector<8x32xf32>
      %cst_423 = arith.constant dense<0.000000e+00> : vector<32xf32>
      %731 = vector.multi_reduction <add>, %730, %cst_423 [0] : vector<8x32xf32> to vector<32xf32>
      %732 = vector.shape_cast %731 : vector<32xf32> to vector<1x32xf32>
      %733 = arith.addf %729, %732 : vector<1x32xf32>
      %c4_424 = arith.constant 4 : index
      %c0_425 = arith.constant 0 : index
      %734 = vector.load %arg7[%c4_424, %c0_425] : memref<16x32xf32, #tpu.memory_space<vmem>>, vector<1x32xf32>
      tpu.vector_store %arg7[%c4_424, %c0_425], %733 {strides = array<i32>} : memref<16x32xf32, #tpu.memory_space<vmem>>, vector<1x32xf32>,
      %c0_426 = arith.constant 0 : index
      %c5_427 = arith.constant 5 : index
      %735 = memref.load %arg3[%c0_426, %c5_427] : memref<27x16xf32, #tpu.memory_space<smem>>
      %736 = vector.broadcast %735 : f32 to vector<8x32xf32>
      %737 = arith.mulf %15, %736 : vector<8x32xf32>
      %c1_428 = arith.constant 1 : index
      %c5_429 = arith.constant 5 : index
      %738 = memref.load %arg3[%c1_428, %c5_429] : memref<27x16xf32, #tpu.memory_space<smem>>
      %739 = vector.broadcast %738 : f32 to vector<8x32xf32>
      %740 = arith.mulf %19, %739 : vector<8x32xf32>
      %741 = arith.addf %737, %740 : vector<8x32xf32>
      %c2_430 = arith.constant 2 : index
      %c5_431 = arith.constant 5 : index
      %742 = memref.load %arg3[%c2_430, %c5_431] : memref<27x16xf32, #tpu.memory_space<smem>>
      %743 = vector.broadcast %742 : f32 to vector<8x32xf32>
      %744 = arith.mulf %23, %743 : vector<8x32xf32>
      %745 = arith.addf %741, %744 : vector<8x32xf32>
      %c3_432 = arith.constant 3 : index
      %c5_433 = arith.constant 5 : index
      %746 = memref.load %arg3[%c3_432, %c5_433] : memref<27x16xf32, #tpu.memory_space<smem>>
      %747 = vector.broadcast %746 : f32 to vector<8x32xf32>
      %748 = arith.mulf %27, %747 : vector<8x32xf32>
      %749 = arith.addf %745, %748 : vector<8x32xf32>
      %c4_434 = arith.constant 4 : index
      %c5_435 = arith.constant 5 : index
      %750 = memref.load %arg3[%c4_434, %c5_435] : memref<27x16xf32, #tpu.memory_space<smem>>
      %751 = vector.broadcast %750 : f32 to vector<8x32xf32>
      %752 = arith.mulf %31, %751 : vector<8x32xf32>
      %753 = arith.addf %749, %752 : vector<8x32xf32>
      %c5_436 = arith.constant 5 : index
      %c5_437 = arith.constant 5 : index
      %754 = memref.load %arg3[%c5_436, %c5_437] : memref<27x16xf32, #tpu.memory_space<smem>>
      %755 = vector.broadcast %754 : f32 to vector<8x32xf32>
      %756 = arith.mulf %35, %755 : vector<8x32xf32>
      %757 = arith.addf %753, %756 : vector<8x32xf32>
      %c6_438 = arith.constant 6 : index
      %c5_439 = arith.constant 5 : index
      %758 = memref.load %arg3[%c6_438, %c5_439] : memref<27x16xf32, #tpu.memory_space<smem>>
      %759 = vector.broadcast %758 : f32 to vector<8x32xf32>
      %760 = arith.mulf %39, %759 : vector<8x32xf32>
      %761 = arith.addf %757, %760 : vector<8x32xf32>
      %c7_440 = arith.constant 7 : index
      %c5_441 = arith.constant 5 : index
      %762 = memref.load %arg3[%c7_440, %c5_441] : memref<27x16xf32, #tpu.memory_space<smem>>
      %763 = vector.broadcast %762 : f32 to vector<8x32xf32>
      %764 = arith.mulf %43, %763 : vector<8x32xf32>
      %765 = arith.addf %761, %764 : vector<8x32xf32>
      %c8_442 = arith.constant 8 : index
      %c5_443 = arith.constant 5 : index
      %766 = memref.load %arg3[%c8_442, %c5_443] : memref<27x16xf32, #tpu.memory_space<smem>>
      %767 = vector.broadcast %766 : f32 to vector<8x32xf32>
      %768 = arith.mulf %47, %767 : vector<8x32xf32>
      %769 = arith.addf %765, %768 : vector<8x32xf32>
      %c9_444 = arith.constant 9 : index
      %c5_445 = arith.constant 5 : index
      %770 = memref.load %arg3[%c9_444, %c5_445] : memref<27x16xf32, #tpu.memory_space<smem>>
      %771 = vector.broadcast %770 : f32 to vector<8x32xf32>
      %772 = arith.mulf %51, %771 : vector<8x32xf32>
      %773 = arith.addf %769, %772 : vector<8x32xf32>
      %c10_446 = arith.constant 10 : index
      %c5_447 = arith.constant 5 : index
      %774 = memref.load %arg3[%c10_446, %c5_447] : memref<27x16xf32, #tpu.memory_space<smem>>
      %775 = vector.broadcast %774 : f32 to vector<8x32xf32>
      %776 = arith.mulf %55, %775 : vector<8x32xf32>
      %777 = arith.addf %773, %776 : vector<8x32xf32>
      %c11_448 = arith.constant 11 : index
      %c5_449 = arith.constant 5 : index
      %778 = memref.load %arg3[%c11_448, %c5_449] : memref<27x16xf32, #tpu.memory_space<smem>>
      %779 = vector.broadcast %778 : f32 to vector<8x32xf32>
      %780 = arith.mulf %59, %779 : vector<8x32xf32>
      %781 = arith.addf %777, %780 : vector<8x32xf32>
      %c12_450 = arith.constant 12 : index
      %c5_451 = arith.constant 5 : index
      %782 = memref.load %arg3[%c12_450, %c5_451] : memref<27x16xf32, #tpu.memory_space<smem>>
      %783 = vector.broadcast %782 : f32 to vector<8x32xf32>
      %784 = arith.mulf %63, %783 : vector<8x32xf32>
      %785 = arith.addf %781, %784 : vector<8x32xf32>
      %c13_452 = arith.constant 13 : index
      %c5_453 = arith.constant 5 : index
      %786 = memref.load %arg3[%c13_452, %c5_453] : memref<27x16xf32, #tpu.memory_space<smem>>
      %787 = vector.broadcast %786 : f32 to vector<8x32xf32>
      %788 = arith.mulf %67, %787 : vector<8x32xf32>
      %789 = arith.addf %785, %788 : vector<8x32xf32>
      %c14_454 = arith.constant 14 : index
      %c5_455 = arith.constant 5 : index
      %790 = memref.load %arg3[%c14_454, %c5_455] : memref<27x16xf32, #tpu.memory_space<smem>>
      %791 = vector.broadcast %790 : f32 to vector<8x32xf32>
      %792 = arith.mulf %71, %791 : vector<8x32xf32>
      %793 = arith.addf %789, %792 : vector<8x32xf32>
      %c15_456 = arith.constant 15 : index
      %c5_457 = arith.constant 5 : index
      %794 = memref.load %arg3[%c15_456, %c5_457] : memref<27x16xf32, #tpu.memory_space<smem>>
      %795 = vector.broadcast %794 : f32 to vector<8x32xf32>
      %796 = arith.mulf %75, %795 : vector<8x32xf32>
      %797 = arith.addf %793, %796 : vector<8x32xf32>
      %c16_458 = arith.constant 16 : index
      %c5_459 = arith.constant 5 : index
      %798 = memref.load %arg3[%c16_458, %c5_459] : memref<27x16xf32, #tpu.memory_space<smem>>
      %799 = vector.broadcast %798 : f32 to vector<8x32xf32>
      %800 = arith.mulf %79, %799 : vector<8x32xf32>
      %801 = arith.addf %797, %800 : vector<8x32xf32>
      %c17_460 = arith.constant 17 : index
      %c5_461 = arith.constant 5 : index
      %802 = memref.load %arg3[%c17_460, %c5_461] : memref<27x16xf32, #tpu.memory_space<smem>>
      %803 = vector.broadcast %802 : f32 to vector<8x32xf32>
      %804 = arith.mulf %83, %803 : vector<8x32xf32>
      %805 = arith.addf %801, %804 : vector<8x32xf32>
      %c18_462 = arith.constant 18 : index
      %c5_463 = arith.constant 5 : index
      %806 = memref.load %arg3[%c18_462, %c5_463] : memref<27x16xf32, #tpu.memory_space<smem>>
      %807 = vector.broadcast %806 : f32 to vector<8x32xf32>
      %808 = arith.mulf %87, %807 : vector<8x32xf32>
      %809 = arith.addf %805, %808 : vector<8x32xf32>
      %c19_464 = arith.constant 19 : index
      %c5_465 = arith.constant 5 : index
      %810 = memref.load %arg3[%c19_464, %c5_465] : memref<27x16xf32, #tpu.memory_space<smem>>
      %811 = vector.broadcast %810 : f32 to vector<8x32xf32>
      %812 = arith.mulf %91, %811 : vector<8x32xf32>
      %813 = arith.addf %809, %812 : vector<8x32xf32>
      %c20_466 = arith.constant 20 : index
      %c5_467 = arith.constant 5 : index
      %814 = memref.load %arg3[%c20_466, %c5_467] : memref<27x16xf32, #tpu.memory_space<smem>>
      %815 = vector.broadcast %814 : f32 to vector<8x32xf32>
      %816 = arith.mulf %95, %815 : vector<8x32xf32>
      %817 = arith.addf %813, %816 : vector<8x32xf32>
      %c21_468 = arith.constant 21 : index
      %c5_469 = arith.constant 5 : index
      %818 = memref.load %arg3[%c21_468, %c5_469] : memref<27x16xf32, #tpu.memory_space<smem>>
      %819 = vector.broadcast %818 : f32 to vector<8x32xf32>
      %820 = arith.mulf %99, %819 : vector<8x32xf32>
      %821 = arith.addf %817, %820 : vector<8x32xf32>
      %c22_470 = arith.constant 22 : index
      %c5_471 = arith.constant 5 : index
      %822 = memref.load %arg3[%c22_470, %c5_471] : memref<27x16xf32, #tpu.memory_space<smem>>
      %823 = vector.broadcast %822 : f32 to vector<8x32xf32>
      %824 = arith.mulf %103, %823 : vector<8x32xf32>
      %825 = arith.addf %821, %824 : vector<8x32xf32>
      %c23_472 = arith.constant 23 : index
      %c5_473 = arith.constant 5 : index
      %826 = memref.load %arg3[%c23_472, %c5_473] : memref<27x16xf32, #tpu.memory_space<smem>>
      %827 = vector.broadcast %826 : f32 to vector<8x32xf32>
      %828 = arith.mulf %107, %827 : vector<8x32xf32>
      %829 = arith.addf %825, %828 : vector<8x32xf32>
      %c24_474 = arith.constant 24 : index
      %c5_475 = arith.constant 5 : index
      %830 = memref.load %arg3[%c24_474, %c5_475] : memref<27x16xf32, #tpu.memory_space<smem>>
      %831 = vector.broadcast %830 : f32 to vector<8x32xf32>
      %832 = arith.mulf %111, %831 : vector<8x32xf32>
      %833 = arith.addf %829, %832 : vector<8x32xf32>
      %c25_476 = arith.constant 25 : index
      %c5_477 = arith.constant 5 : index
      %834 = memref.load %arg3[%c25_476, %c5_477] : memref<27x16xf32, #tpu.memory_space<smem>>
      %835 = vector.broadcast %834 : f32 to vector<8x32xf32>
      %836 = arith.mulf %115, %835 : vector<8x32xf32>
      %837 = arith.addf %833, %836 : vector<8x32xf32>
      %c26_478 = arith.constant 26 : index
      %c5_479 = arith.constant 5 : index
      %838 = memref.load %arg3[%c26_478, %c5_479] : memref<27x16xf32, #tpu.memory_space<smem>>
      %839 = vector.broadcast %838 : f32 to vector<8x32xf32>
      %840 = arith.mulf %119, %839 : vector<8x32xf32>
      %841 = arith.addf %837, %840 : vector<8x32xf32>
      %c8_i32_480 = arith.constant 8 : i32
      %842 = arith.muli %9, %c8_i32_480 : i32
      %c0_481 = arith.constant 0 : index
      %c5_482 = arith.constant 5 : index
      %843 = arith.index_cast %842 : i32 to index
      %c0_483 = arith.constant 0 : index
      %844 = vector.load %arg4[%c0_481, %c5_482, %843, %c0_483] : memref<1x16x32x32xf32, #tpu.memory_space<vmem>>, vector<1x1x8x32xf32>
      %845 = vector.shape_cast %844 : vector<1x1x8x32xf32> to vector<8x32xf32>
      %846 = vector.shape_cast %841 : vector<8x32xf32> to vector<1x1x8x32xf32>
      tpu.vector_store %arg4[%c0_481, %c5_482, %843, %c0_483], %846 {strides = array<i32>} : memref<1x16x32x32xf32, #tpu.memory_space<vmem>>, vector<1x1x8x32xf32>,
      %c5_484 = arith.constant 5 : index
      %c0_485 = arith.constant 0 : index
      %847 = vector.load %arg6[%c5_484, %c0_485] : memref<16x32xf32, #tpu.memory_space<vmem>>, vector<1x32xf32>
      %cst_486 = arith.constant dense<0.000000e+00> : vector<32xf32>
      %848 = vector.multi_reduction <add>, %841, %cst_486 [0] : vector<8x32xf32> to vector<32xf32>
      %849 = vector.shape_cast %848 : vector<32xf32> to vector<1x32xf32>
      %850 = arith.addf %847, %849 : vector<1x32xf32>
      %c5_487 = arith.constant 5 : index
      %c0_488 = arith.constant 0 : index
      %851 = vector.load %arg6[%c5_487, %c0_488] : memref<16x32xf32, #tpu.memory_space<vmem>>, vector<1x32xf32>
      tpu.vector_store %arg6[%c5_487, %c0_488], %850 {strides = array<i32>} : memref<16x32xf32, #tpu.memory_space<vmem>>, vector<1x32xf32>,
      %c5_489 = arith.constant 5 : index
      %c0_490 = arith.constant 0 : index
      %852 = vector.load %arg7[%c5_489, %c0_490] : memref<16x32xf32, #tpu.memory_space<vmem>>, vector<1x32xf32>
      %853 = arith.mulf %841, %841 : vector<8x32xf32>
      %cst_491 = arith.constant dense<0.000000e+00> : vector<32xf32>
      %854 = vector.multi_reduction <add>, %853, %cst_491 [0] : vector<8x32xf32> to vector<32xf32>
      %855 = vector.shape_cast %854 : vector<32xf32> to vector<1x32xf32>
      %856 = arith.addf %852, %855 : vector<1x32xf32>
      %c5_492 = arith.constant 5 : index
      %c0_493 = arith.constant 0 : index
      %857 = vector.load %arg7[%c5_492, %c0_493] : memref<16x32xf32, #tpu.memory_space<vmem>>, vector<1x32xf32>
      tpu.vector_store %arg7[%c5_492, %c0_493], %856 {strides = array<i32>} : memref<16x32xf32, #tpu.memory_space<vmem>>, vector<1x32xf32>,
      %c0_494 = arith.constant 0 : index
      %c6_495 = arith.constant 6 : index
      %858 = memref.load %arg3[%c0_494, %c6_495] : memref<27x16xf32, #tpu.memory_space<smem>>
      %859 = vector.broadcast %858 : f32 to vector<8x32xf32>
      %860 = arith.mulf %15, %859 : vector<8x32xf32>
      %c1_496 = arith.constant 1 : index
      %c6_497 = arith.constant 6 : index
      %861 = memref.load %arg3[%c1_496, %c6_497] : memref<27x16xf32, #tpu.memory_space<smem>>
      %862 = vector.broadcast %861 : f32 to vector<8x32xf32>
      %863 = arith.mulf %19, %862 : vector<8x32xf32>
      %864 = arith.addf %860, %863 : vector<8x32xf32>
      %c2_498 = arith.constant 2 : index
      %c6_499 = arith.constant 6 : index
      %865 = memref.load %arg3[%c2_498, %c6_499] : memref<27x16xf32, #tpu.memory_space<smem>>
      %866 = vector.broadcast %865 : f32 to vector<8x32xf32>
      %867 = arith.mulf %23, %866 : vector<8x32xf32>
      %868 = arith.addf %864, %867 : vector<8x32xf32>
      %c3_500 = arith.constant 3 : index
      %c6_501 = arith.constant 6 : index
      %869 = memref.load %arg3[%c3_500, %c6_501] : memref<27x16xf32, #tpu.memory_space<smem>>
      %870 = vector.broadcast %869 : f32 to vector<8x32xf32>
      %871 = arith.mulf %27, %870 : vector<8x32xf32>
      %872 = arith.addf %868, %871 : vector<8x32xf32>
      %c4_502 = arith.constant 4 : index
      %c6_503 = arith.constant 6 : index
      %873 = memref.load %arg3[%c4_502, %c6_503] : memref<27x16xf32, #tpu.memory_space<smem>>
      %874 = vector.broadcast %873 : f32 to vector<8x32xf32>
      %875 = arith.mulf %31, %874 : vector<8x32xf32>
      %876 = arith.addf %872, %875 : vector<8x32xf32>
      %c5_504 = arith.constant 5 : index
      %c6_505 = arith.constant 6 : index
      %877 = memref.load %arg3[%c5_504, %c6_505] : memref<27x16xf32, #tpu.memory_space<smem>>
      %878 = vector.broadcast %877 : f32 to vector<8x32xf32>
      %879 = arith.mulf %35, %878 : vector<8x32xf32>
      %880 = arith.addf %876, %879 : vector<8x32xf32>
      %c6_506 = arith.constant 6 : index
      %c6_507 = arith.constant 6 : index
      %881 = memref.load %arg3[%c6_506, %c6_507] : memref<27x16xf32, #tpu.memory_space<smem>>
      %882 = vector.broadcast %881 : f32 to vector<8x32xf32>
      %883 = arith.mulf %39, %882 : vector<8x32xf32>
      %884 = arith.addf %880, %883 : vector<8x32xf32>
      %c7_508 = arith.constant 7 : index
      %c6_509 = arith.constant 6 : index
      %885 = memref.load %arg3[%c7_508, %c6_509] : memref<27x16xf32, #tpu.memory_space<smem>>
      %886 = vector.broadcast %885 : f32 to vector<8x32xf32>
      %887 = arith.mulf %43, %886 : vector<8x32xf32>
      %888 = arith.addf %884, %887 : vector<8x32xf32>
      %c8_510 = arith.constant 8 : index
      %c6_511 = arith.constant 6 : index
      %889 = memref.load %arg3[%c8_510, %c6_511] : memref<27x16xf32, #tpu.memory_space<smem>>
      %890 = vector.broadcast %889 : f32 to vector<8x32xf32>
      %891 = arith.mulf %47, %890 : vector<8x32xf32>
      %892 = arith.addf %888, %891 : vector<8x32xf32>
      %c9_512 = arith.constant 9 : index
      %c6_513 = arith.constant 6 : index
      %893 = memref.load %arg3[%c9_512, %c6_513] : memref<27x16xf32, #tpu.memory_space<smem>>
      %894 = vector.broadcast %893 : f32 to vector<8x32xf32>
      %895 = arith.mulf %51, %894 : vector<8x32xf32>
      %896 = arith.addf %892, %895 : vector<8x32xf32>
      %c10_514 = arith.constant 10 : index
      %c6_515 = arith.constant 6 : index
      %897 = memref.load %arg3[%c10_514, %c6_515] : memref<27x16xf32, #tpu.memory_space<smem>>
      %898 = vector.broadcast %897 : f32 to vector<8x32xf32>
      %899 = arith.mulf %55, %898 : vector<8x32xf32>
      %900 = arith.addf %896, %899 : vector<8x32xf32>
      %c11_516 = arith.constant 11 : index
      %c6_517 = arith.constant 6 : index
      %901 = memref.load %arg3[%c11_516, %c6_517] : memref<27x16xf32, #tpu.memory_space<smem>>
      %902 = vector.broadcast %901 : f32 to vector<8x32xf32>
      %903 = arith.mulf %59, %902 : vector<8x32xf32>
      %904 = arith.addf %900, %903 : vector<8x32xf32>
      %c12_518 = arith.constant 12 : index
      %c6_519 = arith.constant 6 : index
      %905 = memref.load %arg3[%c12_518, %c6_519] : memref<27x16xf32, #tpu.memory_space<smem>>
      %906 = vector.broadcast %905 : f32 to vector<8x32xf32>
      %907 = arith.mulf %63, %906 : vector<8x32xf32>
      %908 = arith.addf %904, %907 : vector<8x32xf32>
      %c13_520 = arith.constant 13 : index
      %c6_521 = arith.constant 6 : index
      %909 = memref.load %arg3[%c13_520, %c6_521] : memref<27x16xf32, #tpu.memory_space<smem>>
      %910 = vector.broadcast %909 : f32 to vector<8x32xf32>
      %911 = arith.mulf %67, %910 : vector<8x32xf32>
      %912 = arith.addf %908, %911 : vector<8x32xf32>
      %c14_522 = arith.constant 14 : index
      %c6_523 = arith.constant 6 : index
      %913 = memref.load %arg3[%c14_522, %c6_523] : memref<27x16xf32, #tpu.memory_space<smem>>
      %914 = vector.broadcast %913 : f32 to vector<8x32xf32>
      %915 = arith.mulf %71, %914 : vector<8x32xf32>
      %916 = arith.addf %912, %915 : vector<8x32xf32>
      %c15_524 = arith.constant 15 : index
      %c6_525 = arith.constant 6 : index
      %917 = memref.load %arg3[%c15_524, %c6_525] : memref<27x16xf32, #tpu.memory_space<smem>>
      %918 = vector.broadcast %917 : f32 to vector<8x32xf32>
      %919 = arith.mulf %75, %918 : vector<8x32xf32>
      %920 = arith.addf %916, %919 : vector<8x32xf32>
      %c16_526 = arith.constant 16 : index
      %c6_527 = arith.constant 6 : index
      %921 = memref.load %arg3[%c16_526, %c6_527] : memref<27x16xf32, #tpu.memory_space<smem>>
      %922 = vector.broadcast %921 : f32 to vector<8x32xf32>
      %923 = arith.mulf %79, %922 : vector<8x32xf32>
      %924 = arith.addf %920, %923 : vector<8x32xf32>
      %c17_528 = arith.constant 17 : index
      %c6_529 = arith.constant 6 : index
      %925 = memref.load %arg3[%c17_528, %c6_529] : memref<27x16xf32, #tpu.memory_space<smem>>
      %926 = vector.broadcast %925 : f32 to vector<8x32xf32>
      %927 = arith.mulf %83, %926 : vector<8x32xf32>
      %928 = arith.addf %924, %927 : vector<8x32xf32>
      %c18_530 = arith.constant 18 : index
      %c6_531 = arith.constant 6 : index
      %929 = memref.load %arg3[%c18_530, %c6_531] : memref<27x16xf32, #tpu.memory_space<smem>>
      %930 = vector.broadcast %929 : f32 to vector<8x32xf32>
      %931 = arith.mulf %87, %930 : vector<8x32xf32>
      %932 = arith.addf %928, %931 : vector<8x32xf32>
      %c19_532 = arith.constant 19 : index
      %c6_533 = arith.constant 6 : index
      %933 = memref.load %arg3[%c19_532, %c6_533] : memref<27x16xf32, #tpu.memory_space<smem>>
      %934 = vector.broadcast %933 : f32 to vector<8x32xf32>
      %935 = arith.mulf %91, %934 : vector<8x32xf32>
      %936 = arith.addf %932, %935 : vector<8x32xf32>
      %c20_534 = arith.constant 20 : index
      %c6_535 = arith.constant 6 : index
      %937 = memref.load %arg3[%c20_534, %c6_535] : memref<27x16xf32, #tpu.memory_space<smem>>
      %938 = vector.broadcast %937 : f32 to vector<8x32xf32>
      %939 = arith.mulf %95, %938 : vector<8x32xf32>
      %940 = arith.addf %936, %939 : vector<8x32xf32>
      %c21_536 = arith.constant 21 : index
      %c6_537 = arith.constant 6 : index
      %941 = memref.load %arg3[%c21_536, %c6_537] : memref<27x16xf32, #tpu.memory_space<smem>>
      %942 = vector.broadcast %941 : f32 to vector<8x32xf32>
      %943 = arith.mulf %99, %942 : vector<8x32xf32>
      %944 = arith.addf %940, %943 : vector<8x32xf32>
      %c22_538 = arith.constant 22 : index
      %c6_539 = arith.constant 6 : index
      %945 = memref.load %arg3[%c22_538, %c6_539] : memref<27x16xf32, #tpu.memory_space<smem>>
      %946 = vector.broadcast %945 : f32 to vector<8x32xf32>
      %947 = arith.mulf %103, %946 : vector<8x32xf32>
      %948 = arith.addf %944, %947 : vector<8x32xf32>
      %c23_540 = arith.constant 23 : index
      %c6_541 = arith.constant 6 : index
      %949 = memref.load %arg3[%c23_540, %c6_541] : memref<27x16xf32, #tpu.memory_space<smem>>
      %950 = vector.broadcast %949 : f32 to vector<8x32xf32>
      %951 = arith.mulf %107, %950 : vector<8x32xf32>
      %952 = arith.addf %948, %951 : vector<8x32xf32>
      %c24_542 = arith.constant 24 : index
      %c6_543 = arith.constant 6 : index
      %953 = memref.load %arg3[%c24_542, %c6_543] : memref<27x16xf32, #tpu.memory_space<smem>>
      %954 = vector.broadcast %953 : f32 to vector<8x32xf32>
      %955 = arith.mulf %111, %954 : vector<8x32xf32>
      %956 = arith.addf %952, %955 : vector<8x32xf32>
      %c25_544 = arith.constant 25 : index
      %c6_545 = arith.constant 6 : index
      %957 = memref.load %arg3[%c25_544, %c6_545] : memref<27x16xf32, #tpu.memory_space<smem>>
      %958 = vector.broadcast %957 : f32 to vector<8x32xf32>
      %959 = arith.mulf %115, %958 : vector<8x32xf32>
      %960 = arith.addf %956, %959 : vector<8x32xf32>
      %c26_546 = arith.constant 26 : index
      %c6_547 = arith.constant 6 : index
      %961 = memref.load %arg3[%c26_546, %c6_547] : memref<27x16xf32, #tpu.memory_space<smem>>
      %962 = vector.broadcast %961 : f32 to vector<8x32xf32>
      %963 = arith.mulf %119, %962 : vector<8x32xf32>
      %964 = arith.addf %960, %963 : vector<8x32xf32>
      %c8_i32_548 = arith.constant 8 : i32
      %965 = arith.muli %9, %c8_i32_548 : i32
      %c0_549 = arith.constant 0 : index
      %c6_550 = arith.constant 6 : index
      %966 = arith.index_cast %965 : i32 to index
      %c0_551 = arith.constant 0 : index
      %967 = vector.load %arg4[%c0_549, %c6_550, %966, %c0_551] : memref<1x16x32x32xf32, #tpu.memory_space<vmem>>, vector<1x1x8x32xf32>
      %968 = vector.shape_cast %967 : vector<1x1x8x32xf32> to vector<8x32xf32>
      %969 = vector.shape_cast %964 : vector<8x32xf32> to vector<1x1x8x32xf32>
      tpu.vector_store %arg4[%c0_549, %c6_550, %966, %c0_551], %969 {strides = array<i32>} : memref<1x16x32x32xf32, #tpu.memory_space<vmem>>, vector<1x1x8x32xf32>,
      %c6_552 = arith.constant 6 : index
      %c0_553 = arith.constant 0 : index
      %970 = vector.load %arg6[%c6_552, %c0_553] : memref<16x32xf32, #tpu.memory_space<vmem>>, vector<1x32xf32>
      %cst_554 = arith.constant dense<0.000000e+00> : vector<32xf32>
      %971 = vector.multi_reduction <add>, %964, %cst_554 [0] : vector<8x32xf32> to vector<32xf32>
      %972 = vector.shape_cast %971 : vector<32xf32> to vector<1x32xf32>
      %973 = arith.addf %970, %972 : vector<1x32xf32>
      %c6_555 = arith.constant 6 : index
      %c0_556 = arith.constant 0 : index
      %974 = vector.load %arg6[%c6_555, %c0_556] : memref<16x32xf32, #tpu.memory_space<vmem>>, vector<1x32xf32>
      tpu.vector_store %arg6[%c6_555, %c0_556], %973 {strides = array<i32>} : memref<16x32xf32, #tpu.memory_space<vmem>>, vector<1x32xf32>,
      %c6_557 = arith.constant 6 : index
      %c0_558 = arith.constant 0 : index
      %975 = vector.load %arg7[%c6_557, %c0_558] : memref<16x32xf32, #tpu.memory_space<vmem>>, vector<1x32xf32>
      %976 = arith.mulf %964, %964 : vector<8x32xf32>
      %cst_559 = arith.constant dense<0.000000e+00> : vector<32xf32>
      %977 = vector.multi_reduction <add>, %976, %cst_559 [0] : vector<8x32xf32> to vector<32xf32>
      %978 = vector.shape_cast %977 : vector<32xf32> to vector<1x32xf32>
      %979 = arith.addf %975, %978 : vector<1x32xf32>
      %c6_560 = arith.constant 6 : index
      %c0_561 = arith.constant 0 : index
      %980 = vector.load %arg7[%c6_560, %c0_561] : memref<16x32xf32, #tpu.memory_space<vmem>>, vector<1x32xf32>
      tpu.vector_store %arg7[%c6_560, %c0_561], %979 {strides = array<i32>} : memref<16x32xf32, #tpu.memory_space<vmem>>, vector<1x32xf32>,
      %c0_562 = arith.constant 0 : index
      %c7_563 = arith.constant 7 : index
      %981 = memref.load %arg3[%c0_562, %c7_563] : memref<27x16xf32, #tpu.memory_space<smem>>
      %982 = vector.broadcast %981 : f32 to vector<8x32xf32>
      %983 = arith.mulf %15, %982 : vector<8x32xf32>
      %c1_564 = arith.constant 1 : index
      %c7_565 = arith.constant 7 : index
      %984 = memref.load %arg3[%c1_564, %c7_565] : memref<27x16xf32, #tpu.memory_space<smem>>
      %985 = vector.broadcast %984 : f32 to vector<8x32xf32>
      %986 = arith.mulf %19, %985 : vector<8x32xf32>
      %987 = arith.addf %983, %986 : vector<8x32xf32>
      %c2_566 = arith.constant 2 : index
      %c7_567 = arith.constant 7 : index
      %988 = memref.load %arg3[%c2_566, %c7_567] : memref<27x16xf32, #tpu.memory_space<smem>>
      %989 = vector.broadcast %988 : f32 to vector<8x32xf32>
      %990 = arith.mulf %23, %989 : vector<8x32xf32>
      %991 = arith.addf %987, %990 : vector<8x32xf32>
      %c3_568 = arith.constant 3 : index
      %c7_569 = arith.constant 7 : index
      %992 = memref.load %arg3[%c3_568, %c7_569] : memref<27x16xf32, #tpu.memory_space<smem>>
      %993 = vector.broadcast %992 : f32 to vector<8x32xf32>
      %994 = arith.mulf %27, %993 : vector<8x32xf32>
      %995 = arith.addf %991, %994 : vector<8x32xf32>
      %c4_570 = arith.constant 4 : index
      %c7_571 = arith.constant 7 : index
      %996 = memref.load %arg3[%c4_570, %c7_571] : memref<27x16xf32, #tpu.memory_space<smem>>
      %997 = vector.broadcast %996 : f32 to vector<8x32xf32>
      %998 = arith.mulf %31, %997 : vector<8x32xf32>
      %999 = arith.addf %995, %998 : vector<8x32xf32>
      %c5_572 = arith.constant 5 : index
      %c7_573 = arith.constant 7 : index
      %1000 = memref.load %arg3[%c5_572, %c7_573] : memref<27x16xf32, #tpu.memory_space<smem>>
      %1001 = vector.broadcast %1000 : f32 to vector<8x32xf32>
      %1002 = arith.mulf %35, %1001 : vector<8x32xf32>
      %1003 = arith.addf %999, %1002 : vector<8x32xf32>
      %c6_574 = arith.constant 6 : index
      %c7_575 = arith.constant 7 : index
      %1004 = memref.load %arg3[%c6_574, %c7_575] : memref<27x16xf32, #tpu.memory_space<smem>>
      %1005 = vector.broadcast %1004 : f32 to vector<8x32xf32>
      %1006 = arith.mulf %39, %1005 : vector<8x32xf32>
      %1007 = arith.addf %1003, %1006 : vector<8x32xf32>
      %c7_576 = arith.constant 7 : index
      %c7_577 = arith.constant 7 : index
      %1008 = memref.load %arg3[%c7_576, %c7_577] : memref<27x16xf32, #tpu.memory_space<smem>>
      %1009 = vector.broadcast %1008 : f32 to vector<8x32xf32>
      %1010 = arith.mulf %43, %1009 : vector<8x32xf32>
      %1011 = arith.addf %1007, %1010 : vector<8x32xf32>
      %c8_578 = arith.constant 8 : index
      %c7_579 = arith.constant 7 : index
      %1012 = memref.load %arg3[%c8_578, %c7_579] : memref<27x16xf32, #tpu.memory_space<smem>>
      %1013 = vector.broadcast %1012 : f32 to vector<8x32xf32>
      %1014 = arith.mulf %47, %1013 : vector<8x32xf32>
      %1015 = arith.addf %1011, %1014 : vector<8x32xf32>
      %c9_580 = arith.constant 9 : index
      %c7_581 = arith.constant 7 : index
      %1016 = memref.load %arg3[%c9_580, %c7_581] : memref<27x16xf32, #tpu.memory_space<smem>>
      %1017 = vector.broadcast %1016 : f32 to vector<8x32xf32>
      %1018 = arith.mulf %51, %1017 : vector<8x32xf32>
      %1019 = arith.addf %1015, %1018 : vector<8x32xf32>
      %c10_582 = arith.constant 10 : index
      %c7_583 = arith.constant 7 : index
      %1020 = memref.load %arg3[%c10_582, %c7_583] : memref<27x16xf32, #tpu.memory_space<smem>>
      %1021 = vector.broadcast %1020 : f32 to vector<8x32xf32>
      %1022 = arith.mulf %55, %1021 : vector<8x32xf32>
      %1023 = arith.addf %1019, %1022 : vector<8x32xf32>
      %c11_584 = arith.constant 11 : index
      %c7_585 = arith.constant 7 : index
      %1024 = memref.load %arg3[%c11_584, %c7_585] : memref<27x16xf32, #tpu.memory_space<smem>>
      %1025 = vector.broadcast %1024 : f32 to vector<8x32xf32>
      %1026 = arith.mulf %59, %1025 : vector<8x32xf32>
      %1027 = arith.addf %1023, %1026 : vector<8x32xf32>
      %c12_586 = arith.constant 12 : index
      %c7_587 = arith.constant 7 : index
      %1028 = memref.load %arg3[%c12_586, %c7_587] : memref<27x16xf32, #tpu.memory_space<smem>>
      %1029 = vector.broadcast %1028 : f32 to vector<8x32xf32>
      %1030 = arith.mulf %63, %1029 : vector<8x32xf32>
      %1031 = arith.addf %1027, %1030 : vector<8x32xf32>
      %c13_588 = arith.constant 13 : index
      %c7_589 = arith.constant 7 : index
      %1032 = memref.load %arg3[%c13_588, %c7_589] : memref<27x16xf32, #tpu.memory_space<smem>>
      %1033 = vector.broadcast %1032 : f32 to vector<8x32xf32>
      %1034 = arith.mulf %67, %1033 : vector<8x32xf32>
      %1035 = arith.addf %1031, %1034 : vector<8x32xf32>
      %c14_590 = arith.constant 14 : index
      %c7_591 = arith.constant 7 : index
      %1036 = memref.load %arg3[%c14_590, %c7_591] : memref<27x16xf32, #tpu.memory_space<smem>>
      %1037 = vector.broadcast %1036 : f32 to vector<8x32xf32>
      %1038 = arith.mulf %71, %1037 : vector<8x32xf32>
      %1039 = arith.addf %1035, %1038 : vector<8x32xf32>
      %c15_592 = arith.constant 15 : index
      %c7_593 = arith.constant 7 : index
      %1040 = memref.load %arg3[%c15_592, %c7_593] : memref<27x16xf32, #tpu.memory_space<smem>>
      %1041 = vector.broadcast %1040 : f32 to vector<8x32xf32>
      %1042 = arith.mulf %75, %1041 : vector<8x32xf32>
      %1043 = arith.addf %1039, %1042 : vector<8x32xf32>
      %c16_594 = arith.constant 16 : index
      %c7_595 = arith.constant 7 : index
      %1044 = memref.load %arg3[%c16_594, %c7_595] : memref<27x16xf32, #tpu.memory_space<smem>>
      %1045 = vector.broadcast %1044 : f32 to vector<8x32xf32>
      %1046 = arith.mulf %79, %1045 : vector<8x32xf32>
      %1047 = arith.addf %1043, %1046 : vector<8x32xf32>
      %c17_596 = arith.constant 17 : index
      %c7_597 = arith.constant 7 : index
      %1048 = memref.load %arg3[%c17_596, %c7_597] : memref<27x16xf32, #tpu.memory_space<smem>>
      %1049 = vector.broadcast %1048 : f32 to vector<8x32xf32>
      %1050 = arith.mulf %83, %1049 : vector<8x32xf32>
      %1051 = arith.addf %1047, %1050 : vector<8x32xf32>
      %c18_598 = arith.constant 18 : index
      %c7_599 = arith.constant 7 : index
      %1052 = memref.load %arg3[%c18_598, %c7_599] : memref<27x16xf32, #tpu.memory_space<smem>>
      %1053 = vector.broadcast %1052 : f32 to vector<8x32xf32>
      %1054 = arith.mulf %87, %1053 : vector<8x32xf32>
      %1055 = arith.addf %1051, %1054 : vector<8x32xf32>
      %c19_600 = arith.constant 19 : index
      %c7_601 = arith.constant 7 : index
      %1056 = memref.load %arg3[%c19_600, %c7_601] : memref<27x16xf32, #tpu.memory_space<smem>>
      %1057 = vector.broadcast %1056 : f32 to vector<8x32xf32>
      %1058 = arith.mulf %91, %1057 : vector<8x32xf32>
      %1059 = arith.addf %1055, %1058 : vector<8x32xf32>
      %c20_602 = arith.constant 20 : index
      %c7_603 = arith.constant 7 : index
      %1060 = memref.load %arg3[%c20_602, %c7_603] : memref<27x16xf32, #tpu.memory_space<smem>>
      %1061 = vector.broadcast %1060 : f32 to vector<8x32xf32>
      %1062 = arith.mulf %95, %1061 : vector<8x32xf32>
      %1063 = arith.addf %1059, %1062 : vector<8x32xf32>
      %c21_604 = arith.constant 21 : index
      %c7_605 = arith.constant 7 : index
      %1064 = memref.load %arg3[%c21_604, %c7_605] : memref<27x16xf32, #tpu.memory_space<smem>>
      %1065 = vector.broadcast %1064 : f32 to vector<8x32xf32>
      %1066 = arith.mulf %99, %1065 : vector<8x32xf32>
      %1067 = arith.addf %1063, %1066 : vector<8x32xf32>
      %c22_606 = arith.constant 22 : index
      %c7_607 = arith.constant 7 : index
      %1068 = memref.load %arg3[%c22_606, %c7_607] : memref<27x16xf32, #tpu.memory_space<smem>>
      %1069 = vector.broadcast %1068 : f32 to vector<8x32xf32>
      %1070 = arith.mulf %103, %1069 : vector<8x32xf32>
      %1071 = arith.addf %1067, %1070 : vector<8x32xf32>
      %c23_608 = arith.constant 23 : index
      %c7_609 = arith.constant 7 : index
      %1072 = memref.load %arg3[%c23_608, %c7_609] : memref<27x16xf32, #tpu.memory_space<smem>>
      %1073 = vector.broadcast %1072 : f32 to vector<8x32xf32>
      %1074 = arith.mulf %107, %1073 : vector<8x32xf32>
      %1075 = arith.addf %1071, %1074 : vector<8x32xf32>
      %c24_610 = arith.constant 24 : index
      %c7_611 = arith.constant 7 : index
      %1076 = memref.load %arg3[%c24_610, %c7_611] : memref<27x16xf32, #tpu.memory_space<smem>>
      %1077 = vector.broadcast %1076 : f32 to vector<8x32xf32>
      %1078 = arith.mulf %111, %1077 : vector<8x32xf32>
      %1079 = arith.addf %1075, %1078 : vector<8x32xf32>
      %c25_612 = arith.constant 25 : index
      %c7_613 = arith.constant 7 : index
      %1080 = memref.load %arg3[%c25_612, %c7_613] : memref<27x16xf32, #tpu.memory_space<smem>>
      %1081 = vector.broadcast %1080 : f32 to vector<8x32xf32>
      %1082 = arith.mulf %115, %1081 : vector<8x32xf32>
      %1083 = arith.addf %1079, %1082 : vector<8x32xf32>
      %c26_614 = arith.constant 26 : index
      %c7_615 = arith.constant 7 : index
      %1084 = memref.load %arg3[%c26_614, %c7_615] : memref<27x16xf32, #tpu.memory_space<smem>>
      %1085 = vector.broadcast %1084 : f32 to vector<8x32xf32>
      %1086 = arith.mulf %119, %1085 : vector<8x32xf32>
      %1087 = arith.addf %1083, %1086 : vector<8x32xf32>
      %c8_i32_616 = arith.constant 8 : i32
      %1088 = arith.muli %9, %c8_i32_616 : i32
      %c0_617 = arith.constant 0 : index
      %c7_618 = arith.constant 7 : index
      %1089 = arith.index_cast %1088 : i32 to index
      %c0_619 = arith.constant 0 : index
      %1090 = vector.load %arg4[%c0_617, %c7_618, %1089, %c0_619] : memref<1x16x32x32xf32, #tpu.memory_space<vmem>>, vector<1x1x8x32xf32>
      %1091 = vector.shape_cast %1090 : vector<1x1x8x32xf32> to vector<8x32xf32>
      %1092 = vector.shape_cast %1087 : vector<8x32xf32> to vector<1x1x8x32xf32>
      tpu.vector_store %arg4[%c0_617, %c7_618, %1089, %c0_619], %1092 {strides = array<i32>} : memref<1x16x32x32xf32, #tpu.memory_space<vmem>>, vector<1x1x8x32xf32>,
      %c7_620 = arith.constant 7 : index
      %c0_621 = arith.constant 0 : index
      %1093 = vector.load %arg6[%c7_620, %c0_621] : memref<16x32xf32, #tpu.memory_space<vmem>>, vector<1x32xf32>
      %cst_622 = arith.constant dense<0.000000e+00> : vector<32xf32>
      %1094 = vector.multi_reduction <add>, %1087, %cst_622 [0] : vector<8x32xf32> to vector<32xf32>
      %1095 = vector.shape_cast %1094 : vector<32xf32> to vector<1x32xf32>
      %1096 = arith.addf %1093, %1095 : vector<1x32xf32>
      %c7_623 = arith.constant 7 : index
      %c0_624 = arith.constant 0 : index
      %1097 = vector.load %arg6[%c7_623, %c0_624] : memref<16x32xf32, #tpu.memory_space<vmem>>, vector<1x32xf32>
      tpu.vector_store %arg6[%c7_623, %c0_624], %1096 {strides = array<i32>} : memref<16x32xf32, #tpu.memory_space<vmem>>, vector<1x32xf32>,
      %c7_625 = arith.constant 7 : index
      %c0_626 = arith.constant 0 : index
      %1098 = vector.load %arg7[%c7_625, %c0_626] : memref<16x32xf32, #tpu.memory_space<vmem>>, vector<1x32xf32>
      %1099 = arith.mulf %1087, %1087 : vector<8x32xf32>
      %cst_627 = arith.constant dense<0.000000e+00> : vector<32xf32>
      %1100 = vector.multi_reduction <add>, %1099, %cst_627 [0] : vector<8x32xf32> to vector<32xf32>
      %1101 = vector.shape_cast %1100 : vector<32xf32> to vector<1x32xf32>
      %1102 = arith.addf %1098, %1101 : vector<1x32xf32>
      %c7_628 = arith.constant 7 : index
      %c0_629 = arith.constant 0 : index
      %1103 = vector.load %arg7[%c7_628, %c0_629] : memref<16x32xf32, #tpu.memory_space<vmem>>, vector<1x32xf32>
      tpu.vector_store %arg7[%c7_628, %c0_629], %1102 {strides = array<i32>} : memref<16x32xf32, #tpu.memory_space<vmem>>, vector<1x32xf32>,
      %c0_630 = arith.constant 0 : index
      %c8_631 = arith.constant 8 : index
      %1104 = memref.load %arg3[%c0_630, %c8_631] : memref<27x16xf32, #tpu.memory_space<smem>>
      %1105 = vector.broadcast %1104 : f32 to vector<8x32xf32>
      %1106 = arith.mulf %15, %1105 : vector<8x32xf32>
      %c1_632 = arith.constant 1 : index
      %c8_633 = arith.constant 8 : index
      %1107 = memref.load %arg3[%c1_632, %c8_633] : memref<27x16xf32, #tpu.memory_space<smem>>
      %1108 = vector.broadcast %1107 : f32 to vector<8x32xf32>
      %1109 = arith.mulf %19, %1108 : vector<8x32xf32>
      %1110 = arith.addf %1106, %1109 : vector<8x32xf32>
      %c2_634 = arith.constant 2 : index
      %c8_635 = arith.constant 8 : index
      %1111 = memref.load %arg3[%c2_634, %c8_635] : memref<27x16xf32, #tpu.memory_space<smem>>
      %1112 = vector.broadcast %1111 : f32 to vector<8x32xf32>
      %1113 = arith.mulf %23, %1112 : vector<8x32xf32>
      %1114 = arith.addf %1110, %1113 : vector<8x32xf32>
      %c3_636 = arith.constant 3 : index
      %c8_637 = arith.constant 8 : index
      %1115 = memref.load %arg3[%c3_636, %c8_637] : memref<27x16xf32, #tpu.memory_space<smem>>
      %1116 = vector.broadcast %1115 : f32 to vector<8x32xf32>
      %1117 = arith.mulf %27, %1116 : vector<8x32xf32>
      %1118 = arith.addf %1114, %1117 : vector<8x32xf32>
      %c4_638 = arith.constant 4 : index
      %c8_639 = arith.constant 8 : index
      %1119 = memref.load %arg3[%c4_638, %c8_639] : memref<27x16xf32, #tpu.memory_space<smem>>
      %1120 = vector.broadcast %1119 : f32 to vector<8x32xf32>
      %1121 = arith.mulf %31, %1120 : vector<8x32xf32>
      %1122 = arith.addf %1118, %1121 : vector<8x32xf32>
      %c5_640 = arith.constant 5 : index
      %c8_641 = arith.constant 8 : index
      %1123 = memref.load %arg3[%c5_640, %c8_641] : memref<27x16xf32, #tpu.memory_space<smem>>
      %1124 = vector.broadcast %1123 : f32 to vector<8x32xf32>
      %1125 = arith.mulf %35, %1124 : vector<8x32xf32>
      %1126 = arith.addf %1122, %1125 : vector<8x32xf32>
      %c6_642 = arith.constant 6 : index
      %c8_643 = arith.constant 8 : index
      %1127 = memref.load %arg3[%c6_642, %c8_643] : memref<27x16xf32, #tpu.memory_space<smem>>
      %1128 = vector.broadcast %1127 : f32 to vector<8x32xf32>
      %1129 = arith.mulf %39, %1128 : vector<8x32xf32>
      %1130 = arith.addf %1126, %1129 : vector<8x32xf32>
      %c7_644 = arith.constant 7 : index
      %c8_645 = arith.constant 8 : index
      %1131 = memref.load %arg3[%c7_644, %c8_645] : memref<27x16xf32, #tpu.memory_space<smem>>
      %1132 = vector.broadcast %1131 : f32 to vector<8x32xf32>
      %1133 = arith.mulf %43, %1132 : vector<8x32xf32>
      %1134 = arith.addf %1130, %1133 : vector<8x32xf32>
      %c8_646 = arith.constant 8 : index
      %c8_647 = arith.constant 8 : index
      %1135 = memref.load %arg3[%c8_646, %c8_647] : memref<27x16xf32, #tpu.memory_space<smem>>
      %1136 = vector.broadcast %1135 : f32 to vector<8x32xf32>
      %1137 = arith.mulf %47, %1136 : vector<8x32xf32>
      %1138 = arith.addf %1134, %1137 : vector<8x32xf32>
      %c9_648 = arith.constant 9 : index
      %c8_649 = arith.constant 8 : index
      %1139 = memref.load %arg3[%c9_648, %c8_649] : memref<27x16xf32, #tpu.memory_space<smem>>
      %1140 = vector.broadcast %1139 : f32 to vector<8x32xf32>
      %1141 = arith.mulf %51, %1140 : vector<8x32xf32>
      %1142 = arith.addf %1138, %1141 : vector<8x32xf32>
      %c10_650 = arith.constant 10 : index
      %c8_651 = arith.constant 8 : index
      %1143 = memref.load %arg3[%c10_650, %c8_651] : memref<27x16xf32, #tpu.memory_space<smem>>
      %1144 = vector.broadcast %1143 : f32 to vector<8x32xf32>
      %1145 = arith.mulf %55, %1144 : vector<8x32xf32>
      %1146 = arith.addf %1142, %1145 : vector<8x32xf32>
      %c11_652 = arith.constant 11 : index
      %c8_653 = arith.constant 8 : index
      %1147 = memref.load %arg3[%c11_652, %c8_653] : memref<27x16xf32, #tpu.memory_space<smem>>
      %1148 = vector.broadcast %1147 : f32 to vector<8x32xf32>
      %1149 = arith.mulf %59, %1148 : vector<8x32xf32>
      %1150 = arith.addf %1146, %1149 : vector<8x32xf32>
      %c12_654 = arith.constant 12 : index
      %c8_655 = arith.constant 8 : index
      %1151 = memref.load %arg3[%c12_654, %c8_655] : memref<27x16xf32, #tpu.memory_space<smem>>
      %1152 = vector.broadcast %1151 : f32 to vector<8x32xf32>
      %1153 = arith.mulf %63, %1152 : vector<8x32xf32>
      %1154 = arith.addf %1150, %1153 : vector<8x32xf32>
      %c13_656 = arith.constant 13 : index
      %c8_657 = arith.constant 8 : index
      %1155 = memref.load %arg3[%c13_656, %c8_657] : memref<27x16xf32, #tpu.memory_space<smem>>
      %1156 = vector.broadcast %1155 : f32 to vector<8x32xf32>
      %1157 = arith.mulf %67, %1156 : vector<8x32xf32>
      %1158 = arith.addf %1154, %1157 : vector<8x32xf32>
      %c14_658 = arith.constant 14 : index
      %c8_659 = arith.constant 8 : index
      %1159 = memref.load %arg3[%c14_658, %c8_659] : memref<27x16xf32, #tpu.memory_space<smem>>
      %1160 = vector.broadcast %1159 : f32 to vector<8x32xf32>
      %1161 = arith.mulf %71, %1160 : vector<8x32xf32>
      %1162 = arith.addf %1158, %1161 : vector<8x32xf32>
      %c15_660 = arith.constant 15 : index
      %c8_661 = arith.constant 8 : index
      %1163 = memref.load %arg3[%c15_660, %c8_661] : memref<27x16xf32, #tpu.memory_space<smem>>
      %1164 = vector.broadcast %1163 : f32 to vector<8x32xf32>
      %1165 = arith.mulf %75, %1164 : vector<8x32xf32>
      %1166 = arith.addf %1162, %1165 : vector<8x32xf32>
      %c16_662 = arith.constant 16 : index
      %c8_663 = arith.constant 8 : index
      %1167 = memref.load %arg3[%c16_662, %c8_663] : memref<27x16xf32, #tpu.memory_space<smem>>
      %1168 = vector.broadcast %1167 : f32 to vector<8x32xf32>
      %1169 = arith.mulf %79, %1168 : vector<8x32xf32>
      %1170 = arith.addf %1166, %1169 : vector<8x32xf32>
      %c17_664 = arith.constant 17 : index
      %c8_665 = arith.constant 8 : index
      %1171 = memref.load %arg3[%c17_664, %c8_665] : memref<27x16xf32, #tpu.memory_space<smem>>
      %1172 = vector.broadcast %1171 : f32 to vector<8x32xf32>
      %1173 = arith.mulf %83, %1172 : vector<8x32xf32>
      %1174 = arith.addf %1170, %1173 : vector<8x32xf32>
      %c18_666 = arith.constant 18 : index
      %c8_667 = arith.constant 8 : index
      %1175 = memref.load %arg3[%c18_666, %c8_667] : memref<27x16xf32, #tpu.memory_space<smem>>
      %1176 = vector.broadcast %1175 : f32 to vector<8x32xf32>
      %1177 = arith.mulf %87, %1176 : vector<8x32xf32>
      %1178 = arith.addf %1174, %1177 : vector<8x32xf32>
      %c19_668 = arith.constant 19 : index
      %c8_669 = arith.constant 8 : index
      %1179 = memref.load %arg3[%c19_668, %c8_669] : memref<27x16xf32, #tpu.memory_space<smem>>
      %1180 = vector.broadcast %1179 : f32 to vector<8x32xf32>
      %1181 = arith.mulf %91, %1180 : vector<8x32xf32>
      %1182 = arith.addf %1178, %1181 : vector<8x32xf32>
      %c20_670 = arith.constant 20 : index
      %c8_671 = arith.constant 8 : index
      %1183 = memref.load %arg3[%c20_670, %c8_671] : memref<27x16xf32, #tpu.memory_space<smem>>
      %1184 = vector.broadcast %1183 : f32 to vector<8x32xf32>
      %1185 = arith.mulf %95, %1184 : vector<8x32xf32>
      %1186 = arith.addf %1182, %1185 : vector<8x32xf32>
      %c21_672 = arith.constant 21 : index
      %c8_673 = arith.constant 8 : index
      %1187 = memref.load %arg3[%c21_672, %c8_673] : memref<27x16xf32, #tpu.memory_space<smem>>
      %1188 = vector.broadcast %1187 : f32 to vector<8x32xf32>
      %1189 = arith.mulf %99, %1188 : vector<8x32xf32>
      %1190 = arith.addf %1186, %1189 : vector<8x32xf32>
      %c22_674 = arith.constant 22 : index
      %c8_675 = arith.constant 8 : index
      %1191 = memref.load %arg3[%c22_674, %c8_675] : memref<27x16xf32, #tpu.memory_space<smem>>
      %1192 = vector.broadcast %1191 : f32 to vector<8x32xf32>
      %1193 = arith.mulf %103, %1192 : vector<8x32xf32>
      %1194 = arith.addf %1190, %1193 : vector<8x32xf32>
      %c23_676 = arith.constant 23 : index
      %c8_677 = arith.constant 8 : index
      %1195 = memref.load %arg3[%c23_676, %c8_677] : memref<27x16xf32, #tpu.memory_space<smem>>
      %1196 = vector.broadcast %1195 : f32 to vector<8x32xf32>
      %1197 = arith.mulf %107, %1196 : vector<8x32xf32>
      %1198 = arith.addf %1194, %1197 : vector<8x32xf32>
      %c24_678 = arith.constant 24 : index
      %c8_679 = arith.constant 8 : index
      %1199 = memref.load %arg3[%c24_678, %c8_679] : memref<27x16xf32, #tpu.memory_space<smem>>
      %1200 = vector.broadcast %1199 : f32 to vector<8x32xf32>
      %1201 = arith.mulf %111, %1200 : vector<8x32xf32>
      %1202 = arith.addf %1198, %1201 : vector<8x32xf32>
      %c25_680 = arith.constant 25 : index
      %c8_681 = arith.constant 8 : index
      %1203 = memref.load %arg3[%c25_680, %c8_681] : memref<27x16xf32, #tpu.memory_space<smem>>
      %1204 = vector.broadcast %1203 : f32 to vector<8x32xf32>
      %1205 = arith.mulf %115, %1204 : vector<8x32xf32>
      %1206 = arith.addf %1202, %1205 : vector<8x32xf32>
      %c26_682 = arith.constant 26 : index
      %c8_683 = arith.constant 8 : index
      %1207 = memref.load %arg3[%c26_682, %c8_683] : memref<27x16xf32, #tpu.memory_space<smem>>
      %1208 = vector.broadcast %1207 : f32 to vector<8x32xf32>
      %1209 = arith.mulf %119, %1208 : vector<8x32xf32>
      %1210 = arith.addf %1206, %1209 : vector<8x32xf32>
      %c8_i32_684 = arith.constant 8 : i32
      %1211 = arith.muli %9, %c8_i32_684 : i32
      %c0_685 = arith.constant 0 : index
      %c8_686 = arith.constant 8 : index
      %1212 = arith.index_cast %1211 : i32 to index
      %c0_687 = arith.constant 0 : index
      %1213 = vector.load %arg4[%c0_685, %c8_686, %1212, %c0_687] : memref<1x16x32x32xf32, #tpu.memory_space<vmem>>, vector<1x1x8x32xf32>
      %1214 = vector.shape_cast %1213 : vector<1x1x8x32xf32> to vector<8x32xf32>
      %1215 = vector.shape_cast %1210 : vector<8x32xf32> to vector<1x1x8x32xf32>
      tpu.vector_store %arg4[%c0_685, %c8_686, %1212, %c0_687], %1215 {strides = array<i32>} : memref<1x16x32x32xf32, #tpu.memory_space<vmem>>, vector<1x1x8x32xf32>,
      %c8_688 = arith.constant 8 : index
      %c0_689 = arith.constant 0 : index
      %1216 = vector.load %arg6[%c8_688, %c0_689] : memref<16x32xf32, #tpu.memory_space<vmem>>, vector<1x32xf32>
      %cst_690 = arith.constant dense<0.000000e+00> : vector<32xf32>
      %1217 = vector.multi_reduction <add>, %1210, %cst_690 [0] : vector<8x32xf32> to vector<32xf32>
      %1218 = vector.shape_cast %1217 : vector<32xf32> to vector<1x32xf32>
      %1219 = arith.addf %1216, %1218 : vector<1x32xf32>
      %c8_691 = arith.constant 8 : index
      %c0_692 = arith.constant 0 : index
      %1220 = vector.load %arg6[%c8_691, %c0_692] : memref<16x32xf32, #tpu.memory_space<vmem>>, vector<1x32xf32>
      tpu.vector_store %arg6[%c8_691, %c0_692], %1219 {strides = array<i32>} : memref<16x32xf32, #tpu.memory_space<vmem>>, vector<1x32xf32>,
      %c8_693 = arith.constant 8 : index
      %c0_694 = arith.constant 0 : index
      %1221 = vector.load %arg7[%c8_693, %c0_694] : memref<16x32xf32, #tpu.memory_space<vmem>>, vector<1x32xf32>
      %1222 = arith.mulf %1210, %1210 : vector<8x32xf32>
      %cst_695 = arith.constant dense<0.000000e+00> : vector<32xf32>
      %1223 = vector.multi_reduction <add>, %1222, %cst_695 [0] : vector<8x32xf32> to vector<32xf32>
      %1224 = vector.shape_cast %1223 : vector<32xf32> to vector<1x32xf32>
      %1225 = arith.addf %1221, %1224 : vector<1x32xf32>
      %c8_696 = arith.constant 8 : index
      %c0_697 = arith.constant 0 : index
      %1226 = vector.load %arg7[%c8_696, %c0_697] : memref<16x32xf32, #tpu.memory_space<vmem>>, vector<1x32xf32>
      tpu.vector_store %arg7[%c8_696, %c0_697], %1225 {strides = array<i32>} : memref<16x32xf32, #tpu.memory_space<vmem>>, vector<1x32xf32>,
      %c0_698 = arith.constant 0 : index
      %c9_699 = arith.constant 9 : index
      %1227 = memref.load %arg3[%c0_698, %c9_699] : memref<27x16xf32, #tpu.memory_space<smem>>
      %1228 = vector.broadcast %1227 : f32 to vector<8x32xf32>
      %1229 = arith.mulf %15, %1228 : vector<8x32xf32>
      %c1_700 = arith.constant 1 : index
      %c9_701 = arith.constant 9 : index
      %1230 = memref.load %arg3[%c1_700, %c9_701] : memref<27x16xf32, #tpu.memory_space<smem>>
      %1231 = vector.broadcast %1230 : f32 to vector<8x32xf32>
      %1232 = arith.mulf %19, %1231 : vector<8x32xf32>
      %1233 = arith.addf %1229, %1232 : vector<8x32xf32>
      %c2_702 = arith.constant 2 : index
      %c9_703 = arith.constant 9 : index
      %1234 = memref.load %arg3[%c2_702, %c9_703] : memref<27x16xf32, #tpu.memory_space<smem>>
      %1235 = vector.broadcast %1234 : f32 to vector<8x32xf32>
      %1236 = arith.mulf %23, %1235 : vector<8x32xf32>
      %1237 = arith.addf %1233, %1236 : vector<8x32xf32>
      %c3_704 = arith.constant 3 : index
      %c9_705 = arith.constant 9 : index
      %1238 = memref.load %arg3[%c3_704, %c9_705] : memref<27x16xf32, #tpu.memory_space<smem>>
      %1239 = vector.broadcast %1238 : f32 to vector<8x32xf32>
      %1240 = arith.mulf %27, %1239 : vector<8x32xf32>
      %1241 = arith.addf %1237, %1240 : vector<8x32xf32>
      %c4_706 = arith.constant 4 : index
      %c9_707 = arith.constant 9 : index
      %1242 = memref.load %arg3[%c4_706, %c9_707] : memref<27x16xf32, #tpu.memory_space<smem>>
      %1243 = vector.broadcast %1242 : f32 to vector<8x32xf32>
      %1244 = arith.mulf %31, %1243 : vector<8x32xf32>
      %1245 = arith.addf %1241, %1244 : vector<8x32xf32>
      %c5_708 = arith.constant 5 : index
      %c9_709 = arith.constant 9 : index
      %1246 = memref.load %arg3[%c5_708, %c9_709] : memref<27x16xf32, #tpu.memory_space<smem>>
      %1247 = vector.broadcast %1246 : f32 to vector<8x32xf32>
      %1248 = arith.mulf %35, %1247 : vector<8x32xf32>
      %1249 = arith.addf %1245, %1248 : vector<8x32xf32>
      %c6_710 = arith.constant 6 : index
      %c9_711 = arith.constant 9 : index
      %1250 = memref.load %arg3[%c6_710, %c9_711] : memref<27x16xf32, #tpu.memory_space<smem>>
      %1251 = vector.broadcast %1250 : f32 to vector<8x32xf32>
      %1252 = arith.mulf %39, %1251 : vector<8x32xf32>
      %1253 = arith.addf %1249, %1252 : vector<8x32xf32>
      %c7_712 = arith.constant 7 : index
      %c9_713 = arith.constant 9 : index
      %1254 = memref.load %arg3[%c7_712, %c9_713] : memref<27x16xf32, #tpu.memory_space<smem>>
      %1255 = vector.broadcast %1254 : f32 to vector<8x32xf32>
      %1256 = arith.mulf %43, %1255 : vector<8x32xf32>
      %1257 = arith.addf %1253, %1256 : vector<8x32xf32>
      %c8_714 = arith.constant 8 : index
      %c9_715 = arith.constant 9 : index
      %1258 = memref.load %arg3[%c8_714, %c9_715] : memref<27x16xf32, #tpu.memory_space<smem>>
      %1259 = vector.broadcast %1258 : f32 to vector<8x32xf32>
      %1260 = arith.mulf %47, %1259 : vector<8x32xf32>
      %1261 = arith.addf %1257, %1260 : vector<8x32xf32>
      %c9_716 = arith.constant 9 : index
      %c9_717 = arith.constant 9 : index
      %1262 = memref.load %arg3[%c9_716, %c9_717] : memref<27x16xf32, #tpu.memory_space<smem>>
      %1263 = vector.broadcast %1262 : f32 to vector<8x32xf32>
      %1264 = arith.mulf %51, %1263 : vector<8x32xf32>
      %1265 = arith.addf %1261, %1264 : vector<8x32xf32>
      %c10_718 = arith.constant 10 : index
      %c9_719 = arith.constant 9 : index
      %1266 = memref.load %arg3[%c10_718, %c9_719] : memref<27x16xf32, #tpu.memory_space<smem>>
      %1267 = vector.broadcast %1266 : f32 to vector<8x32xf32>
      %1268 = arith.mulf %55, %1267 : vector<8x32xf32>
      %1269 = arith.addf %1265, %1268 : vector<8x32xf32>
      %c11_720 = arith.constant 11 : index
      %c9_721 = arith.constant 9 : index
      %1270 = memref.load %arg3[%c11_720, %c9_721] : memref<27x16xf32, #tpu.memory_space<smem>>
      %1271 = vector.broadcast %1270 : f32 to vector<8x32xf32>
      %1272 = arith.mulf %59, %1271 : vector<8x32xf32>
      %1273 = arith.addf %1269, %1272 : vector<8x32xf32>
      %c12_722 = arith.constant 12 : index
      %c9_723 = arith.constant 9 : index
      %1274 = memref.load %arg3[%c12_722, %c9_723] : memref<27x16xf32, #tpu.memory_space<smem>>
      %1275 = vector.broadcast %1274 : f32 to vector<8x32xf32>
      %1276 = arith.mulf %63, %1275 : vector<8x32xf32>
      %1277 = arith.addf %1273, %1276 : vector<8x32xf32>
      %c13_724 = arith.constant 13 : index
      %c9_725 = arith.constant 9 : index
      %1278 = memref.load %arg3[%c13_724, %c9_725] : memref<27x16xf32, #tpu.memory_space<smem>>
      %1279 = vector.broadcast %1278 : f32 to vector<8x32xf32>
      %1280 = arith.mulf %67, %1279 : vector<8x32xf32>
      %1281 = arith.addf %1277, %1280 : vector<8x32xf32>
      %c14_726 = arith.constant 14 : index
      %c9_727 = arith.constant 9 : index
      %1282 = memref.load %arg3[%c14_726, %c9_727] : memref<27x16xf32, #tpu.memory_space<smem>>
      %1283 = vector.broadcast %1282 : f32 to vector<8x32xf32>
      %1284 = arith.mulf %71, %1283 : vector<8x32xf32>
      %1285 = arith.addf %1281, %1284 : vector<8x32xf32>
      %c15_728 = arith.constant 15 : index
      %c9_729 = arith.constant 9 : index
      %1286 = memref.load %arg3[%c15_728, %c9_729] : memref<27x16xf32, #tpu.memory_space<smem>>
      %1287 = vector.broadcast %1286 : f32 to vector<8x32xf32>
      %1288 = arith.mulf %75, %1287 : vector<8x32xf32>
      %1289 = arith.addf %1285, %1288 : vector<8x32xf32>
      %c16_730 = arith.constant 16 : index
      %c9_731 = arith.constant 9 : index
      %1290 = memref.load %arg3[%c16_730, %c9_731] : memref<27x16xf32, #tpu.memory_space<smem>>
      %1291 = vector.broadcast %1290 : f32 to vector<8x32xf32>
      %1292 = arith.mulf %79, %1291 : vector<8x32xf32>
      %1293 = arith.addf %1289, %1292 : vector<8x32xf32>
      %c17_732 = arith.constant 17 : index
      %c9_733 = arith.constant 9 : index
      %1294 = memref.load %arg3[%c17_732, %c9_733] : memref<27x16xf32, #tpu.memory_space<smem>>
      %1295 = vector.broadcast %1294 : f32 to vector<8x32xf32>
      %1296 = arith.mulf %83, %1295 : vector<8x32xf32>
      %1297 = arith.addf %1293, %1296 : vector<8x32xf32>
      %c18_734 = arith.constant 18 : index
      %c9_735 = arith.constant 9 : index
      %1298 = memref.load %arg3[%c18_734, %c9_735] : memref<27x16xf32, #tpu.memory_space<smem>>
      %1299 = vector.broadcast %1298 : f32 to vector<8x32xf32>
      %1300 = arith.mulf %87, %1299 : vector<8x32xf32>
      %1301 = arith.addf %1297, %1300 : vector<8x32xf32>
      %c19_736 = arith.constant 19 : index
      %c9_737 = arith.constant 9 : index
      %1302 = memref.load %arg3[%c19_736, %c9_737] : memref<27x16xf32, #tpu.memory_space<smem>>
      %1303 = vector.broadcast %1302 : f32 to vector<8x32xf32>
      %1304 = arith.mulf %91, %1303 : vector<8x32xf32>
      %1305 = arith.addf %1301, %1304 : vector<8x32xf32>
      %c20_738 = arith.constant 20 : index
      %c9_739 = arith.constant 9 : index
      %1306 = memref.load %arg3[%c20_738, %c9_739] : memref<27x16xf32, #tpu.memory_space<smem>>
      %1307 = vector.broadcast %1306 : f32 to vector<8x32xf32>
      %1308 = arith.mulf %95, %1307 : vector<8x32xf32>
      %1309 = arith.addf %1305, %1308 : vector<8x32xf32>
      %c21_740 = arith.constant 21 : index
      %c9_741 = arith.constant 9 : index
      %1310 = memref.load %arg3[%c21_740, %c9_741] : memref<27x16xf32, #tpu.memory_space<smem>>
      %1311 = vector.broadcast %1310 : f32 to vector<8x32xf32>
      %1312 = arith.mulf %99, %1311 : vector<8x32xf32>
      %1313 = arith.addf %1309, %1312 : vector<8x32xf32>
      %c22_742 = arith.constant 22 : index
      %c9_743 = arith.constant 9 : index
      %1314 = memref.load %arg3[%c22_742, %c9_743] : memref<27x16xf32, #tpu.memory_space<smem>>
      %1315 = vector.broadcast %1314 : f32 to vector<8x32xf32>
      %1316 = arith.mulf %103, %1315 : vector<8x32xf32>
      %1317 = arith.addf %1313, %1316 : vector<8x32xf32>
      %c23_744 = arith.constant 23 : index
      %c9_745 = arith.constant 9 : index
      %1318 = memref.load %arg3[%c23_744, %c9_745] : memref<27x16xf32, #tpu.memory_space<smem>>
      %1319 = vector.broadcast %1318 : f32 to vector<8x32xf32>
      %1320 = arith.mulf %107, %1319 : vector<8x32xf32>
      %1321 = arith.addf %1317, %1320 : vector<8x32xf32>
      %c24_746 = arith.constant 24 : index
      %c9_747 = arith.constant 9 : index
      %1322 = memref.load %arg3[%c24_746, %c9_747] : memref<27x16xf32, #tpu.memory_space<smem>>
      %1323 = vector.broadcast %1322 : f32 to vector<8x32xf32>
      %1324 = arith.mulf %111, %1323 : vector<8x32xf32>
      %1325 = arith.addf %1321, %1324 : vector<8x32xf32>
      %c25_748 = arith.constant 25 : index
      %c9_749 = arith.constant 9 : index
      %1326 = memref.load %arg3[%c25_748, %c9_749] : memref<27x16xf32, #tpu.memory_space<smem>>
      %1327 = vector.broadcast %1326 : f32 to vector<8x32xf32>
      %1328 = arith.mulf %115, %1327 : vector<8x32xf32>
      %1329 = arith.addf %1325, %1328 : vector<8x32xf32>
      %c26_750 = arith.constant 26 : index
      %c9_751 = arith.constant 9 : index
      %1330 = memref.load %arg3[%c26_750, %c9_751] : memref<27x16xf32, #tpu.memory_space<smem>>
      %1331 = vector.broadcast %1330 : f32 to vector<8x32xf32>
      %1332 = arith.mulf %119, %1331 : vector<8x32xf32>
      %1333 = arith.addf %1329, %1332 : vector<8x32xf32>
      %c8_i32_752 = arith.constant 8 : i32
      %1334 = arith.muli %9, %c8_i32_752 : i32
      %c0_753 = arith.constant 0 : index
      %c9_754 = arith.constant 9 : index
      %1335 = arith.index_cast %1334 : i32 to index
      %c0_755 = arith.constant 0 : index
      %1336 = vector.load %arg4[%c0_753, %c9_754, %1335, %c0_755] : memref<1x16x32x32xf32, #tpu.memory_space<vmem>>, vector<1x1x8x32xf32>
      %1337 = vector.shape_cast %1336 : vector<1x1x8x32xf32> to vector<8x32xf32>
      %1338 = vector.shape_cast %1333 : vector<8x32xf32> to vector<1x1x8x32xf32>
      tpu.vector_store %arg4[%c0_753, %c9_754, %1335, %c0_755], %1338 {strides = array<i32>} : memref<1x16x32x32xf32, #tpu.memory_space<vmem>>, vector<1x1x8x32xf32>,
      %c9_756 = arith.constant 9 : index
      %c0_757 = arith.constant 0 : index
      %1339 = vector.load %arg6[%c9_756, %c0_757] : memref<16x32xf32, #tpu.memory_space<vmem>>, vector<1x32xf32>
      %cst_758 = arith.constant dense<0.000000e+00> : vector<32xf32>
      %1340 = vector.multi_reduction <add>, %1333, %cst_758 [0] : vector<8x32xf32> to vector<32xf32>
      %1341 = vector.shape_cast %1340 : vector<32xf32> to vector<1x32xf32>
      %1342 = arith.addf %1339, %1341 : vector<1x32xf32>
      %c9_759 = arith.constant 9 : index
      %c0_760 = arith.constant 0 : index
      %1343 = vector.load %arg6[%c9_759, %c0_760] : memref<16x32xf32, #tpu.memory_space<vmem>>, vector<1x32xf32>
      tpu.vector_store %arg6[%c9_759, %c0_760], %1342 {strides = array<i32>} : memref<16x32xf32, #tpu.memory_space<vmem>>, vector<1x32xf32>,
      %c9_761 = arith.constant 9 : index
      %c0_762 = arith.constant 0 : index
      %1344 = vector.load %arg7[%c9_761, %c0_762] : memref<16x32xf32, #tpu.memory_space<vmem>>, vector<1x32xf32>
      %1345 = arith.mulf %1333, %1333 : vector<8x32xf32>
      %cst_763 = arith.constant dense<0.000000e+00> : vector<32xf32>
      %1346 = vector.multi_reduction <add>, %1345, %cst_763 [0] : vector<8x32xf32> to vector<32xf32>
      %1347 = vector.shape_cast %1346 : vector<32xf32> to vector<1x32xf32>
      %1348 = arith.addf %1344, %1347 : vector<1x32xf32>
      %c9_764 = arith.constant 9 : index
      %c0_765 = arith.constant 0 : index
      %1349 = vector.load %arg7[%c9_764, %c0_765] : memref<16x32xf32, #tpu.memory_space<vmem>>, vector<1x32xf32>
      tpu.vector_store %arg7[%c9_764, %c0_765], %1348 {strides = array<i32>} : memref<16x32xf32, #tpu.memory_space<vmem>>, vector<1x32xf32>,
      %c0_766 = arith.constant 0 : index
      %c10_767 = arith.constant 10 : index
      %1350 = memref.load %arg3[%c0_766, %c10_767] : memref<27x16xf32, #tpu.memory_space<smem>>
      %1351 = vector.broadcast %1350 : f32 to vector<8x32xf32>
      %1352 = arith.mulf %15, %1351 : vector<8x32xf32>
      %c1_768 = arith.constant 1 : index
      %c10_769 = arith.constant 10 : index
      %1353 = memref.load %arg3[%c1_768, %c10_769] : memref<27x16xf32, #tpu.memory_space<smem>>
      %1354 = vector.broadcast %1353 : f32 to vector<8x32xf32>
      %1355 = arith.mulf %19, %1354 : vector<8x32xf32>
      %1356 = arith.addf %1352, %1355 : vector<8x32xf32>
      %c2_770 = arith.constant 2 : index
      %c10_771 = arith.constant 10 : index
      %1357 = memref.load %arg3[%c2_770, %c10_771] : memref<27x16xf32, #tpu.memory_space<smem>>
      %1358 = vector.broadcast %1357 : f32 to vector<8x32xf32>
      %1359 = arith.mulf %23, %1358 : vector<8x32xf32>
      %1360 = arith.addf %1356, %1359 : vector<8x32xf32>
      %c3_772 = arith.constant 3 : index
      %c10_773 = arith.constant 10 : index
      %1361 = memref.load %arg3[%c3_772, %c10_773] : memref<27x16xf32, #tpu.memory_space<smem>>
      %1362 = vector.broadcast %1361 : f32 to vector<8x32xf32>
      %1363 = arith.mulf %27, %1362 : vector<8x32xf32>
      %1364 = arith.addf %1360, %1363 : vector<8x32xf32>
      %c4_774 = arith.constant 4 : index
      %c10_775 = arith.constant 10 : index
      %1365 = memref.load %arg3[%c4_774, %c10_775] : memref<27x16xf32, #tpu.memory_space<smem>>
      %1366 = vector.broadcast %1365 : f32 to vector<8x32xf32>
      %1367 = arith.mulf %31, %1366 : vector<8x32xf32>
      %1368 = arith.addf %1364, %1367 : vector<8x32xf32>
      %c5_776 = arith.constant 5 : index
      %c10_777 = arith.constant 10 : index
      %1369 = memref.load %arg3[%c5_776, %c10_777] : memref<27x16xf32, #tpu.memory_space<smem>>
      %1370 = vector.broadcast %1369 : f32 to vector<8x32xf32>
      %1371 = arith.mulf %35, %1370 : vector<8x32xf32>
      %1372 = arith.addf %1368, %1371 : vector<8x32xf32>
      %c6_778 = arith.constant 6 : index
      %c10_779 = arith.constant 10 : index
      %1373 = memref.load %arg3[%c6_778, %c10_779] : memref<27x16xf32, #tpu.memory_space<smem>>
      %1374 = vector.broadcast %1373 : f32 to vector<8x32xf32>
      %1375 = arith.mulf %39, %1374 : vector<8x32xf32>
      %1376 = arith.addf %1372, %1375 : vector<8x32xf32>
      %c7_780 = arith.constant 7 : index
      %c10_781 = arith.constant 10 : index
      %1377 = memref.load %arg3[%c7_780, %c10_781] : memref<27x16xf32, #tpu.memory_space<smem>>
      %1378 = vector.broadcast %1377 : f32 to vector<8x32xf32>
      %1379 = arith.mulf %43, %1378 : vector<8x32xf32>
      %1380 = arith.addf %1376, %1379 : vector<8x32xf32>
      %c8_782 = arith.constant 8 : index
      %c10_783 = arith.constant 10 : index
      %1381 = memref.load %arg3[%c8_782, %c10_783] : memref<27x16xf32, #tpu.memory_space<smem>>
      %1382 = vector.broadcast %1381 : f32 to vector<8x32xf32>
      %1383 = arith.mulf %47, %1382 : vector<8x32xf32>
      %1384 = arith.addf %1380, %1383 : vector<8x32xf32>
      %c9_784 = arith.constant 9 : index
      %c10_785 = arith.constant 10 : index
      %1385 = memref.load %arg3[%c9_784, %c10_785] : memref<27x16xf32, #tpu.memory_space<smem>>
      %1386 = vector.broadcast %1385 : f32 to vector<8x32xf32>
      %1387 = arith.mulf %51, %1386 : vector<8x32xf32>
      %1388 = arith.addf %1384, %1387 : vector<8x32xf32>
      %c10_786 = arith.constant 10 : index
      %c10_787 = arith.constant 10 : index
      %1389 = memref.load %arg3[%c10_786, %c10_787] : memref<27x16xf32, #tpu.memory_space<smem>>
      %1390 = vector.broadcast %1389 : f32 to vector<8x32xf32>
      %1391 = arith.mulf %55, %1390 : vector<8x32xf32>
      %1392 = arith.addf %1388, %1391 : vector<8x32xf32>
      %c11_788 = arith.constant 11 : index
      %c10_789 = arith.constant 10 : index
      %1393 = memref.load %arg3[%c11_788, %c10_789] : memref<27x16xf32, #tpu.memory_space<smem>>
      %1394 = vector.broadcast %1393 : f32 to vector<8x32xf32>
      %1395 = arith.mulf %59, %1394 : vector<8x32xf32>
      %1396 = arith.addf %1392, %1395 : vector<8x32xf32>
      %c12_790 = arith.constant 12 : index
      %c10_791 = arith.constant 10 : index
      %1397 = memref.load %arg3[%c12_790, %c10_791] : memref<27x16xf32, #tpu.memory_space<smem>>
      %1398 = vector.broadcast %1397 : f32 to vector<8x32xf32>
      %1399 = arith.mulf %63, %1398 : vector<8x32xf32>
      %1400 = arith.addf %1396, %1399 : vector<8x32xf32>
      %c13_792 = arith.constant 13 : index
      %c10_793 = arith.constant 10 : index
      %1401 = memref.load %arg3[%c13_792, %c10_793] : memref<27x16xf32, #tpu.memory_space<smem>>
      %1402 = vector.broadcast %1401 : f32 to vector<8x32xf32>
      %1403 = arith.mulf %67, %1402 : vector<8x32xf32>
      %1404 = arith.addf %1400, %1403 : vector<8x32xf32>
      %c14_794 = arith.constant 14 : index
      %c10_795 = arith.constant 10 : index
      %1405 = memref.load %arg3[%c14_794, %c10_795] : memref<27x16xf32, #tpu.memory_space<smem>>
      %1406 = vector.broadcast %1405 : f32 to vector<8x32xf32>
      %1407 = arith.mulf %71, %1406 : vector<8x32xf32>
      %1408 = arith.addf %1404, %1407 : vector<8x32xf32>
      %c15_796 = arith.constant 15 : index
      %c10_797 = arith.constant 10 : index
      %1409 = memref.load %arg3[%c15_796, %c10_797] : memref<27x16xf32, #tpu.memory_space<smem>>
      %1410 = vector.broadcast %1409 : f32 to vector<8x32xf32>
      %1411 = arith.mulf %75, %1410 : vector<8x32xf32>
      %1412 = arith.addf %1408, %1411 : vector<8x32xf32>
      %c16_798 = arith.constant 16 : index
      %c10_799 = arith.constant 10 : index
      %1413 = memref.load %arg3[%c16_798, %c10_799] : memref<27x16xf32, #tpu.memory_space<smem>>
      %1414 = vector.broadcast %1413 : f32 to vector<8x32xf32>
      %1415 = arith.mulf %79, %1414 : vector<8x32xf32>
      %1416 = arith.addf %1412, %1415 : vector<8x32xf32>
      %c17_800 = arith.constant 17 : index
      %c10_801 = arith.constant 10 : index
      %1417 = memref.load %arg3[%c17_800, %c10_801] : memref<27x16xf32, #tpu.memory_space<smem>>
      %1418 = vector.broadcast %1417 : f32 to vector<8x32xf32>
      %1419 = arith.mulf %83, %1418 : vector<8x32xf32>
      %1420 = arith.addf %1416, %1419 : vector<8x32xf32>
      %c18_802 = arith.constant 18 : index
      %c10_803 = arith.constant 10 : index
      %1421 = memref.load %arg3[%c18_802, %c10_803] : memref<27x16xf32, #tpu.memory_space<smem>>
      %1422 = vector.broadcast %1421 : f32 to vector<8x32xf32>
      %1423 = arith.mulf %87, %1422 : vector<8x32xf32>
      %1424 = arith.addf %1420, %1423 : vector<8x32xf32>
      %c19_804 = arith.constant 19 : index
      %c10_805 = arith.constant 10 : index
      %1425 = memref.load %arg3[%c19_804, %c10_805] : memref<27x16xf32, #tpu.memory_space<smem>>
      %1426 = vector.broadcast %1425 : f32 to vector<8x32xf32>
      %1427 = arith.mulf %91, %1426 : vector<8x32xf32>
      %1428 = arith.addf %1424, %1427 : vector<8x32xf32>
      %c20_806 = arith.constant 20 : index
      %c10_807 = arith.constant 10 : index
      %1429 = memref.load %arg3[%c20_806, %c10_807] : memref<27x16xf32, #tpu.memory_space<smem>>
      %1430 = vector.broadcast %1429 : f32 to vector<8x32xf32>
      %1431 = arith.mulf %95, %1430 : vector<8x32xf32>
      %1432 = arith.addf %1428, %1431 : vector<8x32xf32>
      %c21_808 = arith.constant 21 : index
      %c10_809 = arith.constant 10 : index
      %1433 = memref.load %arg3[%c21_808, %c10_809] : memref<27x16xf32, #tpu.memory_space<smem>>
      %1434 = vector.broadcast %1433 : f32 to vector<8x32xf32>
      %1435 = arith.mulf %99, %1434 : vector<8x32xf32>
      %1436 = arith.addf %1432, %1435 : vector<8x32xf32>
      %c22_810 = arith.constant 22 : index
      %c10_811 = arith.constant 10 : index
      %1437 = memref.load %arg3[%c22_810, %c10_811] : memref<27x16xf32, #tpu.memory_space<smem>>
      %1438 = vector.broadcast %1437 : f32 to vector<8x32xf32>
      %1439 = arith.mulf %103, %1438 : vector<8x32xf32>
      %1440 = arith.addf %1436, %1439 : vector<8x32xf32>
      %c23_812 = arith.constant 23 : index
      %c10_813 = arith.constant 10 : index
      %1441 = memref.load %arg3[%c23_812, %c10_813] : memref<27x16xf32, #tpu.memory_space<smem>>
      %1442 = vector.broadcast %1441 : f32 to vector<8x32xf32>
      %1443 = arith.mulf %107, %1442 : vector<8x32xf32>
      %1444 = arith.addf %1440, %1443 : vector<8x32xf32>
      %c24_814 = arith.constant 24 : index
      %c10_815 = arith.constant 10 : index
      %1445 = memref.load %arg3[%c24_814, %c10_815] : memref<27x16xf32, #tpu.memory_space<smem>>
      %1446 = vector.broadcast %1445 : f32 to vector<8x32xf32>
      %1447 = arith.mulf %111, %1446 : vector<8x32xf32>
      %1448 = arith.addf %1444, %1447 : vector<8x32xf32>
      %c25_816 = arith.constant 25 : index
      %c10_817 = arith.constant 10 : index
      %1449 = memref.load %arg3[%c25_816, %c10_817] : memref<27x16xf32, #tpu.memory_space<smem>>
      %1450 = vector.broadcast %1449 : f32 to vector<8x32xf32>
      %1451 = arith.mulf %115, %1450 : vector<8x32xf32>
      %1452 = arith.addf %1448, %1451 : vector<8x32xf32>
      %c26_818 = arith.constant 26 : index
      %c10_819 = arith.constant 10 : index
      %1453 = memref.load %arg3[%c26_818, %c10_819] : memref<27x16xf32, #tpu.memory_space<smem>>
      %1454 = vector.broadcast %1453 : f32 to vector<8x32xf32>
      %1455 = arith.mulf %119, %1454 : vector<8x32xf32>
      %1456 = arith.addf %1452, %1455 : vector<8x32xf32>
      %c8_i32_820 = arith.constant 8 : i32
      %1457 = arith.muli %9, %c8_i32_820 : i32
      %c0_821 = arith.constant 0 : index
      %c10_822 = arith.constant 10 : index
      %1458 = arith.index_cast %1457 : i32 to index
      %c0_823 = arith.constant 0 : index
      %1459 = vector.load %arg4[%c0_821, %c10_822, %1458, %c0_823] : memref<1x16x32x32xf32, #tpu.memory_space<vmem>>, vector<1x1x8x32xf32>
      %1460 = vector.shape_cast %1459 : vector<1x1x8x32xf32> to vector<8x32xf32>
      %1461 = vector.shape_cast %1456 : vector<8x32xf32> to vector<1x1x8x32xf32>
      tpu.vector_store %arg4[%c0_821, %c10_822, %1458, %c0_823], %1461 {strides = array<i32>} : memref<1x16x32x32xf32, #tpu.memory_space<vmem>>, vector<1x1x8x32xf32>,
      %c10_824 = arith.constant 10 : index
      %c0_825 = arith.constant 0 : index
      %1462 = vector.load %arg6[%c10_824, %c0_825] : memref<16x32xf32, #tpu.memory_space<vmem>>, vector<1x32xf32>
      %cst_826 = arith.constant dense<0.000000e+00> : vector<32xf32>
      %1463 = vector.multi_reduction <add>, %1456, %cst_826 [0] : vector<8x32xf32> to vector<32xf32>
      %1464 = vector.shape_cast %1463 : vector<32xf32> to vector<1x32xf32>
      %1465 = arith.addf %1462, %1464 : vector<1x32xf32>
      %c10_827 = arith.constant 10 : index
      %c0_828 = arith.constant 0 : index
      %1466 = vector.load %arg6[%c10_827, %c0_828] : memref<16x32xf32, #tpu.memory_space<vmem>>, vector<1x32xf32>
      tpu.vector_store %arg6[%c10_827, %c0_828], %1465 {strides = array<i32>} : memref<16x32xf32, #tpu.memory_space<vmem>>, vector<1x32xf32>,
      %c10_829 = arith.constant 10 : index
      %c0_830 = arith.constant 0 : index
      %1467 = vector.load %arg7[%c10_829, %c0_830] : memref<16x32xf32, #tpu.memory_space<vmem>>, vector<1x32xf32>
      %1468 = arith.mulf %1456, %1456 : vector<8x32xf32>
      %cst_831 = arith.constant dense<0.000000e+00> : vector<32xf32>
      %1469 = vector.multi_reduction <add>, %1468, %cst_831 [0] : vector<8x32xf32> to vector<32xf32>
      %1470 = vector.shape_cast %1469 : vector<32xf32> to vector<1x32xf32>
      %1471 = arith.addf %1467, %1470 : vector<1x32xf32>
      %c10_832 = arith.constant 10 : index
      %c0_833 = arith.constant 0 : index
      %1472 = vector.load %arg7[%c10_832, %c0_833] : memref<16x32xf32, #tpu.memory_space<vmem>>, vector<1x32xf32>
      tpu.vector_store %arg7[%c10_832, %c0_833], %1471 {strides = array<i32>} : memref<16x32xf32, #tpu.memory_space<vmem>>, vector<1x32xf32>,
      %c0_834 = arith.constant 0 : index
      %c11_835 = arith.constant 11 : index
      %1473 = memref.load %arg3[%c0_834, %c11_835] : memref<27x16xf32, #tpu.memory_space<smem>>
      %1474 = vector.broadcast %1473 : f32 to vector<8x32xf32>
      %1475 = arith.mulf %15, %1474 : vector<8x32xf32>
      %c1_836 = arith.constant 1 : index
      %c11_837 = arith.constant 11 : index
      %1476 = memref.load %arg3[%c1_836, %c11_837] : memref<27x16xf32, #tpu.memory_space<smem>>
      %1477 = vector.broadcast %1476 : f32 to vector<8x32xf32>
      %1478 = arith.mulf %19, %1477 : vector<8x32xf32>
      %1479 = arith.addf %1475, %1478 : vector<8x32xf32>
      %c2_838 = arith.constant 2 : index
      %c11_839 = arith.constant 11 : index
      %1480 = memref.load %arg3[%c2_838, %c11_839] : memref<27x16xf32, #tpu.memory_space<smem>>
      %1481 = vector.broadcast %1480 : f32 to vector<8x32xf32>
      %1482 = arith.mulf %23, %1481 : vector<8x32xf32>
      %1483 = arith.addf %1479, %1482 : vector<8x32xf32>
      %c3_840 = arith.constant 3 : index
      %c11_841 = arith.constant 11 : index
      %1484 = memref.load %arg3[%c3_840, %c11_841] : memref<27x16xf32, #tpu.memory_space<smem>>
      %1485 = vector.broadcast %1484 : f32 to vector<8x32xf32>
      %1486 = arith.mulf %27, %1485 : vector<8x32xf32>
      %1487 = arith.addf %1483, %1486 : vector<8x32xf32>
      %c4_842 = arith.constant 4 : index
      %c11_843 = arith.constant 11 : index
      %1488 = memref.load %arg3[%c4_842, %c11_843] : memref<27x16xf32, #tpu.memory_space<smem>>
      %1489 = vector.broadcast %1488 : f32 to vector<8x32xf32>
      %1490 = arith.mulf %31, %1489 : vector<8x32xf32>
      %1491 = arith.addf %1487, %1490 : vector<8x32xf32>
      %c5_844 = arith.constant 5 : index
      %c11_845 = arith.constant 11 : index
      %1492 = memref.load %arg3[%c5_844, %c11_845] : memref<27x16xf32, #tpu.memory_space<smem>>
      %1493 = vector.broadcast %1492 : f32 to vector<8x32xf32>
      %1494 = arith.mulf %35, %1493 : vector<8x32xf32>
      %1495 = arith.addf %1491, %1494 : vector<8x32xf32>
      %c6_846 = arith.constant 6 : index
      %c11_847 = arith.constant 11 : index
      %1496 = memref.load %arg3[%c6_846, %c11_847] : memref<27x16xf32, #tpu.memory_space<smem>>
      %1497 = vector.broadcast %1496 : f32 to vector<8x32xf32>
      %1498 = arith.mulf %39, %1497 : vector<8x32xf32>
      %1499 = arith.addf %1495, %1498 : vector<8x32xf32>
      %c7_848 = arith.constant 7 : index
      %c11_849 = arith.constant 11 : index
      %1500 = memref.load %arg3[%c7_848, %c11_849] : memref<27x16xf32, #tpu.memory_space<smem>>
      %1501 = vector.broadcast %1500 : f32 to vector<8x32xf32>
      %1502 = arith.mulf %43, %1501 : vector<8x32xf32>
      %1503 = arith.addf %1499, %1502 : vector<8x32xf32>
      %c8_850 = arith.constant 8 : index
      %c11_851 = arith.constant 11 : index
      %1504 = memref.load %arg3[%c8_850, %c11_851] : memref<27x16xf32, #tpu.memory_space<smem>>
      %1505 = vector.broadcast %1504 : f32 to vector<8x32xf32>
      %1506 = arith.mulf %47, %1505 : vector<8x32xf32>
      %1507 = arith.addf %1503, %1506 : vector<8x32xf32>
      %c9_852 = arith.constant 9 : index
      %c11_853 = arith.constant 11 : index
      %1508 = memref.load %arg3[%c9_852, %c11_853] : memref<27x16xf32, #tpu.memory_space<smem>>
      %1509 = vector.broadcast %1508 : f32 to vector<8x32xf32>
      %1510 = arith.mulf %51, %1509 : vector<8x32xf32>
      %1511 = arith.addf %1507, %1510 : vector<8x32xf32>
      %c10_854 = arith.constant 10 : index
      %c11_855 = arith.constant 11 : index
      %1512 = memref.load %arg3[%c10_854, %c11_855] : memref<27x16xf32, #tpu.memory_space<smem>>
      %1513 = vector.broadcast %1512 : f32 to vector<8x32xf32>
      %1514 = arith.mulf %55, %1513 : vector<8x32xf32>
      %1515 = arith.addf %1511, %1514 : vector<8x32xf32>
      %c11_856 = arith.constant 11 : index
      %c11_857 = arith.constant 11 : index
      %1516 = memref.load %arg3[%c11_856, %c11_857] : memref<27x16xf32, #tpu.memory_space<smem>>
      %1517 = vector.broadcast %1516 : f32 to vector<8x32xf32>
      %1518 = arith.mulf %59, %1517 : vector<8x32xf32>
      %1519 = arith.addf %1515, %1518 : vector<8x32xf32>
      %c12_858 = arith.constant 12 : index
      %c11_859 = arith.constant 11 : index
      %1520 = memref.load %arg3[%c12_858, %c11_859] : memref<27x16xf32, #tpu.memory_space<smem>>
      %1521 = vector.broadcast %1520 : f32 to vector<8x32xf32>
      %1522 = arith.mulf %63, %1521 : vector<8x32xf32>
      %1523 = arith.addf %1519, %1522 : vector<8x32xf32>
      %c13_860 = arith.constant 13 : index
      %c11_861 = arith.constant 11 : index
      %1524 = memref.load %arg3[%c13_860, %c11_861] : memref<27x16xf32, #tpu.memory_space<smem>>
      %1525 = vector.broadcast %1524 : f32 to vector<8x32xf32>
      %1526 = arith.mulf %67, %1525 : vector<8x32xf32>
      %1527 = arith.addf %1523, %1526 : vector<8x32xf32>
      %c14_862 = arith.constant 14 : index
      %c11_863 = arith.constant 11 : index
      %1528 = memref.load %arg3[%c14_862, %c11_863] : memref<27x16xf32, #tpu.memory_space<smem>>
      %1529 = vector.broadcast %1528 : f32 to vector<8x32xf32>
      %1530 = arith.mulf %71, %1529 : vector<8x32xf32>
      %1531 = arith.addf %1527, %1530 : vector<8x32xf32>
      %c15_864 = arith.constant 15 : index
      %c11_865 = arith.constant 11 : index
      %1532 = memref.load %arg3[%c15_864, %c11_865] : memref<27x16xf32, #tpu.memory_space<smem>>
      %1533 = vector.broadcast %1532 : f32 to vector<8x32xf32>
      %1534 = arith.mulf %75, %1533 : vector<8x32xf32>
      %1535 = arith.addf %1531, %1534 : vector<8x32xf32>
      %c16_866 = arith.constant 16 : index
      %c11_867 = arith.constant 11 : index
      %1536 = memref.load %arg3[%c16_866, %c11_867] : memref<27x16xf32, #tpu.memory_space<smem>>
      %1537 = vector.broadcast %1536 : f32 to vector<8x32xf32>
      %1538 = arith.mulf %79, %1537 : vector<8x32xf32>
      %1539 = arith.addf %1535, %1538 : vector<8x32xf32>
      %c17_868 = arith.constant 17 : index
      %c11_869 = arith.constant 11 : index
      %1540 = memref.load %arg3[%c17_868, %c11_869] : memref<27x16xf32, #tpu.memory_space<smem>>
      %1541 = vector.broadcast %1540 : f32 to vector<8x32xf32>
      %1542 = arith.mulf %83, %1541 : vector<8x32xf32>
      %1543 = arith.addf %1539, %1542 : vector<8x32xf32>
      %c18_870 = arith.constant 18 : index
      %c11_871 = arith.constant 11 : index
      %1544 = memref.load %arg3[%c18_870, %c11_871] : memref<27x16xf32, #tpu.memory_space<smem>>
      %1545 = vector.broadcast %1544 : f32 to vector<8x32xf32>
      %1546 = arith.mulf %87, %1545 : vector<8x32xf32>
      %1547 = arith.addf %1543, %1546 : vector<8x32xf32>
      %c19_872 = arith.constant 19 : index
      %c11_873 = arith.constant 11 : index
      %1548 = memref.load %arg3[%c19_872, %c11_873] : memref<27x16xf32, #tpu.memory_space<smem>>
      %1549 = vector.broadcast %1548 : f32 to vector<8x32xf32>
      %1550 = arith.mulf %91, %1549 : vector<8x32xf32>
      %1551 = arith.addf %1547, %1550 : vector<8x32xf32>
      %c20_874 = arith.constant 20 : index
      %c11_875 = arith.constant 11 : index
      %1552 = memref.load %arg3[%c20_874, %c11_875] : memref<27x16xf32, #tpu.memory_space<smem>>
      %1553 = vector.broadcast %1552 : f32 to vector<8x32xf32>
      %1554 = arith.mulf %95, %1553 : vector<8x32xf32>
      %1555 = arith.addf %1551, %1554 : vector<8x32xf32>
      %c21_876 = arith.constant 21 : index
      %c11_877 = arith.constant 11 : index
      %1556 = memref.load %arg3[%c21_876, %c11_877] : memref<27x16xf32, #tpu.memory_space<smem>>
      %1557 = vector.broadcast %1556 : f32 to vector<8x32xf32>
      %1558 = arith.mulf %99, %1557 : vector<8x32xf32>
      %1559 = arith.addf %1555, %1558 : vector<8x32xf32>
      %c22_878 = arith.constant 22 : index
      %c11_879 = arith.constant 11 : index
      %1560 = memref.load %arg3[%c22_878, %c11_879] : memref<27x16xf32, #tpu.memory_space<smem>>
      %1561 = vector.broadcast %1560 : f32 to vector<8x32xf32>
      %1562 = arith.mulf %103, %1561 : vector<8x32xf32>
      %1563 = arith.addf %1559, %1562 : vector<8x32xf32>
      %c23_880 = arith.constant 23 : index
      %c11_881 = arith.constant 11 : index
      %1564 = memref.load %arg3[%c23_880, %c11_881] : memref<27x16xf32, #tpu.memory_space<smem>>
      %1565 = vector.broadcast %1564 : f32 to vector<8x32xf32>
      %1566 = arith.mulf %107, %1565 : vector<8x32xf32>
      %1567 = arith.addf %1563, %1566 : vector<8x32xf32>
      %c24_882 = arith.constant 24 : index
      %c11_883 = arith.constant 11 : index
      %1568 = memref.load %arg3[%c24_882, %c11_883] : memref<27x16xf32, #tpu.memory_space<smem>>
      %1569 = vector.broadcast %1568 : f32 to vector<8x32xf32>
      %1570 = arith.mulf %111, %1569 : vector<8x32xf32>
      %1571 = arith.addf %1567, %1570 : vector<8x32xf32>
      %c25_884 = arith.constant 25 : index
      %c11_885 = arith.constant 11 : index
      %1572 = memref.load %arg3[%c25_884, %c11_885] : memref<27x16xf32, #tpu.memory_space<smem>>
      %1573 = vector.broadcast %1572 : f32 to vector<8x32xf32>
      %1574 = arith.mulf %115, %1573 : vector<8x32xf32>
      %1575 = arith.addf %1571, %1574 : vector<8x32xf32>
      %c26_886 = arith.constant 26 : index
      %c11_887 = arith.constant 11 : index
      %1576 = memref.load %arg3[%c26_886, %c11_887] : memref<27x16xf32, #tpu.memory_space<smem>>
      %1577 = vector.broadcast %1576 : f32 to vector<8x32xf32>
      %1578 = arith.mulf %119, %1577 : vector<8x32xf32>
      %1579 = arith.addf %1575, %1578 : vector<8x32xf32>
      %c8_i32_888 = arith.constant 8 : i32
      %1580 = arith.muli %9, %c8_i32_888 : i32
      %c0_889 = arith.constant 0 : index
      %c11_890 = arith.constant 11 : index
      %1581 = arith.index_cast %1580 : i32 to index
      %c0_891 = arith.constant 0 : index
      %1582 = vector.load %arg4[%c0_889, %c11_890, %1581, %c0_891] : memref<1x16x32x32xf32, #tpu.memory_space<vmem>>, vector<1x1x8x32xf32>
      %1583 = vector.shape_cast %1582 : vector<1x1x8x32xf32> to vector<8x32xf32>
      %1584 = vector.shape_cast %1579 : vector<8x32xf32> to vector<1x1x8x32xf32>
      tpu.vector_store %arg4[%c0_889, %c11_890, %1581, %c0_891], %1584 {strides = array<i32>} : memref<1x16x32x32xf32, #tpu.memory_space<vmem>>, vector<1x1x8x32xf32>,
      %c11_892 = arith.constant 11 : index
      %c0_893 = arith.constant 0 : index
      %1585 = vector.load %arg6[%c11_892, %c0_893] : memref<16x32xf32, #tpu.memory_space<vmem>>, vector<1x32xf32>
      %cst_894 = arith.constant dense<0.000000e+00> : vector<32xf32>
      %1586 = vector.multi_reduction <add>, %1579, %cst_894 [0] : vector<8x32xf32> to vector<32xf32>
      %1587 = vector.shape_cast %1586 : vector<32xf32> to vector<1x32xf32>
      %1588 = arith.addf %1585, %1587 : vector<1x32xf32>
      %c11_895 = arith.constant 11 : index
      %c0_896 = arith.constant 0 : index
      %1589 = vector.load %arg6[%c11_895, %c0_896] : memref<16x32xf32, #tpu.memory_space<vmem>>, vector<1x32xf32>
      tpu.vector_store %arg6[%c11_895, %c0_896], %1588 {strides = array<i32>} : memref<16x32xf32, #tpu.memory_space<vmem>>, vector<1x32xf32>,
      %c11_897 = arith.constant 11 : index
      %c0_898 = arith.constant 0 : index
      %1590 = vector.load %arg7[%c11_897, %c0_898] : memref<16x32xf32, #tpu.memory_space<vmem>>, vector<1x32xf32>
      %1591 = arith.mulf %1579, %1579 : vector<8x32xf32>
      %cst_899 = arith.constant dense<0.000000e+00> : vector<32xf32>
      %1592 = vector.multi_reduction <add>, %1591, %cst_899 [0] : vector<8x32xf32> to vector<32xf32>
      %1593 = vector.shape_cast %1592 : vector<32xf32> to vector<1x32xf32>
      %1594 = arith.addf %1590, %1593 : vector<1x32xf32>
      %c11_900 = arith.constant 11 : index
      %c0_901 = arith.constant 0 : index
      %1595 = vector.load %arg7[%c11_900, %c0_901] : memref<16x32xf32, #tpu.memory_space<vmem>>, vector<1x32xf32>
      tpu.vector_store %arg7[%c11_900, %c0_901], %1594 {strides = array<i32>} : memref<16x32xf32, #tpu.memory_space<vmem>>, vector<1x32xf32>,
      %c0_902 = arith.constant 0 : index
      %c12_903 = arith.constant 12 : index
      %1596 = memref.load %arg3[%c0_902, %c12_903] : memref<27x16xf32, #tpu.memory_space<smem>>
      %1597 = vector.broadcast %1596 : f32 to vector<8x32xf32>
      %1598 = arith.mulf %15, %1597 : vector<8x32xf32>
      %c1_904 = arith.constant 1 : index
      %c12_905 = arith.constant 12 : index
      %1599 = memref.load %arg3[%c1_904, %c12_905] : memref<27x16xf32, #tpu.memory_space<smem>>
      %1600 = vector.broadcast %1599 : f32 to vector<8x32xf32>
      %1601 = arith.mulf %19, %1600 : vector<8x32xf32>
      %1602 = arith.addf %1598, %1601 : vector<8x32xf32>
      %c2_906 = arith.constant 2 : index
      %c12_907 = arith.constant 12 : index
      %1603 = memref.load %arg3[%c2_906, %c12_907] : memref<27x16xf32, #tpu.memory_space<smem>>
      %1604 = vector.broadcast %1603 : f32 to vector<8x32xf32>
      %1605 = arith.mulf %23, %1604 : vector<8x32xf32>
      %1606 = arith.addf %1602, %1605 : vector<8x32xf32>
      %c3_908 = arith.constant 3 : index
      %c12_909 = arith.constant 12 : index
      %1607 = memref.load %arg3[%c3_908, %c12_909] : memref<27x16xf32, #tpu.memory_space<smem>>
      %1608 = vector.broadcast %1607 : f32 to vector<8x32xf32>
      %1609 = arith.mulf %27, %1608 : vector<8x32xf32>
      %1610 = arith.addf %1606, %1609 : vector<8x32xf32>
      %c4_910 = arith.constant 4 : index
      %c12_911 = arith.constant 12 : index
      %1611 = memref.load %arg3[%c4_910, %c12_911] : memref<27x16xf32, #tpu.memory_space<smem>>
      %1612 = vector.broadcast %1611 : f32 to vector<8x32xf32>
      %1613 = arith.mulf %31, %1612 : vector<8x32xf32>
      %1614 = arith.addf %1610, %1613 : vector<8x32xf32>
      %c5_912 = arith.constant 5 : index
      %c12_913 = arith.constant 12 : index
      %1615 = memref.load %arg3[%c5_912, %c12_913] : memref<27x16xf32, #tpu.memory_space<smem>>
      %1616 = vector.broadcast %1615 : f32 to vector<8x32xf32>
      %1617 = arith.mulf %35, %1616 : vector<8x32xf32>
      %1618 = arith.addf %1614, %1617 : vector<8x32xf32>
      %c6_914 = arith.constant 6 : index
      %c12_915 = arith.constant 12 : index
      %1619 = memref.load %arg3[%c6_914, %c12_915] : memref<27x16xf32, #tpu.memory_space<smem>>
      %1620 = vector.broadcast %1619 : f32 to vector<8x32xf32>
      %1621 = arith.mulf %39, %1620 : vector<8x32xf32>
      %1622 = arith.addf %1618, %1621 : vector<8x32xf32>
      %c7_916 = arith.constant 7 : index
      %c12_917 = arith.constant 12 : index
      %1623 = memref.load %arg3[%c7_916, %c12_917] : memref<27x16xf32, #tpu.memory_space<smem>>
      %1624 = vector.broadcast %1623 : f32 to vector<8x32xf32>
      %1625 = arith.mulf %43, %1624 : vector<8x32xf32>
      %1626 = arith.addf %1622, %1625 : vector<8x32xf32>
      %c8_918 = arith.constant 8 : index
      %c12_919 = arith.constant 12 : index
      %1627 = memref.load %arg3[%c8_918, %c12_919] : memref<27x16xf32, #tpu.memory_space<smem>>
      %1628 = vector.broadcast %1627 : f32 to vector<8x32xf32>
      %1629 = arith.mulf %47, %1628 : vector<8x32xf32>
      %1630 = arith.addf %1626, %1629 : vector<8x32xf32>
      %c9_920 = arith.constant 9 : index
      %c12_921 = arith.constant 12 : index
      %1631 = memref.load %arg3[%c9_920, %c12_921] : memref<27x16xf32, #tpu.memory_space<smem>>
      %1632 = vector.broadcast %1631 : f32 to vector<8x32xf32>
      %1633 = arith.mulf %51, %1632 : vector<8x32xf32>
      %1634 = arith.addf %1630, %1633 : vector<8x32xf32>
      %c10_922 = arith.constant 10 : index
      %c12_923 = arith.constant 12 : index
      %1635 = memref.load %arg3[%c10_922, %c12_923] : memref<27x16xf32, #tpu.memory_space<smem>>
      %1636 = vector.broadcast %1635 : f32 to vector<8x32xf32>
      %1637 = arith.mulf %55, %1636 : vector<8x32xf32>
      %1638 = arith.addf %1634, %1637 : vector<8x32xf32>
      %c11_924 = arith.constant 11 : index
      %c12_925 = arith.constant 12 : index
      %1639 = memref.load %arg3[%c11_924, %c12_925] : memref<27x16xf32, #tpu.memory_space<smem>>
      %1640 = vector.broadcast %1639 : f32 to vector<8x32xf32>
      %1641 = arith.mulf %59, %1640 : vector<8x32xf32>
      %1642 = arith.addf %1638, %1641 : vector<8x32xf32>
      %c12_926 = arith.constant 12 : index
      %c12_927 = arith.constant 12 : index
      %1643 = memref.load %arg3[%c12_926, %c12_927] : memref<27x16xf32, #tpu.memory_space<smem>>
      %1644 = vector.broadcast %1643 : f32 to vector<8x32xf32>
      %1645 = arith.mulf %63, %1644 : vector<8x32xf32>
      %1646 = arith.addf %1642, %1645 : vector<8x32xf32>
      %c13_928 = arith.constant 13 : index
      %c12_929 = arith.constant 12 : index
      %1647 = memref.load %arg3[%c13_928, %c12_929] : memref<27x16xf32, #tpu.memory_space<smem>>
      %1648 = vector.broadcast %1647 : f32 to vector<8x32xf32>
      %1649 = arith.mulf %67, %1648 : vector<8x32xf32>
      %1650 = arith.addf %1646, %1649 : vector<8x32xf32>
      %c14_930 = arith.constant 14 : index
      %c12_931 = arith.constant 12 : index
      %1651 = memref.load %arg3[%c14_930, %c12_931] : memref<27x16xf32, #tpu.memory_space<smem>>
      %1652 = vector.broadcast %1651 : f32 to vector<8x32xf32>
      %1653 = arith.mulf %71, %1652 : vector<8x32xf32>
      %1654 = arith.addf %1650, %1653 : vector<8x32xf32>
      %c15_932 = arith.constant 15 : index
      %c12_933 = arith.constant 12 : index
      %1655 = memref.load %arg3[%c15_932, %c12_933] : memref<27x16xf32, #tpu.memory_space<smem>>
      %1656 = vector.broadcast %1655 : f32 to vector<8x32xf32>
      %1657 = arith.mulf %75, %1656 : vector<8x32xf32>
      %1658 = arith.addf %1654, %1657 : vector<8x32xf32>
      %c16_934 = arith.constant 16 : index
      %c12_935 = arith.constant 12 : index
      %1659 = memref.load %arg3[%c16_934, %c12_935] : memref<27x16xf32, #tpu.memory_space<smem>>
      %1660 = vector.broadcast %1659 : f32 to vector<8x32xf32>
      %1661 = arith.mulf %79, %1660 : vector<8x32xf32>
      %1662 = arith.addf %1658, %1661 : vector<8x32xf32>
      %c17_936 = arith.constant 17 : index
      %c12_937 = arith.constant 12 : index
      %1663 = memref.load %arg3[%c17_936, %c12_937] : memref<27x16xf32, #tpu.memory_space<smem>>
      %1664 = vector.broadcast %1663 : f32 to vector<8x32xf32>
      %1665 = arith.mulf %83, %1664 : vector<8x32xf32>
      %1666 = arith.addf %1662, %1665 : vector<8x32xf32>
      %c18_938 = arith.constant 18 : index
      %c12_939 = arith.constant 12 : index
      %1667 = memref.load %arg3[%c18_938, %c12_939] : memref<27x16xf32, #tpu.memory_space<smem>>
      %1668 = vector.broadcast %1667 : f32 to vector<8x32xf32>
      %1669 = arith.mulf %87, %1668 : vector<8x32xf32>
      %1670 = arith.addf %1666, %1669 : vector<8x32xf32>
      %c19_940 = arith.constant 19 : index
      %c12_941 = arith.constant 12 : index
      %1671 = memref.load %arg3[%c19_940, %c12_941] : memref<27x16xf32, #tpu.memory_space<smem>>
      %1672 = vector.broadcast %1671 : f32 to vector<8x32xf32>
      %1673 = arith.mulf %91, %1672 : vector<8x32xf32>
      %1674 = arith.addf %1670, %1673 : vector<8x32xf32>
      %c20_942 = arith.constant 20 : index
      %c12_943 = arith.constant 12 : index
      %1675 = memref.load %arg3[%c20_942, %c12_943] : memref<27x16xf32, #tpu.memory_space<smem>>
      %1676 = vector.broadcast %1675 : f32 to vector<8x32xf32>
      %1677 = arith.mulf %95, %1676 : vector<8x32xf32>
      %1678 = arith.addf %1674, %1677 : vector<8x32xf32>
      %c21_944 = arith.constant 21 : index
      %c12_945 = arith.constant 12 : index
      %1679 = memref.load %arg3[%c21_944, %c12_945] : memref<27x16xf32, #tpu.memory_space<smem>>
      %1680 = vector.broadcast %1679 : f32 to vector<8x32xf32>
      %1681 = arith.mulf %99, %1680 : vector<8x32xf32>
      %1682 = arith.addf %1678, %1681 : vector<8x32xf32>
      %c22_946 = arith.constant 22 : index
      %c12_947 = arith.constant 12 : index
      %1683 = memref.load %arg3[%c22_946, %c12_947] : memref<27x16xf32, #tpu.memory_space<smem>>
      %1684 = vector.broadcast %1683 : f32 to vector<8x32xf32>
      %1685 = arith.mulf %103, %1684 : vector<8x32xf32>
      %1686 = arith.addf %1682, %1685 : vector<8x32xf32>
      %c23_948 = arith.constant 23 : index
      %c12_949 = arith.constant 12 : index
      %1687 = memref.load %arg3[%c23_948, %c12_949] : memref<27x16xf32, #tpu.memory_space<smem>>
      %1688 = vector.broadcast %1687 : f32 to vector<8x32xf32>
      %1689 = arith.mulf %107, %1688 : vector<8x32xf32>
      %1690 = arith.addf %1686, %1689 : vector<8x32xf32>
      %c24_950 = arith.constant 24 : index
      %c12_951 = arith.constant 12 : index
      %1691 = memref.load %arg3[%c24_950, %c12_951] : memref<27x16xf32, #tpu.memory_space<smem>>
      %1692 = vector.broadcast %1691 : f32 to vector<8x32xf32>
      %1693 = arith.mulf %111, %1692 : vector<8x32xf32>
      %1694 = arith.addf %1690, %1693 : vector<8x32xf32>
      %c25_952 = arith.constant 25 : index
      %c12_953 = arith.constant 12 : index
      %1695 = memref.load %arg3[%c25_952, %c12_953] : memref<27x16xf32, #tpu.memory_space<smem>>
      %1696 = vector.broadcast %1695 : f32 to vector<8x32xf32>
      %1697 = arith.mulf %115, %1696 : vector<8x32xf32>
      %1698 = arith.addf %1694, %1697 : vector<8x32xf32>
      %c26_954 = arith.constant 26 : index
      %c12_955 = arith.constant 12 : index
      %1699 = memref.load %arg3[%c26_954, %c12_955] : memref<27x16xf32, #tpu.memory_space<smem>>
      %1700 = vector.broadcast %1699 : f32 to vector<8x32xf32>
      %1701 = arith.mulf %119, %1700 : vector<8x32xf32>
      %1702 = arith.addf %1698, %1701 : vector<8x32xf32>
      %c8_i32_956 = arith.constant 8 : i32
      %1703 = arith.muli %9, %c8_i32_956 : i32
      %c0_957 = arith.constant 0 : index
      %c12_958 = arith.constant 12 : index
      %1704 = arith.index_cast %1703 : i32 to index
      %c0_959 = arith.constant 0 : index
      %1705 = vector.load %arg4[%c0_957, %c12_958, %1704, %c0_959] : memref<1x16x32x32xf32, #tpu.memory_space<vmem>>, vector<1x1x8x32xf32>
      %1706 = vector.shape_cast %1705 : vector<1x1x8x32xf32> to vector<8x32xf32>
      %1707 = vector.shape_cast %1702 : vector<8x32xf32> to vector<1x1x8x32xf32>
      tpu.vector_store %arg4[%c0_957, %c12_958, %1704, %c0_959], %1707 {strides = array<i32>} : memref<1x16x32x32xf32, #tpu.memory_space<vmem>>, vector<1x1x8x32xf32>,
      %c12_960 = arith.constant 12 : index
      %c0_961 = arith.constant 0 : index
      %1708 = vector.load %arg6[%c12_960, %c0_961] : memref<16x32xf32, #tpu.memory_space<vmem>>, vector<1x32xf32>
      %cst_962 = arith.constant dense<0.000000e+00> : vector<32xf32>
      %1709 = vector.multi_reduction <add>, %1702, %cst_962 [0] : vector<8x32xf32> to vector<32xf32>
      %1710 = vector.shape_cast %1709 : vector<32xf32> to vector<1x32xf32>
      %1711 = arith.addf %1708, %1710 : vector<1x32xf32>
      %c12_963 = arith.constant 12 : index
      %c0_964 = arith.constant 0 : index
      %1712 = vector.load %arg6[%c12_963, %c0_964] : memref<16x32xf32, #tpu.memory_space<vmem>>, vector<1x32xf32>
      tpu.vector_store %arg6[%c12_963, %c0_964], %1711 {strides = array<i32>} : memref<16x32xf32, #tpu.memory_space<vmem>>, vector<1x32xf32>,
      %c12_965 = arith.constant 12 : index
      %c0_966 = arith.constant 0 : index
      %1713 = vector.load %arg7[%c12_965, %c0_966] : memref<16x32xf32, #tpu.memory_space<vmem>>, vector<1x32xf32>
      %1714 = arith.mulf %1702, %1702 : vector<8x32xf32>
      %cst_967 = arith.constant dense<0.000000e+00> : vector<32xf32>
      %1715 = vector.multi_reduction <add>, %1714, %cst_967 [0] : vector<8x32xf32> to vector<32xf32>
      %1716 = vector.shape_cast %1715 : vector<32xf32> to vector<1x32xf32>
      %1717 = arith.addf %1713, %1716 : vector<1x32xf32>
      %c12_968 = arith.constant 12 : index
      %c0_969 = arith.constant 0 : index
      %1718 = vector.load %arg7[%c12_968, %c0_969] : memref<16x32xf32, #tpu.memory_space<vmem>>, vector<1x32xf32>
      tpu.vector_store %arg7[%c12_968, %c0_969], %1717 {strides = array<i32>} : memref<16x32xf32, #tpu.memory_space<vmem>>, vector<1x32xf32>,
      %c0_970 = arith.constant 0 : index
      %c13_971 = arith.constant 13 : index
      %1719 = memref.load %arg3[%c0_970, %c13_971] : memref<27x16xf32, #tpu.memory_space<smem>>
      %1720 = vector.broadcast %1719 : f32 to vector<8x32xf32>
      %1721 = arith.mulf %15, %1720 : vector<8x32xf32>
      %c1_972 = arith.constant 1 : index
      %c13_973 = arith.constant 13 : index
      %1722 = memref.load %arg3[%c1_972, %c13_973] : memref<27x16xf32, #tpu.memory_space<smem>>
      %1723 = vector.broadcast %1722 : f32 to vector<8x32xf32>
      %1724 = arith.mulf %19, %1723 : vector<8x32xf32>
      %1725 = arith.addf %1721, %1724 : vector<8x32xf32>
      %c2_974 = arith.constant 2 : index
      %c13_975 = arith.constant 13 : index
      %1726 = memref.load %arg3[%c2_974, %c13_975] : memref<27x16xf32, #tpu.memory_space<smem>>
      %1727 = vector.broadcast %1726 : f32 to vector<8x32xf32>
      %1728 = arith.mulf %23, %1727 : vector<8x32xf32>
      %1729 = arith.addf %1725, %1728 : vector<8x32xf32>
      %c3_976 = arith.constant 3 : index
      %c13_977 = arith.constant 13 : index
      %1730 = memref.load %arg3[%c3_976, %c13_977] : memref<27x16xf32, #tpu.memory_space<smem>>
      %1731 = vector.broadcast %1730 : f32 to vector<8x32xf32>
      %1732 = arith.mulf %27, %1731 : vector<8x32xf32>
      %1733 = arith.addf %1729, %1732 : vector<8x32xf32>
      %c4_978 = arith.constant 4 : index
      %c13_979 = arith.constant 13 : index
      %1734 = memref.load %arg3[%c4_978, %c13_979] : memref<27x16xf32, #tpu.memory_space<smem>>
      %1735 = vector.broadcast %1734 : f32 to vector<8x32xf32>
      %1736 = arith.mulf %31, %1735 : vector<8x32xf32>
      %1737 = arith.addf %1733, %1736 : vector<8x32xf32>
      %c5_980 = arith.constant 5 : index
      %c13_981 = arith.constant 13 : index
      %1738 = memref.load %arg3[%c5_980, %c13_981] : memref<27x16xf32, #tpu.memory_space<smem>>
      %1739 = vector.broadcast %1738 : f32 to vector<8x32xf32>
      %1740 = arith.mulf %35, %1739 : vector<8x32xf32>
      %1741 = arith.addf %1737, %1740 : vector<8x32xf32>
      %c6_982 = arith.constant 6 : index
      %c13_983 = arith.constant 13 : index
      %1742 = memref.load %arg3[%c6_982, %c13_983] : memref<27x16xf32, #tpu.memory_space<smem>>
      %1743 = vector.broadcast %1742 : f32 to vector<8x32xf32>
      %1744 = arith.mulf %39, %1743 : vector<8x32xf32>
      %1745 = arith.addf %1741, %1744 : vector<8x32xf32>
      %c7_984 = arith.constant 7 : index
      %c13_985 = arith.constant 13 : index
      %1746 = memref.load %arg3[%c7_984, %c13_985] : memref<27x16xf32, #tpu.memory_space<smem>>
      %1747 = vector.broadcast %1746 : f32 to vector<8x32xf32>
      %1748 = arith.mulf %43, %1747 : vector<8x32xf32>
      %1749 = arith.addf %1745, %1748 : vector<8x32xf32>
      %c8_986 = arith.constant 8 : index
      %c13_987 = arith.constant 13 : index
      %1750 = memref.load %arg3[%c8_986, %c13_987] : memref<27x16xf32, #tpu.memory_space<smem>>
      %1751 = vector.broadcast %1750 : f32 to vector<8x32xf32>
      %1752 = arith.mulf %47, %1751 : vector<8x32xf32>
      %1753 = arith.addf %1749, %1752 : vector<8x32xf32>
      %c9_988 = arith.constant 9 : index
      %c13_989 = arith.constant 13 : index
      %1754 = memref.load %arg3[%c9_988, %c13_989] : memref<27x16xf32, #tpu.memory_space<smem>>
      %1755 = vector.broadcast %1754 : f32 to vector<8x32xf32>
      %1756 = arith.mulf %51, %1755 : vector<8x32xf32>
      %1757 = arith.addf %1753, %1756 : vector<8x32xf32>
      %c10_990 = arith.constant 10 : index
      %c13_991 = arith.constant 13 : index
      %1758 = memref.load %arg3[%c10_990, %c13_991] : memref<27x16xf32, #tpu.memory_space<smem>>
      %1759 = vector.broadcast %1758 : f32 to vector<8x32xf32>
      %1760 = arith.mulf %55, %1759 : vector<8x32xf32>
      %1761 = arith.addf %1757, %1760 : vector<8x32xf32>
      %c11_992 = arith.constant 11 : index
      %c13_993 = arith.constant 13 : index
      %1762 = memref.load %arg3[%c11_992, %c13_993] : memref<27x16xf32, #tpu.memory_space<smem>>
      %1763 = vector.broadcast %1762 : f32 to vector<8x32xf32>
      %1764 = arith.mulf %59, %1763 : vector<8x32xf32>
      %1765 = arith.addf %1761, %1764 : vector<8x32xf32>
      %c12_994 = arith.constant 12 : index
      %c13_995 = arith.constant 13 : index
      %1766 = memref.load %arg3[%c12_994, %c13_995] : memref<27x16xf32, #tpu.memory_space<smem>>
      %1767 = vector.broadcast %1766 : f32 to vector<8x32xf32>
      %1768 = arith.mulf %63, %1767 : vector<8x32xf32>
      %1769 = arith.addf %1765, %1768 : vector<8x32xf32>
      %c13_996 = arith.constant 13 : index
      %c13_997 = arith.constant 13 : index
      %1770 = memref.load %arg3[%c13_996, %c13_997] : memref<27x16xf32, #tpu.memory_space<smem>>
      %1771 = vector.broadcast %1770 : f32 to vector<8x32xf32>
      %1772 = arith.mulf %67, %1771 : vector<8x32xf32>
      %1773 = arith.addf %1769, %1772 : vector<8x32xf32>
      %c14_998 = arith.constant 14 : index
      %c13_999 = arith.constant 13 : index
      %1774 = memref.load %arg3[%c14_998, %c13_999] : memref<27x16xf32, #tpu.memory_space<smem>>
      %1775 = vector.broadcast %1774 : f32 to vector<8x32xf32>
      %1776 = arith.mulf %71, %1775 : vector<8x32xf32>
      %1777 = arith.addf %1773, %1776 : vector<8x32xf32>
      %c15_1000 = arith.constant 15 : index
      %c13_1001 = arith.constant 13 : index
      %1778 = memref.load %arg3[%c15_1000, %c13_1001] : memref<27x16xf32, #tpu.memory_space<smem>>
      %1779 = vector.broadcast %1778 : f32 to vector<8x32xf32>
      %1780 = arith.mulf %75, %1779 : vector<8x32xf32>
      %1781 = arith.addf %1777, %1780 : vector<8x32xf32>
      %c16_1002 = arith.constant 16 : index
      %c13_1003 = arith.constant 13 : index
      %1782 = memref.load %arg3[%c16_1002, %c13_1003] : memref<27x16xf32, #tpu.memory_space<smem>>
      %1783 = vector.broadcast %1782 : f32 to vector<8x32xf32>
      %1784 = arith.mulf %79, %1783 : vector<8x32xf32>
      %1785 = arith.addf %1781, %1784 : vector<8x32xf32>
      %c17_1004 = arith.constant 17 : index
      %c13_1005 = arith.constant 13 : index
      %1786 = memref.load %arg3[%c17_1004, %c13_1005] : memref<27x16xf32, #tpu.memory_space<smem>>
      %1787 = vector.broadcast %1786 : f32 to vector<8x32xf32>
      %1788 = arith.mulf %83, %1787 : vector<8x32xf32>
      %1789 = arith.addf %1785, %1788 : vector<8x32xf32>
      %c18_1006 = arith.constant 18 : index
      %c13_1007 = arith.constant 13 : index
      %1790 = memref.load %arg3[%c18_1006, %c13_1007] : memref<27x16xf32, #tpu.memory_space<smem>>
      %1791 = vector.broadcast %1790 : f32 to vector<8x32xf32>
      %1792 = arith.mulf %87, %1791 : vector<8x32xf32>
      %1793 = arith.addf %1789, %1792 : vector<8x32xf32>
      %c19_1008 = arith.constant 19 : index
      %c13_1009 = arith.constant 13 : index
      %1794 = memref.load %arg3[%c19_1008, %c13_1009] : memref<27x16xf32, #tpu.memory_space<smem>>
      %1795 = vector.broadcast %1794 : f32 to vector<8x32xf32>
      %1796 = arith.mulf %91, %1795 : vector<8x32xf32>
      %1797 = arith.addf %1793, %1796 : vector<8x32xf32>
      %c20_1010 = arith.constant 20 : index
      %c13_1011 = arith.constant 13 : index
      %1798 = memref.load %arg3[%c20_1010, %c13_1011] : memref<27x16xf32, #tpu.memory_space<smem>>
      %1799 = vector.broadcast %1798 : f32 to vector<8x32xf32>
      %1800 = arith.mulf %95, %1799 : vector<8x32xf32>
      %1801 = arith.addf %1797, %1800 : vector<8x32xf32>
      %c21_1012 = arith.constant 21 : index
      %c13_1013 = arith.constant 13 : index
      %1802 = memref.load %arg3[%c21_1012, %c13_1013] : memref<27x16xf32, #tpu.memory_space<smem>>
      %1803 = vector.broadcast %1802 : f32 to vector<8x32xf32>
      %1804 = arith.mulf %99, %1803 : vector<8x32xf32>
      %1805 = arith.addf %1801, %1804 : vector<8x32xf32>
      %c22_1014 = arith.constant 22 : index
      %c13_1015 = arith.constant 13 : index
      %1806 = memref.load %arg3[%c22_1014, %c13_1015] : memref<27x16xf32, #tpu.memory_space<smem>>
      %1807 = vector.broadcast %1806 : f32 to vector<8x32xf32>
      %1808 = arith.mulf %103, %1807 : vector<8x32xf32>
      %1809 = arith.addf %1805, %1808 : vector<8x32xf32>
      %c23_1016 = arith.constant 23 : index
      %c13_1017 = arith.constant 13 : index
      %1810 = memref.load %arg3[%c23_1016, %c13_1017] : memref<27x16xf32, #tpu.memory_space<smem>>
      %1811 = vector.broadcast %1810 : f32 to vector<8x32xf32>
      %1812 = arith.mulf %107, %1811 : vector<8x32xf32>
      %1813 = arith.addf %1809, %1812 : vector<8x32xf32>
      %c24_1018 = arith.constant 24 : index
      %c13_1019 = arith.constant 13 : index
      %1814 = memref.load %arg3[%c24_1018, %c13_1019] : memref<27x16xf32, #tpu.memory_space<smem>>
      %1815 = vector.broadcast %1814 : f32 to vector<8x32xf32>
      %1816 = arith.mulf %111, %1815 : vector<8x32xf32>
      %1817 = arith.addf %1813, %1816 : vector<8x32xf32>
      %c25_1020 = arith.constant 25 : index
      %c13_1021 = arith.constant 13 : index
      %1818 = memref.load %arg3[%c25_1020, %c13_1021] : memref<27x16xf32, #tpu.memory_space<smem>>
      %1819 = vector.broadcast %1818 : f32 to vector<8x32xf32>
      %1820 = arith.mulf %115, %1819 : vector<8x32xf32>
      %1821 = arith.addf %1817, %1820 : vector<8x32xf32>
      %c26_1022 = arith.constant 26 : index
      %c13_1023 = arith.constant 13 : index
      %1822 = memref.load %arg3[%c26_1022, %c13_1023] : memref<27x16xf32, #tpu.memory_space<smem>>
      %1823 = vector.broadcast %1822 : f32 to vector<8x32xf32>
      %1824 = arith.mulf %119, %1823 : vector<8x32xf32>
      %1825 = arith.addf %1821, %1824 : vector<8x32xf32>
      %c8_i32_1024 = arith.constant 8 : i32
      %1826 = arith.muli %9, %c8_i32_1024 : i32
      %c0_1025 = arith.constant 0 : index
      %c13_1026 = arith.constant 13 : index
      %1827 = arith.index_cast %1826 : i32 to index
      %c0_1027 = arith.constant 0 : index
      %1828 = vector.load %arg4[%c0_1025, %c13_1026, %1827, %c0_1027] : memref<1x16x32x32xf32, #tpu.memory_space<vmem>>, vector<1x1x8x32xf32>
      %1829 = vector.shape_cast %1828 : vector<1x1x8x32xf32> to vector<8x32xf32>
      %1830 = vector.shape_cast %1825 : vector<8x32xf32> to vector<1x1x8x32xf32>
      tpu.vector_store %arg4[%c0_1025, %c13_1026, %1827, %c0_1027], %1830 {strides = array<i32>} : memref<1x16x32x32xf32, #tpu.memory_space<vmem>>, vector<1x1x8x32xf32>,
      %c13_1028 = arith.constant 13 : index
      %c0_1029 = arith.constant 0 : index
      %1831 = vector.load %arg6[%c13_1028, %c0_1029] : memref<16x32xf32, #tpu.memory_space<vmem>>, vector<1x32xf32>
      %cst_1030 = arith.constant dense<0.000000e+00> : vector<32xf32>
      %1832 = vector.multi_reduction <add>, %1825, %cst_1030 [0] : vector<8x32xf32> to vector<32xf32>
      %1833 = vector.shape_cast %1832 : vector<32xf32> to vector<1x32xf32>
      %1834 = arith.addf %1831, %1833 : vector<1x32xf32>
      %c13_1031 = arith.constant 13 : index
      %c0_1032 = arith.constant 0 : index
      %1835 = vector.load %arg6[%c13_1031, %c0_1032] : memref<16x32xf32, #tpu.memory_space<vmem>>, vector<1x32xf32>
      tpu.vector_store %arg6[%c13_1031, %c0_1032], %1834 {strides = array<i32>} : memref<16x32xf32, #tpu.memory_space<vmem>>, vector<1x32xf32>,
      %c13_1033 = arith.constant 13 : index
      %c0_1034 = arith.constant 0 : index
      %1836 = vector.load %arg7[%c13_1033, %c0_1034] : memref<16x32xf32, #tpu.memory_space<vmem>>, vector<1x32xf32>
      %1837 = arith.mulf %1825, %1825 : vector<8x32xf32>
      %cst_1035 = arith.constant dense<0.000000e+00> : vector<32xf32>
      %1838 = vector.multi_reduction <add>, %1837, %cst_1035 [0] : vector<8x32xf32> to vector<32xf32>
      %1839 = vector.shape_cast %1838 : vector<32xf32> to vector<1x32xf32>
      %1840 = arith.addf %1836, %1839 : vector<1x32xf32>
      %c13_1036 = arith.constant 13 : index
      %c0_1037 = arith.constant 0 : index
      %1841 = vector.load %arg7[%c13_1036, %c0_1037] : memref<16x32xf32, #tpu.memory_space<vmem>>, vector<1x32xf32>
      tpu.vector_store %arg7[%c13_1036, %c0_1037], %1840 {strides = array<i32>} : memref<16x32xf32, #tpu.memory_space<vmem>>, vector<1x32xf32>,
      %c0_1038 = arith.constant 0 : index
      %c14_1039 = arith.constant 14 : index
      %1842 = memref.load %arg3[%c0_1038, %c14_1039] : memref<27x16xf32, #tpu.memory_space<smem>>
      %1843 = vector.broadcast %1842 : f32 to vector<8x32xf32>
      %1844 = arith.mulf %15, %1843 : vector<8x32xf32>
      %c1_1040 = arith.constant 1 : index
      %c14_1041 = arith.constant 14 : index
      %1845 = memref.load %arg3[%c1_1040, %c14_1041] : memref<27x16xf32, #tpu.memory_space<smem>>
      %1846 = vector.broadcast %1845 : f32 to vector<8x32xf32>
      %1847 = arith.mulf %19, %1846 : vector<8x32xf32>
      %1848 = arith.addf %1844, %1847 : vector<8x32xf32>
      %c2_1042 = arith.constant 2 : index
      %c14_1043 = arith.constant 14 : index
      %1849 = memref.load %arg3[%c2_1042, %c14_1043] : memref<27x16xf32, #tpu.memory_space<smem>>
      %1850 = vector.broadcast %1849 : f32 to vector<8x32xf32>
      %1851 = arith.mulf %23, %1850 : vector<8x32xf32>
      %1852 = arith.addf %1848, %1851 : vector<8x32xf32>
      %c3_1044 = arith.constant 3 : index
      %c14_1045 = arith.constant 14 : index
      %1853 = memref.load %arg3[%c3_1044, %c14_1045] : memref<27x16xf32, #tpu.memory_space<smem>>
      %1854 = vector.broadcast %1853 : f32 to vector<8x32xf32>
      %1855 = arith.mulf %27, %1854 : vector<8x32xf32>
      %1856 = arith.addf %1852, %1855 : vector<8x32xf32>
      %c4_1046 = arith.constant 4 : index
      %c14_1047 = arith.constant 14 : index
      %1857 = memref.load %arg3[%c4_1046, %c14_1047] : memref<27x16xf32, #tpu.memory_space<smem>>
      %1858 = vector.broadcast %1857 : f32 to vector<8x32xf32>
      %1859 = arith.mulf %31, %1858 : vector<8x32xf32>
      %1860 = arith.addf %1856, %1859 : vector<8x32xf32>
      %c5_1048 = arith.constant 5 : index
      %c14_1049 = arith.constant 14 : index
      %1861 = memref.load %arg3[%c5_1048, %c14_1049] : memref<27x16xf32, #tpu.memory_space<smem>>
      %1862 = vector.broadcast %1861 : f32 to vector<8x32xf32>
      %1863 = arith.mulf %35, %1862 : vector<8x32xf32>
      %1864 = arith.addf %1860, %1863 : vector<8x32xf32>
      %c6_1050 = arith.constant 6 : index
      %c14_1051 = arith.constant 14 : index
      %1865 = memref.load %arg3[%c6_1050, %c14_1051] : memref<27x16xf32, #tpu.memory_space<smem>>
      %1866 = vector.broadcast %1865 : f32 to vector<8x32xf32>
      %1867 = arith.mulf %39, %1866 : vector<8x32xf32>
      %1868 = arith.addf %1864, %1867 : vector<8x32xf32>
      %c7_1052 = arith.constant 7 : index
      %c14_1053 = arith.constant 14 : index
      %1869 = memref.load %arg3[%c7_1052, %c14_1053] : memref<27x16xf32, #tpu.memory_space<smem>>
      %1870 = vector.broadcast %1869 : f32 to vector<8x32xf32>
      %1871 = arith.mulf %43, %1870 : vector<8x32xf32>
      %1872 = arith.addf %1868, %1871 : vector<8x32xf32>
      %c8_1054 = arith.constant 8 : index
      %c14_1055 = arith.constant 14 : index
      %1873 = memref.load %arg3[%c8_1054, %c14_1055] : memref<27x16xf32, #tpu.memory_space<smem>>
      %1874 = vector.broadcast %1873 : f32 to vector<8x32xf32>
      %1875 = arith.mulf %47, %1874 : vector<8x32xf32>
      %1876 = arith.addf %1872, %1875 : vector<8x32xf32>
      %c9_1056 = arith.constant 9 : index
      %c14_1057 = arith.constant 14 : index
      %1877 = memref.load %arg3[%c9_1056, %c14_1057] : memref<27x16xf32, #tpu.memory_space<smem>>
      %1878 = vector.broadcast %1877 : f32 to vector<8x32xf32>
      %1879 = arith.mulf %51, %1878 : vector<8x32xf32>
      %1880 = arith.addf %1876, %1879 : vector<8x32xf32>
      %c10_1058 = arith.constant 10 : index
      %c14_1059 = arith.constant 14 : index
      %1881 = memref.load %arg3[%c10_1058, %c14_1059] : memref<27x16xf32, #tpu.memory_space<smem>>
      %1882 = vector.broadcast %1881 : f32 to vector<8x32xf32>
      %1883 = arith.mulf %55, %1882 : vector<8x32xf32>
      %1884 = arith.addf %1880, %1883 : vector<8x32xf32>
      %c11_1060 = arith.constant 11 : index
      %c14_1061 = arith.constant 14 : index
      %1885 = memref.load %arg3[%c11_1060, %c14_1061] : memref<27x16xf32, #tpu.memory_space<smem>>
      %1886 = vector.broadcast %1885 : f32 to vector<8x32xf32>
      %1887 = arith.mulf %59, %1886 : vector<8x32xf32>
      %1888 = arith.addf %1884, %1887 : vector<8x32xf32>
      %c12_1062 = arith.constant 12 : index
      %c14_1063 = arith.constant 14 : index
      %1889 = memref.load %arg3[%c12_1062, %c14_1063] : memref<27x16xf32, #tpu.memory_space<smem>>
      %1890 = vector.broadcast %1889 : f32 to vector<8x32xf32>
      %1891 = arith.mulf %63, %1890 : vector<8x32xf32>
      %1892 = arith.addf %1888, %1891 : vector<8x32xf32>
      %c13_1064 = arith.constant 13 : index
      %c14_1065 = arith.constant 14 : index
      %1893 = memref.load %arg3[%c13_1064, %c14_1065] : memref<27x16xf32, #tpu.memory_space<smem>>
      %1894 = vector.broadcast %1893 : f32 to vector<8x32xf32>
      %1895 = arith.mulf %67, %1894 : vector<8x32xf32>
      %1896 = arith.addf %1892, %1895 : vector<8x32xf32>
      %c14_1066 = arith.constant 14 : index
      %c14_1067 = arith.constant 14 : index
      %1897 = memref.load %arg3[%c14_1066, %c14_1067] : memref<27x16xf32, #tpu.memory_space<smem>>
      %1898 = vector.broadcast %1897 : f32 to vector<8x32xf32>
      %1899 = arith.mulf %71, %1898 : vector<8x32xf32>
      %1900 = arith.addf %1896, %1899 : vector<8x32xf32>
      %c15_1068 = arith.constant 15 : index
      %c14_1069 = arith.constant 14 : index
      %1901 = memref.load %arg3[%c15_1068, %c14_1069] : memref<27x16xf32, #tpu.memory_space<smem>>
      %1902 = vector.broadcast %1901 : f32 to vector<8x32xf32>
      %1903 = arith.mulf %75, %1902 : vector<8x32xf32>
      %1904 = arith.addf %1900, %1903 : vector<8x32xf32>
      %c16_1070 = arith.constant 16 : index
      %c14_1071 = arith.constant 14 : index
      %1905 = memref.load %arg3[%c16_1070, %c14_1071] : memref<27x16xf32, #tpu.memory_space<smem>>
      %1906 = vector.broadcast %1905 : f32 to vector<8x32xf32>
      %1907 = arith.mulf %79, %1906 : vector<8x32xf32>
      %1908 = arith.addf %1904, %1907 : vector<8x32xf32>
      %c17_1072 = arith.constant 17 : index
      %c14_1073 = arith.constant 14 : index
      %1909 = memref.load %arg3[%c17_1072, %c14_1073] : memref<27x16xf32, #tpu.memory_space<smem>>
      %1910 = vector.broadcast %1909 : f32 to vector<8x32xf32>
      %1911 = arith.mulf %83, %1910 : vector<8x32xf32>
      %1912 = arith.addf %1908, %1911 : vector<8x32xf32>
      %c18_1074 = arith.constant 18 : index
      %c14_1075 = arith.constant 14 : index
      %1913 = memref.load %arg3[%c18_1074, %c14_1075] : memref<27x16xf32, #tpu.memory_space<smem>>
      %1914 = vector.broadcast %1913 : f32 to vector<8x32xf32>
      %1915 = arith.mulf %87, %1914 : vector<8x32xf32>
      %1916 = arith.addf %1912, %1915 : vector<8x32xf32>
      %c19_1076 = arith.constant 19 : index
      %c14_1077 = arith.constant 14 : index
      %1917 = memref.load %arg3[%c19_1076, %c14_1077] : memref<27x16xf32, #tpu.memory_space<smem>>
      %1918 = vector.broadcast %1917 : f32 to vector<8x32xf32>
      %1919 = arith.mulf %91, %1918 : vector<8x32xf32>
      %1920 = arith.addf %1916, %1919 : vector<8x32xf32>
      %c20_1078 = arith.constant 20 : index
      %c14_1079 = arith.constant 14 : index
      %1921 = memref.load %arg3[%c20_1078, %c14_1079] : memref<27x16xf32, #tpu.memory_space<smem>>
      %1922 = vector.broadcast %1921 : f32 to vector<8x32xf32>
      %1923 = arith.mulf %95, %1922 : vector<8x32xf32>
      %1924 = arith.addf %1920, %1923 : vector<8x32xf32>
      %c21_1080 = arith.constant 21 : index
      %c14_1081 = arith.constant 14 : index
      %1925 = memref.load %arg3[%c21_1080, %c14_1081] : memref<27x16xf32, #tpu.memory_space<smem>>
      %1926 = vector.broadcast %1925 : f32 to vector<8x32xf32>
      %1927 = arith.mulf %99, %1926 : vector<8x32xf32>
      %1928 = arith.addf %1924, %1927 : vector<8x32xf32>
      %c22_1082 = arith.constant 22 : index
      %c14_1083 = arith.constant 14 : index
      %1929 = memref.load %arg3[%c22_1082, %c14_1083] : memref<27x16xf32, #tpu.memory_space<smem>>
      %1930 = vector.broadcast %1929 : f32 to vector<8x32xf32>
      %1931 = arith.mulf %103, %1930 : vector<8x32xf32>
      %1932 = arith.addf %1928, %1931 : vector<8x32xf32>
      %c23_1084 = arith.constant 23 : index
      %c14_1085 = arith.constant 14 : index
      %1933 = memref.load %arg3[%c23_1084, %c14_1085] : memref<27x16xf32, #tpu.memory_space<smem>>
      %1934 = vector.broadcast %1933 : f32 to vector<8x32xf32>
      %1935 = arith.mulf %107, %1934 : vector<8x32xf32>
      %1936 = arith.addf %1932, %1935 : vector<8x32xf32>
      %c24_1086 = arith.constant 24 : index
      %c14_1087 = arith.constant 14 : index
      %1937 = memref.load %arg3[%c24_1086, %c14_1087] : memref<27x16xf32, #tpu.memory_space<smem>>
      %1938 = vector.broadcast %1937 : f32 to vector<8x32xf32>
      %1939 = arith.mulf %111, %1938 : vector<8x32xf32>
      %1940 = arith.addf %1936, %1939 : vector<8x32xf32>
      %c25_1088 = arith.constant 25 : index
      %c14_1089 = arith.constant 14 : index
      %1941 = memref.load %arg3[%c25_1088, %c14_1089] : memref<27x16xf32, #tpu.memory_space<smem>>
      %1942 = vector.broadcast %1941 : f32 to vector<8x32xf32>
      %1943 = arith.mulf %115, %1942 : vector<8x32xf32>
      %1944 = arith.addf %1940, %1943 : vector<8x32xf32>
      %c26_1090 = arith.constant 26 : index
      %c14_1091 = arith.constant 14 : index
      %1945 = memref.load %arg3[%c26_1090, %c14_1091] : memref<27x16xf32, #tpu.memory_space<smem>>
      %1946 = vector.broadcast %1945 : f32 to vector<8x32xf32>
      %1947 = arith.mulf %119, %1946 : vector<8x32xf32>
      %1948 = arith.addf %1944, %1947 : vector<8x32xf32>
      %c8_i32_1092 = arith.constant 8 : i32
      %1949 = arith.muli %9, %c8_i32_1092 : i32
      %c0_1093 = arith.constant 0 : index
      %c14_1094 = arith.constant 14 : index
      %1950 = arith.index_cast %1949 : i32 to index
      %c0_1095 = arith.constant 0 : index
      %1951 = vector.load %arg4[%c0_1093, %c14_1094, %1950, %c0_1095] : memref<1x16x32x32xf32, #tpu.memory_space<vmem>>, vector<1x1x8x32xf32>
      %1952 = vector.shape_cast %1951 : vector<1x1x8x32xf32> to vector<8x32xf32>
      %1953 = vector.shape_cast %1948 : vector<8x32xf32> to vector<1x1x8x32xf32>
      tpu.vector_store %arg4[%c0_1093, %c14_1094, %1950, %c0_1095], %1953 {strides = array<i32>} : memref<1x16x32x32xf32, #tpu.memory_space<vmem>>, vector<1x1x8x32xf32>,
      %c14_1096 = arith.constant 14 : index
      %c0_1097 = arith.constant 0 : index
      %1954 = vector.load %arg6[%c14_1096, %c0_1097] : memref<16x32xf32, #tpu.memory_space<vmem>>, vector<1x32xf32>
      %cst_1098 = arith.constant dense<0.000000e+00> : vector<32xf32>
      %1955 = vector.multi_reduction <add>, %1948, %cst_1098 [0] : vector<8x32xf32> to vector<32xf32>
      %1956 = vector.shape_cast %1955 : vector<32xf32> to vector<1x32xf32>
      %1957 = arith.addf %1954, %1956 : vector<1x32xf32>
      %c14_1099 = arith.constant 14 : index
      %c0_1100 = arith.constant 0 : index
      %1958 = vector.load %arg6[%c14_1099, %c0_1100] : memref<16x32xf32, #tpu.memory_space<vmem>>, vector<1x32xf32>
      tpu.vector_store %arg6[%c14_1099, %c0_1100], %1957 {strides = array<i32>} : memref<16x32xf32, #tpu.memory_space<vmem>>, vector<1x32xf32>,
      %c14_1101 = arith.constant 14 : index
      %c0_1102 = arith.constant 0 : index
      %1959 = vector.load %arg7[%c14_1101, %c0_1102] : memref<16x32xf32, #tpu.memory_space<vmem>>, vector<1x32xf32>
      %1960 = arith.mulf %1948, %1948 : vector<8x32xf32>
      %cst_1103 = arith.constant dense<0.000000e+00> : vector<32xf32>
      %1961 = vector.multi_reduction <add>, %1960, %cst_1103 [0] : vector<8x32xf32> to vector<32xf32>
      %1962 = vector.shape_cast %1961 : vector<32xf32> to vector<1x32xf32>
      %1963 = arith.addf %1959, %1962 : vector<1x32xf32>
      %c14_1104 = arith.constant 14 : index
      %c0_1105 = arith.constant 0 : index
      %1964 = vector.load %arg7[%c14_1104, %c0_1105] : memref<16x32xf32, #tpu.memory_space<vmem>>, vector<1x32xf32>
      tpu.vector_store %arg7[%c14_1104, %c0_1105], %1963 {strides = array<i32>} : memref<16x32xf32, #tpu.memory_space<vmem>>, vector<1x32xf32>,
      %c0_1106 = arith.constant 0 : index
      %c15_1107 = arith.constant 15 : index
      %1965 = memref.load %arg3[%c0_1106, %c15_1107] : memref<27x16xf32, #tpu.memory_space<smem>>
      %1966 = vector.broadcast %1965 : f32 to vector<8x32xf32>
      %1967 = arith.mulf %15, %1966 : vector<8x32xf32>
      %c1_1108 = arith.constant 1 : index
      %c15_1109 = arith.constant 15 : index
      %1968 = memref.load %arg3[%c1_1108, %c15_1109] : memref<27x16xf32, #tpu.memory_space<smem>>
      %1969 = vector.broadcast %1968 : f32 to vector<8x32xf32>
      %1970 = arith.mulf %19, %1969 : vector<8x32xf32>
      %1971 = arith.addf %1967, %1970 : vector<8x32xf32>
      %c2_1110 = arith.constant 2 : index
      %c15_1111 = arith.constant 15 : index
      %1972 = memref.load %arg3[%c2_1110, %c15_1111] : memref<27x16xf32, #tpu.memory_space<smem>>
      %1973 = vector.broadcast %1972 : f32 to vector<8x32xf32>
      %1974 = arith.mulf %23, %1973 : vector<8x32xf32>
      %1975 = arith.addf %1971, %1974 : vector<8x32xf32>
      %c3_1112 = arith.constant 3 : index
      %c15_1113 = arith.constant 15 : index
      %1976 = memref.load %arg3[%c3_1112, %c15_1113] : memref<27x16xf32, #tpu.memory_space<smem>>
      %1977 = vector.broadcast %1976 : f32 to vector<8x32xf32>
      %1978 = arith.mulf %27, %1977 : vector<8x32xf32>
      %1979 = arith.addf %1975, %1978 : vector<8x32xf32>
      %c4_1114 = arith.constant 4 : index
      %c15_1115 = arith.constant 15 : index
      %1980 = memref.load %arg3[%c4_1114, %c15_1115] : memref<27x16xf32, #tpu.memory_space<smem>>
      %1981 = vector.broadcast %1980 : f32 to vector<8x32xf32>
      %1982 = arith.mulf %31, %1981 : vector<8x32xf32>
      %1983 = arith.addf %1979, %1982 : vector<8x32xf32>
      %c5_1116 = arith.constant 5 : index
      %c15_1117 = arith.constant 15 : index
      %1984 = memref.load %arg3[%c5_1116, %c15_1117] : memref<27x16xf32, #tpu.memory_space<smem>>
      %1985 = vector.broadcast %1984 : f32 to vector<8x32xf32>
      %1986 = arith.mulf %35, %1985 : vector<8x32xf32>
      %1987 = arith.addf %1983, %1986 : vector<8x32xf32>
      %c6_1118 = arith.constant 6 : index
      %c15_1119 = arith.constant 15 : index
      %1988 = memref.load %arg3[%c6_1118, %c15_1119] : memref<27x16xf32, #tpu.memory_space<smem>>
      %1989 = vector.broadcast %1988 : f32 to vector<8x32xf32>
      %1990 = arith.mulf %39, %1989 : vector<8x32xf32>
      %1991 = arith.addf %1987, %1990 : vector<8x32xf32>
      %c7_1120 = arith.constant 7 : index
      %c15_1121 = arith.constant 15 : index
      %1992 = memref.load %arg3[%c7_1120, %c15_1121] : memref<27x16xf32, #tpu.memory_space<smem>>
      %1993 = vector.broadcast %1992 : f32 to vector<8x32xf32>
      %1994 = arith.mulf %43, %1993 : vector<8x32xf32>
      %1995 = arith.addf %1991, %1994 : vector<8x32xf32>
      %c8_1122 = arith.constant 8 : index
      %c15_1123 = arith.constant 15 : index
      %1996 = memref.load %arg3[%c8_1122, %c15_1123] : memref<27x16xf32, #tpu.memory_space<smem>>
      %1997 = vector.broadcast %1996 : f32 to vector<8x32xf32>
      %1998 = arith.mulf %47, %1997 : vector<8x32xf32>
      %1999 = arith.addf %1995, %1998 : vector<8x32xf32>
      %c9_1124 = arith.constant 9 : index
      %c15_1125 = arith.constant 15 : index
      %2000 = memref.load %arg3[%c9_1124, %c15_1125] : memref<27x16xf32, #tpu.memory_space<smem>>
      %2001 = vector.broadcast %2000 : f32 to vector<8x32xf32>
      %2002 = arith.mulf %51, %2001 : vector<8x32xf32>
      %2003 = arith.addf %1999, %2002 : vector<8x32xf32>
      %c10_1126 = arith.constant 10 : index
      %c15_1127 = arith.constant 15 : index
      %2004 = memref.load %arg3[%c10_1126, %c15_1127] : memref<27x16xf32, #tpu.memory_space<smem>>
      %2005 = vector.broadcast %2004 : f32 to vector<8x32xf32>
      %2006 = arith.mulf %55, %2005 : vector<8x32xf32>
      %2007 = arith.addf %2003, %2006 : vector<8x32xf32>
      %c11_1128 = arith.constant 11 : index
      %c15_1129 = arith.constant 15 : index
      %2008 = memref.load %arg3[%c11_1128, %c15_1129] : memref<27x16xf32, #tpu.memory_space<smem>>
      %2009 = vector.broadcast %2008 : f32 to vector<8x32xf32>
      %2010 = arith.mulf %59, %2009 : vector<8x32xf32>
      %2011 = arith.addf %2007, %2010 : vector<8x32xf32>
      %c12_1130 = arith.constant 12 : index
      %c15_1131 = arith.constant 15 : index
      %2012 = memref.load %arg3[%c12_1130, %c15_1131] : memref<27x16xf32, #tpu.memory_space<smem>>
      %2013 = vector.broadcast %2012 : f32 to vector<8x32xf32>
      %2014 = arith.mulf %63, %2013 : vector<8x32xf32>
      %2015 = arith.addf %2011, %2014 : vector<8x32xf32>
      %c13_1132 = arith.constant 13 : index
      %c15_1133 = arith.constant 15 : index
      %2016 = memref.load %arg3[%c13_1132, %c15_1133] : memref<27x16xf32, #tpu.memory_space<smem>>
      %2017 = vector.broadcast %2016 : f32 to vector<8x32xf32>
      %2018 = arith.mulf %67, %2017 : vector<8x32xf32>
      %2019 = arith.addf %2015, %2018 : vector<8x32xf32>
      %c14_1134 = arith.constant 14 : index
      %c15_1135 = arith.constant 15 : index
      %2020 = memref.load %arg3[%c14_1134, %c15_1135] : memref<27x16xf32, #tpu.memory_space<smem>>
      %2021 = vector.broadcast %2020 : f32 to vector<8x32xf32>
      %2022 = arith.mulf %71, %2021 : vector<8x32xf32>
      %2023 = arith.addf %2019, %2022 : vector<8x32xf32>
      %c15_1136 = arith.constant 15 : index
      %c15_1137 = arith.constant 15 : index
      %2024 = memref.load %arg3[%c15_1136, %c15_1137] : memref<27x16xf32, #tpu.memory_space<smem>>
      %2025 = vector.broadcast %2024 : f32 to vector<8x32xf32>
      %2026 = arith.mulf %75, %2025 : vector<8x32xf32>
      %2027 = arith.addf %2023, %2026 : vector<8x32xf32>
      %c16_1138 = arith.constant 16 : index
      %c15_1139 = arith.constant 15 : index
      %2028 = memref.load %arg3[%c16_1138, %c15_1139] : memref<27x16xf32, #tpu.memory_space<smem>>
      %2029 = vector.broadcast %2028 : f32 to vector<8x32xf32>
      %2030 = arith.mulf %79, %2029 : vector<8x32xf32>
      %2031 = arith.addf %2027, %2030 : vector<8x32xf32>
      %c17_1140 = arith.constant 17 : index
      %c15_1141 = arith.constant 15 : index
      %2032 = memref.load %arg3[%c17_1140, %c15_1141] : memref<27x16xf32, #tpu.memory_space<smem>>
      %2033 = vector.broadcast %2032 : f32 to vector<8x32xf32>
      %2034 = arith.mulf %83, %2033 : vector<8x32xf32>
      %2035 = arith.addf %2031, %2034 : vector<8x32xf32>
      %c18_1142 = arith.constant 18 : index
      %c15_1143 = arith.constant 15 : index
      %2036 = memref.load %arg3[%c18_1142, %c15_1143] : memref<27x16xf32, #tpu.memory_space<smem>>
      %2037 = vector.broadcast %2036 : f32 to vector<8x32xf32>
      %2038 = arith.mulf %87, %2037 : vector<8x32xf32>
      %2039 = arith.addf %2035, %2038 : vector<8x32xf32>
      %c19_1144 = arith.constant 19 : index
      %c15_1145 = arith.constant 15 : index
      %2040 = memref.load %arg3[%c19_1144, %c15_1145] : memref<27x16xf32, #tpu.memory_space<smem>>
      %2041 = vector.broadcast %2040 : f32 to vector<8x32xf32>
      %2042 = arith.mulf %91, %2041 : vector<8x32xf32>
      %2043 = arith.addf %2039, %2042 : vector<8x32xf32>
      %c20_1146 = arith.constant 20 : index
      %c15_1147 = arith.constant 15 : index
      %2044 = memref.load %arg3[%c20_1146, %c15_1147] : memref<27x16xf32, #tpu.memory_space<smem>>
      %2045 = vector.broadcast %2044 : f32 to vector<8x32xf32>
      %2046 = arith.mulf %95, %2045 : vector<8x32xf32>
      %2047 = arith.addf %2043, %2046 : vector<8x32xf32>
      %c21_1148 = arith.constant 21 : index
      %c15_1149 = arith.constant 15 : index
      %2048 = memref.load %arg3[%c21_1148, %c15_1149] : memref<27x16xf32, #tpu.memory_space<smem>>
      %2049 = vector.broadcast %2048 : f32 to vector<8x32xf32>
      %2050 = arith.mulf %99, %2049 : vector<8x32xf32>
      %2051 = arith.addf %2047, %2050 : vector<8x32xf32>
      %c22_1150 = arith.constant 22 : index
      %c15_1151 = arith.constant 15 : index
      %2052 = memref.load %arg3[%c22_1150, %c15_1151] : memref<27x16xf32, #tpu.memory_space<smem>>
      %2053 = vector.broadcast %2052 : f32 to vector<8x32xf32>
      %2054 = arith.mulf %103, %2053 : vector<8x32xf32>
      %2055 = arith.addf %2051, %2054 : vector<8x32xf32>
      %c23_1152 = arith.constant 23 : index
      %c15_1153 = arith.constant 15 : index
      %2056 = memref.load %arg3[%c23_1152, %c15_1153] : memref<27x16xf32, #tpu.memory_space<smem>>
      %2057 = vector.broadcast %2056 : f32 to vector<8x32xf32>
      %2058 = arith.mulf %107, %2057 : vector<8x32xf32>
      %2059 = arith.addf %2055, %2058 : vector<8x32xf32>
      %c24_1154 = arith.constant 24 : index
      %c15_1155 = arith.constant 15 : index
      %2060 = memref.load %arg3[%c24_1154, %c15_1155] : memref<27x16xf32, #tpu.memory_space<smem>>
      %2061 = vector.broadcast %2060 : f32 to vector<8x32xf32>
      %2062 = arith.mulf %111, %2061 : vector<8x32xf32>
      %2063 = arith.addf %2059, %2062 : vector<8x32xf32>
      %c25_1156 = arith.constant 25 : index
      %c15_1157 = arith.constant 15 : index
      %2064 = memref.load %arg3[%c25_1156, %c15_1157] : memref<27x16xf32, #tpu.memory_space<smem>>
      %2065 = vector.broadcast %2064 : f32 to vector<8x32xf32>
      %2066 = arith.mulf %115, %2065 : vector<8x32xf32>
      %2067 = arith.addf %2063, %2066 : vector<8x32xf32>
      %c26_1158 = arith.constant 26 : index
      %c15_1159 = arith.constant 15 : index
      %2068 = memref.load %arg3[%c26_1158, %c15_1159] : memref<27x16xf32, #tpu.memory_space<smem>>
      %2069 = vector.broadcast %2068 : f32 to vector<8x32xf32>
      %2070 = arith.mulf %119, %2069 : vector<8x32xf32>
      %2071 = arith.addf %2067, %2070 : vector<8x32xf32>
      %c8_i32_1160 = arith.constant 8 : i32
      %2072 = arith.muli %9, %c8_i32_1160 : i32
      %c0_1161 = arith.constant 0 : index
      %c15_1162 = arith.constant 15 : index
      %2073 = arith.index_cast %2072 : i32 to index
      %c0_1163 = arith.constant 0 : index
      %2074 = vector.load %arg4[%c0_1161, %c15_1162, %2073, %c0_1163] : memref<1x16x32x32xf32, #tpu.memory_space<vmem>>, vector<1x1x8x32xf32>
      %2075 = vector.shape_cast %2074 : vector<1x1x8x32xf32> to vector<8x32xf32>
      %2076 = vector.shape_cast %2071 : vector<8x32xf32> to vector<1x1x8x32xf32>
      tpu.vector_store %arg4[%c0_1161, %c15_1162, %2073, %c0_1163], %2076 {strides = array<i32>} : memref<1x16x32x32xf32, #tpu.memory_space<vmem>>, vector<1x1x8x32xf32>,
      %c15_1164 = arith.constant 15 : index
      %c0_1165 = arith.constant 0 : index
      %2077 = vector.load %arg6[%c15_1164, %c0_1165] : memref<16x32xf32, #tpu.memory_space<vmem>>, vector<1x32xf32>
      %cst_1166 = arith.constant dense<0.000000e+00> : vector<32xf32>
      %2078 = vector.multi_reduction <add>, %2071, %cst_1166 [0] : vector<8x32xf32> to vector<32xf32>
      %2079 = vector.shape_cast %2078 : vector<32xf32> to vector<1x32xf32>
      %2080 = arith.addf %2077, %2079 : vector<1x32xf32>
      %c15_1167 = arith.constant 15 : index
      %c0_1168 = arith.constant 0 : index
      %2081 = vector.load %arg6[%c15_1167, %c0_1168] : memref<16x32xf32, #tpu.memory_space<vmem>>, vector<1x32xf32>
      tpu.vector_store %arg6[%c15_1167, %c0_1168], %2080 {strides = array<i32>} : memref<16x32xf32, #tpu.memory_space<vmem>>, vector<1x32xf32>,
      %c15_1169 = arith.constant 15 : index
      %c0_1170 = arith.constant 0 : index
      %2082 = vector.load %arg7[%c15_1169, %c0_1170] : memref<16x32xf32, #tpu.memory_space<vmem>>, vector<1x32xf32>
      %2083 = arith.mulf %2071, %2071 : vector<8x32xf32>
      %cst_1171 = arith.constant dense<0.000000e+00> : vector<32xf32>
      %2084 = vector.multi_reduction <add>, %2083, %cst_1171 [0] : vector<8x32xf32> to vector<32xf32>
      %2085 = vector.shape_cast %2084 : vector<32xf32> to vector<1x32xf32>
      %2086 = arith.addf %2082, %2085 : vector<1x32xf32>
      %c15_1172 = arith.constant 15 : index
      %c0_1173 = arith.constant 0 : index
      %2087 = vector.load %arg7[%c15_1172, %c0_1173] : memref<16x32xf32, #tpu.memory_space<vmem>>, vector<1x32xf32>
      tpu.vector_store %arg7[%c15_1172, %c0_1173], %2086 {strides = array<i32>} : memref<16x32xf32, #tpu.memory_space<vmem>>, vector<1x32xf32>,
    }
    %c4_i32_2 = arith.constant 4 : i32
    %c0_i32_3 = arith.constant 0 : i32
    %5 = arith.cmpi eq, %arg1, %c0_i32_3 : i32
    %6 = arith.extui %5 : i1 to i32
    %c0_i32_4 = arith.constant 0 : i32
    %7 = arith.cmpi ne, %6, %c0_i32_4 : i32
    scf.if %7 {
      %c0 = arith.constant 0 : index
      %c0_5 = arith.constant 0 : index
      %8 = vector.load %arg6[%c0, %c0_5] : memref<16x32xf32, #tpu.memory_space<vmem>>, vector<16x32xf32>
      %cst = arith.constant dense<0.000000e+00> : vector<16xf32>
      %9 = vector.multi_reduction <add>, %8, %cst [1] : vector<16x32xf32> to vector<16xf32>
      %10 = vector.shape_cast %9 : vector<16xf32> to vector<16x1xf32>
      %c0_6 = arith.constant 0 : index
      %c0_7 = arith.constant 0 : index
      %c0_8 = arith.constant 0 : index
      %11 = vector.load %arg5[%c0_6, %c0_7, %c0_8] : memref<1x16x2xf32, #tpu.memory_space<vmem>>, vector<1x16x1xf32>
      %12 = vector.shape_cast %11 : vector<1x16x1xf32> to vector<16x1xf32>
      %13 = vector.shape_cast %10 : vector<16x1xf32> to vector<1x16x1xf32>
      tpu.vector_store %arg5[%c0_6, %c0_7, %c0_8], %13 {strides = array<i32>} : memref<1x16x2xf32, #tpu.memory_space<vmem>>, vector<1x16x1xf32>,
      %c0_9 = arith.constant 0 : index
      %c0_10 = arith.constant 0 : index
      %14 = vector.load %arg7[%c0_9, %c0_10] : memref<16x32xf32, #tpu.memory_space<vmem>>, vector<16x32xf32>
      %cst_11 = arith.constant dense<0.000000e+00> : vector<16xf32>
      %15 = vector.multi_reduction <add>, %14, %cst_11 [1] : vector<16x32xf32> to vector<16xf32>
      %16 = vector.shape_cast %15 : vector<16xf32> to vector<16x1xf32>
      %c0_12 = arith.constant 0 : index
      %c0_13 = arith.constant 0 : index
      %c1 = arith.constant 1 : index
      %17 = vector.load %arg5[%c0_12, %c0_13, %c1] : memref<1x16x2xf32, #tpu.memory_space<vmem>>, vector<1x16x1xf32>
      %18 = vector.shape_cast %17 : vector<1x16x1xf32> to vector<16x1xf32>
      %19 = vector.shape_cast %16 : vector<16x1xf32> to vector<1x16x1xf32>
      tpu.vector_store %arg5[%c0_12, %c0_13, %c1], %19 {strides = array<i32>} : memref<1x16x2xf32, #tpu.memory_space<vmem>>, vector<1x16x1xf32>,
    } else {
    }
    return
  }
  func.func @transform_0(%arg0: i32, %arg1: i32) -> (i32, i32, i32, i32) {
    %c0_i32 = arith.constant 0 : i32
    %c0_i32_0 = arith.constant 0 : i32
    %c0_i32_1 = arith.constant 0 : i32
    %c0_i32_2 = arith.constant 0 : i32
    return %arg0, %c0_i32, %c0_i32_0, %c0_i32_1 : i32, i32, i32, i32
  }
  func.func @transform_1(%arg0: i32, %arg1: i32) -> (i32, i32) {
    %c0_i32 = arith.constant 0 : i32
    %c0_i32_0 = arith.constant 0 : i32
    %c0_i32_1 = arith.constant 0 : i32
    return %c0_i32, %c0_i32_0 : i32, i32
  }
  func.func @transform_2(%arg0: i32, %arg1: i32) -> (i32, i32, i32, i32) {
    %c0_i32 = arith.constant 0 : i32
    %c0_i32_0 = arith.constant 0 : i32
    %c0_i32_1 = arith.constant 0 : i32
    return %arg0, %c0_i32, %arg1, %c0_i32_0 : i32, i32, i32, i32
  }
  func.func @transform_3(%arg0: i32, %arg1: i32) -> (i32, i32, i32) {
    %c0_i32 = arith.constant 0 : i32
    %c0_i32_0 = arith.constant 0 : i32
    %c0_i32_1 = arith.constant 0 : i32
    return %arg0, %c0_i32, %c0_i32_0 : i32, i32, i32
  }
}

</mosaic_0001>

<llo_original>
// kernel: tpu_custom_call.1
$region0: #{tpu_custom_call.1}
  #allocation0 [shape = 'u32[]', space=smem, size = 0x4, offset = 0x4, fixed_abs, tag = 'smem constant byte address 0x4 - core index']
  #allocation1 [shape = 'u32[72,128]{1,0:T(1,128)}', space=vmem, size = 0x9000, scoped, tag = 'internal scratch']
  #allocation2 [shape = 'f32[16,32]{1,0:T(8,128)}', space=vmem, size = 0x2000, scoped, tag = 'scratch operand']
  #allocation3 [shape = 'f32[16,32]{1,0:T(8,128)}', space=vmem, size = 0x2000, scoped, tag = 'scratch operand']
  %s0 = inlined_call_operand.vmem [shape: f32[2,3,34,34], index: 0, kind: input, shape index: {}]
  %s1 = inlined_call_operand.vmem [shape: f32[27,16], index: 1, kind: input, shape index: {}]
  %s2 = inlined_call_operand.hbm [shape: f32[2,16,32,32], index: 2, kind: output, shape index: {0}]
  %s3 = inlined_call_operand.vmem [shape: f32[2,16,2], index: 3, kind: output, shape index: {1}]
  %4 = xla_tuple %s2, %s3
  %s5 = sld [smem:[#allocation0]]
  $region68: #{tpu_custom_call.1} parent=0
    _
  %s7 = ssub.s32 1, %s5
  %s8 = scalar_select 0, %s7, %s5
  $region1: #{tpu_custom_call.1} parent=0
    #allocation4 [shape = 'u8[16384]{0}', space=smem, size = 0x4000, scoped, tag = 'input window, operand 1, single buffered']
    #allocation5 [shape = 's32[2]{0}', space=sflag, size = 0x8, scoped, tag = 'scoped memory for tpu_custom_call.1']
    #allocation6 [shape = 's32[2]{0}', space=sflag, size = 0x8, scoped, tag = 'scoped memory for tpu_custom_call.1']
    #allocation7 [shape = 'u8[524288]{0}', space=vmem, size = 0x80000, scoped, tag = 'output window, operand 0']
    %9 = vsyncpa [#allocation6], 0
    %10 = vsyncpa [#allocation5], 0
    %s11 = scalar_lea.sflag [#allocation5], 1
    %12 = vsyncpa %s11, 0
    loop: start=0, step=1, limit=4
    $region2: #{tpu_custom_call.1} parent=1 // loop_pre_header
      _
    $region3: #{tpu_custom_call.1} parent=1 // loop_header
      %s14 = sphi 0, %s18
      %p15 = scmp.ge.s32.totalorder %s14, 4
      %s21 = sphi 0, %s33
      %s22 = sphi 0, %s29
      %s23 = sphi 0, %s21
      %s24 = sphi 0, %s22
      %s25 = sphi 0, %s23
      %s26 = sphi 0, %s24
      %s36 = sphi 0, %s38
      %s39 = sphi 0, %s36
      %s40 = sphi 0, %s39
      %s56 = sphi 0, %s40
      %s60 = sphi 0, %s60
      %s62 = sphi 0, %s60
      %s63 = sphi 0, %s62
      %s77 = sphi 0, %s63
      %s85 = sphi 0, %s87
      %s88 = sphi 0, %s85
      %s89 = sphi 0, %s88
      %s105 = sphi 0, %s89
      %s111 = sphi 0, %s113
      %s114 = sphi 0, %s111
      %s115 = sphi 0, %s114
      %s131 = sphi 0, %s115
    $region4: #{tpu_custom_call.1} parent=1 // loop_header_branch
      %17 = sbr.rel (%p15) target = $region8
    $region5: #{tpu_custom_call.1} parent=1 // loop_body
      %s19 = ssub.s32 %s14, 1
      %s20 = ssub.s32 %s14, 2
      %s27 = sadd.s32 1, %s22
      %p28 = scmp.ge.s32.totalorder %s27, 1
      %s29 = scalar_select %p28, 0, %s27
      %s30 = sadd.s32 1, %s21
      %s31 = scalar_select %p28, %s30, %s21
      %p32 = scmp.ge.s32.totalorder %s31, 2
      %s33 = scalar_select %p32, 0, %s31
      %s34 = ssub.s32 %s21, %s33
      %p35 = scmp.eq.s32.totalorder %s34, 0
      %s37 = sadd.s32 %s36, 1
      %s38 = scalar_select %p35, %s36, %s37
      %p41 = pneg %p35
      %p42 = scmp.eq.s32.totalorder %s14, 1
      %p43 = por %p41, %p42
      %p44 = scmp.ne.s32.totalorder %s36, %s39
      %p45 = scmp.eq.s32.totalorder %s14, 0
      %p46 = por %p44, %p45
      %p47 = scmp.ne.s32.totalorder %s36, %s39
      %p48 = scmp.eq.s32.totalorder %s19, 1
      %p49 = por %p47, %p48
      %p50 = scmp.ne.s32.totalorder %s39, %s40
      %p51 = scmp.eq.s32.totalorder %s19, 0
      %p52 = por %p50, %p51
      %p53 = scmp.ne.s32.totalorder %s39, %s40
      %p54 = scmp.eq.s32.totalorder %s20, 1
      %p55 = por %p53, %p54
      %p57 = scmp.ne.s32.totalorder %s40, %s56
      %p58 = scmp.eq.s32.totalorder %s20, 0
      %p59 = por %p57, %p58
      %s61 = sadd.s32 %s60, 1
      %p64 = scmp.eq.s32.totalorder %s14, 1
      %p65 = scmp.ne.s32.totalorder %s60, %s62
      %p66 = scmp.eq.s32.totalorder %s14, 0
      %p67 = por %p65, %p66
      %p68 = scmp.ne.s32.totalorder %s60, %s62
      %p69 = scmp.eq.s32.totalorder %s19, 1
      %p70 = por %p68, %p69
      %p71 = scmp.ne.s32.totalorder %s62, %s63
      %p72 = scmp.eq.s32.totalorder %s19, 0
      %p73 = por %p71, %p72
      %p74 = scmp.ne.s32.totalorder %s62, %s63
      %p75 = scmp.eq.s32.totalorder %s20, 1
      %p76 = por %p74, %p75
      %p78 = scmp.ne.s32.totalorder %s63, %s77
      %p79 = scmp.eq.s32.totalorder %s20, 0
      %p80 = por %p78, %p79
      %s81 = ssub.s32 %s21, %s33
      %s82 = ssub.s32 %s22, %s29
      %s83 = sor.u32 %s81, %s82
      %p84 = scmp.eq.s32.totalorder %s83, 0
      %s86 = sadd.s32 %s85, 1
      %s87 = scalar_select %p84, %s85, %s86
      %p90 = pneg %p84
      %p91 = scmp.eq.s32.totalorder %s14, 1
      %p92 = por %p90, %p91
      %p93 = scmp.ne.s32.totalorder %s85, %s88
      %p94 = scmp.eq.s32.totalorder %s14, 0
      %p95 = por %p93, %p94
      %p96 = scmp.ne.s32.totalorder %s85, %s88
      %p97 = scmp.eq.s32.totalorder %s19, 1
      %p98 = por %p96, %p97
      %p99 = scmp.ne.s32.totalorder %s88, %s89
      %p100 = scmp.eq.s32.totalorder %s19, 0
      %p101 = por %p99, %p100
      %p102 = scmp.ne.s32.totalorder %s88, %s89
      %p103 = scmp.eq.s32.totalorder %s20, 1
      %p104 = por %p102, %p103
      %p106 = scmp.ne.s32.totalorder %s89, %s105
      %p107 = scmp.eq.s32.totalorder %s20, 0
      %p108 = por %p106, %p107
      %s109 = ssub.s32 %s21, %s33
      %p110 = scmp.eq.s32.totalorder %s109, 0
      %s112 = sadd.s32 %s111, 1
      %s113 = scalar_select %p110, %s111, %s112
      %p116 = pneg %p110
      %p117 = scmp.eq.s32.totalorder %s14, 1
      %p118 = por %p116, %p117
      %p119 = scmp.ne.s32.totalorder %s111, %s114
      %p120 = scmp.eq.s32.totalorder %s14, 0
      %p121 = por %p119, %p120
      %p122 = scmp.ne.s32.totalorder %s111, %s114
      %p123 = scmp.eq.s32.totalorder %s19, 1
      %p124 = por %p122, %p123
      %p125 = scmp.ne.s32.totalorder %s114, %s115
      %p126 = scmp.eq.s32.totalorder %s19, 0
      %p127 = por %p125, %p126
      %p128 = scmp.ne.s32.totalorder %s114, %s115
      %p129 = scmp.eq.s32.totalorder %s20, 1
      %p130 = por %p128, %p129
      %p132 = scmp.ne.s32.totalorder %s115, %s131
      %p133 = scmp.eq.s32.totalorder %s20, 0
      %p134 = por %p132, %p133
      %p135 = scmp.le.s32.totalorder 1, %s14
      %p136 = scmp.lt.s32.totalorder %s14, 3
      %p137 = pnand %p135, %p136
      %p138 = pneg %p137
      // Predicated region
      $region9: #{tpu_custom_call.1} parent=5 // pred_check
        _
      $region10: #{tpu_custom_call.1} parent=5 // pred_check_branch
        %140 = sbr.rel (%p137) target = $region12
      $region11: #{tpu_custom_call.1} parent=5 // pred_region
        %s141 = ssub.s32 %s14, 1
        // Predicated region
        $region13: #{tpu_custom_call.1} parent=11 // pred_check
          %p142 = pneg %p73
        $region14: #{tpu_custom_call.1} parent=11 // pred_check_branch
          %144 = sbr.rel (%p142) target = $region16
        $region15: #{tpu_custom_call.1} parent=11 // pred_region
          %146 = vsyncadd [#allocation6], 0
          %s147 = sshll.u32 %s1, 4
          %s148 = int_to_ptr.vmem [resolvable:$true] %s147
          %153 = dma.vmem_to_smem %s148, 512, [#allocation4], [#allocation6], 128, 128, 8
        $region16: #{tpu_custom_call.1} parent=11 // pred_fallthru
          _
      $region12: #{tpu_custom_call.1} parent=5 // pred_fallthru
        _
      %p154 = scmp.lt.s32.totalorder %s14, 2
      // Predicated region
      $region17: #{tpu_custom_call.1} parent=5 // pred_check
        %p155 = pneg %p154
      $region18: #{tpu_custom_call.1} parent=5 // pred_check_branch
        %157 = sbr.rel (%p155) target = $region20
      $region19: #{tpu_custom_call.1} parent=5 // pred_region
        // Predicated region
        $region21: #{tpu_custom_call.1} parent=19 // pred_check
          %p158 = pneg %p46
        $region22: #{tpu_custom_call.1} parent=19 // pred_check_branch
          %160 = sbr.rel (%p158) target = $region24
        $region23: #{tpu_custom_call.1} parent=19 // pred_region
          %p161 = scmp.lt.s32.totalorder %s21, 1
          %s162 = scalar_select %p161, %s21, 1
          %s163 = smul.addr %s162, 15
          %s164 = smul.addr %s163, 8
          %s165 = scalar_lea.vmem %s0, %s164
        $region24: #{tpu_custom_call.1} parent=19 // pred_fallthru
          _
      $region20: #{tpu_custom_call.1} parent=5 // pred_fallthru
        _
      %p166 = scmp.le.s32.totalorder 1, %s14
      %p167 = scmp.lt.s32.totalorder %s14, 3
      %p168 = pnand %p166, %p167
      %p169 = pneg %p168
      // Predicated region
      $region25: #{tpu_custom_call.1} parent=5 // pred_check
        _
      $region26: #{tpu_custom_call.1} parent=5 // pred_check_branch
        %171 = sbr.rel (%p168) target = $region28
      $region27: #{tpu_custom_call.1} parent=5 // pred_region
        %s172 = ssub.s32 %s14, 1
        // Predicated region
        $region29: #{tpu_custom_call.1} parent=27 // pred_check
          %p173 = pneg %p73
        $region30: #{tpu_custom_call.1} parent=27 // pred_check_branch
          %175 = sbr.rel (%p173) target = $region32
        $region31: #{tpu_custom_call.1} parent=27 // pred_region
          %177 = dma.done [#allocation6], 512
        $region32: #{tpu_custom_call.1} parent=27 // pred_fallthru
          _
        %178 = sfence
        %p179 = scmp.lt.s32.totalorder %s23, 1
        %s180 = scalar_select %p179, %s23, 1
        %s181 = smul.addr %s180, 15
        %s182 = smul.addr %s181, 8
        %s183 = scalar_lea.vmem %s0, %s182
        %p184 = pneg %p52
        %p185 = pneg %p49
        %p186 = pneg %p73
        %p187 = pneg %p70
        %p188 = pneg %p101
        %p189 = pneg %p98
        %s190 = sand.u32 %s88, 1
        %s191 = scalar_lea.sflag [#allocation5], %s190
        %s192 = sand.u32 %s88, 1
        %s193 = smul.addr %s192, 512
        %s194 = scalar_lea.vmem [#allocation7], %s193
        %p195 = pneg %p127
        %p196 = pneg %p124
        %p197 = scmp.lt.s32.totalorder %s23, 1
        %s198 = scalar_select %p197, %s23, 1
        %s199 = smul.addr %s198, 2
        %s200 = smul.addr %s199, 8
        %s201 = scalar_lea.vmem %s3, %s200
        %p202 = scmp.lt.s32.totalorder %s23, 1
        %s203 = scalar_select %p202, %s23, 1
        %s204 = smul.addr %s203, 15
        %s205 = smul.addr %s204, 8
        %s206 = scalar_lea.vmem %s0, %s205
        %s207 = smul.u32 4, %s24
        %p208 = scmp.lt.s32.totalorder %s23, 1
        %s209 = scalar_select %p208, %s23, 1
        %s210 = smul.addr %s209, 2
        %s211 = smul.addr %s210, 8
        %s212 = scalar_lea.vmem %s3, %s211
        %p213 = scmp.eq.s32.totalorder %s24, 0
        // Predicated region
        $region33: #{tpu_custom_call.1} parent=27 // pred_check
          %p214 = pneg %p213
        $region34: #{tpu_custom_call.1} parent=27 // pred_check_branch
          %216 = sbr.rel (%p214) target = $region36
        $region35: #{tpu_custom_call.1} parent=27 // pred_region
          %vm217 = vcmask 261120
          %218 = vst.msk [vmem:[#allocation2] sm:$0xff] %vm217, 0.0
          %219 = vst.msk [vmem:[#allocation2 + $0x8] sm:$0xff] %vm217, 0.0
          %220 = vst.msk [vmem:[#allocation3] sm:$0xff] %vm217, 0.0
          %221 = vst.msk [vmem:[#allocation3 + $0x8] sm:$0xff] %vm217, 0.0
        $region36: #{tpu_custom_call.1} parent=27 // pred_fallthru
          _
        %s222 = smul.u32 %s24, 32
        loop: start=0, step=1, limit=4
        $region37: #{tpu_custom_call.1} parent=27 // loop_pre_header
          _
        $region38: #{tpu_custom_call.1} parent=27 // loop_header
          %s224 = sphi 0, %s228
          %p225 = scmp.ge.s32.totalorder %s224, 4
        $region39: #{tpu_custom_call.1} parent=27 // loop_header_branch
          %227 = sbr.rel (%p225) target = $region43
        $region40: #{tpu_custom_call.1} parent=27 // loop_body
          %s229 = smul.u32 %s224, 8
          %s230 = sadd.s32 %s222, %s229
          %s231 = scalar_lea.vmem %s206, %s230
          %v232 = vld [vmem:[%s231] sm:$0xff]
          %s233 = sadd.s32 %s230, 40
          %s234 = scalar_lea.vmem %s206, %s233
          %v235 = vld [vmem:[%s234] sm:$0xff]
          %s236 = sadd.s32 %s230, 80
          %s237 = scalar_lea.vmem %s206, %s236
          %v238 = vld [vmem:[%s237] sm:$0xff]
          %s239 = sadd.s32 %s230, 1
          %s240 = scalar_lea.vmem %s206, %s239
          %v241 = vld [vmem:[%s240] sm:$0xff]
          %s242 = sadd.s32 %s239, 40
          %s243 = scalar_lea.vmem %s206, %s242
          %v244 = vld [vmem:[%s243] sm:$0xff]
          %s245 = sadd.s32 %s239, 80
          %s246 = scalar_lea.vmem %s206, %s245
          %v247 = vld [vmem:[%s246] sm:$0xff]
          %s248 = sadd.s32 %s230, 2
          %s249 = scalar_lea.vmem %s206, %s248
          %v250 = vld [vmem:[%s249] sm:$0xff]
          %s251 = sadd.s32 %s248, 40
          %s252 = scalar_lea.vmem %s206, %s251
          %v253 = vld [vmem:[%s252] sm:$0xff]
          %s254 = sadd.s32 %s248, 80
          %s255 = scalar_lea.vmem %s206, %s254
          %v256 = vld [vmem:[%s255] sm:$0xff]
          %s257 = sld [smem:[#allocation4]]
          %v258 = vstv %s257
          %v259 = vmul.f32 %v232, %v258
          %s260 = sld [smem:[#allocation4 + $0x80]]
          %v261 = vstv %s260
          %v262 = vmul.f32 %v235, %v261
          %v263 = vadd.f32 %v259, %v262
          %s264 = sld [smem:[#allocation4 + $0x100]]
          %v265 = vstv %s264
          %v266 = vmul.f32 %v238, %v265
          %v267 = vadd.f32 %v263, %v266
          %s268 = sld [smem:[#allocation4 + $0x180]]
          %v269 = vstv %s268
          %v270 = vmul.f32 %v232, %v269
          %272 = vrot.lane.b32.xlu0 %v270, 127
          %v273 = vpop.permute.xlu0 %272
          %v275 = vadd.f32 %v267, %v273
          %s276 = sld [smem:[#allocation4 + $0x200]]
          %v277 = vstv %s276
          %v278 = vmul.f32 %v235, %v277
          %280 = vrot.lane.b32.xlu0 %v278, 127
          %v281 = vpop.permute.xlu0 %280
          %v283 = vadd.f32 %v275, %v281
          %s284 = sld [smem:[#allocation4 + $0x280]]
          %v285 = vstv %s284
          %v286 = vmul.f32 %v238, %v285
          %288 = vrot.lane.b32.xlu0 %v286, 127
          %v289 = vpop.permute.xlu0 %288
          %v291 = vadd.f32 %v283, %v289
          %s292 = sld [smem:[#allocation4 + $0x300]]
          %v293 = vstv %s292
          %v294 = vmul.f32 %v232, %v293
          %296 = vrot.lane.b32.xlu0 %v294, 126
          %v297 = vpop.permute.xlu0 %296
          %v299 = vadd.f32 %v291, %v297
          %s300 = sld [smem:[#allocation4 + $0x380]]
          %v301 = vstv %s300
          %v302 = vmul.f32 %v235, %v301
          %304 = vrot.lane.b32.xlu0 %v302, 126
          %v305 = vpop.permute.xlu0 %304
          %v307 = vadd.f32 %v299, %v305
          %s308 = sld [smem:[#allocation4 + $0x400]]
          %v309 = vstv %s308
          %v310 = vmul.f32 %v238, %v309
          %312 = vrot.lane.b32.xlu0 %v310, 126
          %v313 = vpop.permute.xlu0 %312
          %v315 = vadd.f32 %v307, %v313
          %s316 = sld [smem:[#allocation4 + $0x480]]
          %v317 = vstv %s316
          %v318 = vmul.f32 %v241, %v317
          %v319 = vadd.f32 %v315, %v318
          %s320 = sld [smem:[#allocation4 + $0x500]]
          %v321 = vstv %s320
          %v322 = vmul.f32 %v244, %v321
          %v323 = vadd.f32 %v319, %v322
          %s324 = sld [smem:[#allocation4 + $0x580]]
          %v325 = vstv %s324
          %v326 = vmul.f32 %v247, %v325
          %v327 = vadd.f32 %v323, %v326
          %s328 = sld [smem:[#allocation4 + $0x600]]
          %v329 = vstv %s328
          %v330 = vmul.f32 %v241, %v329
          %332 = vrot.lane.b32.xlu0 %v330, 127
          %v333 = vpop.permute.xlu0 %332
          %v335 = vadd.f32 %v327, %v333
          %s336 = sld [smem:[#allocation4 + $0x680]]
          %v337 = vstv %s336
          %v338 = vmul.f32 %v244, %v337
          %340 = vrot.lane.b32.xlu0 %v338, 127
          %v341 = vpop.permute.xlu0 %340
          %v343 = vadd.f32 %v335, %v341
          %s344 = sld [smem:[#allocation4 + $0x700]]
          %v345 = vstv %s344
          %v346 = vmul.f32 %v247, %v345
          %348 = vrot.lane.b32.xlu0 %v346, 127
          %v349 = vpop.permute.xlu0 %348
          %v351 = vadd.f32 %v343, %v349
          %s352 = sld [smem:[#allocation4 + $0x780]]
          %v353 = vstv %s352
          %v354 = vmul.f32 %v241, %v353
          %356 = vrot.lane.b32.xlu0 %v354, 126
          %v357 = vpop.permute.xlu0 %356
          %v359 = vadd.f32 %v351, %v357
          %s360 = sld [smem:[#allocation4 + $0x800]]
          %v361 = vstv %s360
          %v362 = vmul.f32 %v244, %v361
          %364 = vrot.lane.b32.xlu0 %v362, 126
          %v365 = vpop.permute.xlu0 %364
          %v367 = vadd.f32 %v359, %v365
          %s368 = sld [smem:[#allocation4 + $0x880]]
          %v369 = vstv %s368
          %v370 = vmul.f32 %v247, %v369
          %372 = vrot.lane.b32.xlu0 %v370, 126
          %v373 = vpop.permute.xlu0 %372
          %v375 = vadd.f32 %v367, %v373
          %s376 = sld [smem:[#allocation4 + $0x900]]
          %v377 = vstv %s376
          %v378 = vmul.f32 %v250, %v377
          %v379 = vadd.f32 %v375, %v378
          %s380 = sld [smem:[#allocation4 + $0x980]]
          %v381 = vstv %s380
          %v382 = vmul.f32 %v253, %v381
          %v383 = vadd.f32 %v379, %v382
          %s384 = sld [smem:[#allocation4 + $0xa00]]
          %v385 = vstv %s384
          %v386 = vmul.f32 %v256, %v385
          %v387 = vadd.f32 %v383, %v386
          %s388 = sld [smem:[#allocation4 + $0xa80]]
          %v389 = vstv %s388
          %v390 = vmul.f32 %v250, %v389
          %392 = vrot.lane.b32.xlu0 %v390, 127
          %v393 = vpop.permute.xlu0 %392
          %v395 = vadd.f32 %v387, %v393
          %s396 = sld [smem:[#allocation4 + $0xb00]]
          %v397 = vstv %s396
          %v398 = vmul.f32 %v253, %v397
          %400 = vrot.lane.b32.xlu0 %v398, 127
          %v401 = vpop.permute.xlu0 %400
          %v403 = vadd.f32 %v395, %v401
          %s404 = sld [smem:[#allocation4 + $0xb80]]
          %v405 = vstv %s404
          %v406 = vmul.f32 %v256, %v405
          %408 = vrot.lane.b32.xlu0 %v406, 127
          %v409 = vpop.permute.xlu0 %408
          %v411 = vadd.f32 %v403, %v409
          %s412 = sld [smem:[#allocation4 + $0xc00]]
          %v413 = vstv %s412
          %v414 = vmul.f32 %v250, %v413
          %416 = vrot.lane.b32.xlu0 %v414, 126
          %v417 = vpop.permute.xlu0 %416
          %v419 = vadd.f32 %v411, %v417
          %s420 = sld [smem:[#allocation4 + $0xc80]]
          %v421 = vstv %s420
          %v422 = vmul.f32 %v253, %v421
          %424 = vrot.lane.b32.xlu0 %v422, 126
          %v425 = vpop.permute.xlu0 %424
          %v427 = vadd.f32 %v419, %v425
          %s428 = sld [smem:[#allocation4 + $0xd00]]
          %v429 = vstv %s428
          %v430 = vmul.f32 %v256, %v429
          %432 = vrot.lane.b32.xlu0 %v430, 126
          %v433 = vpop.permute.xlu0 %432
          %v435 = vadd.f32 %v427, %v433
          %s436 = scalar_lea.vmem %s194, %s229 [#allocation7]
          %vm437 = vcmask 261120
          %438 = vst.msk [vmem:[%s436] sm:$0xff] %vm437, %v435
          %v439 = vld [vmem:[#allocation2] sm:$0x1]
          %v440 = vsel %vm437, %v435, 0.0
          %v441 = vrot.slane %v440, 4
          %v442 = vadd.f32 %v440, %v441
          %v443 = vrot.slane %v442, 2
          %v444 = vadd.f32 %v442, %v443
          %v445 = vrot.slane %v444, 1
          %v446 = vadd.f32 %v444, %v445
          %v447 = vadd.f32 %v439, %v446
          %vm448 = vcmask 253952
          %449 = vst.msk [vmem:[#allocation2] sm:$0x1] %vm448, %v447
          %v450 = vld [vmem:[#allocation3] sm:$0x1]
          %v451 = vmul.f32 %v435, %v435
          %v452 = vsel %vm437, %v451, 0.0
          %v453 = vrot.slane %v452, 4
          %v454 = vadd.f32 %v452, %v453
          %v455 = vrot.slane %v454, 2
          %v456 = vadd.f32 %v454, %v455
          %v457 = vrot.slane %v456, 1
          %v458 = vadd.f32 %v456, %v457
          %v459 = vadd.f32 %v450, %v458
          %460 = vst.msk [vmem:[#allocation3] sm:$0x1] %vm448, %v459
          %s461 = sld [smem:[#allocation4 + $0x1]]
          %v462 = vstv %s461
          %v463 = vmul.f32 %v232, %v462
          %s464 = sld [smem:[#allocation4 + $0x81]]
          %v465 = vstv %s464
          %v466 = vmul.f32 %v235, %v465
          %v467 = vadd.f32 %v463, %v466
          %s468 = sld [smem:[#allocation4 + $0x101]]
          %v469 = vstv %s468
          %v470 = vmul.f32 %v238, %v469
          %v471 = vadd.f32 %v467, %v470
          %s472 = sld [smem:[#allocation4 + $0x181]]
          %v473 = vstv %s472
          %v474 = vmul.f32 %v232, %v473
          %476 = vrot.lane.b32.xlu0 %v474, 127
          %v477 = vpop.permute.xlu0 %476
          %v479 = vadd.f32 %v471, %v477
          %s480 = sld [smem:[#allocation4 + $0x201]]
          %v481 = vstv %s480
          %v482 = vmul.f32 %v235, %v481
          %484 = vrot.lane.b32.xlu0 %v482, 127
          %v485 = vpop.permute.xlu0 %484
          %v487 = vadd.f32 %v479, %v485
          %s488 = sld [smem:[#allocation4 + $0x281]]
          %v489 = vstv %s488
          %v490 = vmul.f32 %v238, %v489
          %492 = vrot.lane.b32.xlu0 %v490, 127
          %v493 = vpop.permute.xlu0 %492
          %v495 = vadd.f32 %v487, %v493
          %s496 = sld [smem:[#allocation4 + $0x301]]
          %v497 = vstv %s496
          %v498 = vmul.f32 %v232, %v497
          %500 = vrot.lane.b32.xlu0 %v498, 126
          %v501 = vpop.permute.xlu0 %500
          %v503 = vadd.f32 %v495, %v501
          %s504 = sld [smem:[#allocation4 + $0x381]]
          %v505 = vstv %s504
          %v506 = vmul.f32 %v235, %v505
          %508 = vrot.lane.b32.xlu0 %v506, 126
          %v509 = vpop.permute.xlu0 %508
          %v511 = vadd.f32 %v503, %v509
          %s512 = sld [smem:[#allocation4 + $0x401]]
          %v513 = vstv %s512
          %v514 = vmul.f32 %v238, %v513
          %516 = vrot.lane.b32.xlu0 %v514, 126
          %v517 = vpop.permute.xlu0 %516
          %v519 = vadd.f32 %v511, %v517
          %s520 = sld [smem:[#allocation4 + $0x481]]
          %v521 = vstv %s520
          %v522 = vmul.f32 %v241, %v521
          %v523 = vadd.f32 %v519, %v522
          %s524 = sld [smem:[#allocation4 + $0x501]]
          %v525 = vstv %s524
          %v526 = vmul.f32 %v244, %v525
          %v527 = vadd.f32 %v523, %v526
          %s528 = sld [smem:[#allocation4 + $0x581]]
          %v529 = vstv %s528
          %v530 = vmul.f32 %v247, %v529
          %v531 = vadd.f32 %v527, %v530
          %s532 = sld [smem:[#allocation4 + $0x601]]
          %v533 = vstv %s532
          %v534 = vmul.f32 %v241, %v533
          %536 = vrot.lane.b32.xlu0 %v534, 127
          %v537 = vpop.permute.xlu0 %536
          %v539 = vadd.f32 %v531, %v537
          %s540 = sld [smem:[#allocation4 + $0x681]]
          %v541 = vstv %s540
          %v542 = vmul.f32 %v244, %v541
          %544 = vrot.lane.b32.xlu0 %v542, 127
          %v545 = vpop.permute.xlu0 %544
          %v547 = vadd.f32 %v539, %v545
          %s548 = sld [smem:[#allocation4 + $0x701]]
          %v549 = vstv %s548
          %v550 = vmul.f32 %v247, %v549
          %552 = vrot.lane.b32.xlu0 %v550, 127
          %v553 = vpop.permute.xlu0 %552
          %v555 = vadd.f32 %v547, %v553
          %s556 = sld [smem:[#allocation4 + $0x781]]
          %v557 = vstv %s556
          %v558 = vmul.f32 %v241, %v557
          %560 = vrot.lane.b32.xlu0 %v558, 126
          %v561 = vpop.permute.xlu0 %560
          %v563 = vadd.f32 %v555, %v561
          %s564 = sld [smem:[#allocation4 + $0x801]]
          %v565 = vstv %s564
          %v566 = vmul.f32 %v244, %v565
          %568 = vrot.lane.b32.xlu0 %v566, 126
          %v569 = vpop.permute.xlu0 %568
          %v571 = vadd.f32 %v563, %v569
          %s572 = sld [smem:[#allocation4 + $0x881]]
          %v573 = vstv %s572
          %v574 = vmul.f32 %v247, %v573
          %576 = vrot.lane.b32.xlu0 %v574, 126
          %v577 = vpop.permute.xlu0 %576
          %v579 = vadd.f32 %v571, %v577
          %s580 = sld [smem:[#allocation4 + $0x901]]
          %v581 = vstv %s580
          %v582 = vmul.f32 %v250, %v581
          %v583 = vadd.f32 %v579, %v582
          %s584 = sld [smem:[#allocation4 + $0x981]]
          %v585 = vstv %s584
          %v586 = vmul.f32 %v253, %v585
          %v587 = vadd.f32 %v583, %v586
          %s588 = sld [smem:[#allocation4 + $0xa01]]
          %v589 = vstv %s588
          %v590 = vmul.f32 %v256, %v589
          %v591 = vadd.f32 %v587, %v590
          %s592 = sld [smem:[#allocation4 + $0xa81]]
          %v593 = vstv %s592
          %v594 = vmul.f32 %v250, %v593
          %596 = vrot.lane.b32.xlu0 %v594, 127
          %v597 = vpop.permute.xlu0 %596
          %v599 = vadd.f32 %v591, %v597
          %s600 = sld [smem:[#allocation4 + $0xb01]]
          %v601 = vstv %s600
          %v602 = vmul.f32 %v253, %v601
          %604 = vrot.lane.b32.xlu0 %v602, 127
          %v605 = vpop.permute.xlu0 %604
          %v607 = vadd.f32 %v599, %v605
          %s608 = sld [smem:[#allocation4 + $0xb81]]
          %v609 = vstv %s608
          %v610 = vmul.f32 %v256, %v609
          %612 = vrot.lane.b32.xlu0 %v610, 127
          %v613 = vpop.permute.xlu0 %612
          %v615 = vadd.f32 %v607, %v613
          %s616 = sld [smem:[#allocation4 + $0xc01]]
          %v617 = vstv %s616
          %v618 = vmul.f32 %v250, %v617
          %620 = vrot.lane.b32.xlu0 %v618, 126
          %v621 = vpop.permute.xlu0 %620
          %v623 = vadd.f32 %v615, %v621
          %s624 = sld [smem:[#allocation4 + $0xc81]]
          %v625 = vstv %s624
          %v626 = vmul.f32 %v253, %v625
          %628 = vrot.lane.b32.xlu0 %v626, 126
          %v629 = vpop.permute.xlu0 %628
          %v631 = vadd.f32 %v623, %v629
          %s632 = sld [smem:[#allocation4 + $0xd01]]
          %v633 = vstv %s632
          %v634 = vmul.f32 %v256, %v633
          %636 = vrot.lane.b32.xlu0 %v634, 126
          %v637 = vpop.permute.xlu0 %636
          %v639 = vadd.f32 %v631, %v637
          %s640 = sadd.s32 %s229, 32
          %s641 = scalar_lea.vmem %s194, %s640 [#allocation7]
          %642 = vst.msk [vmem:[%s641] sm:$0xff] %vm437, %v639
          %v643 = vld [vmem:[#allocation2 + $0x1] sm:$0x1]
          %v644 = vsel %vm437, %v639, 0.0
          %v645 = vrot.slane %v644, 4
          %v646 = vadd.f32 %v644, %v645
          %v647 = vrot.slane %v646, 2
          %v648 = vadd.f32 %v646, %v647
          %v649 = vrot.slane %v648, 1
          %v650 = vadd.f32 %v648, %v649
          %v651 = vadd.f32 %v643, %v650
          %652 = vst.msk [vmem:[#allocation2 + $0x1] sm:$0x1] %vm448, %v651
          %v653 = vld [vmem:[#allocation3 + $0x1] sm:$0x1]
          %v654 = vmul.f32 %v639, %v639
          %v655 = vsel %vm437, %v654, 0.0
          %v656 = vrot.slane %v655, 4
          %v657 = vadd.f32 %v655, %v656
          %v658 = vrot.slane %v657, 2
          %v659 = vadd.f32 %v657, %v658
          %v660 = vrot.slane %v659, 1
          %v661 = vadd.f32 %v659, %v660
          %v662 = vadd.f32 %v653, %v661
          %663 = vst.msk [vmem:[#allocation3 + $0x1] sm:$0x1] %vm448, %v662
          %s664 = sld [smem:[#allocation4 + $0x2]]
          %v665 = vstv %s664
          %v666 = vmul.f32 %v232, %v665
          %s667 = sld [smem:[#allocation4 + $0x82]]
          %v668 = vstv %s667
          %v669 = vmul.f32 %v235, %v668
          %v670 = vadd.f32 %v666, %v669
          %s671 = sld [smem:[#allocation4 + $0x102]]
          %v672 = vstv %s671
          %v673 = vmul.f32 %v238, %v672
          %v674 = vadd.f32 %v670, %v673
          %s675 = sld [smem:[#allocation4 + $0x182]]
          %v676 = vstv %s675
          %v677 = vmul.f32 %v232, %v676
          %679 = vrot.lane.b32.xlu0 %v677, 127
          %v680 = vpop.permute.xlu0 %679
          %v682 = vadd.f32 %v674, %v680
          %s683 = sld [smem:[#allocation4 + $0x202]]
          %v684 = vstv %s683
          %v685 = vmul.f32 %v235, %v684
          %687 = vrot.lane.b32.xlu0 %v685, 127
          %v688 = vpop.permute.xlu0 %687
          %v690 = vadd.f32 %v682, %v688
          %s691 = sld [smem:[#allocation4 + $0x282]]
          %v692 = vstv %s691
          %v693 = vmul.f32 %v238, %v692
          %695 = vrot.lane.b32.xlu0 %v693, 127
          %v696 = vpop.permute.xlu0 %695
          %v698 = vadd.f32 %v690, %v696
          %s699 = sld [smem:[#allocation4 + $0x302]]
          %v700 = vstv %s699
          %v701 = vmul.f32 %v232, %v700
          %703 = vrot.lane.b32.xlu0 %v701, 126
          %v704 = vpop.permute.xlu0 %703
          %v706 = vadd.f32 %v698, %v704
          %s707 = sld [smem:[#allocation4 + $0x382]]
          %v708 = vstv %s707
          %v709 = vmul.f32 %v235, %v708
          %711 = vrot.lane.b32.xlu0 %v709, 126
          %v712 = vpop.permute.xlu0 %711
          %v714 = vadd.f32 %v706, %v712
          %s715 = sld [smem:[#allocation4 + $0x402]]
          %v716 = vstv %s715
          %v717 = vmul.f32 %v238, %v716
          %719 = vrot.lane.b32.xlu0 %v717, 126
          %v720 = vpop.permute.xlu0 %719
          %v722 = vadd.f32 %v714, %v720
          %s723 = sld [smem:[#allocation4 + $0x482]]
          %v724 = vstv %s723
          %v725 = vmul.f32 %v241, %v724
          %v726 = vadd.f32 %v722, %v725
          %s727 = sld [smem:[#allocation4 + $0x502]]
          %v728 = vstv %s727
          %v729 = vmul.f32 %v244, %v728
          %v730 = vadd.f32 %v726, %v729
          %s731 = sld [smem:[#allocation4 + $0x582]]
          %v732 = vstv %s731
          %v733 = vmul.f32 %v247, %v732
          %v734 = vadd.f32 %v730, %v733
          %s735 = sld [smem:[#allocation4 + $0x602]]
          %v736 = vstv %s735
          %v737 = vmul.f32 %v241, %v736
          %739 = vrot.lane.b32.xlu0 %v737, 127
          %v740 = vpop.permute.xlu0 %739
          %v742 = vadd.f32 %v734, %v740
          %s743 = sld [smem:[#allocation4 + $0x682]]
          %v744 = vstv %s743
          %v745 = vmul.f32 %v244, %v744
          %747 = vrot.lane.b32.xlu0 %v745, 127
          %v748 = vpop.permute.xlu0 %747
          %v750 = vadd.f32 %v742, %v748
          %s751 = sld [smem:[#allocation4 + $0x702]]
          %v752 = vstv %s751
          %v753 = vmul.f32 %v247, %v752
          %755 = vrot.lane.b32.xlu0 %v753, 127
          %v756 = vpop.permute.xlu0 %755
          %v758 = vadd.f32 %v750, %v756
          %s759 = sld [smem:[#allocation4 + $0x782]]
          %v760 = vstv %s759
          %v761 = vmul.f32 %v241, %v760
          %763 = vrot.lane.b32.xlu0 %v761, 126
          %v764 = vpop.permute.xlu0 %763
          %v766 = vadd.f32 %v758, %v764
          %s767 = sld [smem:[#allocation4 + $0x802]]
          %v768 = vstv %s767
          %v769 = vmul.f32 %v244, %v768
          %771 = vrot.lane.b32.xlu0 %v769, 126
          %v772 = vpop.permute.xlu0 %771
          %v774 = vadd.f32 %v766, %v772
          %s775 = sld [smem:[#allocation4 + $0x882]]
          %v776 = vstv %s775
          %v777 = vmul.f32 %v247, %v776
          %779 = vrot.lane.b32.xlu0 %v777, 126
          %v780 = vpop.permute.xlu0 %779
          %v782 = vadd.f32 %v774, %v780
          %s783 = sld [smem:[#allocation4 + $0x902]]
          %v784 = vstv %s783
          %v785 = vmul.f32 %v250, %v784
          %v786 = vadd.f32 %v782, %v785
          %s787 = sld [smem:[#allocation4 + $0x982]]
          %v788 = vstv %s787
          %v789 = vmul.f32 %v253, %v788
          %v790 = vadd.f32 %v786, %v789
          %s791 = sld [smem:[#allocation4 + $0xa02]]
          %v792 = vstv %s791
          %v793 = vmul.f32 %v256, %v792
          %v794 = vadd.f32 %v790, %v793
          %s795 = sld [smem:[#allocation4 + $0xa82]]
          %v796 = vstv %s795
          %v797 = vmul.f32 %v250, %v796
          %799 = vrot.lane.b32.xlu0 %v797, 127
          %v800 = vpop.permute.xlu0 %799
          %v802 = vadd.f32 %v794, %v800
          %s803 = sld [smem:[#allocation4 + $0xb02]]
          %v804 = vstv %s803
          %v805 = vmul.f32 %v253, %v804
          %807 = vrot.lane.b32.xlu0 %v805, 127
          %v808 = vpop.permute.xlu0 %807
          %v810 = vadd.f32 %v802, %v808
          %s811 = sld [smem:[#allocation4 + $0xb82]]
          %v812 = vstv %s811
          %v813 = vmul.f32 %v256, %v812
          %815 = vrot.lane.b32.xlu0 %v813, 127
          %v816 = vpop.permute.xlu0 %815
          %v818 = vadd.f32 %v810, %v816
          %s819 = sld [smem:[#allocation4 + $0xc02]]
          %v820 = vstv %s819
          %v821 = vmul.f32 %v250, %v820
          %823 = vrot.lane.b32.xlu0 %v821, 126
          %v824 = vpop.permute.xlu0 %823
          %v826 = vadd.f32 %v818, %v824
          %s827 = sld [smem:[#allocation4 + $0xc82]]
          %v828 = vstv %s827
          %v829 = vmul.f32 %v253, %v828
          %831 = vrot.lane.b32.xlu0 %v829, 126
          %v832 = vpop.permute.xlu0 %831
          %v834 = vadd.f32 %v826, %v832
          %s835 = sld [smem:[#allocation4 + $0xd02]]
          %v836 = vstv %s835
          %v837 = vmul.f32 %v256, %v836
          %839 = vrot.lane.b32.xlu0 %v837, 126
          %v840 = vpop.permute.xlu0 %839
          %v842 = vadd.f32 %v834, %v840
          %s843 = sadd.s32 %s229, 64
          %s844 = scalar_lea.vmem %s194, %s843 [#allocation7]
          %845 = vst.msk [vmem:[%s844] sm:$0xff] %vm437, %v842
          %v846 = vld [vmem:[#allocation2 + $0x2] sm:$0x1]
          %v847 = vsel %vm437, %v842, 0.0
          %v848 = vrot.slane %v847, 4
          %v849 = vadd.f32 %v847, %v848
          %v850 = vrot.slane %v849, 2
          %v851 = vadd.f32 %v849, %v850
          %v852 = vrot.slane %v851, 1
          %v853 = vadd.f32 %v851, %v852
          %v854 = vadd.f32 %v846, %v853
          %855 = vst.msk [vmem:[#allocation2 + $0x2] sm:$0x1] %vm448, %v854
          %v856 = vld [vmem:[#allocation3 + $0x2] sm:$0x1]
          %v857 = vmul.f32 %v842, %v842
          %v858 = vsel %vm437, %v857, 0.0
          %v859 = vrot.slane %v858, 4
          %v860 = vadd.f32 %v858, %v859
          %v861 = vrot.slane %v860, 2
          %v862 = vadd.f32 %v860, %v861
          %v863 = vrot.slane %v862, 1
          %v864 = vadd.f32 %v862, %v863
          %v865 = vadd.f32 %v856, %v864
          %866 = vst.msk [vmem:[#allocation3 + $0x2] sm:$0x1] %vm448, %v865
          %s867 = sld [smem:[#allocation4 + $0x3]]
          %v868 = vstv %s867
          %v869 = vmul.f32 %v232, %v868
          %s870 = sld [smem:[#allocation4 + $0x83]]
          %v871 = vstv %s870
          %v872 = vmul.f32 %v235, %v871
          %v873 = vadd.f32 %v869, %v872
          %s874 = sld [smem:[#allocation4 + $0x103]]
          %v875 = vstv %s874
          %v876 = vmul.f32 %v238, %v875
          %v877 = vadd.f32 %v873, %v876
          %s878 = sld [smem:[#allocation4 + $0x183]]
          %v879 = vstv %s878
          %v880 = vmul.f32 %v232, %v879
          %882 = vrot.lane.b32.xlu0 %v880, 127
          %v883 = vpop.permute.xlu0 %882
          %v885 = vadd.f32 %v877, %v883
          %s886 = sld [smem:[#allocation4 + $0x203]]
          %v887 = vstv %s886
          %v888 = vmul.f32 %v235, %v887
          %890 = vrot.lane.b32.xlu0 %v888, 127
          %v891 = vpop.permute.xlu0 %890
          %v893 = vadd.f32 %v885, %v891
          %s894 = sld [smem:[#allocation4 + $0x283]]
          %v895 = vstv %s894
          %v896 = vmul.f32 %v238, %v895
          %898 = vrot.lane.b32.xlu0 %v896, 127
          %v899 = vpop.permute.xlu0 %898
          %v901 = vadd.f32 %v893, %v899
          %s902 = sld [smem:[#allocation4 + $0x303]]
          %v903 = vstv %s902
          %v904 = vmul.f32 %v232, %v903
          %906 = vrot.lane.b32.xlu0 %v904, 126
          %v907 = vpop.permute.xlu0 %906
          %v909 = vadd.f32 %v901, %v907
          %s910 = sld [smem:[#allocation4 + $0x383]]
          %v911 = vstv %s910
          %v912 = vmul.f32 %v235, %v911
          %914 = vrot.lane.b32.xlu0 %v912, 126
          %v915 = vpop.permute.xlu0 %914
          %v917 = vadd.f32 %v909, %v915
          %s918 = sld [smem:[#allocation4 + $0x403]]
          %v919 = vstv %s918
          %v920 = vmul.f32 %v238, %v919
          %922 = vrot.lane.b32.xlu0 %v920, 126
          %v923 = vpop.permute.xlu0 %922
          %v925 = vadd.f32 %v917, %v923
          %s926 = sld [smem:[#allocation4 + $0x483]]
          %v927 = vstv %s926
          %v928 = vmul.f32 %v241, %v927
          %v929 = vadd.f32 %v925, %v928
          %s930 = sld [smem:[#allocation4 + $0x503]]
          %v931 = vstv %s930
          %v932 = vmul.f32 %v244, %v931
          %v933 = vadd.f32 %v929, %v932
          %s934 = sld [smem:[#allocation4 + $0x583]]
          %v935 = vstv %s934
          %v936 = vmul.f32 %v247, %v935
          %v937 = vadd.f32 %v933, %v936
          %s938 = sld [smem:[#allocation4 + $0x603]]
          %v939 = vstv %s938
          %v940 = vmul.f32 %v241, %v939
          %942 = vrot.lane.b32.xlu0 %v940, 127
          %v943 = vpop.permute.xlu0 %942
          %v945 = vadd.f32 %v937, %v943
          %s946 = sld [smem:[#allocation4 + $0x683]]
          %v947 = vstv %s946
          %v948 = vmul.f32 %v244, %v947
          %950 = vrot.lane.b32.xlu0 %v948, 127
          %v951 = vpop.permute.xlu0 %950
          %v953 = vadd.f32 %v945, %v951
          %s954 = sld [smem:[#allocation4 + $0x703]]
          %v955 = vstv %s954
          %v956 = vmul.f32 %v247, %v955
          %958 = vrot.lane.b32.xlu0 %v956, 127
          %v959 = vpop.permute.xlu0 %958
          %v961 = vadd.f32 %v953, %v959
          %s962 = sld [smem:[#allocation4 + $0x783]]
          %v963 = vstv %s962
          %v964 = vmul.f32 %v241, %v963
          %966 = vrot.lane.b32.xlu0 %v964, 126
          %v967 = vpop.permute.xlu0 %966
          %v969 = vadd.f32 %v961, %v967
          %s970 = sld [smem:[#allocation4 + $0x803]]
          %v971 = vstv %s970
          %v972 = vmul.f32 %v244, %v971
          %974 = vrot.lane.b32.xlu0 %v972, 126
          %v975 = vpop.permute.xlu0 %974
          %v977 = vadd.f32 %v969, %v975
          %s978 = sld [smem:[#allocation4 + $0x883]]
          %v979 = vstv %s978
          %v980 = vmul.f32 %v247, %v979
          %982 = vrot.lane.b32.xlu0 %v980, 126
          %v983 = vpop.permute.xlu0 %982
          %v985 = vadd.f32 %v977, %v983
          %s986 = sld [smem:[#allocation4 + $0x903]]
          %v987 = vstv %s986
          %v988 = vmul.f32 %v250, %v987
          %v989 = vadd.f32 %v985, %v988
          %s990 = sld [smem:[#allocation4 + $0x983]]
          %v991 = vstv %s990
          %v992 = vmul.f32 %v253, %v991
          %v993 = vadd.f32 %v989, %v992
          %s994 = sld [smem:[#allocation4 + $0xa03]]
          %v995 = vstv %s994
          %v996 = vmul.f32 %v256, %v995
          %v997 = vadd.f32 %v993, %v996
          %s998 = sld [smem:[#allocation4 + $0xa83]]
          %v999 = vstv %s998
          %v1000 = vmul.f32 %v250, %v999
          %1002 = vrot.lane.b32.xlu0 %v1000, 127
          %v1003 = vpop.permute.xlu0 %1002
          %v1005 = vadd.f32 %v997, %v1003
          %s1006 = sld [smem:[#allocation4 + $0xb03]]
          %v1007 = vstv %s1006
          %v1008 = vmul.f32 %v253, %v1007
          %1010 = vrot.lane.b32.xlu0 %v1008, 127
          %v1011 = vpop.permute.xlu0 %1010
          %v1013 = vadd.f32 %v1005, %v1011
          %s1014 = sld [smem:[#allocation4 + $0xb83]]
          %v1015 = vstv %s1014
          %v1016 = vmul.f32 %v256, %v1015
          %1018 = vrot.lane.b32.xlu0 %v1016, 127
          %v1019 = vpop.permute.xlu0 %1018
          %v1021 = vadd.f32 %v1013, %v1019
          %s1022 = sld [smem:[#allocation4 + $0xc03]]
          %v1023 = vstv %s1022
          %v1024 = vmul.f32 %v250, %v1023
          %1026 = vrot.lane.b32.xlu0 %v1024, 126
          %v1027 = vpop.permute.xlu0 %1026
          %v1029 = vadd.f32 %v1021, %v1027
          %s1030 = sld [smem:[#allocation4 + $0xc83]]
          %v1031 = vstv %s1030
          %v1032 = vmul.f32 %v253, %v1031
          %1034 = vrot.lane.b32.xlu0 %v1032, 126
          %v1035 = vpop.permute.xlu0 %1034
          %v1037 = vadd.f32 %v1029, %v1035
          %s1038 = sld [smem:[#allocation4 + $0xd03]]
          %v1039 = vstv %s1038
          %v1040 = vmul.f32 %v256, %v1039
          %1042 = vrot.lane.b32.xlu0 %v1040, 126
          %v1043 = vpop.permute.xlu0 %1042
          %v1045 = vadd.f32 %v1037, %v1043
          %s1046 = sadd.s32 %s229, 96
          %s1047 = scalar_lea.vmem %s194, %s1046 [#allocation7]
          %1048 = vst.msk [vmem:[%s1047] sm:$0xff] %vm437, %v1045
          %v1049 = vld [vmem:[#allocation2 + $0x3] sm:$0x1]
          %v1050 = vsel %vm437, %v1045, 0.0
          %v1051 = vrot.slane %v1050, 4
          %v1052 = vadd.f32 %v1050, %v1051
          %v1053 = vrot.slane %v1052, 2
          %v1054 = vadd.f32 %v1052, %v1053
          %v1055 = vrot.slane %v1054, 1
          %v1056 = vadd.f32 %v1054, %v1055
          %v1057 = vadd.f32 %v1049, %v1056
          %1058 = vst.msk [vmem:[#allocation2 + $0x3] sm:$0x1] %vm448, %v1057
          %v1059 = vld [vmem:[#allocation3 + $0x3] sm:$0x1]
          %v1060 = vmul.f32 %v1045, %v1045
          %v1061 = vsel %vm437, %v1060, 0.0
          %v1062 = vrot.slane %v1061, 4
          %v1063 = vadd.f32 %v1061, %v1062
          %v1064 = vrot.slane %v1063, 2
          %v1065 = vadd.f32 %v1063, %v1064
          %v1066 = vrot.slane %v1065, 1
          %v1067 = vadd.f32 %v1065, %v1066
          %v1068 = vadd.f32 %v1059, %v1067
          %1069 = vst.msk [vmem:[#allocation3 + $0x3] sm:$0x1] %vm448, %v1068
          %s1070 = sld [smem:[#allocation4 + $0x4]]
          %v1071 = vstv %s1070
          %v1072 = vmul.f32 %v232, %v1071
          %s1073 = sld [smem:[#allocation4 + $0x84]]
          %v1074 = vstv %s1073
          %v1075 = vmul.f32 %v235, %v1074
          %v1076 = vadd.f32 %v1072, %v1075
          %s1077 = sld [smem:[#allocation4 + $0x104]]
          %v1078 = vstv %s1077
          %v1079 = vmul.f32 %v238, %v1078
          %v1080 = vadd.f32 %v1076, %v1079
          %s1081 = sld [smem:[#allocation4 + $0x184]]
          %v1082 = vstv %s1081
          %v1083 = vmul.f32 %v232, %v1082
          %1085 = vrot.lane.b32.xlu0 %v1083, 127
          %v1086 = vpop.permute.xlu0 %1085
          %v1088 = vadd.f32 %v1080, %v1086
          %s1089 = sld [smem:[#allocation4 + $0x204]]
          %v1090 = vstv %s1089
          %v1091 = vmul.f32 %v235, %v1090
          %1093 = vrot.lane.b32.xlu0 %v1091, 127
          %v1094 = vpop.permute.xlu0 %1093
          %v1096 = vadd.f32 %v1088, %v1094
          %s1097 = sld [smem:[#allocation4 + $0x284]]
          %v1098 = vstv %s1097
          %v1099 = vmul.f32 %v238, %v1098
          %1101 = vrot.lane.b32.xlu0 %v1099, 127
          %v1102 = vpop.permute.xlu0 %1101
          %v1104 = vadd.f32 %v1096, %v1102
          %s1105 = sld [smem:[#allocation4 + $0x304]]
          %v1106 = vstv %s1105
          %v1107 = vmul.f32 %v232, %v1106
          %1109 = vrot.lane.b32.xlu0 %v1107, 126
          %v1110 = vpop.permute.xlu0 %1109
          %v1112 = vadd.f32 %v1104, %v1110
          %s1113 = sld [smem:[#allocation4 + $0x384]]
          %v1114 = vstv %s1113
          %v1115 = vmul.f32 %v235, %v1114
          %1117 = vrot.lane.b32.xlu0 %v1115, 126
          %v1118 = vpop.permute.xlu0 %1117
          %v1120 = vadd.f32 %v1112, %v1118
          %s1121 = sld [smem:[#allocation4 + $0x404]]
          %v1122 = vstv %s1121
          %v1123 = vmul.f32 %v238, %v1122
          %1125 = vrot.lane.b32.xlu0 %v1123, 126
          %v1126 = vpop.permute.xlu0 %1125
          %v1128 = vadd.f32 %v1120, %v1126
          %s1129 = sld [smem:[#allocation4 + $0x484]]
          %v1130 = vstv %s1129
          %v1131 = vmul.f32 %v241, %v1130
          %v1132 = vadd.f32 %v1128, %v1131
          %s1133 = sld [smem:[#allocation4 + $0x504]]
          %v1134 = vstv %s1133
          %v1135 = vmul.f32 %v244, %v1134
          %v1136 = vadd.f32 %v1132, %v1135
          %s1137 = sld [smem:[#allocation4 + $0x584]]
          %v1138 = vstv %s1137
          %v1139 = vmul.f32 %v247, %v1138
          %v1140 = vadd.f32 %v1136, %v1139
          %s1141 = sld [smem:[#allocation4 + $0x604]]
          %v1142 = vstv %s1141
          %v1143 = vmul.f32 %v241, %v1142
          %1145 = vrot.lane.b32.xlu0 %v1143, 127
          %v1146 = vpop.permute.xlu0 %1145
          %v1148 = vadd.f32 %v1140, %v1146
          %s1149 = sld [smem:[#allocation4 + $0x684]]
          %v1150 = vstv %s1149
          %v1151 = vmul.f32 %v244, %v1150
          %1153 = vrot.lane.b32.xlu0 %v1151, 127
          %v1154 = vpop.permute.xlu0 %1153
          %v1156 = vadd.f32 %v1148, %v1154
          %s1157 = sld [smem:[#allocation4 + $0x704]]
          %v1158 = vstv %s1157
          %v1159 = vmul.f32 %v247, %v1158
          %1161 = vrot.lane.b32.xlu0 %v1159, 127
          %v1162 = vpop.permute.xlu0 %1161
          %v1164 = vadd.f32 %v1156, %v1162
          %s1165 = sld [smem:[#allocation4 + $0x784]]
          %v1166 = vstv %s1165
          %v1167 = vmul.f32 %v241, %v1166
          %1169 = vrot.lane.b32.xlu0 %v1167, 126
          %v1170 = vpop.permute.xlu0 %1169
          %v1172 = vadd.f32 %v1164, %v1170
          %s1173 = sld [smem:[#allocation4 + $0x804]]
          %v1174 = vstv %s1173
          %v1175 = vmul.f32 %v244, %v1174
          %1177 = vrot.lane.b32.xlu0 %v1175, 126
          %v1178 = vpop.permute.xlu0 %1177
          %v1180 = vadd.f32 %v1172, %v1178
          %s1181 = sld [smem:[#allocation4 + $0x884]]
          %v1182 = vstv %s1181
          %v1183 = vmul.f32 %v247, %v1182
          %1185 = vrot.lane.b32.xlu0 %v1183, 126
          %v1186 = vpop.permute.xlu0 %1185
          %v1188 = vadd.f32 %v1180, %v1186
          %s1189 = sld [smem:[#allocation4 + $0x904]]
          %v1190 = vstv %s1189
          %v1191 = vmul.f32 %v250, %v1190
          %v1192 = vadd.f32 %v1188, %v1191
          %s1193 = sld [smem:[#allocation4 + $0x984]]
          %v1194 = vstv %s1193
          %v1195 = vmul.f32 %v253, %v1194
          %v1196 = vadd.f32 %v1192, %v1195
          %s1197 = sld [smem:[#allocation4 + $0xa04]]
          %v1198 = vstv %s1197
          %v1199 = vmul.f32 %v256, %v1198
          %v1200 = vadd.f32 %v1196, %v1199
          %s1201 = sld [smem:[#allocation4 + $0xa84]]
          %v1202 = vstv %s1201
          %v1203 = vmul.f32 %v250, %v1202
          %1205 = vrot.lane.b32.xlu0 %v1203, 127
          %v1206 = vpop.permute.xlu0 %1205
          %v1208 = vadd.f32 %v1200, %v1206
          %s1209 = sld [smem:[#allocation4 + $0xb04]]
          %v1210 = vstv %s1209
          %v1211 = vmul.f32 %v253, %v1210
          %1213 = vrot.lane.b32.xlu0 %v1211, 127
          %v1214 = vpop.permute.xlu0 %1213
          %v1216 = vadd.f32 %v1208, %v1214
          %s1217 = sld [smem:[#allocation4 + $0xb84]]
          %v1218 = vstv %s1217
          %v1219 = vmul.f32 %v256, %v1218
          %1221 = vrot.lane.b32.xlu0 %v1219, 127
          %v1222 = vpop.permute.xlu0 %1221
          %v1224 = vadd.f32 %v1216, %v1222
          %s1225 = sld [smem:[#allocation4 + $0xc04]]
          %v1226 = vstv %s1225
          %v1227 = vmul.f32 %v250, %v1226
          %1229 = vrot.lane.b32.xlu0 %v1227, 126
          %v1230 = vpop.permute.xlu0 %1229
          %v1232 = vadd.f32 %v1224, %v1230
          %s1233 = sld [smem:[#allocation4 + $0xc84]]
          %v1234 = vstv %s1233
          %v1235 = vmul.f32 %v253, %v1234
          %1237 = vrot.lane.b32.xlu0 %v1235, 126
          %v1238 = vpop.permute.xlu0 %1237
          %v1240 = vadd.f32 %v1232, %v1238
          %s1241 = sld [smem:[#allocation4 + $0xd04]]
          %v1242 = vstv %s1241
          %v1243 = vmul.f32 %v256, %v1242
          %1245 = vrot.lane.b32.xlu0 %v1243, 126
          %v1246 = vpop.permute.xlu0 %1245
          %v1248 = vadd.f32 %v1240, %v1246
          %s1249 = sadd.s32 %s229, 128
          %s1250 = scalar_lea.vmem %s194, %s1249 [#allocation7]
          %1251 = vst.msk [vmem:[%s1250] sm:$0xff] %vm437, %v1248
          %v1252 = vld [vmem:[#allocation2 + $0x4] sm:$0x1]
          %v1253 = vsel %vm437, %v1248, 0.0
          %v1254 = vrot.slane %v1253, 4
          %v1255 = vadd.f32 %v1253, %v1254
          %v1256 = vrot.slane %v1255, 2
          %v1257 = vadd.f32 %v1255, %v1256
          %v1258 = vrot.slane %v1257, 1
          %v1259 = vadd.f32 %v1257, %v1258
          %v1260 = vadd.f32 %v1252, %v1259
          %1261 = vst.msk [vmem:[#allocation2 + $0x4] sm:$0x1] %vm448, %v1260
          %v1262 = vld [vmem:[#allocation3 + $0x4] sm:$0x1]
          %v1263 = vmul.f32 %v1248, %v1248
          %v1264 = vsel %vm437, %v1263, 0.0
          %v1265 = vrot.slane %v1264, 4
          %v1266 = vadd.f32 %v1264, %v1265
          %v1267 = vrot.slane %v1266, 2
          %v1268 = vadd.f32 %v1266, %v1267
          %v1269 = vrot.slane %v1268, 1
          %v1270 = vadd.f32 %v1268, %v1269
          %v1271 = vadd.f32 %v1262, %v1270
          %1272 = vst.msk [vmem:[#allocation3 + $0x4] sm:$0x1] %vm448, %v1271
          %s1273 = sld [smem:[#allocation4 + $0x5]]
          %v1274 = vstv %s1273
          %v1275 = vmul.f32 %v232, %v1274
          %s1276 = sld [smem:[#allocation4 + $0x85]]
          %v1277 = vstv %s1276
          %v1278 = vmul.f32 %v235, %v1277
          %v1279 = vadd.f32 %v1275, %v1278
          %s1280 = sld [smem:[#allocation4 + $0x105]]
          %v1281 = vstv %s1280
          %v1282 = vmul.f32 %v238, %v1281
          %v1283 = vadd.f32 %v1279, %v1282
          %s1284 = sld [smem:[#allocation4 + $0x185]]
          %v1285 = vstv %s1284
          %v1286 = vmul.f32 %v232, %v1285
          %1288 = vrot.lane.b32.xlu0 %v1286, 127
          %v1289 = vpop.permute.xlu0 %1288
          %v1291 = vadd.f32 %v1283, %v1289
          %s1292 = sld [smem:[#allocation4 + $0x205]]
          %v1293 = vstv %s1292
          %v1294 = vmul.f32 %v235, %v1293
          %1296 = vrot.lane.b32.xlu0 %v1294, 127
          %v1297 = vpop.permute.xlu0 %1296
          %v1299 = vadd.f32 %v1291, %v1297
          %s1300 = sld [smem:[#allocation4 + $0x285]]
          %v1301 = vstv %s1300
          %v1302 = vmul.f32 %v238, %v1301
          %1304 = vrot.lane.b32.xlu0 %v1302, 127
          %v1305 = vpop.permute.xlu0 %1304
          %v1307 = vadd.f32 %v1299, %v1305
          %s1308 = sld [smem:[#allocation4 + $0x305]]
          %v1309 = vstv %s1308
          %v1310 = vmul.f32 %v232, %v1309
          %1312 = vrot.lane.b32.xlu0 %v1310, 126
          %v1313 = vpop.permute.xlu0 %1312
          %v1315 = vadd.f32 %v1307, %v1313
          %s1316 = sld [smem:[#allocation4 + $0x385]]
          %v1317 = vstv %s1316
          %v1318 = vmul.f32 %v235, %v1317
          %1320 = vrot.lane.b32.xlu0 %v1318, 126
          %v1321 = vpop.permute.xlu0 %1320
          %v1323 = vadd.f32 %v1315, %v1321
          %s1324 = sld [smem:[#allocation4 + $0x405]]
          %v1325 = vstv %s1324
          %v1326 = vmul.f32 %v238, %v1325
          %1328 = vrot.lane.b32.xlu0 %v1326, 126
          %v1329 = vpop.permute.xlu0 %1328
          %v1331 = vadd.f32 %v1323, %v1329
          %s1332 = sld [smem:[#allocation4 + $0x485]]
          %v1333 = vstv %s1332
          %v1334 = vmul.f32 %v241, %v1333
          %v1335 = vadd.f32 %v1331, %v1334
          %s1336 = sld [smem:[#allocation4 + $0x505]]
          %v1337 = vstv %s1336
          %v1338 = vmul.f32 %v244, %v1337
          %v1339 = vadd.f32 %v1335, %v1338
          %s1340 = sld [smem:[#allocation4 + $0x585]]
          %v1341 = vstv %s1340
          %v1342 = vmul.f32 %v247, %v1341
          %v1343 = vadd.f32 %v1339, %v1342
          %s1344 = sld [smem:[#allocation4 + $0x605]]
          %v1345 = vstv %s1344
          %v1346 = vmul.f32 %v241, %v1345
          %1348 = vrot.lane.b32.xlu0 %v1346, 127
          %v1349 = vpop.permute.xlu0 %1348
          %v1351 = vadd.f32 %v1343, %v1349
          %s1352 = sld [smem:[#allocation4 + $0x685]]
          %v1353 = vstv %s1352
          %v1354 = vmul.f32 %v244, %v1353
          %1356 = vrot.lane.b32.xlu0 %v1354, 127
          %v1357 = vpop.permute.xlu0 %1356
          %v1359 = vadd.f32 %v1351, %v1357
          %s1360 = sld [smem:[#allocation4 + $0x705]]
          %v1361 = vstv %s1360
          %v1362 = vmul.f32 %v247, %v1361
          %1364 = vrot.lane.b32.xlu0 %v1362, 127
          %v1365 = vpop.permute.xlu0 %1364
          %v1367 = vadd.f32 %v1359, %v1365
          %s1368 = sld [smem:[#allocation4 + $0x785]]
          %v1369 = vstv %s1368
          %v1370 = vmul.f32 %v241, %v1369
          %1372 = vrot.lane.b32.xlu0 %v1370, 126
          %v1373 = vpop.permute.xlu0 %1372
          %v1375 = vadd.f32 %v1367, %v1373
          %s1376 = sld [smem:[#allocation4 + $0x805]]
          %v1377 = vstv %s1376
          %v1378 = vmul.f32 %v244, %v1377
          %1380 = vrot.lane.b32.xlu0 %v1378, 126
          %v1381 = vpop.permute.xlu0 %1380
          %v1383 = vadd.f32 %v1375, %v1381
          %s1384 = sld [smem:[#allocation4 + $0x885]]
          %v1385 = vstv %s1384
          %v1386 = vmul.f32 %v247, %v1385
          %1388 = vrot.lane.b32.xlu0 %v1386, 126
          %v1389 = vpop.permute.xlu0 %1388
          %v1391 = vadd.f32 %v1383, %v1389
          %s1392 = sld [smem:[#allocation4 + $0x905]]
          %v1393 = vstv %s1392
          %v1394 = vmul.f32 %v250, %v1393
          %v1395 = vadd.f32 %v1391, %v1394
          %s1396 = sld [smem:[#allocation4 + $0x985]]
          %v1397 = vstv %s1396
          %v1398 = vmul.f32 %v253, %v1397
          %v1399 = vadd.f32 %v1395, %v1398
          %s1400 = sld [smem:[#allocation4 + $0xa05]]
          %v1401 = vstv %s1400
          %v1402 = vmul.f32 %v256, %v1401
          %v1403 = vadd.f32 %v1399, %v1402
          %s1404 = sld [smem:[#allocation4 + $0xa85]]
          %v1405 = vstv %s1404
          %v1406 = vmul.f32 %v250, %v1405
          %1408 = vrot.lane.b32.xlu0 %v1406, 127
          %v1409 = vpop.permute.xlu0 %1408
          %v1411 = vadd.f32 %v1403, %v1409
          %s1412 = sld [smem:[#allocation4 + $0xb05]]
          %v1413 = vstv %s1412
          %v1414 = vmul.f32 %v253, %v1413
          %1416 = vrot.lane.b32.xlu0 %v1414, 127
          %v1417 = vpop.permute.xlu0 %1416
          %v1419 = vadd.f32 %v1411, %v1417
          %s1420 = sld [smem:[#allocation4 + $0xb85]]
          %v1421 = vstv %s1420
          %v1422 = vmul.f32 %v256, %v1421
          %1424 = vrot.lane.b32.xlu0 %v1422, 127
          %v1425 = vpop.permute.xlu0 %1424
          %v1427 = vadd.f32 %v1419, %v1425
          %s1428 = sld [smem:[#allocation4 + $0xc05]]
          %v1429 = vstv %s1428
          %v1430 = vmul.f32 %v250, %v1429
          %1432 = vrot.lane.b32.xlu0 %v1430, 126
          %v1433 = vpop.permute.xlu0 %1432
          %v1435 = vadd.f32 %v1427, %v1433
          %s1436 = sld [smem:[#allocation4 + $0xc85]]
          %v1437 = vstv %s1436
          %v1438 = vmul.f32 %v253, %v1437
          %1440 = vrot.lane.b32.xlu0 %v1438, 126
          %v1441 = vpop.permute.xlu0 %1440
          %v1443 = vadd.f32 %v1435, %v1441
          %s1444 = sld [smem:[#allocation4 + $0xd05]]
          %v1445 = vstv %s1444
          %v1446 = vmul.f32 %v256, %v1445
          %1448 = vrot.lane.b32.xlu0 %v1446, 126
          %v1449 = vpop.permute.xlu0 %1448
          %v1451 = vadd.f32 %v1443, %v1449
          %s1452 = sadd.s32 %s229, 160
          %s1453 = scalar_lea.vmem %s194, %s1452 [#allocation7]
          %1454 = vst.msk [vmem:[%s1453] sm:$0xff] %vm437, %v1451
          %v1455 = vld [vmem:[#allocation2 + $0x5] sm:$0x1]
          %v1456 = vsel %vm437, %v1451, 0.0
          %v1457 = vrot.slane %v1456, 4
          %v1458 = vadd.f32 %v1456, %v1457
          %v1459 = vrot.slane %v1458, 2
          %v1460 = vadd.f32 %v1458, %v1459
          %v1461 = vrot.slane %v1460, 1
          %v1462 = vadd.f32 %v1460, %v1461
          %v1463 = vadd.f32 %v1455, %v1462
          %1464 = vst.msk [vmem:[#allocation2 + $0x5] sm:$0x1] %vm448, %v1463
          %v1465 = vld [vmem:[#allocation3 + $0x5] sm:$0x1]
          %v1466 = vmul.f32 %v1451, %v1451
          %v1467 = vsel %vm437, %v1466, 0.0
          %v1468 = vrot.slane %v1467, 4
          %v1469 = vadd.f32 %v1467, %v1468
          %v1470 = vrot.slane %v1469, 2
          %v1471 = vadd.f32 %v1469, %v1470
          %v1472 = vrot.slane %v1471, 1
          %v1473 = vadd.f32 %v1471, %v1472
          %v1474 = vadd.f32 %v1465, %v1473
          %1475 = vst.msk [vmem:[#allocation3 + $0x5] sm:$0x1] %vm448, %v1474
          %s1476 = sld [smem:[#allocation4 + $0x6]]
          %v1477 = vstv %s1476
          %v1478 = vmul.f32 %v232, %v1477
          %s1479 = sld [smem:[#allocation4 + $0x86]]
          %v1480 = vstv %s1479
          %v1481 = vmul.f32 %v235, %v1480
          %v1482 = vadd.f32 %v1478, %v1481
          %s1483 = sld [smem:[#allocation4 + $0x106]]
          %v1484 = vstv %s1483
          %v1485 = vmul.f32 %v238, %v1484
          %v1486 = vadd.f32 %v1482, %v1485
          %s1487 = sld [smem:[#allocation4 + $0x186]]
          %v1488 = vstv %s1487
          %v1489 = vmul.f32 %v232, %v1488
          %1491 = vrot.lane.b32.xlu0 %v1489, 127
          %v1492 = vpop.permute.xlu0 %1491
          %v1494 = vadd.f32 %v1486, %v1492
          %s1495 = sld [smem:[#allocation4 + $0x206]]
          %v1496 = vstv %s1495
          %v1497 = vmul.f32 %v235, %v1496
          %1499 = vrot.lane.b32.xlu0 %v1497, 127
          %v1500 = vpop.permute.xlu0 %1499
          %v1502 = vadd.f32 %v1494, %v1500
          %s1503 = sld [smem:[#allocation4 + $0x286]]
          %v1504 = vstv %s1503
          %v1505 = vmul.f32 %v238, %v1504
          %1507 = vrot.lane.b32.xlu0 %v1505, 127
          %v1508 = vpop.permute.xlu0 %1507
          %v1510 = vadd.f32 %v1502, %v1508
          %s1511 = sld [smem:[#allocation4 + $0x306]]
          %v1512 = vstv %s1511
          %v1513 = vmul.f32 %v232, %v1512
          %1515 = vrot.lane.b32.xlu0 %v1513, 126
          %v1516 = vpop.permute.xlu0 %1515
          %v1518 = vadd.f32 %v1510, %v1516
          %s1519 = sld [smem:[#allocation4 + $0x386]]
          %v1520 = vstv %s1519
          %v1521 = vmul.f32 %v235, %v1520
          %1523 = vrot.lane.b32.xlu0 %v1521, 126
          %v1524 = vpop.permute.xlu0 %1523
          %v1526 = vadd.f32 %v1518, %v1524
          %s1527 = sld [smem:[#allocation4 + $0x406]]
          %v1528 = vstv %s1527
          %v1529 = vmul.f32 %v238, %v1528
          %1531 = vrot.lane.b32.xlu0 %v1529, 126
          %v1532 = vpop.permute.xlu0 %1531
          %v1534 = vadd.f32 %v1526, %v1532
          %s1535 = sld [smem:[#allocation4 + $0x486]]
          %v1536 = vstv %s1535
          %v1537 = vmul.f32 %v241, %v1536
          %v1538 = vadd.f32 %v1534, %v1537
          %s1539 = sld [smem:[#allocation4 + $0x506]]
          %v1540 = vstv %s1539
          %v1541 = vmul.f32 %v244, %v1540
          %v1542 = vadd.f32 %v1538, %v1541
          %s1543 = sld [smem:[#allocation4 + $0x586]]
          %v1544 = vstv %s1543
          %v1545 = vmul.f32 %v247, %v1544
          %v1546 = vadd.f32 %v1542, %v1545
          %s1547 = sld [smem:[#allocation4 + $0x606]]
          %v1548 = vstv %s1547
          %v1549 = vmul.f32 %v241, %v1548
          %1551 = vrot.lane.b32.xlu0 %v1549, 127
          %v1552 = vpop.permute.xlu0 %1551
          %v1554 = vadd.f32 %v1546, %v1552
          %s1555 = sld [smem:[#allocation4 + $0x686]]
          %v1556 = vstv %s1555
          %v1557 = vmul.f32 %v244, %v1556
          %1559 = vrot.lane.b32.xlu0 %v1557, 127
          %v1560 = vpop.permute.xlu0 %1559
          %v1562 = vadd.f32 %v1554, %v1560
          %s1563 = sld [smem:[#allocation4 + $0x706]]
          %v1564 = vstv %s1563
          %v1565 = vmul.f32 %v247, %v1564
          %1567 = vrot.lane.b32.xlu0 %v1565, 127
          %v1568 = vpop.permute.xlu0 %1567
          %v1570 = vadd.f32 %v1562, %v1568
          %s1571 = sld [smem:[#allocation4 + $0x786]]
          %v1572 = vstv %s1571
          %v1573 = vmul.f32 %v241, %v1572
          %1575 = vrot.lane.b32.xlu0 %v1573, 126
          %v1576 = vpop.permute.xlu0 %1575
          %v1578 = vadd.f32 %v1570, %v1576
          %s1579 = sld [smem:[#allocation4 + $0x806]]
          %v1580 = vstv %s1579
          %v1581 = vmul.f32 %v244, %v1580
          %1583 = vrot.lane.b32.xlu0 %v1581, 126
          %v1584 = vpop.permute.xlu0 %1583
          %v1586 = vadd.f32 %v1578, %v1584
          %s1587 = sld [smem:[#allocation4 + $0x886]]
          %v1588 = vstv %s1587
          %v1589 = vmul.f32 %v247, %v1588
          %1591 = vrot.lane.b32.xlu0 %v1589, 126
          %v1592 = vpop.permute.xlu0 %1591
          %v1594 = vadd.f32 %v1586, %v1592
          %s1595 = sld [smem:[#allocation4 + $0x906]]
          %v1596 = vstv %s1595
          %v1597 = vmul.f32 %v250, %v1596
          %v1598 = vadd.f32 %v1594, %v1597
          %s1599 = sld [smem:[#allocation4 + $0x986]]
          %v1600 = vstv %s1599
          %v1601 = vmul.f32 %v253, %v1600
          %v1602 = vadd.f32 %v1598, %v1601
          %s1603 = sld [smem:[#allocation4 + $0xa06]]
          %v1604 = vstv %s1603
          %v1605 = vmul.f32 %v256, %v1604
          %v1606 = vadd.f32 %v1602, %v1605
          %s1607 = sld [smem:[#allocation4 + $0xa86]]
          %v1608 = vstv %s1607
          %v1609 = vmul.f32 %v250, %v1608
          %1611 = vrot.lane.b32.xlu0 %v1609, 127
          %v1612 = vpop.permute.xlu0 %1611
          %v1614 = vadd.f32 %v1606, %v1612
          %s1615 = sld [smem:[#allocation4 + $0xb06]]
          %v1616 = vstv %s1615
          %v1617 = vmul.f32 %v253, %v1616
          %1619 = vrot.lane.b32.xlu0 %v1617, 127
          %v1620 = vpop.permute.xlu0 %1619
          %v1622 = vadd.f32 %v1614, %v1620
          %s1623 = sld [smem:[#allocation4 + $0xb86]]
          %v1624 = vstv %s1623
          %v1625 = vmul.f32 %v256, %v1624
          %1627 = vrot.lane.b32.xlu0 %v1625, 127
          %v1628 = vpop.permute.xlu0 %1627
          %v1630 = vadd.f32 %v1622, %v1628
          %s1631 = sld [smem:[#allocation4 + $0xc06]]
          %v1632 = vstv %s1631
          %v1633 = vmul.f32 %v250, %v1632
          %1635 = vrot.lane.b32.xlu0 %v1633, 126
          %v1636 = vpop.permute.xlu0 %1635
          %v1638 = vadd.f32 %v1630, %v1636
          %s1639 = sld [smem:[#allocation4 + $0xc86]]
          %v1640 = vstv %s1639
          %v1641 = vmul.f32 %v253, %v1640
          %1643 = vrot.lane.b32.xlu0 %v1641, 126
          %v1644 = vpop.permute.xlu0 %1643
          %v1646 = vadd.f32 %v1638, %v1644
          %s1647 = sld [smem:[#allocation4 + $0xd06]]
          %v1648 = vstv %s1647
          %v1649 = vmul.f32 %v256, %v1648
          %1651 = vrot.lane.b32.xlu0 %v1649, 126
          %v1652 = vpop.permute.xlu0 %1651
          %v1654 = vadd.f32 %v1646, %v1652
          %s1655 = sadd.s32 %s229, 192
          %s1656 = scalar_lea.vmem %s194, %s1655 [#allocation7]
          %1657 = vst.msk [vmem:[%s1656] sm:$0xff] %vm437, %v1654
          %v1658 = vld [vmem:[#allocation2 + $0x6] sm:$0x1]
          %v1659 = vsel %vm437, %v1654, 0.0
          %v1660 = vrot.slane %v1659, 4
          %v1661 = vadd.f32 %v1659, %v1660
          %v1662 = vrot.slane %v1661, 2
          %v1663 = vadd.f32 %v1661, %v1662
          %v1664 = vrot.slane %v1663, 1
          %v1665 = vadd.f32 %v1663, %v1664
          %v1666 = vadd.f32 %v1658, %v1665
          %1667 = vst.msk [vmem:[#allocation2 + $0x6] sm:$0x1] %vm448, %v1666
          %v1668 = vld [vmem:[#allocation3 + $0x6] sm:$0x1]
          %v1669 = vmul.f32 %v1654, %v1654
          %v1670 = vsel %vm437, %v1669, 0.0
          %v1671 = vrot.slane %v1670, 4
          %v1672 = vadd.f32 %v1670, %v1671
          %v1673 = vrot.slane %v1672, 2
          %v1674 = vadd.f32 %v1672, %v1673
          %v1675 = vrot.slane %v1674, 1
          %v1676 = vadd.f32 %v1674, %v1675
          %v1677 = vadd.f32 %v1668, %v1676
          %1678 = vst.msk [vmem:[#allocation3 + $0x6] sm:$0x1] %vm448, %v1677
          %s1679 = sld [smem:[#allocation4 + $0x7]]
          %v1680 = vstv %s1679
          %v1681 = vmul.f32 %v232, %v1680
          %s1682 = sld [smem:[#allocation4 + $0x87]]
          %v1683 = vstv %s1682
          %v1684 = vmul.f32 %v235, %v1683
          %v1685 = vadd.f32 %v1681, %v1684
          %s1686 = sld [smem:[#allocation4 + $0x107]]
          %v1687 = vstv %s1686
          %v1688 = vmul.f32 %v238, %v1687
          %v1689 = vadd.f32 %v1685, %v1688
          %s1690 = sld [smem:[#allocation4 + $0x187]]
          %v1691 = vstv %s1690
          %v1692 = vmul.f32 %v232, %v1691
          %1694 = vrot.lane.b32.xlu0 %v1692, 127
          %v1695 = vpop.permute.xlu0 %1694
          %v1697 = vadd.f32 %v1689, %v1695
          %s1698 = sld [smem:[#allocation4 + $0x207]]
          %v1699 = vstv %s1698
          %v1700 = vmul.f32 %v235, %v1699
          %1702 = vrot.lane.b32.xlu0 %v1700, 127
          %v1703 = vpop.permute.xlu0 %1702
          %v1705 = vadd.f32 %v1697, %v1703
          %s1706 = sld [smem:[#allocation4 + $0x287]]
          %v1707 = vstv %s1706
          %v1708 = vmul.f32 %v238, %v1707
          %1710 = vrot.lane.b32.xlu0 %v1708, 127
          %v1711 = vpop.permute.xlu0 %1710
          %v1713 = vadd.f32 %v1705, %v1711
          %s1714 = sld [smem:[#allocation4 + $0x307]]
          %v1715 = vstv %s1714
          %v1716 = vmul.f32 %v232, %v1715
          %1718 = vrot.lane.b32.xlu0 %v1716, 126
          %v1719 = vpop.permute.xlu0 %1718
          %v1721 = vadd.f32 %v1713, %v1719
          %s1722 = sld [smem:[#allocation4 + $0x387]]
          %v1723 = vstv %s1722
          %v1724 = vmul.f32 %v235, %v1723
          %1726 = vrot.lane.b32.xlu0 %v1724, 126
          %v1727 = vpop.permute.xlu0 %1726
          %v1729 = vadd.f32 %v1721, %v1727
          %s1730 = sld [smem:[#allocation4 + $0x407]]
          %v1731 = vstv %s1730
          %v1732 = vmul.f32 %v238, %v1731
          %1734 = vrot.lane.b32.xlu0 %v1732, 126
          %v1735 = vpop.permute.xlu0 %1734
          %v1737 = vadd.f32 %v1729, %v1735
          %s1738 = sld [smem:[#allocation4 + $0x487]]
          %v1739 = vstv %s1738
          %v1740 = vmul.f32 %v241, %v1739
          %v1741 = vadd.f32 %v1737, %v1740
          %s1742 = sld [smem:[#allocation4 + $0x507]]
          %v1743 = vstv %s1742
          %v1744 = vmul.f32 %v244, %v1743
          %v1745 = vadd.f32 %v1741, %v1744
          %s1746 = sld [smem:[#allocation4 + $0x587]]
          %v1747 = vstv %s1746
          %v1748 = vmul.f32 %v247, %v1747
          %v1749 = vadd.f32 %v1745, %v1748
          %s1750 = sld [smem:[#allocation4 + $0x607]]
          %v1751 = vstv %s1750
          %v1752 = vmul.f32 %v241, %v1751
          %1754 = vrot.lane.b32.xlu0 %v1752, 127
          %v1755 = vpop.permute.xlu0 %1754
          %v1757 = vadd.f32 %v1749, %v1755
          %s1758 = sld [smem:[#allocation4 + $0x687]]
          %v1759 = vstv %s1758
          %v1760 = vmul.f32 %v244, %v1759
          %1762 = vrot.lane.b32.xlu0 %v1760, 127
          %v1763 = vpop.permute.xlu0 %1762
          %v1765 = vadd.f32 %v1757, %v1763
          %s1766 = sld [smem:[#allocation4 + $0x707]]
          %v1767 = vstv %s1766
          %v1768 = vmul.f32 %v247, %v1767
          %1770 = vrot.lane.b32.xlu0 %v1768, 127
          %v1771 = vpop.permute.xlu0 %1770
          %v1773 = vadd.f32 %v1765, %v1771
          %s1774 = sld [smem:[#allocation4 + $0x787]]
          %v1775 = vstv %s1774
          %v1776 = vmul.f32 %v241, %v1775
          %1778 = vrot.lane.b32.xlu0 %v1776, 126
          %v1779 = vpop.permute.xlu0 %1778
          %v1781 = vadd.f32 %v1773, %v1779
          %s1782 = sld [smem:[#allocation4 + $0x807]]
          %v1783 = vstv %s1782
          %v1784 = vmul.f32 %v244, %v1783
          %1786 = vrot.lane.b32.xlu0 %v1784, 126
          %v1787 = vpop.permute.xlu0 %1786
          %v1789 = vadd.f32 %v1781, %v1787
          %s1790 = sld [smem:[#allocation4 + $0x887]]
          %v1791 = vstv %s1790
          %v1792 = vmul.f32 %v247, %v1791
          %1794 = vrot.lane.b32.xlu0 %v1792, 126
          %v1795 = vpop.permute.xlu0 %1794
          %v1797 = vadd.f32 %v1789, %v1795
          %s1798 = sld [smem:[#allocation4 + $0x907]]
          %v1799 = vstv %s1798
          %v1800 = vmul.f32 %v250, %v1799
          %v1801 = vadd.f32 %v1797, %v1800
          %s1802 = sld [smem:[#allocation4 + $0x987]]
          %v1803 = vstv %s1802
          %v1804 = vmul.f32 %v253, %v1803
          %v1805 = vadd.f32 %v1801, %v1804
          %s1806 = sld [smem:[#allocation4 + $0xa07]]
          %v1807 = vstv %s1806
          %v1808 = vmul.f32 %v256, %v1807
          %v1809 = vadd.f32 %v1805, %v1808
          %s1810 = sld [smem:[#allocation4 + $0xa87]]
          %v1811 = vstv %s1810
          %v1812 = vmul.f32 %v250, %v1811
          %1814 = vrot.lane.b32.xlu0 %v1812, 127
          %v1815 = vpop.permute.xlu0 %1814
          %v1817 = vadd.f32 %v1809, %v1815
          %s1818 = sld [smem:[#allocation4 + $0xb07]]
          %v1819 = vstv %s1818
          %v1820 = vmul.f32 %v253, %v1819
          %1822 = vrot.lane.b32.xlu0 %v1820, 127
          %v1823 = vpop.permute.xlu0 %1822
          %v1825 = vadd.f32 %v1817, %v1823
          %s1826 = sld [smem:[#allocation4 + $0xb87]]
          %v1827 = vstv %s1826
          %v1828 = vmul.f32 %v256, %v1827
          %1830 = vrot.lane.b32.xlu0 %v1828, 127
          %v1831 = vpop.permute.xlu0 %1830
          %v1833 = vadd.f32 %v1825, %v1831
          %s1834 = sld [smem:[#allocation4 + $0xc07]]
          %v1835 = vstv %s1834
          %v1836 = vmul.f32 %v250, %v1835
          %1838 = vrot.lane.b32.xlu0 %v1836, 126
          %v1839 = vpop.permute.xlu0 %1838
          %v1841 = vadd.f32 %v1833, %v1839
          %s1842 = sld [smem:[#allocation4 + $0xc87]]
          %v1843 = vstv %s1842
          %v1844 = vmul.f32 %v253, %v1843
          %1846 = vrot.lane.b32.xlu0 %v1844, 126
          %v1847 = vpop.permute.xlu0 %1846
          %v1849 = vadd.f32 %v1841, %v1847
          %s1850 = sld [smem:[#allocation4 + $0xd07]]
          %v1851 = vstv %s1850
          %v1852 = vmul.f32 %v256, %v1851
          %1854 = vrot.lane.b32.xlu0 %v1852, 126
          %v1855 = vpop.permute.xlu0 %1854
          %v1857 = vadd.f32 %v1849, %v1855
          %s1858 = sadd.s32 %s229, 224
          %s1859 = scalar_lea.vmem %s194, %s1858 [#allocation7]
          %1860 = vst.msk [vmem:[%s1859] sm:$0xff] %vm437, %v1857
          %v1861 = vld [vmem:[#allocation2 + $0x7] sm:$0x1]
          %v1862 = vsel %vm437, %v1857, 0.0
          %v1863 = vrot.slane %v1862, 4
          %v1864 = vadd.f32 %v1862, %v1863
          %v1865 = vrot.slane %v1864, 2
          %v1866 = vadd.f32 %v1864, %v1865
          %v1867 = vrot.slane %v1866, 1
          %v1868 = vadd.f32 %v1866, %v1867
          %v1869 = vadd.f32 %v1861, %v1868
          %1870 = vst.msk [vmem:[#allocation2 + $0x7] sm:$0x1] %vm448, %v1869
          %v1871 = vld [vmem:[#allocation3 + $0x7] sm:$0x1]
          %v1872 = vmul.f32 %v1857, %v1857
          %v1873 = vsel %vm437, %v1872, 0.0
          %v1874 = vrot.slane %v1873, 4
          %v1875 = vadd.f32 %v1873, %v1874
          %v1876 = vrot.slane %v1875, 2
          %v1877 = vadd.f32 %v1875, %v1876
          %v1878 = vrot.slane %v1877, 1
          %v1879 = vadd.f32 %v1877, %v1878
          %v1880 = vadd.f32 %v1871, %v1879
          %1881 = vst.msk [vmem:[#allocation3 + $0x7] sm:$0x1] %vm448, %v1880
          %s1882 = sld [smem:[#allocation4 + $0x8]]
          %v1883 = vstv %s1882
          %v1884 = vmul.f32 %v232, %v1883
          %s1885 = sld [smem:[#allocation4 + $0x88]]
          %v1886 = vstv %s1885
          %v1887 = vmul.f32 %v235, %v1886
          %v1888 = vadd.f32 %v1884, %v1887
          %s1889 = sld [smem:[#allocation4 + $0x108]]
          %v1890 = vstv %s1889
          %v1891 = vmul.f32 %v238, %v1890
          %v1892 = vadd.f32 %v1888, %v1891
          %s1893 = sld [smem:[#allocation4 + $0x188]]
          %v1894 = vstv %s1893
          %v1895 = vmul.f32 %v232, %v1894
          %1897 = vrot.lane.b32.xlu0 %v1895, 127
          %v1898 = vpop.permute.xlu0 %1897
          %v1900 = vadd.f32 %v1892, %v1898
          %s1901 = sld [smem:[#allocation4 + $0x208]]
          %v1902 = vstv %s1901
          %v1903 = vmul.f32 %v235, %v1902
          %1905 = vrot.lane.b32.xlu0 %v1903, 127
          %v1906 = vpop.permute.xlu0 %1905
          %v1908 = vadd.f32 %v1900, %v1906
          %s1909 = sld [smem:[#allocation4 + $0x288]]
          %v1910 = vstv %s1909
          %v1911 = vmul.f32 %v238, %v1910
          %1913 = vrot.lane.b32.xlu0 %v1911, 127
          %v1914 = vpop.permute.xlu0 %1913
          %v1916 = vadd.f32 %v1908, %v1914
          %s1917 = sld [smem:[#allocation4 + $0x308]]
          %v1918 = vstv %s1917
          %v1919 = vmul.f32 %v232, %v1918
          %1921 = vrot.lane.b32.xlu0 %v1919, 126
          %v1922 = vpop.permute.xlu0 %1921
          %v1924 = vadd.f32 %v1916, %v1922
          %s1925 = sld [smem:[#allocation4 + $0x388]]
          %v1926 = vstv %s1925
          %v1927 = vmul.f32 %v235, %v1926
          %1929 = vrot.lane.b32.xlu0 %v1927, 126
          %v1930 = vpop.permute.xlu0 %1929
          %v1932 = vadd.f32 %v1924, %v1930
          %s1933 = sld [smem:[#allocation4 + $0x408]]
          %v1934 = vstv %s1933
          %v1935 = vmul.f32 %v238, %v1934
          %1937 = vrot.lane.b32.xlu0 %v1935, 126
          %v1938 = vpop.permute.xlu0 %1937
          %v1940 = vadd.f32 %v1932, %v1938
          %s1941 = sld [smem:[#allocation4 + $0x488]]
          %v1942 = vstv %s1941
          %v1943 = vmul.f32 %v241, %v1942
          %v1944 = vadd.f32 %v1940, %v1943
          %s1945 = sld [smem:[#allocation4 + $0x508]]
          %v1946 = vstv %s1945
          %v1947 = vmul.f32 %v244, %v1946
          %v1948 = vadd.f32 %v1944, %v1947
          %s1949 = sld [smem:[#allocation4 + $0x588]]
          %v1950 = vstv %s1949
          %v1951 = vmul.f32 %v247, %v1950
          %v1952 = vadd.f32 %v1948, %v1951
          %s1953 = sld [smem:[#allocation4 + $0x608]]
          %v1954 = vstv %s1953
          %v1955 = vmul.f32 %v241, %v1954
          %1957 = vrot.lane.b32.xlu0 %v1955, 127
          %v1958 = vpop.permute.xlu0 %1957
          %v1960 = vadd.f32 %v1952, %v1958
          %s1961 = sld [smem:[#allocation4 + $0x688]]
          %v1962 = vstv %s1961
          %v1963 = vmul.f32 %v244, %v1962
          %1965 = vrot.lane.b32.xlu0 %v1963, 127
          %v1966 = vpop.permute.xlu0 %1965
          %v1968 = vadd.f32 %v1960, %v1966
          %s1969 = sld [smem:[#allocation4 + $0x708]]
          %v1970 = vstv %s1969
          %v1971 = vmul.f32 %v247, %v1970
          %1973 = vrot.lane.b32.xlu0 %v1971, 127
          %v1974 = vpop.permute.xlu0 %1973
          %v1976 = vadd.f32 %v1968, %v1974
          %s1977 = sld [smem:[#allocation4 + $0x788]]
          %v1978 = vstv %s1977
          %v1979 = vmul.f32 %v241, %v1978
          %1981 = vrot.lane.b32.xlu0 %v1979, 126
          %v1982 = vpop.permute.xlu0 %1981
          %v1984 = vadd.f32 %v1976, %v1982
          %s1985 = sld [smem:[#allocation4 + $0x808]]
          %v1986 = vstv %s1985
          %v1987 = vmul.f32 %v244, %v1986
          %1989 = vrot.lane.b32.xlu0 %v1987, 126
          %v1990 = vpop.permute.xlu0 %1989
          %v1992 = vadd.f32 %v1984, %v1990
          %s1993 = sld [smem:[#allocation4 + $0x888]]
          %v1994 = vstv %s1993
          %v1995 = vmul.f32 %v247, %v1994
          %1997 = vrot.lane.b32.xlu0 %v1995, 126
          %v1998 = vpop.permute.xlu0 %1997
          %v2000 = vadd.f32 %v1992, %v1998
          %s2001 = sld [smem:[#allocation4 + $0x908]]
          %v2002 = vstv %s2001
          %v2003 = vmul.f32 %v250, %v2002
          %v2004 = vadd.f32 %v2000, %v2003
          %s2005 = sld [smem:[#allocation4 + $0x988]]
          %v2006 = vstv %s2005
          %v2007 = vmul.f32 %v253, %v2006
          %v2008 = vadd.f32 %v2004, %v2007
          %s2009 = sld [smem:[#allocation4 + $0xa08]]
          %v2010 = vstv %s2009
          %v2011 = vmul.f32 %v256, %v2010
          %v2012 = vadd.f32 %v2008, %v2011
          %s2013 = sld [smem:[#allocation4 + $0xa88]]
          %v2014 = vstv %s2013
          %v2015 = vmul.f32 %v250, %v2014
          %2017 = vrot.lane.b32.xlu0 %v2015, 127
          %v2018 = vpop.permute.xlu0 %2017
          %v2020 = vadd.f32 %v2012, %v2018
          %s2021 = sld [smem:[#allocation4 + $0xb08]]
          %v2022 = vstv %s2021
          %v2023 = vmul.f32 %v253, %v2022
          %2025 = vrot.lane.b32.xlu0 %v2023, 127
          %v2026 = vpop.permute.xlu0 %2025
          %v2028 = vadd.f32 %v2020, %v2026
          %s2029 = sld [smem:[#allocation4 + $0xb88]]
          %v2030 = vstv %s2029
          %v2031 = vmul.f32 %v256, %v2030
          %2033 = vrot.lane.b32.xlu0 %v2031, 127
          %v2034 = vpop.permute.xlu0 %2033
          %v2036 = vadd.f32 %v2028, %v2034
          %s2037 = sld [smem:[#allocation4 + $0xc08]]
          %v2038 = vstv %s2037
          %v2039 = vmul.f32 %v250, %v2038
          %2041 = vrot.lane.b32.xlu0 %v2039, 126
          %v2042 = vpop.permute.xlu0 %2041
          %v2044 = vadd.f32 %v2036, %v2042
          %s2045 = sld [smem:[#allocation4 + $0xc88]]
          %v2046 = vstv %s2045
          %v2047 = vmul.f32 %v253, %v2046
          %2049 = vrot.lane.b32.xlu0 %v2047, 126
          %v2050 = vpop.permute.xlu0 %2049
          %v2052 = vadd.f32 %v2044, %v2050
          %s2053 = sld [smem:[#allocation4 + $0xd08]]
          %v2054 = vstv %s2053
          %v2055 = vmul.f32 %v256, %v2054
          %2057 = vrot.lane.b32.xlu0 %v2055, 126
          %v2058 = vpop.permute.xlu0 %2057
          %v2060 = vadd.f32 %v2052, %v2058
          %s2061 = sadd.s32 %s229, 256
          %s2062 = scalar_lea.vmem %s194, %s2061 [#allocation7]
          %2063 = vst.msk [vmem:[%s2062] sm:$0xff] %vm437, %v2060
          %v2064 = vld [vmem:[#allocation2 + $0x8] sm:$0x1]
          %v2065 = vsel %vm437, %v2060, 0.0
          %v2066 = vrot.slane %v2065, 4
          %v2067 = vadd.f32 %v2065, %v2066
          %v2068 = vrot.slane %v2067, 2
          %v2069 = vadd.f32 %v2067, %v2068
          %v2070 = vrot.slane %v2069, 1
          %v2071 = vadd.f32 %v2069, %v2070
          %v2072 = vadd.f32 %v2064, %v2071
          %2073 = vst.msk [vmem:[#allocation2 + $0x8] sm:$0x1] %vm448, %v2072
          %v2074 = vld [vmem:[#allocation3 + $0x8] sm:$0x1]
          %v2075 = vmul.f32 %v2060, %v2060
          %v2076 = vsel %vm437, %v2075, 0.0
          %v2077 = vrot.slane %v2076, 4
          %v2078 = vadd.f32 %v2076, %v2077
          %v2079 = vrot.slane %v2078, 2
          %v2080 = vadd.f32 %v2078, %v2079
          %v2081 = vrot.slane %v2080, 1
          %v2082 = vadd.f32 %v2080, %v2081
          %v2083 = vadd.f32 %v2074, %v2082
          %2084 = vst.msk [vmem:[#allocation3 + $0x8] sm:$0x1] %vm448, %v2083
          %s2085 = sld [smem:[#allocation4 + $0x9]]
          %v2086 = vstv %s2085
          %v2087 = vmul.f32 %v232, %v2086
          %s2088 = sld [smem:[#allocation4 + $0x89]]
          %v2089 = vstv %s2088
          %v2090 = vmul.f32 %v235, %v2089
          %v2091 = vadd.f32 %v2087, %v2090
          %s2092 = sld [smem:[#allocation4 + $0x109]]
          %v2093 = vstv %s2092
          %v2094 = vmul.f32 %v238, %v2093
          %v2095 = vadd.f32 %v2091, %v2094
          %s2096 = sld [smem:[#allocation4 + $0x189]]
          %v2097 = vstv %s2096
          %v2098 = vmul.f32 %v232, %v2097
          %2100 = vrot.lane.b32.xlu0 %v2098, 127
          %v2101 = vpop.permute.xlu0 %2100
          %v2103 = vadd.f32 %v2095, %v2101
          %s2104 = sld [smem:[#allocation4 + $0x209]]
          %v2105 = vstv %s2104
          %v2106 = vmul.f32 %v235, %v2105
          %2108 = vrot.lane.b32.xlu0 %v2106, 127
          %v2109 = vpop.permute.xlu0 %2108
          %v2111 = vadd.f32 %v2103, %v2109
          %s2112 = sld [smem:[#allocation4 + $0x289]]
          %v2113 = vstv %s2112
          %v2114 = vmul.f32 %v238, %v2113
          %2116 = vrot.lane.b32.xlu0 %v2114, 127
          %v2117 = vpop.permute.xlu0 %2116
          %v2119 = vadd.f32 %v2111, %v2117
          %s2120 = sld [smem:[#allocation4 + $0x309]]
          %v2121 = vstv %s2120
          %v2122 = vmul.f32 %v232, %v2121
          %2124 = vrot.lane.b32.xlu0 %v2122, 126
          %v2125 = vpop.permute.xlu0 %2124
          %v2127 = vadd.f32 %v2119, %v2125
          %s2128 = sld [smem:[#allocation4 + $0x389]]
          %v2129 = vstv %s2128
          %v2130 = vmul.f32 %v235, %v2129
          %2132 = vrot.lane.b32.xlu0 %v2130, 126
          %v2133 = vpop.permute.xlu0 %2132
          %v2135 = vadd.f32 %v2127, %v2133
          %s2136 = sld [smem:[#allocation4 + $0x409]]
          %v2137 = vstv %s2136
          %v2138 = vmul.f32 %v238, %v2137
          %2140 = vrot.lane.b32.xlu0 %v2138, 126
          %v2141 = vpop.permute.xlu0 %2140
          %v2143 = vadd.f32 %v2135, %v2141
          %s2144 = sld [smem:[#allocation4 + $0x489]]
          %v2145 = vstv %s2144
          %v2146 = vmul.f32 %v241, %v2145
          %v2147 = vadd.f32 %v2143, %v2146
          %s2148 = sld [smem:[#allocation4 + $0x509]]
          %v2149 = vstv %s2148
          %v2150 = vmul.f32 %v244, %v2149
          %v2151 = vadd.f32 %v2147, %v2150
          %s2152 = sld [smem:[#allocation4 + $0x589]]
          %v2153 = vstv %s2152
          %v2154 = vmul.f32 %v247, %v2153
          %v2155 = vadd.f32 %v2151, %v2154
          %s2156 = sld [smem:[#allocation4 + $0x609]]
          %v2157 = vstv %s2156
          %v2158 = vmul.f32 %v241, %v2157
          %2160 = vrot.lane.b32.xlu0 %v2158, 127
          %v2161 = vpop.permute.xlu0 %2160
          %v2163 = vadd.f32 %v2155, %v2161
          %s2164 = sld [smem:[#allocation4 + $0x689]]
          %v2165 = vstv %s2164
          %v2166 = vmul.f32 %v244, %v2165
          %2168 = vrot.lane.b32.xlu0 %v2166, 127
          %v2169 = vpop.permute.xlu0 %2168
          %v2171 = vadd.f32 %v2163, %v2169
          %s2172 = sld [smem:[#allocation4 + $0x709]]
          %v2173 = vstv %s2172
          %v2174 = vmul.f32 %v247, %v2173
          %2176 = vrot.lane.b32.xlu0 %v2174, 127
          %v2177 = vpop.permute.xlu0 %2176
          %v2179 = vadd.f32 %v2171, %v2177
          %s2180 = sld [smem:[#allocation4 + $0x789]]
          %v2181 = vstv %s2180
          %v2182 = vmul.f32 %v241, %v2181
          %2184 = vrot.lane.b32.xlu0 %v2182, 126
          %v2185 = vpop.permute.xlu0 %2184
          %v2187 = vadd.f32 %v2179, %v2185
          %s2188 = sld [smem:[#allocation4 + $0x809]]
          %v2189 = vstv %s2188
          %v2190 = vmul.f32 %v244, %v2189
          %2192 = vrot.lane.b32.xlu0 %v2190, 126
          %v2193 = vpop.permute.xlu0 %2192
          %v2195 = vadd.f32 %v2187, %v2193
          %s2196 = sld [smem:[#allocation4 + $0x889]]
          %v2197 = vstv %s2196
          %v2198 = vmul.f32 %v247, %v2197
          %2200 = vrot.lane.b32.xlu0 %v2198, 126
          %v2201 = vpop.permute.xlu0 %2200
          %v2203 = vadd.f32 %v2195, %v2201
          %s2204 = sld [smem:[#allocation4 + $0x909]]
          %v2205 = vstv %s2204
          %v2206 = vmul.f32 %v250, %v2205
          %v2207 = vadd.f32 %v2203, %v2206
          %s2208 = sld [smem:[#allocation4 + $0x989]]
          %v2209 = vstv %s2208
          %v2210 = vmul.f32 %v253, %v2209
          %v2211 = vadd.f32 %v2207, %v2210
          %s2212 = sld [smem:[#allocation4 + $0xa09]]
          %v2213 = vstv %s2212
          %v2214 = vmul.f32 %v256, %v2213
          %v2215 = vadd.f32 %v2211, %v2214
          %s2216 = sld [smem:[#allocation4 + $0xa89]]
          %v2217 = vstv %s2216
          %v2218 = vmul.f32 %v250, %v2217
          %2220 = vrot.lane.b32.xlu0 %v2218, 127
          %v2221 = vpop.permute.xlu0 %2220
          %v2223 = vadd.f32 %v2215, %v2221
          %s2224 = sld [smem:[#allocation4 + $0xb09]]
          %v2225 = vstv %s2224
          %v2226 = vmul.f32 %v253, %v2225
          %2228 = vrot.lane.b32.xlu0 %v2226, 127
          %v2229 = vpop.permute.xlu0 %2228
          %v2231 = vadd.f32 %v2223, %v2229
          %s2232 = sld [smem:[#allocation4 + $0xb89]]
          %v2233 = vstv %s2232
          %v2234 = vmul.f32 %v256, %v2233
          %2236 = vrot.lane.b32.xlu0 %v2234, 127
          %v2237 = vpop.permute.xlu0 %2236
          %v2239 = vadd.f32 %v2231, %v2237
          %s2240 = sld [smem:[#allocation4 + $0xc09]]
          %v2241 = vstv %s2240
          %v2242 = vmul.f32 %v250, %v2241
          %2244 = vrot.lane.b32.xlu0 %v2242, 126
          %v2245 = vpop.permute.xlu0 %2244
          %v2247 = vadd.f32 %v2239, %v2245
          %s2248 = sld [smem:[#allocation4 + $0xc89]]
          %v2249 = vstv %s2248
          %v2250 = vmul.f32 %v253, %v2249
          %2252 = vrot.lane.b32.xlu0 %v2250, 126
          %v2253 = vpop.permute.xlu0 %2252
          %v2255 = vadd.f32 %v2247, %v2253
          %s2256 = sld [smem:[#allocation4 + $0xd09]]
          %v2257 = vstv %s2256
          %v2258 = vmul.f32 %v256, %v2257
          %2260 = vrot.lane.b32.xlu0 %v2258, 126
          %v2261 = vpop.permute.xlu0 %2260
          %v2263 = vadd.f32 %v2255, %v2261
          %s2264 = sadd.s32 %s229, 288
          %s2265 = scalar_lea.vmem %s194, %s2264 [#allocation7]
          %2266 = vst.msk [vmem:[%s2265] sm:$0xff] %vm437, %v2263
          %v2267 = vld [vmem:[#allocation2 + $0x9] sm:$0x1]
          %v2268 = vsel %vm437, %v2263, 0.0
          %v2269 = vrot.slane %v2268, 4
          %v2270 = vadd.f32 %v2268, %v2269
          %v2271 = vrot.slane %v2270, 2
          %v2272 = vadd.f32 %v2270, %v2271
          %v2273 = vrot.slane %v2272, 1
          %v2274 = vadd.f32 %v2272, %v2273
          %v2275 = vadd.f32 %v2267, %v2274
          %2276 = vst.msk [vmem:[#allocation2 + $0x9] sm:$0x1] %vm448, %v2275
          %v2277 = vld [vmem:[#allocation3 + $0x9] sm:$0x1]
          %v2278 = vmul.f32 %v2263, %v2263
          %v2279 = vsel %vm437, %v2278, 0.0
          %v2280 = vrot.slane %v2279, 4
          %v2281 = vadd.f32 %v2279, %v2280
          %v2282 = vrot.slane %v2281, 2
          %v2283 = vadd.f32 %v2281, %v2282
          %v2284 = vrot.slane %v2283, 1
          %v2285 = vadd.f32 %v2283, %v2284
          %v2286 = vadd.f32 %v2277, %v2285
          %2287 = vst.msk [vmem:[#allocation3 + $0x9] sm:$0x1] %vm448, %v2286
          %s2288 = sld [smem:[#allocation4 + $0xa]]
          %v2289 = vstv %s2288
          %v2290 = vmul.f32 %v232, %v2289
          %s2291 = sld [smem:[#allocation4 + $0x8a]]
          %v2292 = vstv %s2291
          %v2293 = vmul.f32 %v235, %v2292
          %v2294 = vadd.f32 %v2290, %v2293
          %s2295 = sld [smem:[#allocation4 + $0x10a]]
          %v2296 = vstv %s2295
          %v2297 = vmul.f32 %v238, %v2296
          %v2298 = vadd.f32 %v2294, %v2297
          %s2299 = sld [smem:[#allocation4 + $0x18a]]
          %v2300 = vstv %s2299
          %v2301 = vmul.f32 %v232, %v2300
          %2303 = vrot.lane.b32.xlu0 %v2301, 127
          %v2304 = vpop.permute.xlu0 %2303
          %v2306 = vadd.f32 %v2298, %v2304
          %s2307 = sld [smem:[#allocation4 + $0x20a]]
          %v2308 = vstv %s2307
          %v2309 = vmul.f32 %v235, %v2308
          %2311 = vrot.lane.b32.xlu0 %v2309, 127
          %v2312 = vpop.permute.xlu0 %2311
          %v2314 = vadd.f32 %v2306, %v2312
          %s2315 = sld [smem:[#allocation4 + $0x28a]]
          %v2316 = vstv %s2315
          %v2317 = vmul.f32 %v238, %v2316
          %2319 = vrot.lane.b32.xlu0 %v2317, 127
          %v2320 = vpop.permute.xlu0 %2319
          %v2322 = vadd.f32 %v2314, %v2320
          %s2323 = sld [smem:[#allocation4 + $0x30a]]
          %v2324 = vstv %s2323
          %v2325 = vmul.f32 %v232, %v2324
          %2327 = vrot.lane.b32.xlu0 %v2325, 126
          %v2328 = vpop.permute.xlu0 %2327
          %v2330 = vadd.f32 %v2322, %v2328
          %s2331 = sld [smem:[#allocation4 + $0x38a]]
          %v2332 = vstv %s2331
          %v2333 = vmul.f32 %v235, %v2332
          %2335 = vrot.lane.b32.xlu0 %v2333, 126
          %v2336 = vpop.permute.xlu0 %2335
          %v2338 = vadd.f32 %v2330, %v2336
          %s2339 = sld [smem:[#allocation4 + $0x40a]]
          %v2340 = vstv %s2339
          %v2341 = vmul.f32 %v238, %v2340
          %2343 = vrot.lane.b32.xlu0 %v2341, 126
          %v2344 = vpop.permute.xlu0 %2343
          %v2346 = vadd.f32 %v2338, %v2344
          %s2347 = sld [smem:[#allocation4 + $0x48a]]
          %v2348 = vstv %s2347
          %v2349 = vmul.f32 %v241, %v2348
          %v2350 = vadd.f32 %v2346, %v2349
          %s2351 = sld [smem:[#allocation4 + $0x50a]]
          %v2352 = vstv %s2351
          %v2353 = vmul.f32 %v244, %v2352
          %v2354 = vadd.f32 %v2350, %v2353
          %s2355 = sld [smem:[#allocation4 + $0x58a]]
          %v2356 = vstv %s2355
          %v2357 = vmul.f32 %v247, %v2356
          %v2358 = vadd.f32 %v2354, %v2357
          %s2359 = sld [smem:[#allocation4 + $0x60a]]
          %v2360 = vstv %s2359
          %v2361 = vmul.f32 %v241, %v2360
          %2363 = vrot.lane.b32.xlu0 %v2361, 127
          %v2364 = vpop.permute.xlu0 %2363
          %v2366 = vadd.f32 %v2358, %v2364
          %s2367 = sld [smem:[#allocation4 + $0x68a]]
          %v2368 = vstv %s2367
          %v2369 = vmul.f32 %v244, %v2368
          %2371 = vrot.lane.b32.xlu0 %v2369, 127
          %v2372 = vpop.permute.xlu0 %2371
          %v2374 = vadd.f32 %v2366, %v2372
          %s2375 = sld [smem:[#allocation4 + $0x70a]]
          %v2376 = vstv %s2375
          %v2377 = vmul.f32 %v247, %v2376
          %2379 = vrot.lane.b32.xlu0 %v2377, 127
          %v2380 = vpop.permute.xlu0 %2379
          %v2382 = vadd.f32 %v2374, %v2380
          %s2383 = sld [smem:[#allocation4 + $0x78a]]
          %v2384 = vstv %s2383
          %v2385 = vmul.f32 %v241, %v2384
          %2387 = vrot.lane.b32.xlu0 %v2385, 126
          %v2388 = vpop.permute.xlu0 %2387
          %v2390 = vadd.f32 %v2382, %v2388
          %s2391 = sld [smem:[#allocation4 + $0x80a]]
          %v2392 = vstv %s2391
          %v2393 = vmul.f32 %v244, %v2392
          %2395 = vrot.lane.b32.xlu0 %v2393, 126
          %v2396 = vpop.permute.xlu0 %2395
          %v2398 = vadd.f32 %v2390, %v2396
          %s2399 = sld [smem:[#allocation4 + $0x88a]]
          %v2400 = vstv %s2399
          %v2401 = vmul.f32 %v247, %v2400
          %2403 = vrot.lane.b32.xlu0 %v2401, 126
          %v2404 = vpop.permute.xlu0 %2403
          %v2406 = vadd.f32 %v2398, %v2404
          %s2407 = sld [smem:[#allocation4 + $0x90a]]
          %v2408 = vstv %s2407
          %v2409 = vmul.f32 %v250, %v2408
          %v2410 = vadd.f32 %v2406, %v2409
          %s2411 = sld [smem:[#allocation4 + $0x98a]]
          %v2412 = vstv %s2411
          %v2413 = vmul.f32 %v253, %v2412
          %v2414 = vadd.f32 %v2410, %v2413
          %s2415 = sld [smem:[#allocation4 + $0xa0a]]
          %v2416 = vstv %s2415
          %v2417 = vmul.f32 %v256, %v2416
          %v2418 = vadd.f32 %v2414, %v2417
          %s2419 = sld [smem:[#allocation4 + $0xa8a]]
          %v2420 = vstv %s2419
          %v2421 = vmul.f32 %v250, %v2420
          %2423 = vrot.lane.b32.xlu0 %v2421, 127
          %v2424 = vpop.permute.xlu0 %2423
          %v2426 = vadd.f32 %v2418, %v2424
          %s2427 = sld [smem:[#allocation4 + $0xb0a]]
          %v2428 = vstv %s2427
          %v2429 = vmul.f32 %v253, %v2428
          %2431 = vrot.lane.b32.xlu0 %v2429, 127
          %v2432 = vpop.permute.xlu0 %2431
          %v2434 = vadd.f32 %v2426, %v2432
          %s2435 = sld [smem:[#allocation4 + $0xb8a]]
          %v2436 = vstv %s2435
          %v2437 = vmul.f32 %v256, %v2436
          %2439 = vrot.lane.b32.xlu0 %v2437, 127
          %v2440 = vpop.permute.xlu0 %2439
          %v2442 = vadd.f32 %v2434, %v2440
          %s2443 = sld [smem:[#allocation4 + $0xc0a]]
          %v2444 = vstv %s2443
          %v2445 = vmul.f32 %v250, %v2444
          %2447 = vrot.lane.b32.xlu0 %v2445, 126
          %v2448 = vpop.permute.xlu0 %2447
          %v2450 = vadd.f32 %v2442, %v2448
          %s2451 = sld [smem:[#allocation4 + $0xc8a]]
          %v2452 = vstv %s2451
          %v2453 = vmul.f32 %v253, %v2452
          %2455 = vrot.lane.b32.xlu0 %v2453, 126
          %v2456 = vpop.permute.xlu0 %2455
          %v2458 = vadd.f32 %v2450, %v2456
          %s2459 = sld [smem:[#allocation4 + $0xd0a]]
          %v2460 = vstv %s2459
          %v2461 = vmul.f32 %v256, %v2460
          %2463 = vrot.lane.b32.xlu0 %v2461, 126
          %v2464 = vpop.permute.xlu0 %2463
          %v2466 = vadd.f32 %v2458, %v2464
          %s2467 = sadd.s32 %s229, 320
          %s2468 = scalar_lea.vmem %s194, %s2467 [#allocation7]
          %2469 = vst.msk [vmem:[%s2468] sm:$0xff] %vm437, %v2466
          %v2470 = vld [vmem:[#allocation2 + $0xa] sm:$0x1]
          %v2471 = vsel %vm437, %v2466, 0.0
          %v2472 = vrot.slane %v2471, 4
          %v2473 = vadd.f32 %v2471, %v2472
          %v2474 = vrot.slane %v2473, 2
          %v2475 = vadd.f32 %v2473, %v2474
          %v2476 = vrot.slane %v2475, 1
          %v2477 = vadd.f32 %v2475, %v2476
          %v2478 = vadd.f32 %v2470, %v2477
          %2479 = vst.msk [vmem:[#allocation2 + $0xa] sm:$0x1] %vm448, %v2478
          %v2480 = vld [vmem:[#allocation3 + $0xa] sm:$0x1]
          %v2481 = vmul.f32 %v2466, %v2466
          %v2482 = vsel %vm437, %v2481, 0.0
          %v2483 = vrot.slane %v2482, 4
          %v2484 = vadd.f32 %v2482, %v2483
          %v2485 = vrot.slane %v2484, 2
          %v2486 = vadd.f32 %v2484, %v2485
          %v2487 = vrot.slane %v2486, 1
          %v2488 = vadd.f32 %v2486, %v2487
          %v2489 = vadd.f32 %v2480, %v2488
          %2490 = vst.msk [vmem:[#allocation3 + $0xa] sm:$0x1] %vm448, %v2489
          %s2491 = sld [smem:[#allocation4 + $0xb]]
          %v2492 = vstv %s2491
          %v2493 = vmul.f32 %v232, %v2492
          %s2494 = sld [smem:[#allocation4 + $0x8b]]
          %v2495 = vstv %s2494
          %v2496 = vmul.f32 %v235, %v2495
          %v2497 = vadd.f32 %v2493, %v2496
          %s2498 = sld [smem:[#allocation4 + $0x10b]]
          %v2499 = vstv %s2498
          %v2500 = vmul.f32 %v238, %v2499
          %v2501 = vadd.f32 %v2497, %v2500
          %s2502 = sld [smem:[#allocation4 + $0x18b]]
          %v2503 = vstv %s2502
          %v2504 = vmul.f32 %v232, %v2503
          %2506 = vrot.lane.b32.xlu0 %v2504, 127
          %v2507 = vpop.permute.xlu0 %2506
          %v2509 = vadd.f32 %v2501, %v2507
          %s2510 = sld [smem:[#allocation4 + $0x20b]]
          %v2511 = vstv %s2510
          %v2512 = vmul.f32 %v235, %v2511
          %2514 = vrot.lane.b32.xlu0 %v2512, 127
          %v2515 = vpop.permute.xlu0 %2514
          %v2517 = vadd.f32 %v2509, %v2515
          %s2518 = sld [smem:[#allocation4 + $0x28b]]
          %v2519 = vstv %s2518
          %v2520 = vmul.f32 %v238, %v2519
          %2522 = vrot.lane.b32.xlu0 %v2520, 127
          %v2523 = vpop.permute.xlu0 %2522
          %v2525 = vadd.f32 %v2517, %v2523
          %s2526 = sld [smem:[#allocation4 + $0x30b]]
          %v2527 = vstv %s2526
          %v2528 = vmul.f32 %v232, %v2527
          %2530 = vrot.lane.b32.xlu0 %v2528, 126
          %v2531 = vpop.permute.xlu0 %2530
          %v2533 = vadd.f32 %v2525, %v2531
          %s2534 = sld [smem:[#allocation4 + $0x38b]]
          %v2535 = vstv %s2534
          %v2536 = vmul.f32 %v235, %v2535
          %2538 = vrot.lane.b32.xlu0 %v2536, 126
          %v2539 = vpop.permute.xlu0 %2538
          %v2541 = vadd.f32 %v2533, %v2539
          %s2542 = sld [smem:[#allocation4 + $0x40b]]
          %v2543 = vstv %s2542
          %v2544 = vmul.f32 %v238, %v2543
          %2546 = vrot.lane.b32.xlu0 %v2544, 126
          %v2547 = vpop.permute.xlu0 %2546
          %v2549 = vadd.f32 %v2541, %v2547
          %s2550 = sld [smem:[#allocation4 + $0x48b]]
          %v2551 = vstv %s2550
          %v2552 = vmul.f32 %v241, %v2551
          %v2553 = vadd.f32 %v2549, %v2552
          %s2554 = sld [smem:[#allocation4 + $0x50b]]
          %v2555 = vstv %s2554
          %v2556 = vmul.f32 %v244, %v2555
          %v2557 = vadd.f32 %v2553, %v2556
          %s2558 = sld [smem:[#allocation4 + $0x58b]]
          %v2559 = vstv %s2558
          %v2560 = vmul.f32 %v247, %v2559
          %v2561 = vadd.f32 %v2557, %v2560
          %s2562 = sld [smem:[#allocation4 + $0x60b]]
          %v2563 = vstv %s2562
          %v2564 = vmul.f32 %v241, %v2563
          %2566 = vrot.lane.b32.xlu0 %v2564, 127
          %v2567 = vpop.permute.xlu0 %2566
          %v2569 = vadd.f32 %v2561, %v2567
          %s2570 = sld [smem:[#allocation4 + $0x68b]]
          %v2571 = vstv %s2570
          %v2572 = vmul.f32 %v244, %v2571
          %2574 = vrot.lane.b32.xlu0 %v2572, 127
          %v2575 = vpop.permute.xlu0 %2574
          %v2577 = vadd.f32 %v2569, %v2575
          %s2578 = sld [smem:[#allocation4 + $0x70b]]
          %v2579 = vstv %s2578
          %v2580 = vmul.f32 %v247, %v2579
          %2582 = vrot.lane.b32.xlu0 %v2580, 127
          %v2583 = vpop.permute.xlu0 %2582
          %v2585 = vadd.f32 %v2577, %v2583
          %s2586 = sld [smem:[#allocation4 + $0x78b]]
          %v2587 = vstv %s2586
          %v2588 = vmul.f32 %v241, %v2587
          %2590 = vrot.lane.b32.xlu0 %v2588, 126
          %v2591 = vpop.permute.xlu0 %2590
          %v2593 = vadd.f32 %v2585, %v2591
          %s2594 = sld [smem:[#allocation4 + $0x80b]]
          %v2595 = vstv %s2594
          %v2596 = vmul.f32 %v244, %v2595
          %2598 = vrot.lane.b32.xlu0 %v2596, 126
          %v2599 = vpop.permute.xlu0 %2598
          %v2601 = vadd.f32 %v2593, %v2599
          %s2602 = sld [smem:[#allocation4 + $0x88b]]
          %v2603 = vstv %s2602
          %v2604 = vmul.f32 %v247, %v2603
          %2606 = vrot.lane.b32.xlu0 %v2604, 126
          %v2607 = vpop.permute.xlu0 %2606
          %v2609 = vadd.f32 %v2601, %v2607
          %s2610 = sld [smem:[#allocation4 + $0x90b]]
          %v2611 = vstv %s2610
          %v2612 = vmul.f32 %v250, %v2611
          %v2613 = vadd.f32 %v2609, %v2612
          %s2614 = sld [smem:[#allocation4 + $0x98b]]
          %v2615 = vstv %s2614
          %v2616 = vmul.f32 %v253, %v2615
          %v2617 = vadd.f32 %v2613, %v2616
          %s2618 = sld [smem:[#allocation4 + $0xa0b]]
          %v2619 = vstv %s2618
          %v2620 = vmul.f32 %v256, %v2619
          %v2621 = vadd.f32 %v2617, %v2620
          %s2622 = sld [smem:[#allocation4 + $0xa8b]]
          %v2623 = vstv %s2622
          %v2624 = vmul.f32 %v250, %v2623
          %2626 = vrot.lane.b32.xlu0 %v2624, 127
          %v2627 = vpop.permute.xlu0 %2626
          %v2629 = vadd.f32 %v2621, %v2627
          %s2630 = sld [smem:[#allocation4 + $0xb0b]]
          %v2631 = vstv %s2630
          %v2632 = vmul.f32 %v253, %v2631
          %2634 = vrot.lane.b32.xlu0 %v2632, 127
          %v2635 = vpop.permute.xlu0 %2634
          %v2637 = vadd.f32 %v2629, %v2635
          %s2638 = sld [smem:[#allocation4 + $0xb8b]]
          %v2639 = vstv %s2638
          %v2640 = vmul.f32 %v256, %v2639
          %2642 = vrot.lane.b32.xlu0 %v2640, 127
          %v2643 = vpop.permute.xlu0 %2642
          %v2645 = vadd.f32 %v2637, %v2643
          %s2646 = sld [smem:[#allocation4 + $0xc0b]]
          %v2647 = vstv %s2646
          %v2648 = vmul.f32 %v250, %v2647
          %2650 = vrot.lane.b32.xlu0 %v2648, 126
          %v2651 = vpop.permute.xlu0 %2650
          %v2653 = vadd.f32 %v2645, %v2651
          %s2654 = sld [smem:[#allocation4 + $0xc8b]]
          %v2655 = vstv %s2654
          %v2656 = vmul.f32 %v253, %v2655
          %2658 = vrot.lane.b32.xlu0 %v2656, 126
          %v2659 = vpop.permute.xlu0 %2658
          %v2661 = vadd.f32 %v2653, %v2659
          %s2662 = sld [smem:[#allocation4 + $0xd0b]]
          %v2663 = vstv %s2662
          %v2664 = vmul.f32 %v256, %v2663
          %2666 = vrot.lane.b32.xlu0 %v2664, 126
          %v2667 = vpop.permute.xlu0 %2666
          %v2669 = vadd.f32 %v2661, %v2667
          %s2670 = sadd.s32 %s229, 352
          %s2671 = scalar_lea.vmem %s194, %s2670 [#allocation7]
          %2672 = vst.msk [vmem:[%s2671] sm:$0xff] %vm437, %v2669
          %v2673 = vld [vmem:[#allocation2 + $0xb] sm:$0x1]
          %v2674 = vsel %vm437, %v2669, 0.0
          %v2675 = vrot.slane %v2674, 4
          %v2676 = vadd.f32 %v2674, %v2675
          %v2677 = vrot.slane %v2676, 2
          %v2678 = vadd.f32 %v2676, %v2677
          %v2679 = vrot.slane %v2678, 1
          %v2680 = vadd.f32 %v2678, %v2679
          %v2681 = vadd.f32 %v2673, %v2680
          %2682 = vst.msk [vmem:[#allocation2 + $0xb] sm:$0x1] %vm448, %v2681
          %v2683 = vld [vmem:[#allocation3 + $0xb] sm:$0x1]
          %v2684 = vmul.f32 %v2669, %v2669
          %v2685 = vsel %vm437, %v2684, 0.0
          %v2686 = vrot.slane %v2685, 4
          %v2687 = vadd.f32 %v2685, %v2686
          %v2688 = vrot.slane %v2687, 2
          %v2689 = vadd.f32 %v2687, %v2688
          %v2690 = vrot.slane %v2689, 1
          %v2691 = vadd.f32 %v2689, %v2690
          %v2692 = vadd.f32 %v2683, %v2691
          %2693 = vst.msk [vmem:[#allocation3 + $0xb] sm:$0x1] %vm448, %v2692
          %s2694 = sld [smem:[#allocation4 + $0xc]]
          %v2695 = vstv %s2694
          %v2696 = vmul.f32 %v232, %v2695
          %s2697 = sld [smem:[#allocation4 + $0x8c]]
          %v2698 = vstv %s2697
          %v2699 = vmul.f32 %v235, %v2698
          %v2700 = vadd.f32 %v2696, %v2699
          %s2701 = sld [smem:[#allocation4 + $0x10c]]
          %v2702 = vstv %s2701
          %v2703 = vmul.f32 %v238, %v2702
          %v2704 = vadd.f32 %v2700, %v2703
          %s2705 = sld [smem:[#allocation4 + $0x18c]]
          %v2706 = vstv %s2705
          %v2707 = vmul.f32 %v232, %v2706
          %2709 = vrot.lane.b32.xlu0 %v2707, 127
          %v2710 = vpop.permute.xlu0 %2709
          %v2712 = vadd.f32 %v2704, %v2710
          %s2713 = sld [smem:[#allocation4 + $0x20c]]
          %v2714 = vstv %s2713
          %v2715 = vmul.f32 %v235, %v2714
          %2717 = vrot.lane.b32.xlu0 %v2715, 127
          %v2718 = vpop.permute.xlu0 %2717
          %v2720 = vadd.f32 %v2712, %v2718
          %s2721 = sld [smem:[#allocation4 + $0x28c]]
          %v2722 = vstv %s2721
          %v2723 = vmul.f32 %v238, %v2722
          %2725 = vrot.lane.b32.xlu0 %v2723, 127
          %v2726 = vpop.permute.xlu0 %2725
          %v2728 = vadd.f32 %v2720, %v2726
          %s2729 = sld [smem:[#allocation4 + $0x30c]]
          %v2730 = vstv %s2729
          %v2731 = vmul.f32 %v232, %v2730
          %2733 = vrot.lane.b32.xlu0 %v2731, 126
          %v2734 = vpop.permute.xlu0 %2733
          %v2736 = vadd.f32 %v2728, %v2734
          %s2737 = sld [smem:[#allocation4 + $0x38c]]
          %v2738 = vstv %s2737
          %v2739 = vmul.f32 %v235, %v2738
          %2741 = vrot.lane.b32.xlu0 %v2739, 126
          %v2742 = vpop.permute.xlu0 %2741
          %v2744 = vadd.f32 %v2736, %v2742
          %s2745 = sld [smem:[#allocation4 + $0x40c]]
          %v2746 = vstv %s2745
          %v2747 = vmul.f32 %v238, %v2746
          %2749 = vrot.lane.b32.xlu0 %v2747, 126
          %v2750 = vpop.permute.xlu0 %2749
          %v2752 = vadd.f32 %v2744, %v2750
          %s2753 = sld [smem:[#allocation4 + $0x48c]]
          %v2754 = vstv %s2753
          %v2755 = vmul.f32 %v241, %v2754
          %v2756 = vadd.f32 %v2752, %v2755
          %s2757 = sld [smem:[#allocation4 + $0x50c]]
          %v2758 = vstv %s2757
          %v2759 = vmul.f32 %v244, %v2758
          %v2760 = vadd.f32 %v2756, %v2759
          %s2761 = sld [smem:[#allocation4 + $0x58c]]
          %v2762 = vstv %s2761
          %v2763 = vmul.f32 %v247, %v2762
          %v2764 = vadd.f32 %v2760, %v2763
          %s2765 = sld [smem:[#allocation4 + $0x60c]]
          %v2766 = vstv %s2765
          %v2767 = vmul.f32 %v241, %v2766
          %2769 = vrot.lane.b32.xlu0 %v2767, 127
          %v2770 = vpop.permute.xlu0 %2769
          %v2772 = vadd.f32 %v2764, %v2770
          %s2773 = sld [smem:[#allocation4 + $0x68c]]
          %v2774 = vstv %s2773
          %v2775 = vmul.f32 %v244, %v2774
          %2777 = vrot.lane.b32.xlu0 %v2775, 127
          %v2778 = vpop.permute.xlu0 %2777
          %v2780 = vadd.f32 %v2772, %v2778
          %s2781 = sld [smem:[#allocation4 + $0x70c]]
          %v2782 = vstv %s2781
          %v2783 = vmul.f32 %v247, %v2782
          %2785 = vrot.lane.b32.xlu0 %v2783, 127
          %v2786 = vpop.permute.xlu0 %2785
          %v2788 = vadd.f32 %v2780, %v2786
          %s2789 = sld [smem:[#allocation4 + $0x78c]]
          %v2790 = vstv %s2789
          %v2791 = vmul.f32 %v241, %v2790
          %2793 = vrot.lane.b32.xlu0 %v2791, 126
          %v2794 = vpop.permute.xlu0 %2793
          %v2796 = vadd.f32 %v2788, %v2794
          %s2797 = sld [smem:[#allocation4 + $0x80c]]
          %v2798 = vstv %s2797
          %v2799 = vmul.f32 %v244, %v2798
          %2801 = vrot.lane.b32.xlu0 %v2799, 126
          %v2802 = vpop.permute.xlu0 %2801
          %v2804 = vadd.f32 %v2796, %v2802
          %s2805 = sld [smem:[#allocation4 + $0x88c]]
          %v2806 = vstv %s2805
          %v2807 = vmul.f32 %v247, %v2806
          %2809 = vrot.lane.b32.xlu0 %v2807, 126
          %v2810 = vpop.permute.xlu0 %2809
          %v2812 = vadd.f32 %v2804, %v2810
          %s2813 = sld [smem:[#allocation4 + $0x90c]]
          %v2814 = vstv %s2813
          %v2815 = vmul.f32 %v250, %v2814
          %v2816 = vadd.f32 %v2812, %v2815
          %s2817 = sld [smem:[#allocation4 + $0x98c]]
          %v2818 = vstv %s2817
          %v2819 = vmul.f32 %v253, %v2818
          %v2820 = vadd.f32 %v2816, %v2819
          %s2821 = sld [smem:[#allocation4 + $0xa0c]]
          %v2822 = vstv %s2821
          %v2823 = vmul.f32 %v256, %v2822
          %v2824 = vadd.f32 %v2820, %v2823
          %s2825 = sld [smem:[#allocation4 + $0xa8c]]
          %v2826 = vstv %s2825
          %v2827 = vmul.f32 %v250, %v2826
          %2829 = vrot.lane.b32.xlu0 %v2827, 127
          %v2830 = vpop.permute.xlu0 %2829
          %v2832 = vadd.f32 %v2824, %v2830
          %s2833 = sld [smem:[#allocation4 + $0xb0c]]
          %v2834 = vstv %s2833
          %v2835 = vmul.f32 %v253, %v2834
          %2837 = vrot.lane.b32.xlu0 %v2835, 127
          %v2838 = vpop.permute.xlu0 %2837
          %v2840 = vadd.f32 %v2832, %v2838
          %s2841 = sld [smem:[#allocation4 + $0xb8c]]
          %v2842 = vstv %s2841
          %v2843 = vmul.f32 %v256, %v2842
          %2845 = vrot.lane.b32.xlu0 %v2843, 127
          %v2846 = vpop.permute.xlu0 %2845
          %v2848 = vadd.f32 %v2840, %v2846
          %s2849 = sld [smem:[#allocation4 + $0xc0c]]
          %v2850 = vstv %s2849
          %v2851 = vmul.f32 %v250, %v2850
          %2853 = vrot.lane.b32.xlu0 %v2851, 126
          %v2854 = vpop.permute.xlu0 %2853
          %v2856 = vadd.f32 %v2848, %v2854
          %s2857 = sld [smem:[#allocation4 + $0xc8c]]
          %v2858 = vstv %s2857
          %v2859 = vmul.f32 %v253, %v2858
          %2861 = vrot.lane.b32.xlu0 %v2859, 126
          %v2862 = vpop.permute.xlu0 %2861
          %v2864 = vadd.f32 %v2856, %v2862
          %s2865 = sld [smem:[#allocation4 + $0xd0c]]
          %v2866 = vstv %s2865
          %v2867 = vmul.f32 %v256, %v2866
          %2869 = vrot.lane.b32.xlu0 %v2867, 126
          %v2870 = vpop.permute.xlu0 %2869
          %v2872 = vadd.f32 %v2864, %v2870
          %s2873 = sadd.s32 %s229, 384
          %s2874 = scalar_lea.vmem %s194, %s2873 [#allocation7]
          %2875 = vst.msk [vmem:[%s2874] sm:$0xff] %vm437, %v2872
          %v2876 = vld [vmem:[#allocation2 + $0xc] sm:$0x1]
          %v2877 = vsel %vm437, %v2872, 0.0
          %v2878 = vrot.slane %v2877, 4
          %v2879 = vadd.f32 %v2877, %v2878
          %v2880 = vrot.slane %v2879, 2
          %v2881 = vadd.f32 %v2879, %v2880
          %v2882 = vrot.slane %v2881, 1
          %v2883 = vadd.f32 %v2881, %v2882
          %v2884 = vadd.f32 %v2876, %v2883
          %2885 = vst.msk [vmem:[#allocation2 + $0xc] sm:$0x1] %vm448, %v2884
          %v2886 = vld [vmem:[#allocation3 + $0xc] sm:$0x1]
          %v2887 = vmul.f32 %v2872, %v2872
          %v2888 = vsel %vm437, %v2887, 0.0
          %v2889 = vrot.slane %v2888, 4
          %v2890 = vadd.f32 %v2888, %v2889
          %v2891 = vrot.slane %v2890, 2
          %v2892 = vadd.f32 %v2890, %v2891
          %v2893 = vrot.slane %v2892, 1
          %v2894 = vadd.f32 %v2892, %v2893
          %v2895 = vadd.f32 %v2886, %v2894
          %2896 = vst.msk [vmem:[#allocation3 + $0xc] sm:$0x1] %vm448, %v2895
          %s2897 = sld [smem:[#allocation4 + $0xd]]
          %v2898 = vstv %s2897
          %v2899 = vmul.f32 %v232, %v2898
          %s2900 = sld [smem:[#allocation4 + $0x8d]]
          %v2901 = vstv %s2900
          %v2902 = vmul.f32 %v235, %v2901
          %v2903 = vadd.f32 %v2899, %v2902
          %s2904 = sld [smem:[#allocation4 + $0x10d]]
          %v2905 = vstv %s2904
          %v2906 = vmul.f32 %v238, %v2905
          %v2907 = vadd.f32 %v2903, %v2906
          %s2908 = sld [smem:[#allocation4 + $0x18d]]
          %v2909 = vstv %s2908
          %v2910 = vmul.f32 %v232, %v2909
          %2912 = vrot.lane.b32.xlu0 %v2910, 127
          %v2913 = vpop.permute.xlu0 %2912
          %v2915 = vadd.f32 %v2907, %v2913
          %s2916 = sld [smem:[#allocation4 + $0x20d]]
          %v2917 = vstv %s2916
          %v2918 = vmul.f32 %v235, %v2917
          %2920 = vrot.lane.b32.xlu0 %v2918, 127
          %v2921 = vpop.permute.xlu0 %2920
          %v2923 = vadd.f32 %v2915, %v2921
          %s2924 = sld [smem:[#allocation4 + $0x28d]]
          %v2925 = vstv %s2924
          %v2926 = vmul.f32 %v238, %v2925
          %2928 = vrot.lane.b32.xlu0 %v2926, 127
          %v2929 = vpop.permute.xlu0 %2928
          %v2931 = vadd.f32 %v2923, %v2929
          %s2932 = sld [smem:[#allocation4 + $0x30d]]
          %v2933 = vstv %s2932
          %v2934 = vmul.f32 %v232, %v2933
          %2936 = vrot.lane.b32.xlu0 %v2934, 126
          %v2937 = vpop.permute.xlu0 %2936
          %v2939 = vadd.f32 %v2931, %v2937
          %s2940 = sld [smem:[#allocation4 + $0x38d]]
          %v2941 = vstv %s2940
          %v2942 = vmul.f32 %v235, %v2941
          %2944 = vrot.lane.b32.xlu0 %v2942, 126
          %v2945 = vpop.permute.xlu0 %2944
          %v2947 = vadd.f32 %v2939, %v2945
          %s2948 = sld [smem:[#allocation4 + $0x40d]]
          %v2949 = vstv %s2948
          %v2950 = vmul.f32 %v238, %v2949
          %2952 = vrot.lane.b32.xlu0 %v2950, 126
          %v2953 = vpop.permute.xlu0 %2952
          %v2955 = vadd.f32 %v2947, %v2953
          %s2956 = sld [smem:[#allocation4 + $0x48d]]
          %v2957 = vstv %s2956
          %v2958 = vmul.f32 %v241, %v2957
          %v2959 = vadd.f32 %v2955, %v2958
          %s2960 = sld [smem:[#allocation4 + $0x50d]]
          %v2961 = vstv %s2960
          %v2962 = vmul.f32 %v244, %v2961
          %v2963 = vadd.f32 %v2959, %v2962
          %s2964 = sld [smem:[#allocation4 + $0x58d]]
          %v2965 = vstv %s2964
          %v2966 = vmul.f32 %v247, %v2965
          %v2967 = vadd.f32 %v2963, %v2966
          %s2968 = sld [smem:[#allocation4 + $0x60d]]
          %v2969 = vstv %s2968
          %v2970 = vmul.f32 %v241, %v2969
          %2972 = vrot.lane.b32.xlu0 %v2970, 127
          %v2973 = vpop.permute.xlu0 %2972
          %v2975 = vadd.f32 %v2967, %v2973
          %s2976 = sld [smem:[#allocation4 + $0x68d]]
          %v2977 = vstv %s2976
          %v2978 = vmul.f32 %v244, %v2977
          %2980 = vrot.lane.b32.xlu0 %v2978, 127
          %v2981 = vpop.permute.xlu0 %2980
          %v2983 = vadd.f32 %v2975, %v2981
          %s2984 = sld [smem:[#allocation4 + $0x70d]]
          %v2985 = vstv %s2984
          %v2986 = vmul.f32 %v247, %v2985
          %2988 = vrot.lane.b32.xlu0 %v2986, 127
          %v2989 = vpop.permute.xlu0 %2988
          %v2991 = vadd.f32 %v2983, %v2989
          %s2992 = sld [smem:[#allocation4 + $0x78d]]
          %v2993 = vstv %s2992
          %v2994 = vmul.f32 %v241, %v2993
          %2996 = vrot.lane.b32.xlu0 %v2994, 126
          %v2997 = vpop.permute.xlu0 %2996
          %v2999 = vadd.f32 %v2991, %v2997
          %s3000 = sld [smem:[#allocation4 + $0x80d]]
          %v3001 = vstv %s3000
          %v3002 = vmul.f32 %v244, %v3001
          %3004 = vrot.lane.b32.xlu0 %v3002, 126
          %v3005 = vpop.permute.xlu0 %3004
          %v3007 = vadd.f32 %v2999, %v3005
          %s3008 = sld [smem:[#allocation4 + $0x88d]]
          %v3009 = vstv %s3008
          %v3010 = vmul.f32 %v247, %v3009
          %3012 = vrot.lane.b32.xlu0 %v3010, 126
          %v3013 = vpop.permute.xlu0 %3012
          %v3015 = vadd.f32 %v3007, %v3013
          %s3016 = sld [smem:[#allocation4 + $0x90d]]
          %v3017 = vstv %s3016
          %v3018 = vmul.f32 %v250, %v3017
          %v3019 = vadd.f32 %v3015, %v3018
          %s3020 = sld [smem:[#allocation4 + $0x98d]]
          %v3021 = vstv %s3020
          %v3022 = vmul.f32 %v253, %v3021
          %v3023 = vadd.f32 %v3019, %v3022
          %s3024 = sld [smem:[#allocation4 + $0xa0d]]
          %v3025 = vstv %s3024
          %v3026 = vmul.f32 %v256, %v3025
          %v3027 = vadd.f32 %v3023, %v3026
          %s3028 = sld [smem:[#allocation4 + $0xa8d]]
          %v3029 = vstv %s3028
          %v3030 = vmul.f32 %v250, %v3029
          %3032 = vrot.lane.b32.xlu0 %v3030, 127
          %v3033 = vpop.permute.xlu0 %3032
          %v3035 = vadd.f32 %v3027, %v3033
          %s3036 = sld [smem:[#allocation4 + $0xb0d]]
          %v3037 = vstv %s3036
          %v3038 = vmul.f32 %v253, %v3037
          %3040 = vrot.lane.b32.xlu0 %v3038, 127
          %v3041 = vpop.permute.xlu0 %3040
          %v3043 = vadd.f32 %v3035, %v3041
          %s3044 = sld [smem:[#allocation4 + $0xb8d]]
          %v3045 = vstv %s3044
          %v3046 = vmul.f32 %v256, %v3045
          %3048 = vrot.lane.b32.xlu0 %v3046, 127
          %v3049 = vpop.permute.xlu0 %3048
          %v3051 = vadd.f32 %v3043, %v3049
          %s3052 = sld [smem:[#allocation4 + $0xc0d]]
          %v3053 = vstv %s3052
          %v3054 = vmul.f32 %v250, %v3053
          %3056 = vrot.lane.b32.xlu0 %v3054, 126
          %v3057 = vpop.permute.xlu0 %3056
          %v3059 = vadd.f32 %v3051, %v3057
          %s3060 = sld [smem:[#allocation4 + $0xc8d]]
          %v3061 = vstv %s3060
          %v3062 = vmul.f32 %v253, %v3061
          %3064 = vrot.lane.b32.xlu0 %v3062, 126
          %v3065 = vpop.permute.xlu0 %3064
          %v3067 = vadd.f32 %v3059, %v3065
          %s3068 = sld [smem:[#allocation4 + $0xd0d]]
          %v3069 = vstv %s3068
          %v3070 = vmul.f32 %v256, %v3069
          %3072 = vrot.lane.b32.xlu0 %v3070, 126
          %v3073 = vpop.permute.xlu0 %3072
          %v3075 = vadd.f32 %v3067, %v3073
          %s3076 = sadd.s32 %s229, 416
          %s3077 = scalar_lea.vmem %s194, %s3076 [#allocation7]
          %3078 = vst.msk [vmem:[%s3077] sm:$0xff] %vm437, %v3075
          %v3079 = vld [vmem:[#allocation2 + $0xd] sm:$0x1]
          %v3080 = vsel %vm437, %v3075, 0.0
          %v3081 = vrot.slane %v3080, 4
          %v3082 = vadd.f32 %v3080, %v3081
          %v3083 = vrot.slane %v3082, 2
          %v3084 = vadd.f32 %v3082, %v3083
          %v3085 = vrot.slane %v3084, 1
          %v3086 = vadd.f32 %v3084, %v3085
          %v3087 = vadd.f32 %v3079, %v3086
          %3088 = vst.msk [vmem:[#allocation2 + $0xd] sm:$0x1] %vm448, %v3087
          %v3089 = vld [vmem:[#allocation3 + $0xd] sm:$0x1]
          %v3090 = vmul.f32 %v3075, %v3075
          %v3091 = vsel %vm437, %v3090, 0.0
          %v3092 = vrot.slane %v3091, 4
          %v3093 = vadd.f32 %v3091, %v3092
          %v3094 = vrot.slane %v3093, 2
          %v3095 = vadd.f32 %v3093, %v3094
          %v3096 = vrot.slane %v3095, 1
          %v3097 = vadd.f32 %v3095, %v3096
          %v3098 = vadd.f32 %v3089, %v3097
          %3099 = vst.msk [vmem:[#allocation3 + $0xd] sm:$0x1] %vm448, %v3098
          %s3100 = sld [smem:[#allocation4 + $0xe]]
          %v3101 = vstv %s3100
          %v3102 = vmul.f32 %v232, %v3101
          %s3103 = sld [smem:[#allocation4 + $0x8e]]
          %v3104 = vstv %s3103
          %v3105 = vmul.f32 %v235, %v3104
          %v3106 = vadd.f32 %v3102, %v3105
          %s3107 = sld [smem:[#allocation4 + $0x10e]]
          %v3108 = vstv %s3107
          %v3109 = vmul.f32 %v238, %v3108
          %v3110 = vadd.f32 %v3106, %v3109
          %s3111 = sld [smem:[#allocation4 + $0x18e]]
          %v3112 = vstv %s3111
          %v3113 = vmul.f32 %v232, %v3112
          %3115 = vrot.lane.b32.xlu0 %v3113, 127
          %v3116 = vpop.permute.xlu0 %3115
          %v3118 = vadd.f32 %v3110, %v3116
          %s3119 = sld [smem:[#allocation4 + $0x20e]]
          %v3120 = vstv %s3119
          %v3121 = vmul.f32 %v235, %v3120
          %3123 = vrot.lane.b32.xlu0 %v3121, 127
          %v3124 = vpop.permute.xlu0 %3123
          %v3126 = vadd.f32 %v3118, %v3124
          %s3127 = sld [smem:[#allocation4 + $0x28e]]
          %v3128 = vstv %s3127
          %v3129 = vmul.f32 %v238, %v3128
          %3131 = vrot.lane.b32.xlu0 %v3129, 127
          %v3132 = vpop.permute.xlu0 %3131
          %v3134 = vadd.f32 %v3126, %v3132
          %s3135 = sld [smem:[#allocation4 + $0x30e]]
          %v3136 = vstv %s3135
          %v3137 = vmul.f32 %v232, %v3136
          %3139 = vrot.lane.b32.xlu0 %v3137, 126
          %v3140 = vpop.permute.xlu0 %3139
          %v3142 = vadd.f32 %v3134, %v3140
          %s3143 = sld [smem:[#allocation4 + $0x38e]]
          %v3144 = vstv %s3143
          %v3145 = vmul.f32 %v235, %v3144
          %3147 = vrot.lane.b32.xlu0 %v3145, 126
          %v3148 = vpop.permute.xlu0 %3147
          %v3150 = vadd.f32 %v3142, %v3148
          %s3151 = sld [smem:[#allocation4 + $0x40e]]
          %v3152 = vstv %s3151
          %v3153 = vmul.f32 %v238, %v3152
          %3155 = vrot.lane.b32.xlu0 %v3153, 126
          %v3156 = vpop.permute.xlu0 %3155
          %v3158 = vadd.f32 %v3150, %v3156
          %s3159 = sld [smem:[#allocation4 + $0x48e]]
          %v3160 = vstv %s3159
          %v3161 = vmul.f32 %v241, %v3160
          %v3162 = vadd.f32 %v3158, %v3161
          %s3163 = sld [smem:[#allocation4 + $0x50e]]
          %v3164 = vstv %s3163
          %v3165 = vmul.f32 %v244, %v3164
          %v3166 = vadd.f32 %v3162, %v3165
          %s3167 = sld [smem:[#allocation4 + $0x58e]]
          %v3168 = vstv %s3167
          %v3169 = vmul.f32 %v247, %v3168
          %v3170 = vadd.f32 %v3166, %v3169
          %s3171 = sld [smem:[#allocation4 + $0x60e]]
          %v3172 = vstv %s3171
          %v3173 = vmul.f32 %v241, %v3172
          %3175 = vrot.lane.b32.xlu0 %v3173, 127
          %v3176 = vpop.permute.xlu0 %3175
          %v3178 = vadd.f32 %v3170, %v3176
          %s3179 = sld [smem:[#allocation4 + $0x68e]]
          %v3180 = vstv %s3179
          %v3181 = vmul.f32 %v244, %v3180
          %3183 = vrot.lane.b32.xlu0 %v3181, 127
          %v3184 = vpop.permute.xlu0 %3183
          %v3186 = vadd.f32 %v3178, %v3184
          %s3187 = sld [smem:[#allocation4 + $0x70e]]
          %v3188 = vstv %s3187
          %v3189 = vmul.f32 %v247, %v3188
          %3191 = vrot.lane.b32.xlu0 %v3189, 127
          %v3192 = vpop.permute.xlu0 %3191
          %v3194 = vadd.f32 %v3186, %v3192
          %s3195 = sld [smem:[#allocation4 + $0x78e]]
          %v3196 = vstv %s3195
          %v3197 = vmul.f32 %v241, %v3196
          %3199 = vrot.lane.b32.xlu0 %v3197, 126
          %v3200 = vpop.permute.xlu0 %3199
          %v3202 = vadd.f32 %v3194, %v3200
          %s3203 = sld [smem:[#allocation4 + $0x80e]]
          %v3204 = vstv %s3203
          %v3205 = vmul.f32 %v244, %v3204
          %3207 = vrot.lane.b32.xlu0 %v3205, 126
          %v3208 = vpop.permute.xlu0 %3207
          %v3210 = vadd.f32 %v3202, %v3208
          %s3211 = sld [smem:[#allocation4 + $0x88e]]
          %v3212 = vstv %s3211
          %v3213 = vmul.f32 %v247, %v3212
          %3215 = vrot.lane.b32.xlu0 %v3213, 126
          %v3216 = vpop.permute.xlu0 %3215
          %v3218 = vadd.f32 %v3210, %v3216
          %s3219 = sld [smem:[#allocation4 + $0x90e]]
          %v3220 = vstv %s3219
          %v3221 = vmul.f32 %v250, %v3220
          %v3222 = vadd.f32 %v3218, %v3221
          %s3223 = sld [smem:[#allocation4 + $0x98e]]
          %v3224 = vstv %s3223
          %v3225 = vmul.f32 %v253, %v3224
          %v3226 = vadd.f32 %v3222, %v3225
          %s3227 = sld [smem:[#allocation4 + $0xa0e]]
          %v3228 = vstv %s3227
          %v3229 = vmul.f32 %v256, %v3228
          %v3230 = vadd.f32 %v3226, %v3229
          %s3231 = sld [smem:[#allocation4 + $0xa8e]]
          %v3232 = vstv %s3231
          %v3233 = vmul.f32 %v250, %v3232
          %3235 = vrot.lane.b32.xlu0 %v3233, 127
          %v3236 = vpop.permute.xlu0 %3235
          %v3238 = vadd.f32 %v3230, %v3236
          %s3239 = sld [smem:[#allocation4 + $0xb0e]]
          %v3240 = vstv %s3239
          %v3241 = vmul.f32 %v253, %v3240
          %3243 = vrot.lane.b32.xlu0 %v3241, 127
          %v3244 = vpop.permute.xlu0 %3243
          %v3246 = vadd.f32 %v3238, %v3244
          %s3247 = sld [smem:[#allocation4 + $0xb8e]]
          %v3248 = vstv %s3247
          %v3249 = vmul.f32 %v256, %v3248
          %3251 = vrot.lane.b32.xlu0 %v3249, 127
          %v3252 = vpop.permute.xlu0 %3251
          %v3254 = vadd.f32 %v3246, %v3252
          %s3255 = sld [smem:[#allocation4 + $0xc0e]]
          %v3256 = vstv %s3255
          %v3257 = vmul.f32 %v250, %v3256
          %3259 = vrot.lane.b32.xlu0 %v3257, 126
          %v3260 = vpop.permute.xlu0 %3259
          %v3262 = vadd.f32 %v3254, %v3260
          %s3263 = sld [smem:[#allocation4 + $0xc8e]]
          %v3264 = vstv %s3263
          %v3265 = vmul.f32 %v253, %v3264
          %3267 = vrot.lane.b32.xlu0 %v3265, 126
          %v3268 = vpop.permute.xlu0 %3267
          %v3270 = vadd.f32 %v3262, %v3268
          %s3271 = sld [smem:[#allocation4 + $0xd0e]]
          %v3272 = vstv %s3271
          %v3273 = vmul.f32 %v256, %v3272
          %3275 = vrot.lane.b32.xlu0 %v3273, 126
          %v3276 = vpop.permute.xlu0 %3275
          %v3278 = vadd.f32 %v3270, %v3276
          %s3279 = sadd.s32 %s229, 448
          %s3280 = scalar_lea.vmem %s194, %s3279 [#allocation7]
          %3281 = vst.msk [vmem:[%s3280] sm:$0xff] %vm437, %v3278
          %v3282 = vld [vmem:[#allocation2 + $0xe] sm:$0x1]
          %v3283 = vsel %vm437, %v3278, 0.0
          %v3284 = vrot.slane %v3283, 4
          %v3285 = vadd.f32 %v3283, %v3284
          %v3286 = vrot.slane %v3285, 2
          %v3287 = vadd.f32 %v3285, %v3286
          %v3288 = vrot.slane %v3287, 1
          %v3289 = vadd.f32 %v3287, %v3288
          %v3290 = vadd.f32 %v3282, %v3289
          %3291 = vst.msk [vmem:[#allocation2 + $0xe] sm:$0x1] %vm448, %v3290
          %v3292 = vld [vmem:[#allocation3 + $0xe] sm:$0x1]
          %v3293 = vmul.f32 %v3278, %v3278
          %v3294 = vsel %vm437, %v3293, 0.0
          %v3295 = vrot.slane %v3294, 4
          %v3296 = vadd.f32 %v3294, %v3295
          %v3297 = vrot.slane %v3296, 2
          %v3298 = vadd.f32 %v3296, %v3297
          %v3299 = vrot.slane %v3298, 1
          %v3300 = vadd.f32 %v3298, %v3299
          %v3301 = vadd.f32 %v3292, %v3300
          %3302 = vst.msk [vmem:[#allocation3 + $0xe] sm:$0x1] %vm448, %v3301
          %s3303 = sld [smem:[#allocation4 + $0xf]]
          %v3304 = vstv %s3303
          %v3305 = vmul.f32 %v232, %v3304
          %s3306 = sld [smem:[#allocation4 + $0x8f]]
          %v3307 = vstv %s3306
          %v3308 = vmul.f32 %v235, %v3307
          %v3309 = vadd.f32 %v3305, %v3308
          %s3310 = sld [smem:[#allocation4 + $0x10f]]
          %v3311 = vstv %s3310
          %v3312 = vmul.f32 %v238, %v3311
          %v3313 = vadd.f32 %v3309, %v3312
          %s3314 = sld [smem:[#allocation4 + $0x18f]]
          %v3315 = vstv %s3314
          %v3316 = vmul.f32 %v232, %v3315
          %3318 = vrot.lane.b32.xlu0 %v3316, 127
          %v3319 = vpop.permute.xlu0 %3318
          %v3321 = vadd.f32 %v3313, %v3319
          %s3322 = sld [smem:[#allocation4 + $0x20f]]
          %v3323 = vstv %s3322
          %v3324 = vmul.f32 %v235, %v3323
          %3326 = vrot.lane.b32.xlu0 %v3324, 127
          %v3327 = vpop.permute.xlu0 %3326
          %v3329 = vadd.f32 %v3321, %v3327
          %s3330 = sld [smem:[#allocation4 + $0x28f]]
          %v3331 = vstv %s3330
          %v3332 = vmul.f32 %v238, %v3331
          %3334 = vrot.lane.b32.xlu0 %v3332, 127
          %v3335 = vpop.permute.xlu0 %3334
          %v3337 = vadd.f32 %v3329, %v3335
          %s3338 = sld [smem:[#allocation4 + $0x30f]]
          %v3339 = vstv %s3338
          %v3340 = vmul.f32 %v232, %v3339
          %3342 = vrot.lane.b32.xlu0 %v3340, 126
          %v3343 = vpop.permute.xlu0 %3342
          %v3345 = vadd.f32 %v3337, %v3343
          %s3346 = sld [smem:[#allocation4 + $0x38f]]
          %v3347 = vstv %s3346
          %v3348 = vmul.f32 %v235, %v3347
          %3350 = vrot.lane.b32.xlu0 %v3348, 126
          %v3351 = vpop.permute.xlu0 %3350
          %v3353 = vadd.f32 %v3345, %v3351
          %s3354 = sld [smem:[#allocation4 + $0x40f]]
          %v3355 = vstv %s3354
          %v3356 = vmul.f32 %v238, %v3355
          %3358 = vrot.lane.b32.xlu0 %v3356, 126
          %v3359 = vpop.permute.xlu0 %3358
          %v3361 = vadd.f32 %v3353, %v3359
          %s3362 = sld [smem:[#allocation4 + $0x48f]]
          %v3363 = vstv %s3362
          %v3364 = vmul.f32 %v241, %v3363
          %v3365 = vadd.f32 %v3361, %v3364
          %s3366 = sld [smem:[#allocation4 + $0x50f]]
          %v3367 = vstv %s3366
          %v3368 = vmul.f32 %v244, %v3367
          %v3369 = vadd.f32 %v3365, %v3368
          %s3370 = sld [smem:[#allocation4 + $0x58f]]
          %v3371 = vstv %s3370
          %v3372 = vmul.f32 %v247, %v3371
          %v3373 = vadd.f32 %v3369, %v3372
          %s3374 = sld [smem:[#allocation4 + $0x60f]]
          %v3375 = vstv %s3374
          %v3376 = vmul.f32 %v241, %v3375
          %3378 = vrot.lane.b32.xlu0 %v3376, 127
          %v3379 = vpop.permute.xlu0 %3378
          %v3381 = vadd.f32 %v3373, %v3379
          %s3382 = sld [smem:[#allocation4 + $0x68f]]
          %v3383 = vstv %s3382
          %v3384 = vmul.f32 %v244, %v3383
          %3386 = vrot.lane.b32.xlu0 %v3384, 127
          %v3387 = vpop.permute.xlu0 %3386
          %v3389 = vadd.f32 %v3381, %v3387
          %s3390 = sld [smem:[#allocation4 + $0x70f]]
          %v3391 = vstv %s3390
          %v3392 = vmul.f32 %v247, %v3391
          %3394 = vrot.lane.b32.xlu0 %v3392, 127
          %v3395 = vpop.permute.xlu0 %3394
          %v3397 = vadd.f32 %v3389, %v3395
          %s3398 = sld [smem:[#allocation4 + $0x78f]]
          %v3399 = vstv %s3398
          %v3400 = vmul.f32 %v241, %v3399
          %3402 = vrot.lane.b32.xlu0 %v3400, 126
          %v3403 = vpop.permute.xlu0 %3402
          %v3405 = vadd.f32 %v3397, %v3403
          %s3406 = sld [smem:[#allocation4 + $0x80f]]
          %v3407 = vstv %s3406
          %v3408 = vmul.f32 %v244, %v3407
          %3410 = vrot.lane.b32.xlu0 %v3408, 126
          %v3411 = vpop.permute.xlu0 %3410
          %v3413 = vadd.f32 %v3405, %v3411
          %s3414 = sld [smem:[#allocation4 + $0x88f]]
          %v3415 = vstv %s3414
          %v3416 = vmul.f32 %v247, %v3415
          %3418 = vrot.lane.b32.xlu0 %v3416, 126
          %v3419 = vpop.permute.xlu0 %3418
          %v3421 = vadd.f32 %v3413, %v3419
          %s3422 = sld [smem:[#allocation4 + $0x90f]]
          %v3423 = vstv %s3422
          %v3424 = vmul.f32 %v250, %v3423
          %v3425 = vadd.f32 %v3421, %v3424
          %s3426 = sld [smem:[#allocation4 + $0x98f]]
          %v3427 = vstv %s3426
          %v3428 = vmul.f32 %v253, %v3427
          %v3429 = vadd.f32 %v3425, %v3428
          %s3430 = sld [smem:[#allocation4 + $0xa0f]]
          %v3431 = vstv %s3430
          %v3432 = vmul.f32 %v256, %v3431
          %v3433 = vadd.f32 %v3429, %v3432
          %s3434 = sld [smem:[#allocation4 + $0xa8f]]
          %v3435 = vstv %s3434
          %v3436 = vmul.f32 %v250, %v3435
          %3438 = vrot.lane.b32.xlu0 %v3436, 127
          %v3439 = vpop.permute.xlu0 %3438
          %v3441 = vadd.f32 %v3433, %v3439
          %s3442 = sld [smem:[#allocation4 + $0xb0f]]
          %v3443 = vstv %s3442
          %v3444 = vmul.f32 %v253, %v3443
          %3446 = vrot.lane.b32.xlu0 %v3444, 127
          %v3447 = vpop.permute.xlu0 %3446
          %v3449 = vadd.f32 %v3441, %v3447
          %s3450 = sld [smem:[#allocation4 + $0xb8f]]
          %v3451 = vstv %s3450
          %v3452 = vmul.f32 %v256, %v3451
          %3454 = vrot.lane.b32.xlu0 %v3452, 127
          %v3455 = vpop.permute.xlu0 %3454
          %v3457 = vadd.f32 %v3449, %v3455
          %s3458 = sld [smem:[#allocation4 + $0xc0f]]
          %v3459 = vstv %s3458
          %v3460 = vmul.f32 %v250, %v3459
          %3462 = vrot.lane.b32.xlu0 %v3460, 126
          %v3463 = vpop.permute.xlu0 %3462
          %v3465 = vadd.f32 %v3457, %v3463
          %s3466 = sld [smem:[#allocation4 + $0xc8f]]
          %v3467 = vstv %s3466
          %v3468 = vmul.f32 %v253, %v3467
          %3470 = vrot.lane.b32.xlu0 %v3468, 126
          %v3471 = vpop.permute.xlu0 %3470
          %v3473 = vadd.f32 %v3465, %v3471
          %s3474 = sld [smem:[#allocation4 + $0xd0f]]
          %v3475 = vstv %s3474
          %v3476 = vmul.f32 %v256, %v3475
          %3478 = vrot.lane.b32.xlu0 %v3476, 126
          %v3479 = vpop.permute.xlu0 %3478
          %v3481 = vadd.f32 %v3473, %v3479
          %s3482 = sadd.s32 %s229, 480
          %s3483 = scalar_lea.vmem %s194, %s3482 [#allocation7]
          %3484 = vst.msk [vmem:[%s3483] sm:$0xff] %vm437, %v3481
          %v3485 = vld [vmem:[#allocation2 + $0xf] sm:$0x1]
          %v3486 = vsel %vm437, %v3481, 0.0
          %v3487 = vrot.slane %v3486, 4
          %v3488 = vadd.f32 %v3486, %v3487
          %v3489 = vrot.slane %v3488, 2
          %v3490 = vadd.f32 %v3488, %v3489
          %v3491 = vrot.slane %v3490, 1
          %v3492 = vadd.f32 %v3490, %v3491
          %v3493 = vadd.f32 %v3485, %v3492
          %3494 = vst.msk [vmem:[#allocation2 + $0xf] sm:$0x1] %vm448, %v3493
          %v3495 = vld [vmem:[#allocation3 + $0xf] sm:$0x1]
          %v3496 = vmul.f32 %v3481, %v3481
          %v3497 = vsel %vm437, %v3496, 0.0
          %v3498 = vrot.slane %v3497, 4
          %v3499 = vadd.f32 %v3497, %v3498
          %v3500 = vrot.slane %v3499, 2
          %v3501 = vadd.f32 %v3499, %v3500
          %v3502 = vrot.slane %v3501, 1
          %v3503 = vadd.f32 %v3501, %v3502
          %v3504 = vadd.f32 %v3495, %v3503
          %3505 = vst.msk [vmem:[#allocation3 + $0xf] sm:$0x1] %vm448, %v3504
        $region41: #{tpu_custom_call.1} parent=27 // loop_footer
          %s228 = sadd.s32 1, %s224
        $region42: #{tpu_custom_call.1} parent=27 // loop_footer_branch
          %223 = sbr.rel target = $region38
        $region43: #{tpu_custom_call.1} parent=27 // loop_exit
          _
        // Predicated region
        $region44: #{tpu_custom_call.1} parent=27 // pred_check
          %p3506 = pneg %p213
        $region45: #{tpu_custom_call.1} parent=27 // pred_check_branch
          %3508 = sbr.rel (%p3506) target = $region47
        $region46: #{tpu_custom_call.1} parent=27 // pred_region
          %v3509 = vld [vmem:[#allocation2] sm:$0xff]
          %v3510 = vld [vmem:[#allocation2 + $0x8] sm:$0xff]
          %vm3511 = vcmask 261120
          %v3512 = vsel %vm3511, %v3509, 0.0
          %3513 = vadd.xlane.f32.xlu0 %v3512
          %v3514 = vpop.xlane.xlu0 %3513
          %v3515 = vsel %vm3511, %v3510, 0.0
          %3516 = vadd.xlane.f32.xlu0 %v3515
          %v3517 = vpop.xlane.xlu0 %3516
          %vm3518 = vcmask 7168
          %3519 = vst.msk [vmem:[%s212] sm:$0xff] %vm3518, %v3514
          %3520 = vst.msk [vmem:[%s212 + $0x8] sm:$0xff] %vm3518, %v3517
          %v3521 = vld [vmem:[#allocation3] sm:$0xff]
          %v3522 = vld [vmem:[#allocation3 + $0x8] sm:$0xff]
          %v3523 = vsel %vm3511, %v3521, 0.0
          %3524 = vadd.xlane.f32.xlu0 %v3523
          %v3525 = vpop.xlane.xlu0 %3524
          %v3526 = vsel %vm3511, %v3522, 0.0
          %3527 = vadd.xlane.f32.xlu0 %v3526
          %v3528 = vpop.xlane.xlu0 %3527
          %vm3529 = vcmask 15368
          %3530 = vst.msk [vmem:[%s212] sm:$0xff] %vm3529, %v3525
          %3531 = vst.msk [vmem:[%s212 + $0x8] sm:$0xff] %vm3529, %v3528
        $region47: #{tpu_custom_call.1} parent=27 // pred_fallthru
          _
        %s3532 = sand.u32 %s88, 1
        %s3533 = scalar_lea.sflag [#allocation5], %s3532
        %s3534 = sand.u32 %s88, 1
        %s3535 = smul.addr %s3534, 512
        %s3536 = scalar_lea.vmem [#allocation7], %s3535
        %p3537 = scmp.lt.s32.totalorder %s23, 1
        %s3538 = scalar_select %p3537, %s23, 1
        %s3539 = smul.addr %s3538, 2
        %s3540 = smul.addr %s3539, 8
        %s3541 = scalar_lea.vmem %s3, %s3540
        // Predicated region
        $region48: #{tpu_custom_call.1} parent=27 // pred_check
          %p3542 = pneg %p98
        $region49: #{tpu_custom_call.1} parent=27 // pred_check_branch
          %3544 = sbr.rel (%p3542) target = $region51
        $region50: #{tpu_custom_call.1} parent=27 // pred_region
          %s3545 = smul.u32 4, %s24
          %3547 = vsyncadd %s3533, 0
          %s3548 = smul.addr %s23, 64
          %s3549 = sadd.s32 %s3545, %s3548
          %s3550 = smul.addr %s3549, 8
          %s3551 = scalar_lea.hbm %s2, %s3550
          %s3552 = sshll.u32 %s3536, 4
          %s3553 = int_to_ptr.vmem [resolvable:$true] %s3552
          %s3554 = sshll.u32 %s3551, 4
          %s3555 = int_to_ptr.hbm [resolvable:$true] %s3554
          %3560 = dma.vmem_to_hbm [thread:$0]  %s3553, 8192, %s3555, %s3533, 128, 128, 8
        $region51: #{tpu_custom_call.1} parent=27 // pred_fallthru
          _
        // Predicated region
        $region52: #{tpu_custom_call.1} parent=27 // pred_check
          %p3561 = pneg %p124
        $region53: #{tpu_custom_call.1} parent=27 // pred_check_branch
          %3563 = sbr.rel (%p3561) target = $region55
        $region54: #{tpu_custom_call.1} parent=27 // pred_region
          _
        $region55: #{tpu_custom_call.1} parent=27 // pred_fallthru
          _
      $region28: #{tpu_custom_call.1} parent=5 // pred_fallthru
        _
      %p3564 = scmp.le.s32.totalorder 2, %s14
      // Predicated region
      $region56: #{tpu_custom_call.1} parent=5 // pred_check
        %p3565 = pneg %p3564
      $region57: #{tpu_custom_call.1} parent=5 // pred_check_branch
        %3567 = sbr.rel (%p3565) target = $region59
      $region58: #{tpu_custom_call.1} parent=5 // pred_region
        %s3568 = ssub.s32 %s14, 2
        // Predicated region
        $region60: #{tpu_custom_call.1} parent=58 // pred_check
          %p3569 = pneg %p104
        $region61: #{tpu_custom_call.1} parent=58 // pred_check_branch
          %3571 = sbr.rel (%p3569) target = $region63
        $region62: #{tpu_custom_call.1} parent=58 // pred_region
          %s3572 = sand.u32 %s89, 1
          %s3573 = scalar_lea.sflag [#allocation5], %s3572
          %s3574 = sand.u32 %s89, 1
          %s3575 = smul.addr %s3574, 512
          %s3576 = scalar_lea.vmem [#allocation7], %s3575
          %3578 = dma.done %s3573, 8192
        $region63: #{tpu_custom_call.1} parent=58 // pred_fallthru
          _
        // Predicated region
        $region64: #{tpu_custom_call.1} parent=58 // pred_check
          %p3579 = pneg %p130
        $region65: #{tpu_custom_call.1} parent=58 // pred_check_branch
          %3581 = sbr.rel (%p3579) target = $region67
        $region66: #{tpu_custom_call.1} parent=58 // pred_region
          %p3582 = scmp.lt.s32.totalorder %s25, 1
          %s3583 = scalar_select %p3582, %s25, 1
          %s3584 = smul.addr %s3583, 2
          %s3585 = smul.addr %s3584, 8
          %s3586 = scalar_lea.vmem %s3, %s3585
        $region67: #{tpu_custom_call.1} parent=58 // pred_fallthru
          _
      $region59: #{tpu_custom_call.1} parent=5 // pred_fallthru
        _
    $region6: #{tpu_custom_call.1} parent=1 // loop_footer
      %s18 = sadd.s32 1, %s14
    $region7: #{tpu_custom_call.1} parent=1 // loop_footer_branch
      %13 = sbr.rel target = $region3
    $region8: #{tpu_custom_call.1} parent=1 // loop_exit
      _
    %3587 = vsyncpa [#allocation5], 1
    %s3588 = scalar_lea.sflag [#allocation5], 1
    %3589 = vsyncpa %s3588, 1
    %3590 = vsyncpa [#allocation6], 1
    %s3591 = scalar_lea.sflag [#allocation6], 1
    %3592 = vsyncpa %s3591, 1

</llo_original>
